<compile_context>
chip_gen: v5e
topology: v5e:2x2
jax: 0.10.0
libtpu: 0.0.40
codegen_flags: <defaults>
</compile_context>

<pallas_src>
import functools

import jax
import jax.numpy as jnp
from jax import lax
from jax.experimental import pallas as pl
from jax.experimental.pallas import tpu as pltpu
import numpy as np

N_EMBD = 384
N_HEAD = 6
HEAD_SIZE = N_EMBD // N_HEAD   # 64
LN_EPS = 1e-5


def _layernorm(x, gamma, beta):
    # x: (M, C) f32; gamma/beta: (1, C) f32
    mu = jnp.mean(x, axis=-1, keepdims=True)
    var = jnp.mean((x - mu) ** 2, axis=-1, keepdims=True)
    return (x - mu) * lax.rsqrt(var + LN_EPS) * gamma + beta


def block_kernel(x_ref,
                 ln1_g_ref, ln1_b_ref,
                 wqkv_ref, wo_ref, bo_ref,
                 ln2_g_ref, ln2_b_ref,
                 w1_ref, b1_ref, w2_ref, b2_ref,
                 out_ref, cat_ref, *, seq_len, packed_seqs):
    # One grid step processes M = packed_seqs * seq_len rows (whole sequences only).
    x = x_ref[...]                       # (M, C) f32
    M, C = x.shape
    T = seq_len

    # ---- ln1 + fused QKV projection (bf16 operands, f32 accumulate) ----
    xn = _layernorm(x, ln1_g_ref[...], ln1_b_ref[...])
    qkv = jnp.dot(xn.astype(jnp.bfloat16), wqkv_ref[...],
                  preferred_element_type=jnp.float32)          # (M, 3C) f32

    scale = HEAD_SIZE ** -0.5
    # Full-width casts (lane-tile aligned at 384-column offsets); scale folded into q once.
    q = (qkv[:, :C] * scale).astype(jnp.bfloat16)              # (M, C) bf16
    k = qkv[:, C:2 * C].astype(jnp.bfloat16)
    v = qkv[:, 2 * C:].astype(jnp.bfloat16)

    # Hoisted causal mask: a single (T, T) additive f32 bias shared by every
    # (sequence, head) tile.
    row = lax.broadcasted_iota(jnp.int32, (T, T), 0)
    col = lax.broadcasted_iota(jnp.int32, (T, T), 1)
    bias = jnp.where(row >= col, jnp.float32(0.0), jnp.float32(-1e30))   # (T, T) f32

    # ---- per-sequence, per-head attention (no cross-sequence waste, no concat) ----
    for s in range(packed_seqs):                       # static unroll over packed seqs
        r0, r1 = s * T, (s + 1) * T
        for h in range(N_HEAD):                        # static unroll over 6 heads
            c0, c1 = h * HEAD_SIZE, (h + 1) * HEAD_SIZE
            qh = q[r0:r1, c0:c1]                       # (T, 64) bf16
            kh = k[r0:r1, c0:c1]
            vh = v[r0:r1, c0:c1]
            # q @ k^T without materializing the transpose (NT matmul).
            wei = lax.dot_general(qh, kh, (((1,), (1,)), ((), ())),
                                  preferred_element_type=jnp.float32)    # (T, T) f32
            wei = wei + bias
            wei = wei - jnp.max(wei, axis=-1, keepdims=True)
            e = jnp.exp(wei)
            p = e * pl.reciprocal(jnp.sum(e, axis=-1, keepdims=True), approx=True)
            pv = jnp.dot(p.astype(jnp.bfloat16), vh,
                         preferred_element_type=jnp.float32)             # (T, 64) f32
            cat_ref[r0:r1, c0:c1] = pv                 # scatter into (M, C) scratch

    cat = cat_ref[...].astype(jnp.bfloat16)            # one full-width cast, (M, C)
    sa = jnp.dot(cat, wo_ref[...], preferred_element_type=jnp.float32) + bo_ref[...]
    x1 = x + sa

    # ---- ln2 + feed-forward (single wide matmuls, ReLU fused) ----
    x1n = _layernorm(x1, ln2_g_ref[...], ln2_b_ref[...]).astype(jnp.bfloat16)
    hid = jnp.dot(x1n, w1_ref[...],
                  preferred_element_type=jnp.float32) + b1_ref[...]      # (M, 4C) f32
    hid = jnp.maximum(hid, 0.0).astype(jnp.bfloat16)
    ffn = jnp.dot(hid, w2_ref[...], preferred_element_type=jnp.float32)  # (M, C) f32

    out_ref[...] = x1 + ffn + b2_ref[...]


def _pick_packing(B, T, row_cap=512):
    """Pack whole sequences into one grid step; keep >=2 grid steps when B >= 2."""
    bb = 1
    for cand in range(1, B + 1):
        if B % cand != 0:
            continue
        if cand * T > max(T, row_cap):
            continue
        if cand > 1 and B // cand < 2:
            continue                      # keep both v7x TensorCores busy
        bb = cand
    if (bb * T) % 8 != 0 and bb != B:
        bb = B                            # full-extent block avoids (8,128) divisibility
    return bb


def block_forward(x, params):
    B, T, C = x.shape
    assert C == N_EMBD

    bb = _pick_packing(B, T)
    m_blk = bb * T

    # Flat row-major activations -> lane-dense (M, C) blocks, no in-kernel 3-D reshapes.
    x2 = x.reshape(B * T, C)

    weight_args = (
        params["ln1_g"], params["ln1_b"],
        params["wqkv"], params["wo"], params["bo"],
        params["ln2_g"], params["ln2_b"],
        params["w1"], params["b1"], params["w2"], params["b2"],
    )

    def full_spec(arr):
        nd = arr.ndim
        return pl.BlockSpec(arr.shape, lambda i, _nd=nd: (0,) * _nd)

    in_specs = [pl.BlockSpec((m_blk, C), lambda i: (i, 0))]
    in_specs += [full_spec(w) for w in weight_args]

    kernel = functools.partial(block_kernel, seq_len=T, packed_seqs=bb)

    out2 = pl.pallas_call(
        kernel,
        out_shape=jax.ShapeDtypeStruct((B * T, C), jnp.float32),
        grid=(B // bb,),
        in_specs=in_specs,
        out_specs=pl.BlockSpec((m_blk, C), lambda i: (i, 0)),
        scratch_shapes=[pltpu.VMEM((m_blk, C), jnp.float32)],   # per-head output slab
        compiler_params=pltpu.CompilerParams(
            dimension_semantics=("parallel",),
            vmem_limit_bytes=32 * 1024 * 1024,
        ),
    )(x2, *weight_args)
    return out2.reshape(B, T, C)


def init_params(key):
    ks = jax.random.split(key, 6)
    s = 0.02
    C, H4 = N_EMBD, 4 * N_EMBD
    wq = s * jax.random.normal(ks[0], (C, C), jnp.float32)
    wk = s * jax.random.normal(ks[1], (C, C), jnp.float32)
    wv = s * jax.random.normal(ks[2], (C, C), jnp.float32)
    return {
        "ln1_g": jnp.ones((1, C), jnp.float32),
        "ln1_b": jnp.zeros((1, C), jnp.float32),
        # fused Q/K/V projection, bf16 in HBM: columns [q | k | v], heads packed inside each
        "wqkv": jnp.concatenate([wq, wk, wv], axis=1).astype(jnp.bfloat16),
        "wo": (s * jax.random.normal(ks[3], (C, C), jnp.float32)).astype(jnp.bfloat16),
        "bo": jnp.zeros((1, C), jnp.float32),
        "ln2_g": jnp.ones((1, C), jnp.float32),
        "ln2_b": jnp.zeros((1, C), jnp.float32),
        "w1": (s * jax.random.normal(ks[4], (C, H4), jnp.float32)).astype(jnp.bfloat16),
        "b1": jnp.zeros((1, H4), jnp.float32),
        "w2": (s * jax.random.normal(ks[5], (H4, C), jnp.float32)).astype(jnp.bfloat16),
        "b2": jnp.zeros((1, C), jnp.float32),
    }


def block_reference(x, p):
    # pure-JAX f32 reference of the PyTorch Block forward (eval mode, dropout=identity)
    def ln(y, g, b):
        mu = jnp.mean(y, axis=-1, keepdims=True)
        var = jnp.mean((y - mu) ** 2, axis=-1, keepdims=True)
        return (y - mu) * lax.rsqrt(var + LN_EPS) * g + b

    B, T, C = x.shape
    wqkv = p["wqkv"].astype(jnp.float32)
    wq, wk, wv = wqkv[:, :C], wqkv[:, C:2 * C], wqkv[:, 2 * C:]
    wo = p["wo"].astype(jnp.float32)
    w1 = p["w1"].astype(jnp.float32)
    w2 = p["w2"].astype(jnp.float32)

    xn = ln(x, p["ln1_g"], p["ln1_b"])
    q = (xn @ wq).reshape(B, T, N_HEAD, HEAD_SIZE).transpose(0, 2, 1, 3)
    k = (xn @ wk).reshape(B, T, N_HEAD, HEAD_SIZE).transpose(0, 2, 1, 3)
    v = (xn @ wv).reshape(B, T, N_HEAD, HEAD_SIZE).transpose(0, 2, 1, 3)
    wei = jnp.einsum("bhtd,bhsd->bhts", q, k) * HEAD_SIZE ** -0.5
    mask = jnp.tril(jnp.ones((T, T), bool))
    wei = jnp.where(mask, wei, -jnp.inf)
    wei = jax.nn.softmax(wei, axis=-1)
    out = jnp.einsum("bhts,bhsd->bhtd", wei, v)
    out = out.transpose(0, 2, 1, 3).reshape(B, T, C)
    x1 = x + out @ wo + p["bo"]
    x1n = ln(x1, p["ln2_g"], p["ln2_b"])
    ffn = jnp.maximum(x1n @ w1 + p["b1"], 0.0) @ w2 + p["b2"]
    return x1 + ffn


if __name__ == "__main__":
    key = jax.random.PRNGKey(0)
    k_x, k_p = jax.random.split(key)

    B, T = 2, 64                      # small shapes; T <= block_size (256)
    x = jax.random.normal(k_x, (B, T, N_EMBD), jnp.float32)
    params = init_params(k_p)

    out = block_forward(x, params)
    out = jax.block_until_ready(out)

    ref = block_reference(x, params)
    # Tolerance accounts for bf16 matmul operands (f32 accumulation) and the
    # approximate EUP reciprocal in the softmax.
    np.testing.assert_allclose(np.asarray(out), np.asarray(ref), rtol=2e-2, atol=2e-2)

    print("KERNEL_OK")
</pallas_src>

<mosaic_0001>
module attributes {stable_mosaic.version = 11 : i64} {
  func.func @block_kernel(%arg0: i32, %arg1: memref<64x384xf32, #tpu.memory_space<vmem>>, %arg2: memref<1x384xf32, #tpu.memory_space<vmem>>, %arg3: memref<1x384xf32, #tpu.memory_space<vmem>>, %arg4: memref<384x1152xbf16, #tpu.memory_space<vmem>>, %arg5: memref<384x384xbf16, #tpu.memory_space<vmem>>, %arg6: memref<1x384xf32, #tpu.memory_space<vmem>>, %arg7: memref<1x384xf32, #tpu.memory_space<vmem>>, %arg8: memref<1x384xf32, #tpu.memory_space<vmem>>, %arg9: memref<384x1536xbf16, #tpu.memory_space<vmem>>, %arg10: memref<1x1536xf32, #tpu.memory_space<vmem>>, %arg11: memref<1536x384xbf16, #tpu.memory_space<vmem>>, %arg12: memref<1x384xf32, #tpu.memory_space<vmem>>, %arg13: memref<64x384xf32, #tpu.memory_space<vmem>>, %arg14: memref<64x384xf32, #tpu.memory_space<vmem>>) attributes {dimension_semantics = [#tpu.dimension_semantics<parallel>], iteration_bounds = array<i64: 2>, scalar_prefetch = 0 : i64, scratch_operands = 1 : i64, tpu.core_type = #tpu.core_type<tc>, window_params = [{transform_indices = @transform_0, window_bounds = array<i64: 64, 384>}, {pipeline_mode = #tpu.pipeline_mode<synchronous>, transform_indices = @transform_1, window_bounds = array<i64: 1, 384>}, {pipeline_mode = #tpu.pipeline_mode<synchronous>, transform_indices = @transform_2, window_bounds = array<i64: 1, 384>}, {pipeline_mode = #tpu.pipeline_mode<synchronous>, transform_indices = @transform_3, window_bounds = array<i64: 384, 1152>}, {pipeline_mode = #tpu.pipeline_mode<synchronous>, transform_indices = @transform_4, window_bounds = array<i64: 384, 384>}, {pipeline_mode = #tpu.pipeline_mode<synchronous>, transform_indices = @transform_5, window_bounds = array<i64: 1, 384>}, {pipeline_mode = #tpu.pipeline_mode<synchronous>, transform_indices = @transform_6, window_bounds = array<i64: 1, 384>}, {pipeline_mode = #tpu.pipeline_mode<synchronous>, transform_indices = @transform_7, window_bounds = array<i64: 1, 384>}, {pipeline_mode = #tpu.pipeline_mode<synchronous>, transform_indices = @transform_8, window_bounds = array<i64: 384, 1536>}, {pipeline_mode = #tpu.pipeline_mode<synchronous>, transform_indices = @transform_9, window_bounds = array<i64: 1, 1536>}, {pipeline_mode = #tpu.pipeline_mode<synchronous>, transform_indices = @transform_10, window_bounds = array<i64: 1536, 384>}, {pipeline_mode = #tpu.pipeline_mode<synchronous>, transform_indices = @transform_11, window_bounds = array<i64: 1, 384>}, {transform_indices = @transform_12, window_bounds = array<i64: 64, 384>}]} {
    %c0 = arith.constant 0 : index
    %c0_0 = arith.constant 0 : index
    %0 = vector.load %arg1[%c0, %c0_0] : memref<64x384xf32, #tpu.memory_space<vmem>>, vector<64x384xf32>
    %c0_1 = arith.constant 0 : index
    %c0_2 = arith.constant 0 : index
    %1 = vector.load %arg2[%c0_1, %c0_2] : memref<1x384xf32, #tpu.memory_space<vmem>>, vector<1x384xf32>
    %c0_3 = arith.constant 0 : index
    %c0_4 = arith.constant 0 : index
    %2 = vector.load %arg3[%c0_3, %c0_4] : memref<1x384xf32, #tpu.memory_space<vmem>>, vector<1x384xf32>
    %cst = arith.constant dense<0.000000e+00> : vector<64xf32>
    %3 = vector.multi_reduction <add>, %0, %cst [1] : vector<64x384xf32> to vector<64xf32>
    %4 = vector.shape_cast %3 : vector<64xf32> to vector<64x1xf32>
    %cst_5 = arith.constant 3.840000e+02 : f32
    %5 = vector.broadcast %cst_5 : f32 to vector<64x1xf32>
    %6 = arith.divf %4, %5 : vector<64x1xf32>
    %7 = vector.broadcast %6 : vector<64x1xf32> to vector<64x384xf32>
    %8 = arith.subf %0, %7 : vector<64x384xf32>
    %9 = arith.mulf %8, %8 : vector<64x384xf32>
    %cst_6 = arith.constant dense<0.000000e+00> : vector<64xf32>
    %10 = vector.multi_reduction <add>, %9, %cst_6 [1] : vector<64x384xf32> to vector<64xf32>
    %11 = vector.shape_cast %10 : vector<64xf32> to vector<64x1xf32>
    %cst_7 = arith.constant 3.840000e+02 : f32
    %12 = vector.broadcast %cst_7 : f32 to vector<64x1xf32>
    %13 = arith.divf %11, %12 : vector<64x1xf32>
    %14 = vector.broadcast %6 : vector<64x1xf32> to vector<64x384xf32>
    %15 = arith.subf %0, %14 : vector<64x384xf32>
    %cst_8 = arith.constant 9.99999974E-6 : f32
    %16 = vector.broadcast %cst_8 : f32 to vector<64x1xf32>
    %17 = arith.addf %13, %16 : vector<64x1xf32>
    %18 = math.rsqrt %17 : vector<64x1xf32>
    %19 = vector.broadcast %18 : vector<64x1xf32> to vector<64x384xf32>
    %20 = arith.mulf %15, %19 : vector<64x384xf32>
    %21 = vector.broadcast %1 : vector<1x384xf32> to vector<64x384xf32>
    %22 = arith.mulf %20, %21 : vector<64x384xf32>
    %23 = vector.broadcast %2 : vector<1x384xf32> to vector<64x384xf32>
    %24 = arith.addf %22, %23 : vector<64x384xf32>
    %25 = arith.truncf %24 : vector<64x384xf32> to vector<64x384xbf16>
    %c0_9 = arith.constant 0 : index
    %c0_10 = arith.constant 0 : index
    %26 = vector.load %arg4[%c0_9, %c0_10] : memref<384x1152xbf16, #tpu.memory_space<vmem>>, vector<384x1152xbf16>
    %cst_11 = arith.constant dense<0.000000e+00> : vector<64x1152xf32>
    %27 = tpu.matmul %25, %26, %cst_11 {dimension_numbers = #tpu.dot_dimension_numbers<[1], [0], [0], [1], [0, 0, 1, 1], [], []>} : vector<64x384xbf16>, vector<384x1152xbf16>, vector<64x1152xf32> -> vector<64x1152xf32>
    %28 = vector.extract_strided_slice %27 {offsets = [0, 0], sizes = [64, 384], strides = [1, 1]} : vector<64x1152xf32> to vector<64x384xf32>
    %cst_12 = arith.constant 1.250000e-01 : f32
    %29 = vector.broadcast %cst_12 : f32 to vector<64x384xf32>
    %30 = arith.mulf %28, %29 : vector<64x384xf32>
    %31 = arith.truncf %30 : vector<64x384xf32> to vector<64x384xbf16>
    %32 = vector.extract_strided_slice %27 {offsets = [0, 384], sizes = [64, 384], strides = [1, 1]} : vector<64x1152xf32> to vector<64x384xf32>
    %33 = arith.truncf %32 : vector<64x384xf32> to vector<64x384xbf16>
    %34 = vector.extract_strided_slice %27 {offsets = [0, 768], sizes = [64, 384], strides = [1, 1]} : vector<64x1152xf32> to vector<64x384xf32>
    %35 = arith.truncf %34 : vector<64x384xf32> to vector<64x384xbf16>
    %36 = tpu.iota {dimensions = array<i32: 0>} : vector<64x64xi32>
    %37 = tpu.iota {dimensions = array<i32: 1>} : vector<64x64xi32>
    %38 = arith.cmpi sge, %36, %37 : vector<64x64xi32>
    %cst_13 = arith.constant 0.000000e+00 : f32
    %cst_14 = arith.constant -1.000000e+30 : f32
    %39 = vector.broadcast %cst_13 : f32 to vector<64x64xf32>
    %40 = vector.broadcast %cst_14 : f32 to vector<64x64xf32>
    %41 = arith.select %38, %39, %40 : vector<64x64xi1>, vector<64x64xf32>
    %42 = vector.extract_strided_slice %31 {offsets = [0, 0], sizes = [64, 64], strides = [1, 1]} : vector<64x384xbf16> to vector<64x64xbf16>
    %43 = vector.extract_strided_slice %33 {offsets = [0, 0], sizes = [64, 64], strides = [1, 1]} : vector<64x384xbf16> to vector<64x64xbf16>
    %44 = vector.extract_strided_slice %35 {offsets = [0, 0], sizes = [64, 64], strides = [1, 1]} : vector<64x384xbf16> to vector<64x64xbf16>
    %cst_15 = arith.constant dense<0.000000e+00> : vector<64x64xf32>
    %45 = tpu.matmul %42, %43, %cst_15 {dimension_numbers = #tpu.dot_dimension_numbers<[1], [1], [0], [0], [0, 0, 1, 0], [], []>} : vector<64x64xbf16>, vector<64x64xbf16>, vector<64x64xf32> -> vector<64x64xf32>
    %46 = arith.addf %45, %41 : vector<64x64xf32>
    %cst_16 = arith.constant dense<0xFF800000> : vector<64xf32>
    %47 = vector.multi_reduction <maximumf>, %46, %cst_16 [1] : vector<64x64xf32> to vector<64xf32>
    %48 = vector.shape_cast %47 : vector<64xf32> to vector<64x1xf32>
    %49 = vector.broadcast %48 : vector<64x1xf32> to vector<64x64xf32>
    %50 = arith.subf %46, %49 : vector<64x64xf32>
    %51 = math.exp %50 : vector<64x64xf32>
    %cst_17 = arith.constant dense<0.000000e+00> : vector<64xf32>
    %52 = vector.multi_reduction <add>, %51, %cst_17 [1] : vector<64x64xf32> to vector<64xf32>
    %53 = vector.shape_cast %52 : vector<64xf32> to vector<64x1xf32>
    %54 = tpu.reciprocal %53 {approx = true} : vector<64x1xf32> -> vector<64x1xf32>
    %55 = vector.broadcast %54 : vector<64x1xf32> to vector<64x64xf32>
    %56 = arith.mulf %51, %55 : vector<64x64xf32>
    %57 = arith.truncf %56 : vector<64x64xf32> to vector<64x64xbf16>
    %cst_18 = arith.constant dense<0.000000e+00> : vector<64x64xf32>
    %58 = tpu.matmul %57, %44, %cst_18 {dimension_numbers = #tpu.dot_dimension_numbers<[1], [0], [0], [1], [0, 0, 1, 1], [], []>} : vector<64x64xbf16>, vector<64x64xbf16>, vector<64x64xf32> -> vector<64x64xf32>
    %c0_19 = arith.constant 0 : index
    %c0_20 = arith.constant 0 : index
    %59 = vector.load %arg14[%c0_19, %c0_20] : memref<64x384xf32, #tpu.memory_space<vmem>>, vector<64x64xf32>
    tpu.vector_store %arg14[%c0_19, %c0_20], %58 {strides = array<i32>} : memref<64x384xf32, #tpu.memory_space<vmem>>, vector<64x64xf32>,
    %60 = vector.extract_strided_slice %31 {offsets = [0, 64], sizes = [64, 64], strides = [1, 1]} : vector<64x384xbf16> to vector<64x64xbf16>
    %61 = vector.extract_strided_slice %33 {offsets = [0, 64], sizes = [64, 64], strides = [1, 1]} : vector<64x384xbf16> to vector<64x64xbf16>
    %62 = vector.extract_strided_slice %35 {offsets = [0, 64], sizes = [64, 64], strides = [1, 1]} : vector<64x384xbf16> to vector<64x64xbf16>
    %cst_21 = arith.constant dense<0.000000e+00> : vector<64x64xf32>
    %63 = tpu.matmul %60, %61, %cst_21 {dimension_numbers = #tpu.dot_dimension_numbers<[1], [1], [0], [0], [0, 0, 1, 0], [], []>} : vector<64x64xbf16>, vector<64x64xbf16>, vector<64x64xf32> -> vector<64x64xf32>
    %64 = arith.addf %63, %41 : vector<64x64xf32>
    %cst_22 = arith.constant dense<0xFF800000> : vector<64xf32>
    %65 = vector.multi_reduction <maximumf>, %64, %cst_22 [1] : vector<64x64xf32> to vector<64xf32>
    %66 = vector.shape_cast %65 : vector<64xf32> to vector<64x1xf32>
    %67 = vector.broadcast %66 : vector<64x1xf32> to vector<64x64xf32>
    %68 = arith.subf %64, %67 : vector<64x64xf32>
    %69 = math.exp %68 : vector<64x64xf32>
    %cst_23 = arith.constant dense<0.000000e+00> : vector<64xf32>
    %70 = vector.multi_reduction <add>, %69, %cst_23 [1] : vector<64x64xf32> to vector<64xf32>
    %71 = vector.shape_cast %70 : vector<64xf32> to vector<64x1xf32>
    %72 = tpu.reciprocal %71 {approx = true} : vector<64x1xf32> -> vector<64x1xf32>
    %73 = vector.broadcast %72 : vector<64x1xf32> to vector<64x64xf32>
    %74 = arith.mulf %69, %73 : vector<64x64xf32>
    %75 = arith.truncf %74 : vector<64x64xf32> to vector<64x64xbf16>
    %cst_24 = arith.constant dense<0.000000e+00> : vector<64x64xf32>
    %76 = tpu.matmul %75, %62, %cst_24 {dimension_numbers = #tpu.dot_dimension_numbers<[1], [0], [0], [1], [0, 0, 1, 1], [], []>} : vector<64x64xbf16>, vector<64x64xbf16>, vector<64x64xf32> -> vector<64x64xf32>
    %c0_25 = arith.constant 0 : index
    %c64 = arith.constant 64 : index
    %77 = vector.load %arg14[%c0_25, %c64] : memref<64x384xf32, #tpu.memory_space<vmem>>, vector<64x64xf32>
    tpu.vector_store %arg14[%c0_25, %c64], %76 {strides = array<i32>} : memref<64x384xf32, #tpu.memory_space<vmem>>, vector<64x64xf32>,
    %78 = vector.extract_strided_slice %31 {offsets = [0, 128], sizes = [64, 64], strides = [1, 1]} : vector<64x384xbf16> to vector<64x64xbf16>
    %79 = vector.extract_strided_slice %33 {offsets = [0, 128], sizes = [64, 64], strides = [1, 1]} : vector<64x384xbf16> to vector<64x64xbf16>
    %80 = vector.extract_strided_slice %35 {offsets = [0, 128], sizes = [64, 64], strides = [1, 1]} : vector<64x384xbf16> to vector<64x64xbf16>
    %cst_26 = arith.constant dense<0.000000e+00> : vector<64x64xf32>
    %81 = tpu.matmul %78, %79, %cst_26 {dimension_numbers = #tpu.dot_dimension_numbers<[1], [1], [0], [0], [0, 0, 1, 0], [], []>} : vector<64x64xbf16>, vector<64x64xbf16>, vector<64x64xf32> -> vector<64x64xf32>
    %82 = arith.addf %81, %41 : vector<64x64xf32>
    %cst_27 = arith.constant dense<0xFF800000> : vector<64xf32>
    %83 = vector.multi_reduction <maximumf>, %82, %cst_27 [1] : vector<64x64xf32> to vector<64xf32>
    %84 = vector.shape_cast %83 : vector<64xf32> to vector<64x1xf32>
    %85 = vector.broadcast %84 : vector<64x1xf32> to vector<64x64xf32>
    %86 = arith.subf %82, %85 : vector<64x64xf32>
    %87 = math.exp %86 : vector<64x64xf32>
    %cst_28 = arith.constant dense<0.000000e+00> : vector<64xf32>
    %88 = vector.multi_reduction <add>, %87, %cst_28 [1] : vector<64x64xf32> to vector<64xf32>
    %89 = vector.shape_cast %88 : vector<64xf32> to vector<64x1xf32>
    %90 = tpu.reciprocal %89 {approx = true} : vector<64x1xf32> -> vector<64x1xf32>
    %91 = vector.broadcast %90 : vector<64x1xf32> to vector<64x64xf32>
    %92 = arith.mulf %87, %91 : vector<64x64xf32>
    %93 = arith.truncf %92 : vector<64x64xf32> to vector<64x64xbf16>
    %cst_29 = arith.constant dense<0.000000e+00> : vector<64x64xf32>
    %94 = tpu.matmul %93, %80, %cst_29 {dimension_numbers = #tpu.dot_dimension_numbers<[1], [0], [0], [1], [0, 0, 1, 1], [], []>} : vector<64x64xbf16>, vector<64x64xbf16>, vector<64x64xf32> -> vector<64x64xf32>
    %c0_30 = arith.constant 0 : index
    %c128 = arith.constant 128 : index
    %95 = vector.load %arg14[%c0_30, %c128] : memref<64x384xf32, #tpu.memory_space<vmem>>, vector<64x64xf32>
    tpu.vector_store %arg14[%c0_30, %c128], %94 {strides = array<i32>} : memref<64x384xf32, #tpu.memory_space<vmem>>, vector<64x64xf32>,
    %96 = vector.extract_strided_slice %31 {offsets = [0, 192], sizes = [64, 64], strides = [1, 1]} : vector<64x384xbf16> to vector<64x64xbf16>
    %97 = vector.extract_strided_slice %33 {offsets = [0, 192], sizes = [64, 64], strides = [1, 1]} : vector<64x384xbf16> to vector<64x64xbf16>
    %98 = vector.extract_strided_slice %35 {offsets = [0, 192], sizes = [64, 64], strides = [1, 1]} : vector<64x384xbf16> to vector<64x64xbf16>
    %cst_31 = arith.constant dense<0.000000e+00> : vector<64x64xf32>
    %99 = tpu.matmul %96, %97, %cst_31 {dimension_numbers = #tpu.dot_dimension_numbers<[1], [1], [0], [0], [0, 0, 1, 0], [], []>} : vector<64x64xbf16>, vector<64x64xbf16>, vector<64x64xf32> -> vector<64x64xf32>
    %100 = arith.addf %99, %41 : vector<64x64xf32>
    %cst_32 = arith.constant dense<0xFF800000> : vector<64xf32>
    %101 = vector.multi_reduction <maximumf>, %100, %cst_32 [1] : vector<64x64xf32> to vector<64xf32>
    %102 = vector.shape_cast %101 : vector<64xf32> to vector<64x1xf32>
    %103 = vector.broadcast %102 : vector<64x1xf32> to vector<64x64xf32>
    %104 = arith.subf %100, %103 : vector<64x64xf32>
    %105 = math.exp %104 : vector<64x64xf32>
    %cst_33 = arith.constant dense<0.000000e+00> : vector<64xf32>
    %106 = vector.multi_reduction <add>, %105, %cst_33 [1] : vector<64x64xf32> to vector<64xf32>
    %107 = vector.shape_cast %106 : vector<64xf32> to vector<64x1xf32>
    %108 = tpu.reciprocal %107 {approx = true} : vector<64x1xf32> -> vector<64x1xf32>
    %109 = vector.broadcast %108 : vector<64x1xf32> to vector<64x64xf32>
    %110 = arith.mulf %105, %109 : vector<64x64xf32>
    %111 = arith.truncf %110 : vector<64x64xf32> to vector<64x64xbf16>
    %cst_34 = arith.constant dense<0.000000e+00> : vector<64x64xf32>
    %112 = tpu.matmul %111, %98, %cst_34 {dimension_numbers = #tpu.dot_dimension_numbers<[1], [0], [0], [1], [0, 0, 1, 1], [], []>} : vector<64x64xbf16>, vector<64x64xbf16>, vector<64x64xf32> -> vector<64x64xf32>
    %c0_35 = arith.constant 0 : index
    %c192 = arith.constant 192 : index
    %113 = vector.load %arg14[%c0_35, %c192] : memref<64x384xf32, #tpu.memory_space<vmem>>, vector<64x64xf32>
    tpu.vector_store %arg14[%c0_35, %c192], %112 {strides = array<i32>} : memref<64x384xf32, #tpu.memory_space<vmem>>, vector<64x64xf32>,
    %114 = vector.extract_strided_slice %31 {offsets = [0, 256], sizes = [64, 64], strides = [1, 1]} : vector<64x384xbf16> to vector<64x64xbf16>
    %115 = vector.extract_strided_slice %33 {offsets = [0, 256], sizes = [64, 64], strides = [1, 1]} : vector<64x384xbf16> to vector<64x64xbf16>
    %116 = vector.extract_strided_slice %35 {offsets = [0, 256], sizes = [64, 64], strides = [1, 1]} : vector<64x384xbf16> to vector<64x64xbf16>
    %cst_36 = arith.constant dense<0.000000e+00> : vector<64x64xf32>
    %117 = tpu.matmul %114, %115, %cst_36 {dimension_numbers = #tpu.dot_dimension_numbers<[1], [1], [0], [0], [0, 0, 1, 0], [], []>} : vector<64x64xbf16>, vector<64x64xbf16>, vector<64x64xf32> -> vector<64x64xf32>
    %118 = arith.addf %117, %41 : vector<64x64xf32>
    %cst_37 = arith.constant dense<0xFF800000> : vector<64xf32>
    %119 = vector.multi_reduction <maximumf>, %118, %cst_37 [1] : vector<64x64xf32> to vector<64xf32>
    %120 = vector.shape_cast %119 : vector<64xf32> to vector<64x1xf32>
    %121 = vector.broadcast %120 : vector<64x1xf32> to vector<64x64xf32>
    %122 = arith.subf %118, %121 : vector<64x64xf32>
    %123 = math.exp %122 : vector<64x64xf32>
    %cst_38 = arith.constant dense<0.000000e+00> : vector<64xf32>
    %124 = vector.multi_reduction <add>, %123, %cst_38 [1] : vector<64x64xf32> to vector<64xf32>
    %125 = vector.shape_cast %124 : vector<64xf32> to vector<64x1xf32>
    %126 = tpu.reciprocal %125 {approx = true} : vector<64x1xf32> -> vector<64x1xf32>
    %127 = vector.broadcast %126 : vector<64x1xf32> to vector<64x64xf32>
    %128 = arith.mulf %123, %127 : vector<64x64xf32>
    %129 = arith.truncf %128 : vector<64x64xf32> to vector<64x64xbf16>
    %cst_39 = arith.constant dense<0.000000e+00> : vector<64x64xf32>
    %130 = tpu.matmul %129, %116, %cst_39 {dimension_numbers = #tpu.dot_dimension_numbers<[1], [0], [0], [1], [0, 0, 1, 1], [], []>} : vector<64x64xbf16>, vector<64x64xbf16>, vector<64x64xf32> -> vector<64x64xf32>
    %c0_40 = arith.constant 0 : index
    %c256 = arith.constant 256 : index
    %131 = vector.load %arg14[%c0_40, %c256] : memref<64x384xf32, #tpu.memory_space<vmem>>, vector<64x64xf32>
    tpu.vector_store %arg14[%c0_40, %c256], %130 {strides = array<i32>} : memref<64x384xf32, #tpu.memory_space<vmem>>, vector<64x64xf32>,
    %132 = vector.extract_strided_slice %31 {offsets = [0, 320], sizes = [64, 64], strides = [1, 1]} : vector<64x384xbf16> to vector<64x64xbf16>
    %133 = vector.extract_strided_slice %33 {offsets = [0, 320], sizes = [64, 64], strides = [1, 1]} : vector<64x384xbf16> to vector<64x64xbf16>
    %134 = vector.extract_strided_slice %35 {offsets = [0, 320], sizes = [64, 64], strides = [1, 1]} : vector<64x384xbf16> to vector<64x64xbf16>
    %cst_41 = arith.constant dense<0.000000e+00> : vector<64x64xf32>
    %135 = tpu.matmul %132, %133, %cst_41 {dimension_numbers = #tpu.dot_dimension_numbers<[1], [1], [0], [0], [0, 0, 1, 0], [], []>} : vector<64x64xbf16>, vector<64x64xbf16>, vector<64x64xf32> -> vector<64x64xf32>
    %136 = arith.addf %135, %41 : vector<64x64xf32>
    %cst_42 = arith.constant dense<0xFF800000> : vector<64xf32>
    %137 = vector.multi_reduction <maximumf>, %136, %cst_42 [1] : vector<64x64xf32> to vector<64xf32>
    %138 = vector.shape_cast %137 : vector<64xf32> to vector<64x1xf32>
    %139 = vector.broadcast %138 : vector<64x1xf32> to vector<64x64xf32>
    %140 = arith.subf %136, %139 : vector<64x64xf32>
    %141 = math.exp %140 : vector<64x64xf32>
    %cst_43 = arith.constant dense<0.000000e+00> : vector<64xf32>
    %142 = vector.multi_reduction <add>, %141, %cst_43 [1] : vector<64x64xf32> to vector<64xf32>
    %143 = vector.shape_cast %142 : vector<64xf32> to vector<64x1xf32>
    %144 = tpu.reciprocal %143 {approx = true} : vector<64x1xf32> -> vector<64x1xf32>
    %145 = vector.broadcast %144 : vector<64x1xf32> to vector<64x64xf32>
    %146 = arith.mulf %141, %145 : vector<64x64xf32>
    %147 = arith.truncf %146 : vector<64x64xf32> to vector<64x64xbf16>
    %cst_44 = arith.constant dense<0.000000e+00> : vector<64x64xf32>
    %148 = tpu.matmul %147, %134, %cst_44 {dimension_numbers = #tpu.dot_dimension_numbers<[1], [0], [0], [1], [0, 0, 1, 1], [], []>} : vector<64x64xbf16>, vector<64x64xbf16>, vector<64x64xf32> -> vector<64x64xf32>
    %c0_45 = arith.constant 0 : index
    %c320 = arith.constant 320 : index
    %149 = vector.load %arg14[%c0_45, %c320] : memref<64x384xf32, #tpu.memory_space<vmem>>, vector<64x64xf32>
    tpu.vector_store %arg14[%c0_45, %c320], %148 {strides = array<i32>} : memref<64x384xf32, #tpu.memory_space<vmem>>, vector<64x64xf32>,
    %c0_46 = arith.constant 0 : index
    %c0_47 = arith.constant 0 : index
    %150 = vector.load %arg14[%c0_46, %c0_47] : memref<64x384xf32, #tpu.memory_space<vmem>>, vector<64x384xf32>
    %151 = arith.truncf %150 : vector<64x384xf32> to vector<64x384xbf16>
    %c0_48 = arith.constant 0 : index
    %c0_49 = arith.constant 0 : index
    %152 = vector.load %arg5[%c0_48, %c0_49] : memref<384x384xbf16, #tpu.memory_space<vmem>>, vector<384x384xbf16>
    %cst_50 = arith.constant dense<0.000000e+00> : vector<64x384xf32>
    %153 = tpu.matmul %151, %152, %cst_50 {dimension_numbers = #tpu.dot_dimension_numbers<[1], [0], [0], [1], [0, 0, 1, 1], [], []>} : vector<64x384xbf16>, vector<384x384xbf16>, vector<64x384xf32> -> vector<64x384xf32>
    %c0_51 = arith.constant 0 : index
    %c0_52 = arith.constant 0 : index
    %154 = vector.load %arg6[%c0_51, %c0_52] : memref<1x384xf32, #tpu.memory_space<vmem>>, vector<1x384xf32>
    %155 = vector.broadcast %154 : vector<1x384xf32> to vector<64x384xf32>
    %156 = arith.addf %153, %155 : vector<64x384xf32>
    %157 = arith.addf %0, %156 : vector<64x384xf32>
    %c0_53 = arith.constant 0 : index
    %c0_54 = arith.constant 0 : index
    %158 = vector.load %arg7[%c0_53, %c0_54] : memref<1x384xf32, #tpu.memory_space<vmem>>, vector<1x384xf32>
    %c0_55 = arith.constant 0 : index
    %c0_56 = arith.constant 0 : index
    %159 = vector.load %arg8[%c0_55, %c0_56] : memref<1x384xf32, #tpu.memory_space<vmem>>, vector<1x384xf32>
    %cst_57 = arith.constant dense<0.000000e+00> : vector<64xf32>
    %160 = vector.multi_reduction <add>, %157, %cst_57 [1] : vector<64x384xf32> to vector<64xf32>
    %161 = vector.shape_cast %160 : vector<64xf32> to vector<64x1xf32>
    %cst_58 = arith.constant 3.840000e+02 : f32
    %162 = vector.broadcast %cst_58 : f32 to vector<64x1xf32>
    %163 = arith.divf %161, %162 : vector<64x1xf32>
    %164 = vector.broadcast %163 : vector<64x1xf32> to vector<64x384xf32>
    %165 = arith.subf %157, %164 : vector<64x384xf32>
    %166 = arith.mulf %165, %165 : vector<64x384xf32>
    %cst_59 = arith.constant dense<0.000000e+00> : vector<64xf32>
    %167 = vector.multi_reduction <add>, %166, %cst_59 [1] : vector<64x384xf32> to vector<64xf32>
    %168 = vector.shape_cast %167 : vector<64xf32> to vector<64x1xf32>
    %cst_60 = arith.constant 3.840000e+02 : f32
    %169 = vector.broadcast %cst_60 : f32 to vector<64x1xf32>
    %170 = arith.divf %168, %169 : vector<64x1xf32>
    %171 = vector.broadcast %163 : vector<64x1xf32> to vector<64x384xf32>
    %172 = arith.subf %157, %171 : vector<64x384xf32>
    %cst_61 = arith.constant 9.99999974E-6 : f32
    %173 = vector.broadcast %cst_61 : f32 to vector<64x1xf32>
    %174 = arith.addf %170, %173 : vector<64x1xf32>
    %175 = math.rsqrt %174 : vector<64x1xf32>
    %176 = vector.broadcast %175 : vector<64x1xf32> to vector<64x384xf32>
    %177 = arith.mulf %172, %176 : vector<64x384xf32>
    %178 = vector.broadcast %158 : vector<1x384xf32> to vector<64x384xf32>
    %179 = arith.mulf %177, %178 : vector<64x384xf32>
    %180 = vector.broadcast %159 : vector<1x384xf32> to vector<64x384xf32>
    %181 = arith.addf %179, %180 : vector<64x384xf32>
    %182 = arith.truncf %181 : vector<64x384xf32> to vector<64x384xbf16>
    %c0_62 = arith.constant 0 : index
    %c0_63 = arith.constant 0 : index
    %183 = vector.load %arg9[%c0_62, %c0_63] : memref<384x1536xbf16, #tpu.memory_space<vmem>>, vector<384x1536xbf16>
    %cst_64 = arith.constant dense<0.000000e+00> : vector<64x1536xf32>
    %184 = tpu.matmul %182, %183, %cst_64 {dimension_numbers = #tpu.dot_dimension_numbers<[1], [0], [0], [1], [0, 0, 1, 1], [], []>} : vector<64x384xbf16>, vector<384x1536xbf16>, vector<64x1536xf32> -> vector<64x1536xf32>
    %c0_65 = arith.constant 0 : index
    %c0_66 = arith.constant 0 : index
    %185 = vector.load %arg10[%c0_65, %c0_66] : memref<1x1536xf32, #tpu.memory_space<vmem>>, vector<1x1536xf32>
    %186 = vector.broadcast %185 : vector<1x1536xf32> to vector<64x1536xf32>
    %187 = arith.addf %184, %186 : vector<64x1536xf32>
    %cst_67 = arith.constant 0.000000e+00 : f32
    %188 = vector.broadcast %cst_67 : f32 to vector<64x1536xf32>
    %189 = arith.maximumf %187, %188 : vector<64x1536xf32>
    %190 = arith.truncf %189 : vector<64x1536xf32> to vector<64x1536xbf16>
    %c0_68 = arith.constant 0 : index
    %c0_69 = arith.constant 0 : index
    %191 = vector.load %arg11[%c0_68, %c0_69] : memref<1536x384xbf16, #tpu.memory_space<vmem>>, vector<1536x384xbf16>
    %cst_70 = arith.constant dense<0.000000e+00> : vector<64x384xf32>
    %192 = tpu.matmul %190, %191, %cst_70 {dimension_numbers = #tpu.dot_dimension_numbers<[1], [0], [0], [1], [0, 0, 1, 1], [], []>} : vector<64x1536xbf16>, vector<1536x384xbf16>, vector<64x384xf32> -> vector<64x384xf32>
    %193 = arith.addf %157, %192 : vector<64x384xf32>
    %c0_71 = arith.constant 0 : index
    %c0_72 = arith.constant 0 : index
    %194 = vector.load %arg12[%c0_71, %c0_72] : memref<1x384xf32, #tpu.memory_space<vmem>>, vector<1x384xf32>
    %195 = vector.broadcast %194 : vector<1x384xf32> to vector<64x384xf32>
    %196 = arith.addf %193, %195 : vector<64x384xf32>
    %c0_73 = arith.constant 0 : index
    %c0_74 = arith.constant 0 : index
    %197 = vector.load %arg13[%c0_73, %c0_74] : memref<64x384xf32, #tpu.memory_space<vmem>>, vector<64x384xf32>
    tpu.vector_store %arg13[%c0_73, %c0_74], %196 {strides = array<i32>} : memref<64x384xf32, #tpu.memory_space<vmem>>, vector<64x384xf32>,
    return
  }
  func.func @transform_0(%arg0: i32) -> (i32, i32) {
    %c0_i32 = arith.constant 0 : i32
    %c0_i32_0 = arith.constant 0 : i32
    return %arg0, %c0_i32 : i32, i32
  }
  func.func @transform_1(%arg0: i32) -> (i32, i32) {
    %c0_i32 = arith.constant 0 : i32
    %c0_i32_0 = arith.constant 0 : i32
    %c0_i32_1 = arith.constant 0 : i32
    return %c0_i32, %c0_i32_0 : i32, i32
  }
  func.func @transform_2(%arg0: i32) -> (i32, i32) {
    %c0_i32 = arith.constant 0 : i32
    %c0_i32_0 = arith.constant 0 : i32
    %c0_i32_1 = arith.constant 0 : i32
    return %c0_i32, %c0_i32_0 : i32, i32
  }
  func.func @transform_3(%arg0: i32) -> (i32, i32) {
    %c0_i32 = arith.constant 0 : i32
    %c0_i32_0 = arith.constant 0 : i32
    %c0_i32_1 = arith.constant 0 : i32
    return %c0_i32, %c0_i32_0 : i32, i32
  }
  func.func @transform_4(%arg0: i32) -> (i32, i32) {
    %c0_i32 = arith.constant 0 : i32
    %c0_i32_0 = arith.constant 0 : i32
    %c0_i32_1 = arith.constant 0 : i32
    return %c0_i32, %c0_i32_0 : i32, i32
  }
  func.func @transform_5(%arg0: i32) -> (i32, i32) {
    %c0_i32 = arith.constant 0 : i32
    %c0_i32_0 = arith.constant 0 : i32
    %c0_i32_1 = arith.constant 0 : i32
    return %c0_i32, %c0_i32_0 : i32, i32
  }
  func.func @transform_6(%arg0: i32) -> (i32, i32) {
    %c0_i32 = arith.constant 0 : i32
    %c0_i32_0 = arith.constant 0 : i32
    %c0_i32_1 = arith.constant 0 : i32
    return %c0_i32, %c0_i32_0 : i32, i32
  }
  func.func @transform_7(%arg0: i32) -> (i32, i32) {
    %c0_i32 = arith.constant 0 : i32
    %c0_i32_0 = arith.constant 0 : i32
    %c0_i32_1 = arith.constant 0 : i32
    return %c0_i32, %c0_i32_0 : i32, i32
  }
  func.func @transform_8(%arg0: i32) -> (i32, i32) {
    %c0_i32 = arith.constant 0 : i32
    %c0_i32_0 = arith.constant 0 : i32
    %c0_i32_1 = arith.constant 0 : i32
    return %c0_i32, %c0_i32_0 : i32, i32
  }
  func.func @transform_9(%arg0: i32) -> (i32, i32) {
    %c0_i32 = arith.constant 0 : i32
    %c0_i32_0 = arith.constant 0 : i32
    %c0_i32_1 = arith.constant 0 : i32
    return %c0_i32, %c0_i32_0 : i32, i32
  }
  func.func @transform_10(%arg0: i32) -> (i32, i32) {
    %c0_i32 = arith.constant 0 : i32
    %c0_i32_0 = arith.constant 0 : i32
    %c0_i32_1 = arith.constant 0 : i32
    return %c0_i32, %c0_i32_0 : i32, i32
  }
  func.func @transform_11(%arg0: i32) -> (i32, i32) {
    %c0_i32 = arith.constant 0 : i32
    %c0_i32_0 = arith.constant 0 : i32
    %c0_i32_1 = arith.constant 0 : i32
    return %c0_i32, %c0_i32_0 : i32, i32
  }
  func.func @transform_12(%arg0: i32) -> (i32, i32) {
    %c0_i32 = arith.constant 0 : i32
    %c0_i32_0 = arith.constant 0 : i32
    return %arg0, %c0_i32 : i32, i32
  }
}

</mosaic_0001>

<llo_original>
// kernel: tpu_custom_call.1
$region0: #{tpu_custom_call.1}
  #allocation0 [shape = 'u32[]', space=smem, size = 0x4, offset = 0x4, fixed_abs, tag = 'smem constant byte address 0x4 - core index']
  #allocation1 [shape = 'u32[72,128]{1,0:T(1,128)}', space=vmem, size = 0x9000, scoped, tag = 'internal scratch']
  #allocation2 [shape = 'f32[64,384]{1,0:T(8,128)}', space=vmem, size = 0x18000, scoped, tag = 'scratch operand']
  %s0 = inlined_call_operand.hbm [shape: f32[128,384], index: 0, kind: input, shape index: {}]
  %s1 = inlined_call_operand.hbm [shape: f32[1,384], index: 1, kind: input, shape index: {}]
  %s2 = inlined_call_operand.hbm [shape: f32[1,384], index: 2, kind: input, shape index: {}]
  %s3 = inlined_call_operand.hbm [shape: bf16[384,1152], index: 3, kind: input, shape index: {}]
  %s4 = inlined_call_operand.hbm [shape: bf16[384,384], index: 4, kind: input, shape index: {}]
  %s5 = inlined_call_operand.hbm [shape: f32[1,384], index: 5, kind: input, shape index: {}]
  %s6 = inlined_call_operand.hbm [shape: f32[1,384], index: 6, kind: input, shape index: {}]
  %s7 = inlined_call_operand.hbm [shape: f32[1,384], index: 7, kind: input, shape index: {}]
  %s8 = inlined_call_operand.hbm [shape: bf16[384,1536], index: 8, kind: input, shape index: {}]
  %s9 = inlined_call_operand.hbm [shape: f32[1,1536], index: 9, kind: input, shape index: {}]
  %s10 = inlined_call_operand.hbm [shape: bf16[1536,384], index: 10, kind: input, shape index: {}]
  %s11 = inlined_call_operand.hbm [shape: f32[1,384], index: 11, kind: input, shape index: {}]
  %s12 = inlined_call_operand.hbm [shape: f32[128,384], index: 12, kind: output, shape index: {}]
  %s13 = sld [smem:[#allocation0]]
  $region129: #{tpu_custom_call.1} parent=0
    _
  %s15 = ssub.s32 1, %s13
  %s16 = scalar_select 0, %s15, %s13
  $region1: #{tpu_custom_call.1} parent=0
    #allocation3 [shape = 'u8[196608]{0}', space=vmem, size = 0x30000, scoped, tag = 'input window, operand 0']
    #allocation4 [shape = 's32[2]{0}', space=sflag, size = 0x8, scoped, tag = 'scoped memory for tpu_custom_call.1']
    #allocation5 [shape = 's32[2]{0}', space=sflag, size = 0x8, scoped, tag = 'scoped memory for tpu_custom_call.1']
    #allocation6 [shape = 'u8[1536]{0}', space=vmem, size = 0x800, scoped, tag = 'input window, operand 1, single buffered']
    #allocation7 [shape = 's32[1]{0}', space=sflag, size = 0x4, scoped, tag = 'scoped memory for tpu_custom_call.1']
    #allocation8 [shape = 'u8[1536]{0}', space=vmem, size = 0x800, scoped, tag = 'input window, operand 2, single buffered']
    #allocation9 [shape = 'u8[884736]{0}', space=vmem, size = 0xd8000, scoped, tag = 'input window, operand 3, single buffered']
    #allocation10 [shape = 's32[1]{0}', space=sflag, size = 0x4, scoped, tag = 'scoped memory for tpu_custom_call.1']
    #allocation11 [shape = 'u8[294912]{0}', space=vmem, size = 0x48000, scoped, tag = 'input window, operand 4, single buffered']
    #allocation12 [shape = 'u8[1536]{0}', space=vmem, size = 0x800, scoped, tag = 'input window, operand 5, single buffered']
    #allocation13 [shape = 's32[1]{0}', space=sflag, size = 0x4, scoped, tag = 'scoped memory for tpu_custom_call.1']
    #allocation14 [shape = 'u8[1536]{0}', space=vmem, size = 0x800, scoped, tag = 'input window, operand 6, single buffered']
    #allocation15 [shape = 'u8[1536]{0}', space=vmem, size = 0x800, scoped, tag = 'input window, operand 7, single buffered']
    #allocation16 [shape = 's32[1]{0}', space=sflag, size = 0x4, scoped, tag = 'scoped memory for tpu_custom_call.1']
    #allocation17 [shape = 'u8[1179648]{0}', space=vmem, size = 0x120000, scoped, tag = 'input window, operand 8, single buffered']
    #allocation18 [shape = 'u8[6144]{0}', space=vmem, size = 0x1800, scoped, tag = 'input window, operand 9, single buffered']
    #allocation19 [shape = 's32[1]{0}', space=sflag, size = 0x4, scoped, tag = 'scoped memory for tpu_custom_call.1']
    #allocation20 [shape = 'u8[1179648]{0}', space=vmem, size = 0x120000, scoped, tag = 'input window, operand 10, single buffered']
    #allocation21 [shape = 'u8[1536]{0}', space=vmem, size = 0x800, scoped, tag = 'input window, operand 11, single buffered']
    #allocation22 [shape = 's32[1]{0}', space=sflag, size = 0x4, scoped, tag = 'scoped memory for tpu_custom_call.1']
    #allocation23 [shape = 'u8[196608]{0}', space=vmem, size = 0x30000, scoped, tag = 'output window, operand 0']
    %17 = vsyncpa [#allocation4], 0
    %s18 = scalar_lea.sflag [#allocation4], 1
    %19 = vsyncpa %s18, 0
    %20 = vsyncpa [#allocation7], 0
    %21 = vsyncpa [#allocation10], 0
    %22 = vsyncpa [#allocation13], 0
    %23 = vsyncpa [#allocation16], 0
    %24 = vsyncpa [#allocation19], 0
    %25 = vsyncpa [#allocation22], 0
    %26 = vsyncpa [#allocation5], 0
    %s27 = scalar_lea.sflag [#allocation5], 1
    %28 = vsyncpa %s27, 0
    loop: start=0, step=1, limit=4
    $region2: #{tpu_custom_call.1} parent=1 // loop_pre_header
      _
    $region3: #{tpu_custom_call.1} parent=1 // loop_header
      %s30 = sphi 0, %s34
      %p31 = scmp.ge.s32.totalorder %s30, 4
      %s40 = sphi 0, %s42
      %s43 = sphi 0, %s40
      %s44 = sphi 0, %s43
      %s60 = sphi 0, %s44
      %s64 = sphi 0, %s64
      %s66 = sphi 0, %s64
      %s67 = sphi 0, %s66
      %s81 = sphi 0, %s67
      %s85 = sphi 0, %s85
      %s87 = sphi 0, %s85
      %s88 = sphi 0, %s87
      %s102 = sphi 0, %s88
      %s106 = sphi 0, %s106
      %s108 = sphi 0, %s106
      %s109 = sphi 0, %s108
      %s123 = sphi 0, %s109
      %s127 = sphi 0, %s127
      %s129 = sphi 0, %s127
      %s130 = sphi 0, %s129
      %s144 = sphi 0, %s130
      %s148 = sphi 0, %s148
      %s150 = sphi 0, %s148
      %s151 = sphi 0, %s150
      %s165 = sphi 0, %s151
      %s169 = sphi 0, %s169
      %s171 = sphi 0, %s169
      %s172 = sphi 0, %s171
      %s186 = sphi 0, %s172
      %s190 = sphi 0, %s190
      %s192 = sphi 0, %s190
      %s193 = sphi 0, %s192
      %s207 = sphi 0, %s193
      %s211 = sphi 0, %s211
      %s213 = sphi 0, %s211
      %s214 = sphi 0, %s213
      %s228 = sphi 0, %s214
      %s232 = sphi 0, %s232
      %s234 = sphi 0, %s232
      %s235 = sphi 0, %s234
      %s249 = sphi 0, %s235
      %s253 = sphi 0, %s253
      %s255 = sphi 0, %s253
      %s256 = sphi 0, %s255
      %s270 = sphi 0, %s256
      %s274 = sphi 0, %s274
      %s276 = sphi 0, %s274
      %s277 = sphi 0, %s276
      %s291 = sphi 0, %s277
      %s297 = sphi 0, %s299
      %s300 = sphi 0, %s297
      %s301 = sphi 0, %s300
      %s317 = sphi 0, %s301
    $region4: #{tpu_custom_call.1} parent=1 // loop_header_branch
      %33 = sbr.rel (%p31) target = $region8
    $region5: #{tpu_custom_call.1} parent=1 // loop_body
      %s35 = ssub.s32 %s30, 1
      %s36 = ssub.s32 %s30, 2
      %s37 = sadd.s32 %s30, 1
      %s38 = ssub.s32 %s30, %s37
      %p39 = scmp.eq.s32.totalorder %s38, 0
      %s41 = sadd.s32 %s40, 1
      %s42 = scalar_select %p39, %s40, %s41
      %p45 = pneg %p39
      %p46 = scmp.eq.s32.totalorder %s30, 1
      %p47 = por %p45, %p46
      %p48 = scmp.ne.s32.totalorder %s40, %s43
      %p49 = scmp.eq.s32.totalorder %s30, 0
      %p50 = por %p48, %p49
      %p51 = scmp.ne.s32.totalorder %s40, %s43
      %p52 = scmp.eq.s32.totalorder %s35, 1
      %p53 = por %p51, %p52
      %p54 = scmp.ne.s32.totalorder %s43, %s44
      %p55 = scmp.eq.s32.totalorder %s35, 0
      %p56 = por %p54, %p55
      %p57 = scmp.ne.s32.totalorder %s43, %s44
      %p58 = scmp.eq.s32.totalorder %s36, 1
      %p59 = por %p57, %p58
      %p61 = scmp.ne.s32.totalorder %s44, %s60
      %p62 = scmp.eq.s32.totalorder %s36, 0
      %p63 = por %p61, %p62
      %s65 = sadd.s32 %s64, 1
      %p68 = scmp.eq.s32.totalorder %s30, 1
      %p69 = scmp.ne.s32.totalorder %s64, %s66
      %p70 = scmp.eq.s32.totalorder %s30, 0
      %p71 = por %p69, %p70
      %p72 = scmp.ne.s32.totalorder %s64, %s66
      %p73 = scmp.eq.s32.totalorder %s35, 1
      %p74 = por %p72, %p73
      %p75 = scmp.ne.s32.totalorder %s66, %s67
      %p76 = scmp.eq.s32.totalorder %s35, 0
      %p77 = por %p75, %p76
      %p78 = scmp.ne.s32.totalorder %s66, %s67
      %p79 = scmp.eq.s32.totalorder %s36, 1
      %p80 = por %p78, %p79
      %p82 = scmp.ne.s32.totalorder %s67, %s81
      %p83 = scmp.eq.s32.totalorder %s36, 0
      %p84 = por %p82, %p83
      %s86 = sadd.s32 %s85, 1
      %p89 = scmp.eq.s32.totalorder %s30, 1
      %p90 = scmp.ne.s32.totalorder %s85, %s87
      %p91 = scmp.eq.s32.totalorder %s30, 0
      %p92 = por %p90, %p91
      %p93 = scmp.ne.s32.totalorder %s85, %s87
      %p94 = scmp.eq.s32.totalorder %s35, 1
      %p95 = por %p93, %p94
      %p96 = scmp.ne.s32.totalorder %s87, %s88
      %p97 = scmp.eq.s32.totalorder %s35, 0
      %p98 = por %p96, %p97
      %p99 = scmp.ne.s32.totalorder %s87, %s88
      %p100 = scmp.eq.s32.totalorder %s36, 1
      %p101 = por %p99, %p100
      %p103 = scmp.ne.s32.totalorder %s88, %s102
      %p104 = scmp.eq.s32.totalorder %s36, 0
      %p105 = por %p103, %p104
      %s107 = sadd.s32 %s106, 1
      %p110 = scmp.eq.s32.totalorder %s30, 1
      %p111 = scmp.ne.s32.totalorder %s106, %s108
      %p112 = scmp.eq.s32.totalorder %s30, 0
      %p113 = por %p111, %p112
      %p114 = scmp.ne.s32.totalorder %s106, %s108
      %p115 = scmp.eq.s32.totalorder %s35, 1
      %p116 = por %p114, %p115
      %p117 = scmp.ne.s32.totalorder %s108, %s109
      %p118 = scmp.eq.s32.totalorder %s35, 0
      %p119 = por %p117, %p118
      %p120 = scmp.ne.s32.totalorder %s108, %s109
      %p121 = scmp.eq.s32.totalorder %s36, 1
      %p122 = por %p120, %p121
      %p124 = scmp.ne.s32.totalorder %s109, %s123
      %p125 = scmp.eq.s32.totalorder %s36, 0
      %p126 = por %p124, %p125
      %s128 = sadd.s32 %s127, 1
      %p131 = scmp.eq.s32.totalorder %s30, 1
      %p132 = scmp.ne.s32.totalorder %s127, %s129
      %p133 = scmp.eq.s32.totalorder %s30, 0
      %p134 = por %p132, %p133
      %p135 = scmp.ne.s32.totalorder %s127, %s129
      %p136 = scmp.eq.s32.totalorder %s35, 1
      %p137 = por %p135, %p136
      %p138 = scmp.ne.s32.totalorder %s129, %s130
      %p139 = scmp.eq.s32.totalorder %s35, 0
      %p140 = por %p138, %p139
      %p141 = scmp.ne.s32.totalorder %s129, %s130
      %p142 = scmp.eq.s32.totalorder %s36, 1
      %p143 = por %p141, %p142
      %p145 = scmp.ne.s32.totalorder %s130, %s144
      %p146 = scmp.eq.s32.totalorder %s36, 0
      %p147 = por %p145, %p146
      %s149 = sadd.s32 %s148, 1
      %p152 = scmp.eq.s32.totalorder %s30, 1
      %p153 = scmp.ne.s32.totalorder %s148, %s150
      %p154 = scmp.eq.s32.totalorder %s30, 0
      %p155 = por %p153, %p154
      %p156 = scmp.ne.s32.totalorder %s148, %s150
      %p157 = scmp.eq.s32.totalorder %s35, 1
      %p158 = por %p156, %p157
      %p159 = scmp.ne.s32.totalorder %s150, %s151
      %p160 = scmp.eq.s32.totalorder %s35, 0
      %p161 = por %p159, %p160
      %p162 = scmp.ne.s32.totalorder %s150, %s151
      %p163 = scmp.eq.s32.totalorder %s36, 1
      %p164 = por %p162, %p163
      %p166 = scmp.ne.s32.totalorder %s151, %s165
      %p167 = scmp.eq.s32.totalorder %s36, 0
      %p168 = por %p166, %p167
      %s170 = sadd.s32 %s169, 1
      %p173 = scmp.eq.s32.totalorder %s30, 1
      %p174 = scmp.ne.s32.totalorder %s169, %s171
      %p175 = scmp.eq.s32.totalorder %s30, 0
      %p176 = por %p174, %p175
      %p177 = scmp.ne.s32.totalorder %s169, %s171
      %p178 = scmp.eq.s32.totalorder %s35, 1
      %p179 = por %p177, %p178
      %p180 = scmp.ne.s32.totalorder %s171, %s172
      %p181 = scmp.eq.s32.totalorder %s35, 0
      %p182 = por %p180, %p181
      %p183 = scmp.ne.s32.totalorder %s171, %s172
      %p184 = scmp.eq.s32.totalorder %s36, 1
      %p185 = por %p183, %p184
      %p187 = scmp.ne.s32.totalorder %s172, %s186
      %p188 = scmp.eq.s32.totalorder %s36, 0
      %p189 = por %p187, %p188
      %s191 = sadd.s32 %s190, 1
      %p194 = scmp.eq.s32.totalorder %s30, 1
      %p195 = scmp.ne.s32.totalorder %s190, %s192
      %p196 = scmp.eq.s32.totalorder %s30, 0
      %p197 = por %p195, %p196
      %p198 = scmp.ne.s32.totalorder %s190, %s192
      %p199 = scmp.eq.s32.totalorder %s35, 1
      %p200 = por %p198, %p199
      %p201 = scmp.ne.s32.totalorder %s192, %s193
      %p202 = scmp.eq.s32.totalorder %s35, 0
      %p203 = por %p201, %p202
      %p204 = scmp.ne.s32.totalorder %s192, %s193
      %p205 = scmp.eq.s32.totalorder %s36, 1
      %p206 = por %p204, %p205
      %p208 = scmp.ne.s32.totalorder %s193, %s207
      %p209 = scmp.eq.s32.totalorder %s36, 0
      %p210 = por %p208, %p209
      %s212 = sadd.s32 %s211, 1
      %p215 = scmp.eq.s32.totalorder %s30, 1
      %p216 = scmp.ne.s32.totalorder %s211, %s213
      %p217 = scmp.eq.s32.totalorder %s30, 0
      %p218 = por %p216, %p217
      %p219 = scmp.ne.s32.totalorder %s211, %s213
      %p220 = scmp.eq.s32.totalorder %s35, 1
      %p221 = por %p219, %p220
      %p222 = scmp.ne.s32.totalorder %s213, %s214
      %p223 = scmp.eq.s32.totalorder %s35, 0
      %p224 = por %p222, %p223
      %p225 = scmp.ne.s32.totalorder %s213, %s214
      %p226 = scmp.eq.s32.totalorder %s36, 1
      %p227 = por %p225, %p226
      %p229 = scmp.ne.s32.totalorder %s214, %s228
      %p230 = scmp.eq.s32.totalorder %s36, 0
      %p231 = por %p229, %p230
      %s233 = sadd.s32 %s232, 1
      %p236 = scmp.eq.s32.totalorder %s30, 1
      %p237 = scmp.ne.s32.totalorder %s232, %s234
      %p238 = scmp.eq.s32.totalorder %s30, 0
      %p239 = por %p237, %p238
      %p240 = scmp.ne.s32.totalorder %s232, %s234
      %p241 = scmp.eq.s32.totalorder %s35, 1
      %p242 = por %p240, %p241
      %p243 = scmp.ne.s32.totalorder %s234, %s235
      %p244 = scmp.eq.s32.totalorder %s35, 0
      %p245 = por %p243, %p244
      %p246 = scmp.ne.s32.totalorder %s234, %s235
      %p247 = scmp.eq.s32.totalorder %s36, 1
      %p248 = por %p246, %p247
      %p250 = scmp.ne.s32.totalorder %s235, %s249
      %p251 = scmp.eq.s32.totalorder %s36, 0
      %p252 = por %p250, %p251
      %s254 = sadd.s32 %s253, 1
      %p257 = scmp.eq.s32.totalorder %s30, 1
      %p258 = scmp.ne.s32.totalorder %s253, %s255
      %p259 = scmp.eq.s32.totalorder %s30, 0
      %p260 = por %p258, %p259
      %p261 = scmp.ne.s32.totalorder %s253, %s255
      %p262 = scmp.eq.s32.totalorder %s35, 1
      %p263 = por %p261, %p262
      %p264 = scmp.ne.s32.totalorder %s255, %s256
      %p265 = scmp.eq.s32.totalorder %s35, 0
      %p266 = por %p264, %p265
      %p267 = scmp.ne.s32.totalorder %s255, %s256
      %p268 = scmp.eq.s32.totalorder %s36, 1
      %p269 = por %p267, %p268
      %p271 = scmp.ne.s32.totalorder %s256, %s270
      %p272 = scmp.eq.s32.totalorder %s36, 0
      %p273 = por %p271, %p272
      %s275 = sadd.s32 %s274, 1
      %p278 = scmp.eq.s32.totalorder %s30, 1
      %p279 = scmp.ne.s32.totalorder %s274, %s276
      %p280 = scmp.eq.s32.totalorder %s30, 0
      %p281 = por %p279, %p280
      %p282 = scmp.ne.s32.totalorder %s274, %s276
      %p283 = scmp.eq.s32.totalorder %s35, 1
      %p284 = por %p282, %p283
      %p285 = scmp.ne.s32.totalorder %s276, %s277
      %p286 = scmp.eq.s32.totalorder %s35, 0
      %p287 = por %p285, %p286
      %p288 = scmp.ne.s32.totalorder %s276, %s277
      %p289 = scmp.eq.s32.totalorder %s36, 1
      %p290 = por %p288, %p289
      %p292 = scmp.ne.s32.totalorder %s277, %s291
      %p293 = scmp.eq.s32.totalorder %s36, 0
      %p294 = por %p292, %p293
      %s295 = ssub.s32 %s30, %s37
      %p296 = scmp.eq.s32.totalorder %s295, 0
      %s298 = sadd.s32 %s297, 1
      %s299 = scalar_select %p296, %s297, %s298
      %p302 = pneg %p296
      %p303 = scmp.eq.s32.totalorder %s30, 1
      %p304 = por %p302, %p303
      %p305 = scmp.ne.s32.totalorder %s297, %s300
      %p306 = scmp.eq.s32.totalorder %s30, 0
      %p307 = por %p305, %p306
      %p308 = scmp.ne.s32.totalorder %s297, %s300
      %p309 = scmp.eq.s32.totalorder %s35, 1
      %p310 = por %p308, %p309
      %p311 = scmp.ne.s32.totalorder %s300, %s301
      %p312 = scmp.eq.s32.totalorder %s35, 0
      %p313 = por %p311, %p312
      %p314 = scmp.ne.s32.totalorder %s300, %s301
      %p315 = scmp.eq.s32.totalorder %s36, 1
      %p316 = por %p314, %p315
      %p318 = scmp.ne.s32.totalorder %s301, %s317
      %p319 = scmp.eq.s32.totalorder %s36, 0
      %p320 = por %p318, %p319
      %p321 = scmp.le.s32.totalorder 1, %s30
      %p322 = scmp.lt.s32.totalorder %s30, 3
      %p323 = pnand %p321, %p322
      %p324 = pneg %p323
      // Predicated region
      $region9: #{tpu_custom_call.1} parent=5 // pred_check
        _
      $region10: #{tpu_custom_call.1} parent=5 // pred_check_branch
        %326 = sbr.rel (%p323) target = $region12
      $region11: #{tpu_custom_call.1} parent=5 // pred_region
        %s327 = ssub.s32 %s30, 1
        // Predicated region
        $region13: #{tpu_custom_call.1} parent=11 // pred_check
          %p328 = pneg %p77
        $region14: #{tpu_custom_call.1} parent=11 // pred_check_branch
          %330 = sbr.rel (%p328) target = $region16
        $region15: #{tpu_custom_call.1} parent=11 // pred_region
          %332 = vsyncadd [#allocation7], 0
          %s334 = sshll.u32 %s1, 4
          %s335 = int_to_ptr.hbm [resolvable:$true] %s334
          %s336 = sshll.u32 [#allocation6], 4
          %s337 = int_to_ptr.vmem [resolvable:$true] %s336
          %339 = dma.hbm_to_vmem [thread:$0]  %s335, 48, %s337, [#allocation7]
        $region16: #{tpu_custom_call.1} parent=11 // pred_fallthru
          _
        // Predicated region
        $region17: #{tpu_custom_call.1} parent=11 // pred_check
          %p340 = pneg %p98
        $region18: #{tpu_custom_call.1} parent=11 // pred_check_branch
          %342 = sbr.rel (%p340) target = $region20
        $region19: #{tpu_custom_call.1} parent=11 // pred_region
          %344 = vsyncadd [#allocation7], 0
          %s346 = sshll.u32 %s2, 4
          %s347 = int_to_ptr.hbm [resolvable:$true] %s346
          %s348 = sshll.u32 [#allocation8], 4
          %s349 = int_to_ptr.vmem [resolvable:$true] %s348
          %351 = dma.hbm_to_vmem [thread:$0]  %s347, 48, %s349, [#allocation7]
        $region20: #{tpu_custom_call.1} parent=11 // pred_fallthru
          _
        // Predicated region
        $region21: #{tpu_custom_call.1} parent=11 // pred_check
          %p352 = pneg %p119
        $region22: #{tpu_custom_call.1} parent=11 // pred_check_branch
          %354 = sbr.rel (%p352) target = $region24
        $region23: #{tpu_custom_call.1} parent=11 // pred_region
          %356 = vsyncadd [#allocation10], 0
          %s357 = sshll.u32 %s3, 4
          %s358 = int_to_ptr.hbm [resolvable:$true] %s357
          %s359 = sshll.u32 [#allocation9], 4
          %s360 = int_to_ptr.vmem [resolvable:$true] %s359
          %365 = dma.hbm_to_vmem [thread:$0]  %s358, 27648, %s360, [#allocation10], 576, 576, 36
        $region24: #{tpu_custom_call.1} parent=11 // pred_fallthru
          _
        // Predicated region
        $region25: #{tpu_custom_call.1} parent=11 // pred_check
          %p366 = pneg %p140
        $region26: #{tpu_custom_call.1} parent=11 // pred_check_branch
          %368 = sbr.rel (%p366) target = $region28
        $region27: #{tpu_custom_call.1} parent=11 // pred_region
          %370 = vsyncadd [#allocation10], 0
          %s371 = sshll.u32 %s4, 4
          %s372 = int_to_ptr.hbm [resolvable:$true] %s371
          %s373 = sshll.u32 [#allocation11], 4
          %s374 = int_to_ptr.vmem [resolvable:$true] %s373
          %379 = dma.hbm_to_vmem [thread:$0]  %s372, 9216, %s374, [#allocation10], 192, 192, 12
        $region28: #{tpu_custom_call.1} parent=11 // pred_fallthru
          _
        // Predicated region
        $region29: #{tpu_custom_call.1} parent=11 // pred_check
          %p380 = pneg %p161
        $region30: #{tpu_custom_call.1} parent=11 // pred_check_branch
          %382 = sbr.rel (%p380) target = $region32
        $region31: #{tpu_custom_call.1} parent=11 // pred_region
          %384 = vsyncadd [#allocation13], 0
          %s386 = sshll.u32 %s5, 4
          %s387 = int_to_ptr.hbm [resolvable:$true] %s386
          %s388 = sshll.u32 [#allocation12], 4
          %s389 = int_to_ptr.vmem [resolvable:$true] %s388
          %391 = dma.hbm_to_vmem [thread:$0]  %s387, 48, %s389, [#allocation13]
        $region32: #{tpu_custom_call.1} parent=11 // pred_fallthru
          _
        // Predicated region
        $region33: #{tpu_custom_call.1} parent=11 // pred_check
          %p392 = pneg %p182
        $region34: #{tpu_custom_call.1} parent=11 // pred_check_branch
          %394 = sbr.rel (%p392) target = $region36
        $region35: #{tpu_custom_call.1} parent=11 // pred_region
          %396 = vsyncadd [#allocation13], 0
          %s398 = sshll.u32 %s6, 4
          %s399 = int_to_ptr.hbm [resolvable:$true] %s398
          %s400 = sshll.u32 [#allocation14], 4
          %s401 = int_to_ptr.vmem [resolvable:$true] %s400
          %403 = dma.hbm_to_vmem [thread:$0]  %s399, 48, %s401, [#allocation13]
        $region36: #{tpu_custom_call.1} parent=11 // pred_fallthru
          _
        // Predicated region
        $region37: #{tpu_custom_call.1} parent=11 // pred_check
          %p404 = pneg %p203
        $region38: #{tpu_custom_call.1} parent=11 // pred_check_branch
          %406 = sbr.rel (%p404) target = $region40
        $region39: #{tpu_custom_call.1} parent=11 // pred_region
          %408 = vsyncadd [#allocation16], 0
          %s410 = sshll.u32 %s7, 4
          %s411 = int_to_ptr.hbm [resolvable:$true] %s410
          %s412 = sshll.u32 [#allocation15], 4
          %s413 = int_to_ptr.vmem [resolvable:$true] %s412
          %415 = dma.hbm_to_vmem [thread:$0]  %s411, 48, %s413, [#allocation16]
        $region40: #{tpu_custom_call.1} parent=11 // pred_fallthru
          _
        // Predicated region
        $region41: #{tpu_custom_call.1} parent=11 // pred_check
          %p416 = pneg %p224
        $region42: #{tpu_custom_call.1} parent=11 // pred_check_branch
          %418 = sbr.rel (%p416) target = $region44
        $region43: #{tpu_custom_call.1} parent=11 // pred_region
          %420 = vsyncadd [#allocation16], 0
          %s421 = sshll.u32 %s8, 4
          %s422 = int_to_ptr.hbm [resolvable:$true] %s421
          %s423 = sshll.u32 [#allocation17], 4
          %s424 = int_to_ptr.vmem [resolvable:$true] %s423
          %429 = dma.hbm_to_vmem [thread:$0]  %s422, 36864, %s424, [#allocation16], 768, 768, 48
        $region44: #{tpu_custom_call.1} parent=11 // pred_fallthru
          _
        // Predicated region
        $region45: #{tpu_custom_call.1} parent=11 // pred_check
          %p430 = pneg %p245
        $region46: #{tpu_custom_call.1} parent=11 // pred_check_branch
          %432 = sbr.rel (%p430) target = $region48
        $region47: #{tpu_custom_call.1} parent=11 // pred_region
          %434 = vsyncadd [#allocation19], 0
          %s436 = sshll.u32 %s9, 4
          %s437 = int_to_ptr.hbm [resolvable:$true] %s436
          %s438 = sshll.u32 [#allocation18], 4
          %s439 = int_to_ptr.vmem [resolvable:$true] %s438
          %441 = dma.hbm_to_vmem [thread:$0]  %s437, 192, %s439, [#allocation19]
        $region48: #{tpu_custom_call.1} parent=11 // pred_fallthru
          _
        // Predicated region
        $region49: #{tpu_custom_call.1} parent=11 // pred_check
          %p442 = pneg %p266
        $region50: #{tpu_custom_call.1} parent=11 // pred_check_branch
          %444 = sbr.rel (%p442) target = $region52
        $region51: #{tpu_custom_call.1} parent=11 // pred_region
          %446 = vsyncadd [#allocation19], 0
          %s447 = sshll.u32 %s10, 4
          %s448 = int_to_ptr.hbm [resolvable:$true] %s447
          %s449 = sshll.u32 [#allocation20], 4
          %s450 = int_to_ptr.vmem [resolvable:$true] %s449
          %455 = dma.hbm_to_vmem [thread:$0]  %s448, 36864, %s450, [#allocation19], 192, 192, 12
        $region52: #{tpu_custom_call.1} parent=11 // pred_fallthru
          _
        // Predicated region
        $region53: #{tpu_custom_call.1} parent=11 // pred_check
          %p456 = pneg %p287
        $region54: #{tpu_custom_call.1} parent=11 // pred_check_branch
          %458 = sbr.rel (%p456) target = $region56
        $region55: #{tpu_custom_call.1} parent=11 // pred_region
          %460 = vsyncadd [#allocation22], 0
          %s462 = sshll.u32 %s11, 4
          %s463 = int_to_ptr.hbm [resolvable:$true] %s462
          %s464 = sshll.u32 [#allocation21], 4
          %s465 = int_to_ptr.vmem [resolvable:$true] %s464
          %467 = dma.hbm_to_vmem [thread:$0]  %s463, 48, %s465, [#allocation22]
        $region56: #{tpu_custom_call.1} parent=11 // pred_fallthru
          _
      $region12: #{tpu_custom_call.1} parent=5 // pred_fallthru
        _
      %p468 = scmp.lt.s32.totalorder %s30, 2
      // Predicated region
      $region57: #{tpu_custom_call.1} parent=5 // pred_check
        %p469 = pneg %p468
      $region58: #{tpu_custom_call.1} parent=5 // pred_check_branch
        %471 = sbr.rel (%p469) target = $region60
      $region59: #{tpu_custom_call.1} parent=5 // pred_region
        // Predicated region
        $region61: #{tpu_custom_call.1} parent=59 // pred_check
          %p472 = pneg %p50
        $region62: #{tpu_custom_call.1} parent=59 // pred_check_branch
          %474 = sbr.rel (%p472) target = $region64
        $region63: #{tpu_custom_call.1} parent=59 // pred_region
          %s475 = sand.u32 %s40, 1
          %s476 = scalar_lea.sflag [#allocation4], %s475
          %s477 = sand.u32 %s40, 1
          %s478 = smul.addr %s477, 192
          %s479 = scalar_lea.vmem [#allocation3], %s478
          %s480 = smul.u32 8, %s30
          %482 = vsyncadd %s476, 0
          %s483 = smul.addr %s480, 3
          %s484 = smul.addr %s483, 8
          %s485 = scalar_lea.hbm %s0, %s484
          %s486 = sshll.u32 %s485, 4
          %s487 = int_to_ptr.hbm [resolvable:$true] %s486
          %s488 = sshll.u32 %s479, 4
          %s489 = int_to_ptr.vmem [resolvable:$true] %s488
          %494 = dma.hbm_to_vmem [thread:$0]  %s487, 3072, %s489, %s476, 384, 384, 24
        $region64: #{tpu_custom_call.1} parent=59 // pred_fallthru
          _
      $region60: #{tpu_custom_call.1} parent=5 // pred_fallthru
        _
      %p495 = scmp.le.s32.totalorder 1, %s30
      %p496 = scmp.lt.s32.totalorder %s30, 3
      %p497 = pnand %p495, %p496
      %p498 = pneg %p497
      // Predicated region
      $region65: #{tpu_custom_call.1} parent=5 // pred_check
        _
      $region66: #{tpu_custom_call.1} parent=5 // pred_check_branch
        %500 = sbr.rel (%p497) target = $region68
      $region67: #{tpu_custom_call.1} parent=5 // pred_region
        %s501 = ssub.s32 %s30, 1
        %s502 = sand.u32 %s43, 1
        %s503 = scalar_lea.sflag [#allocation4], %s502
        %s504 = sand.u32 %s43, 1
        %s505 = smul.addr %s504, 192
        %s506 = scalar_lea.vmem [#allocation3], %s505
        // Predicated region
        $region69: #{tpu_custom_call.1} parent=67 // pred_check
          %p507 = pneg %p56
        $region70: #{tpu_custom_call.1} parent=67 // pred_check_branch
          %509 = sbr.rel (%p507) target = $region72
        $region71: #{tpu_custom_call.1} parent=67 // pred_region
          %511 = dma.done %s503, 3072
        $region72: #{tpu_custom_call.1} parent=67 // pred_fallthru
          _
        // Predicated region
        $region73: #{tpu_custom_call.1} parent=67 // pred_check
          %p512 = pneg %p77
        $region74: #{tpu_custom_call.1} parent=67 // pred_check_branch
          %514 = sbr.rel (%p512) target = $region76
        $region75: #{tpu_custom_call.1} parent=67 // pred_region
          %516 = dma.done [#allocation7], 48
        $region76: #{tpu_custom_call.1} parent=67 // pred_fallthru
          _
        // Predicated region
        $region77: #{tpu_custom_call.1} parent=67 // pred_check
          %p517 = pneg %p98
        $region78: #{tpu_custom_call.1} parent=67 // pred_check_branch
          %519 = sbr.rel (%p517) target = $region80
        $region79: #{tpu_custom_call.1} parent=67 // pred_region
          %521 = dma.done [#allocation7], 48
        $region80: #{tpu_custom_call.1} parent=67 // pred_fallthru
          _
        // Predicated region
        $region81: #{tpu_custom_call.1} parent=67 // pred_check
          %p522 = pneg %p119
        $region82: #{tpu_custom_call.1} parent=67 // pred_check_branch
          %524 = sbr.rel (%p522) target = $region84
        $region83: #{tpu_custom_call.1} parent=67 // pred_region
          %526 = dma.done [#allocation10], 27648
        $region84: #{tpu_custom_call.1} parent=67 // pred_fallthru
          _
        // Predicated region
        $region85: #{tpu_custom_call.1} parent=67 // pred_check
          %p527 = pneg %p140
        $region86: #{tpu_custom_call.1} parent=67 // pred_check_branch
          %529 = sbr.rel (%p527) target = $region88
        $region87: #{tpu_custom_call.1} parent=67 // pred_region
          %531 = dma.done [#allocation10], 9216
        $region88: #{tpu_custom_call.1} parent=67 // pred_fallthru
          _
        // Predicated region
        $region89: #{tpu_custom_call.1} parent=67 // pred_check
          %p532 = pneg %p161
        $region90: #{tpu_custom_call.1} parent=67 // pred_check_branch
          %534 = sbr.rel (%p532) target = $region92
        $region91: #{tpu_custom_call.1} parent=67 // pred_region
          %536 = dma.done [#allocation13], 48
        $region92: #{tpu_custom_call.1} parent=67 // pred_fallthru
          _
        // Predicated region
        $region93: #{tpu_custom_call.1} parent=67 // pred_check
          %p537 = pneg %p182
        $region94: #{tpu_custom_call.1} parent=67 // pred_check_branch
          %539 = sbr.rel (%p537) target = $region96
        $region95: #{tpu_custom_call.1} parent=67 // pred_region
          %541 = dma.done [#allocation13], 48
        $region96: #{tpu_custom_call.1} parent=67 // pred_fallthru
          _
        // Predicated region
        $region97: #{tpu_custom_call.1} parent=67 // pred_check
          %p542 = pneg %p203
        $region98: #{tpu_custom_call.1} parent=67 // pred_check_branch
          %544 = sbr.rel (%p542) target = $region100
        $region99: #{tpu_custom_call.1} parent=67 // pred_region
          %546 = dma.done [#allocation16], 48
        $region100: #{tpu_custom_call.1} parent=67 // pred_fallthru
          _
        // Predicated region
        $region101: #{tpu_custom_call.1} parent=67 // pred_check
          %p547 = pneg %p224
        $region102: #{tpu_custom_call.1} parent=67 // pred_check_branch
          %549 = sbr.rel (%p547) target = $region104
        $region103: #{tpu_custom_call.1} parent=67 // pred_region
          %551 = dma.done [#allocation16], 36864
        $region104: #{tpu_custom_call.1} parent=67 // pred_fallthru
          _
        // Predicated region
        $region105: #{tpu_custom_call.1} parent=67 // pred_check
          %p552 = pneg %p245
        $region106: #{tpu_custom_call.1} parent=67 // pred_check_branch
          %554 = sbr.rel (%p552) target = $region108
        $region107: #{tpu_custom_call.1} parent=67 // pred_region
          %556 = dma.done [#allocation19], 192
        $region108: #{tpu_custom_call.1} parent=67 // pred_fallthru
          _
        // Predicated region
        $region109: #{tpu_custom_call.1} parent=67 // pred_check
          %p557 = pneg %p266
        $region110: #{tpu_custom_call.1} parent=67 // pred_check_branch
          %559 = sbr.rel (%p557) target = $region112
        $region111: #{tpu_custom_call.1} parent=67 // pred_region
          %561 = dma.done [#allocation19], 36864
        $region112: #{tpu_custom_call.1} parent=67 // pred_fallthru
          _
        // Predicated region
        $region113: #{tpu_custom_call.1} parent=67 // pred_check
          %p562 = pneg %p287
        $region114: #{tpu_custom_call.1} parent=67 // pred_check_branch
          %564 = sbr.rel (%p562) target = $region116
        $region115: #{tpu_custom_call.1} parent=67 // pred_region
          %566 = dma.done [#allocation22], 48
        $region116: #{tpu_custom_call.1} parent=67 // pred_fallthru
          _
        %s567 = sand.u32 %s43, 1
        %s568 = scalar_lea.sflag [#allocation4], %s567
        %s569 = sand.u32 %s43, 1
        %s570 = smul.addr %s569, 192
        %s571 = scalar_lea.vmem [#allocation3], %s570
        %p572 = pneg %p56
        %p573 = pneg %p53
        %p574 = pneg %p77
        %p575 = pneg %p74
        %p576 = pneg %p98
        %p577 = pneg %p95
        %p578 = pneg %p119
        %p579 = pneg %p116
        %p580 = pneg %p140
        %p581 = pneg %p137
        %p582 = pneg %p161
        %p583 = pneg %p158
        %p584 = pneg %p182
        %p585 = pneg %p179
        %p586 = pneg %p203
        %p587 = pneg %p200
        %p588 = pneg %p224
        %p589 = pneg %p221
        %p590 = pneg %p245
        %p591 = pneg %p242
        %p592 = pneg %p266
        %p593 = pneg %p263
        %p594 = pneg %p287
        %p595 = pneg %p284
        %p596 = pneg %p313
        %p597 = pneg %p310
        %s598 = sand.u32 %s300, 1
        %s599 = scalar_lea.sflag [#allocation5], %s598
        %s600 = sand.u32 %s300, 1
        %s601 = smul.addr %s600, 192
        %s602 = scalar_lea.vmem [#allocation23], %s601
        %s603 = smul.u32 8, %s35
        %s604 = smul.u32 8, %s35
        %v606 = vld [vmem:[%s506] sm:$0xff]
        %v607 = vld [vmem:[%s506 + $0x8] sm:$0xff]
        %v608 = vld [vmem:[%s506 + $0x10] sm:$0xff]
        %v609 = vld [vmem:[%s506 + $0x18] sm:$0xff]
        %v610 = vld [vmem:[%s506 + $0x20] sm:$0xff]
        %v611 = vld [vmem:[%s506 + $0x28] sm:$0xff]
        %v612 = vld [vmem:[%s506 + $0x30] sm:$0xff]
        %v613 = vld [vmem:[%s506 + $0x38] sm:$0xff]
        %v614 = vld [vmem:[%s506 + $0x40] sm:$0xff]
        %v615 = vld [vmem:[%s506 + $0x48] sm:$0xff]
        %v616 = vld [vmem:[%s506 + $0x50] sm:$0xff]
        %v617 = vld [vmem:[%s506 + $0x58] sm:$0xff]
        %v618 = vld [vmem:[%s506 + $0x60] sm:$0xff]
        %v619 = vld [vmem:[%s506 + $0x68] sm:$0xff]
        %v620 = vld [vmem:[%s506 + $0x70] sm:$0xff]
        %v621 = vld [vmem:[%s506 + $0x78] sm:$0xff]
        %v622 = vld [vmem:[%s506 + $0x80] sm:$0xff]
        %v623 = vld [vmem:[%s506 + $0x88] sm:$0xff]
        %v624 = vld [vmem:[%s506 + $0x90] sm:$0xff]
        %v625 = vld [vmem:[%s506 + $0x98] sm:$0xff]
        %v626 = vld [vmem:[%s506 + $0xa0] sm:$0xff]
        %v627 = vld [vmem:[%s506 + $0xa8] sm:$0xff]
        %v628 = vld [vmem:[%s506 + $0xb0] sm:$0xff]
        %v629 = vld [vmem:[%s506 + $0xb8] sm:$0xff]
        %v630 = vld [vmem:[#allocation6] sm:$0x7]
        %v631 = vld [vmem:[#allocation8] sm:$0x7]
        %v632 = vadd.f32 %v606, %v607
        %v633 = vadd.f32 %v632, %v608
        %634 = vadd.xlane.f32.xlu0 %v633
        %v635 = vpop.xlane.xlu0 %634
        %v636 = vadd.f32 %v609, %v610
        %v637 = vadd.f32 %v636, %v611
        %638 = vadd.xlane.f32.xlu0 %v637
        %v639 = vpop.xlane.xlu0 %638
        %v640 = vadd.f32 %v612, %v613
        %v641 = vadd.f32 %v640, %v614
        %642 = vadd.xlane.f32.xlu0 %v641
        %v643 = vpop.xlane.xlu0 %642
        %v644 = vadd.f32 %v615, %v616
        %v645 = vadd.f32 %v644, %v617
        %646 = vadd.xlane.f32.xlu0 %v645
        %v647 = vpop.xlane.xlu0 %646
        %v648 = vadd.f32 %v618, %v619
        %v649 = vadd.f32 %v648, %v620
        %650 = vadd.xlane.f32.xlu0 %v649
        %v651 = vpop.xlane.xlu0 %650
        %v652 = vadd.f32 %v621, %v622
        %v653 = vadd.f32 %v652, %v623
        %654 = vadd.xlane.f32.xlu0 %v653
        %v655 = vpop.xlane.xlu0 %654
        %v656 = vadd.f32 %v624, %v625
        %v657 = vadd.f32 %v656, %v626
        %658 = vadd.xlane.f32.xlu0 %v657
        %v659 = vpop.xlane.xlu0 %658
        %v660 = vadd.f32 %v627, %v628
        %v661 = vadd.f32 %v660, %v629
        %662 = vadd.xlane.f32.xlu0 %v661
        %v663 = vpop.xlane.xlu0 %662
        %v664 = vrcp.pop 384.0
        %v665 = vmul.f32 384.0, %v664
        %v666 = vsub.f32 1.0, %v665
        %v667 = vmul.f32 %v664, %v666
        %v668 = vadd.f32 %v664, %v667
        %vm669 = vweird.f32 %v664
        %v670 = vsel %vm669, %v664, %v668
        %v671 = vmul.f32 %v635, %v670
        %v672 = vmul.f32 %v639, %v670
        %v673 = vmul.f32 %v643, %v670
        %v674 = vmul.f32 %v647, %v670
        %v675 = vmul.f32 %v651, %v670
        %v676 = vmul.f32 %v655, %v670
        %v677 = vmul.f32 %v659, %v670
        %v678 = vmul.f32 %v663, %v670
        %v679 = vsub.f32 %v606, %v671
        %v680 = vsub.f32 %v607, %v671
        %v681 = vsub.f32 %v608, %v671
        %v682 = vsub.f32 %v609, %v672
        %v683 = vsub.f32 %v610, %v672
        %v684 = vsub.f32 %v611, %v672
        %v685 = vsub.f32 %v612, %v673
        %v686 = vsub.f32 %v613, %v673
        %v687 = vsub.f32 %v614, %v673
        %v688 = vsub.f32 %v615, %v674
        %v689 = vsub.f32 %v616, %v674
        %v690 = vsub.f32 %v617, %v674
        %v691 = vsub.f32 %v618, %v675
        %v692 = vsub.f32 %v619, %v675
        %v693 = vsub.f32 %v620, %v675
        %v694 = vsub.f32 %v621, %v676
        %v695 = vsub.f32 %v622, %v676
        %v696 = vsub.f32 %v623, %v676
        %v697 = vsub.f32 %v624, %v677
        %v698 = vsub.f32 %v625, %v677
        %v699 = vsub.f32 %v626, %v677
        %v700 = vsub.f32 %v627, %v678
        %v701 = vsub.f32 %v628, %v678
        %v702 = vsub.f32 %v629, %v678
        %v703 = vmul.f32 %v679, %v679
        %v704 = vmul.f32 %v680, %v680
        %v705 = vmul.f32 %v681, %v681
        %v706 = vmul.f32 %v682, %v682
        %v707 = vmul.f32 %v683, %v683
        %v708 = vmul.f32 %v684, %v684
        %v709 = vmul.f32 %v685, %v685
        %v710 = vmul.f32 %v686, %v686
        %v711 = vmul.f32 %v687, %v687
        %v712 = vmul.f32 %v688, %v688
        %v713 = vmul.f32 %v689, %v689
        %v714 = vmul.f32 %v690, %v690
        %v715 = vmul.f32 %v691, %v691
        %v716 = vmul.f32 %v692, %v692
        %v717 = vmul.f32 %v693, %v693
        %v718 = vmul.f32 %v694, %v694
        %v719 = vmul.f32 %v695, %v695
        %v720 = vmul.f32 %v696, %v696
        %v721 = vmul.f32 %v697, %v697
        %v722 = vmul.f32 %v698, %v698
        %v723 = vmul.f32 %v699, %v699
        %v724 = vmul.f32 %v700, %v700
        %v725 = vmul.f32 %v701, %v701
        %v726 = vmul.f32 %v702, %v702
        %v727 = vadd.f32 %v703, %v704
        %v728 = vadd.f32 %v727, %v705
        %729 = vadd.xlane.f32.xlu0 %v728
        %v730 = vpop.xlane.xlu0 %729
        %v731 = vadd.f32 %v706, %v707
        %v732 = vadd.f32 %v731, %v708
        %733 = vadd.xlane.f32.xlu0 %v732
        %v734 = vpop.xlane.xlu0 %733
        %v735 = vadd.f32 %v709, %v710
        %v736 = vadd.f32 %v735, %v711
        %737 = vadd.xlane.f32.xlu0 %v736
        %v738 = vpop.xlane.xlu0 %737
        %v739 = vadd.f32 %v712, %v713
        %v740 = vadd.f32 %v739, %v714
        %741 = vadd.xlane.f32.xlu0 %v740
        %v742 = vpop.xlane.xlu0 %741
        %v743 = vadd.f32 %v715, %v716
        %v744 = vadd.f32 %v743, %v717
        %745 = vadd.xlane.f32.xlu0 %v744
        %v746 = vpop.xlane.xlu0 %745
        %v747 = vadd.f32 %v718, %v719
        %v748 = vadd.f32 %v747, %v720
        %749 = vadd.xlane.f32.xlu0 %v748
        %v750 = vpop.xlane.xlu0 %749
        %v751 = vadd.f32 %v721, %v722
        %v752 = vadd.f32 %v751, %v723
        %753 = vadd.xlane.f32.xlu0 %v752
        %v754 = vpop.xlane.xlu0 %753
        %v755 = vadd.f32 %v724, %v725
        %v756 = vadd.f32 %v755, %v726
        %757 = vadd.xlane.f32.xlu0 %v756
        %v758 = vpop.xlane.xlu0 %757
        %v759 = vmul.f32 %v730, %v670
        %v760 = vmul.f32 %v734, %v670
        %v761 = vmul.f32 %v738, %v670
        %v762 = vmul.f32 %v742, %v670
        %v763 = vmul.f32 %v746, %v670
        %v764 = vmul.f32 %v750, %v670
        %v765 = vmul.f32 %v754, %v670
        %v766 = vmul.f32 %v758, %v670
        %v767 = vadd.f32 %v759, 1e-05
        %v768 = vadd.f32 %v760, 1e-05
        %v769 = vadd.f32 %v761, 1e-05
        %v770 = vadd.f32 %v762, 1e-05
        %v771 = vadd.f32 %v763, 1e-05
        %v772 = vadd.f32 %v764, 1e-05
        %v773 = vadd.f32 %v765, 1e-05
        %v774 = vadd.f32 %v766, 1e-05
        %v775 = vrsqrt.pop %v767
        %v776 = vmul.f32 %v775, %v767
        %v777 = vmul.f32 %v776, %v775
        %v778 = vmul.f32 0.5, %v777
        %v779 = vsub.f32 1.5, %v778
        %v780 = vmul.f32 %v775, %v779
        %vm781 = vweird.f32 %v767
        %vm782 = vweird.f32 %v775
        %vm783 = vmor %vm781, %vm782
        %v784 = vsel %vm783, %v775, %v780
        %v785 = vrsqrt.pop %v768
        %v786 = vmul.f32 %v785, %v768
        %v787 = vmul.f32 %v786, %v785
        %v788 = vmul.f32 0.5, %v787
        %v789 = vsub.f32 1.5, %v788
        %v790 = vmul.f32 %v785, %v789
        %vm791 = vweird.f32 %v768
        %vm792 = vweird.f32 %v785
        %vm793 = vmor %vm791, %vm792
        %v794 = vsel %vm793, %v785, %v790
        %v795 = vrsqrt.pop %v769
        %v796 = vmul.f32 %v795, %v769
        %v797 = vmul.f32 %v796, %v795
        %v798 = vmul.f32 0.5, %v797
        %v799 = vsub.f32 1.5, %v798
        %v800 = vmul.f32 %v795, %v799
        %vm801 = vweird.f32 %v769
        %vm802 = vweird.f32 %v795
        %vm803 = vmor %vm801, %vm802
        %v804 = vsel %vm803, %v795, %v800
        %v805 = vrsqrt.pop %v770
        %v806 = vmul.f32 %v805, %v770
        %v807 = vmul.f32 %v806, %v805
        %v808 = vmul.f32 0.5, %v807
        %v809 = vsub.f32 1.5, %v808
        %v810 = vmul.f32 %v805, %v809
        %vm811 = vweird.f32 %v770
        %vm812 = vweird.f32 %v805
        %vm813 = vmor %vm811, %vm812
        %v814 = vsel %vm813, %v805, %v810
        %v815 = vrsqrt.pop %v771
        %v816 = vmul.f32 %v815, %v771
        %v817 = vmul.f32 %v816, %v815
        %v818 = vmul.f32 0.5, %v817
        %v819 = vsub.f32 1.5, %v818
        %v820 = vmul.f32 %v815, %v819
        %vm821 = vweird.f32 %v771
        %vm822 = vweird.f32 %v815
        %vm823 = vmor %vm821, %vm822
        %v824 = vsel %vm823, %v815, %v820
        %v825 = vrsqrt.pop %v772
        %v826 = vmul.f32 %v825, %v772
        %v827 = vmul.f32 %v826, %v825
        %v828 = vmul.f32 0.5, %v827
        %v829 = vsub.f32 1.5, %v828
        %v830 = vmul.f32 %v825, %v829
        %vm831 = vweird.f32 %v772
        %vm832 = vweird.f32 %v825
        %vm833 = vmor %vm831, %vm832
        %v834 = vsel %vm833, %v825, %v830
        %v835 = vrsqrt.pop %v773
        %v836 = vmul.f32 %v835, %v773
        %v837 = vmul.f32 %v836, %v835
        %v838 = vmul.f32 0.5, %v837
        %v839 = vsub.f32 1.5, %v838
        %v840 = vmul.f32 %v835, %v839
        %vm841 = vweird.f32 %v773
        %vm842 = vweird.f32 %v835
        %vm843 = vmor %vm841, %vm842
        %v844 = vsel %vm843, %v835, %v840
        %v845 = vrsqrt.pop %v774
        %v846 = vmul.f32 %v845, %v774
        %v847 = vmul.f32 %v846, %v845
        %v848 = vmul.f32 0.5, %v847
        %v849 = vsub.f32 1.5, %v848
        %v850 = vmul.f32 %v845, %v849
        %vm851 = vweird.f32 %v774
        %vm852 = vweird.f32 %v845
        %vm853 = vmor %vm851, %vm852
        %v854 = vsel %vm853, %v845, %v850
        %v855 = vmul.f32 %v679, %v784
        %v856 = vmul.f32 %v680, %v784
        %v857 = vmul.f32 %v681, %v784
        %v858 = vmul.f32 %v682, %v794
        %v859 = vmul.f32 %v683, %v794
        %v860 = vmul.f32 %v684, %v794
        %v861 = vmul.f32 %v685, %v804
        %v862 = vmul.f32 %v686, %v804
        %v863 = vmul.f32 %v687, %v804
        %v864 = vmul.f32 %v688, %v814
        %v865 = vmul.f32 %v689, %v814
        %v866 = vmul.f32 %v690, %v814
        %v867 = vmul.f32 %v691, %v824
        %v868 = vmul.f32 %v692, %v824
        %v869 = vmul.f32 %v693, %v824
        %v870 = vmul.f32 %v694, %v834
        %v871 = vmul.f32 %v695, %v834
        %v872 = vmul.f32 %v696, %v834
        %v873 = vmul.f32 %v697, %v844
        %v874 = vmul.f32 %v698, %v844
        %v875 = vmul.f32 %v699, %v844
        %v876 = vmul.f32 %v700, %v854
        %v877 = vmul.f32 %v701, %v854
        %v878 = vmul.f32 %v702, %v854
        %v880 = vperm.slane %v630, 0
        %v881 = vperm.slane %v630, 1
        %v882 = vperm.slane %v630, 2
        %v886 = vmul.f32 %v855, %v880
        %v887 = vmul.f32 %v856, %v881
        %v888 = vmul.f32 %v857, %v882
        %v889 = vmul.f32 %v858, %v880
        %v890 = vmul.f32 %v859, %v881
        %v891 = vmul.f32 %v860, %v882
        %v892 = vmul.f32 %v861, %v880
        %v893 = vmul.f32 %v862, %v881
        %v894 = vmul.f32 %v863, %v882
        %v895 = vmul.f32 %v864, %v880
        %v896 = vmul.f32 %v865, %v881
        %v897 = vmul.f32 %v866, %v882
        %v898 = vmul.f32 %v867, %v880
        %v899 = vmul.f32 %v868, %v881
        %v900 = vmul.f32 %v869, %v882
        %v901 = vmul.f32 %v870, %v880
        %v902 = vmul.f32 %v871, %v881
        %v903 = vmul.f32 %v872, %v882
        %v904 = vmul.f32 %v873, %v880
        %v905 = vmul.f32 %v874, %v881
        %v906 = vmul.f32 %v875, %v882
        %v907 = vmul.f32 %v876, %v880
        %v908 = vmul.f32 %v877, %v881
        %v909 = vmul.f32 %v878, %v882
        %v911 = vperm.slane %v631, 0
        %v912 = vperm.slane %v631, 1
        %v913 = vperm.slane %v631, 2
        %v917 = vadd.f32 %v886, %v911
        %v918 = vadd.f32 %v887, %v912
        %v919 = vadd.f32 %v888, %v913
        %v920 = vadd.f32 %v889, %v911
        %v921 = vadd.f32 %v890, %v912
        %v922 = vadd.f32 %v891, %v913
        %v923 = vadd.f32 %v892, %v911
        %v924 = vadd.f32 %v893, %v912
        %v925 = vadd.f32 %v894, %v913
        %v926 = vadd.f32 %v895, %v911
        %v927 = vadd.f32 %v896, %v912
        %v928 = vadd.f32 %v897, %v913
        %v929 = vadd.f32 %v898, %v911
        %v930 = vadd.f32 %v899, %v912
        %v931 = vadd.f32 %v900, %v913
        %v932 = vadd.f32 %v901, %v911
        %v933 = vadd.f32 %v902, %v912
        %v934 = vadd.f32 %v903, %v913
        %v935 = vadd.f32 %v904, %v911
        %v936 = vadd.f32 %v905, %v912
        %v937 = vadd.f32 %v906, %v913
        %v938 = vadd.f32 %v907, %v911
        %v939 = vadd.f32 %v908, %v912
        %v940 = vadd.f32 %v909, %v913
        %v941 = vpack.c.bf16 %v920, %v917
        %v942 = vpack.c.bf16 %v921, %v918
        %v943 = vpack.c.bf16 %v922, %v919
        %v944 = vpack.c.bf16 %v926, %v923
        %v945 = vpack.c.bf16 %v927, %v924
        %v946 = vpack.c.bf16 %v928, %v925
        %v947 = vpack.c.bf16 %v932, %v929
        %v948 = vpack.c.bf16 %v933, %v930
        %v949 = vpack.c.bf16 %v934, %v931
        %v950 = vpack.c.bf16 %v938, %v935
        %v951 = vpack.c.bf16 %v939, %v936
        %v952 = vpack.c.bf16 %v940, %v937
        %v953 = vld [vmem:[#allocation9] sm:$0xff]
        %v954 = vld [vmem:[#allocation9 + $0x8] sm:$0xff]
        %v955 = vld [vmem:[#allocation9 + $0x10] sm:$0xff]
        %v956 = vld [vmem:[#allocation9 + $0x18] sm:$0xff]
        %v957 = vld [vmem:[#allocation9 + $0x20] sm:$0xf]
        %v958 = vld [vmem:[#allocation9 + $0x24] sm:$0xff]
        %v959 = vld [vmem:[#allocation9 + $0x2c] sm:$0xff]
        %v960 = vld [vmem:[#allocation9 + $0x34] sm:$0xff]
        %v961 = vld [vmem:[#allocation9 + $0x3c] sm:$0xff]
        %v962 = vld [vmem:[#allocation9 + $0x44] sm:$0xf]
        %v963 = vld [vmem:[#allocation9 + $0x48] sm:$0xff]
        %v964 = vld [vmem:[#allocation9 + $0x50] sm:$0xff]
        %v965 = vld [vmem:[#allocation9 + $0x58] sm:$0xff]
        %v966 = vld [vmem:[#allocation9 + $0x60] sm:$0xff]
        %v967 = vld [vmem:[#allocation9 + $0x68] sm:$0xf]
        %v968 = vld [vmem:[#allocation9 + $0x6c] sm:$0xff]
        %v969 = vld [vmem:[#allocation9 + $0x74] sm:$0xff]
        %v970 = vld [vmem:[#allocation9 + $0x7c] sm:$0xff]
        %v971 = vld [vmem:[#allocation9 + $0x84] sm:$0xff]
        %v972 = vld [vmem:[#allocation9 + $0x8c] sm:$0xf]
        %v973 = vld [vmem:[#allocation9 + $0x90] sm:$0xff]
        %v974 = vld [vmem:[#allocation9 + $0x98] sm:$0xff]
        %v975 = vld [vmem:[#allocation9 + $0xa0] sm:$0xff]
        %v976 = vld [vmem:[#allocation9 + $0xa8] sm:$0xff]
        %v977 = vld [vmem:[#allocation9 + $0xb0] sm:$0xf]
        %v978 = vld [vmem:[#allocation9 + $0xb4] sm:$0xff]
        %v979 = vld [vmem:[#allocation9 + $0xbc] sm:$0xff]
        %v980 = vld [vmem:[#allocation9 + $0xc4] sm:$0xff]
        %v981 = vld [vmem:[#allocation9 + $0xcc] sm:$0xff]
        %v982 = vld [vmem:[#allocation9 + $0xd4] sm:$0xf]
        %v983 = vld [vmem:[#allocation9 + $0xd8] sm:$0xff]
        %v984 = vld [vmem:[#allocation9 + $0xe0] sm:$0xff]
        %v985 = vld [vmem:[#allocation9 + $0xe8] sm:$0xff]
        %v986 = vld [vmem:[#allocation9 + $0xf0] sm:$0xff]
        %v987 = vld [vmem:[#allocation9 + $0xf8] sm:$0xf]
        %v988 = vld [vmem:[#allocation9 + $0xfc] sm:$0xff]
        %v989 = vld [vmem:[#allocation9 + $0x104] sm:$0xff]
        %v990 = vld [vmem:[#allocation9 + $0x10c] sm:$0xff]
        %v991 = vld [vmem:[#allocation9 + $0x114] sm:$0xff]
        %v992 = vld [vmem:[#allocation9 + $0x11c] sm:$0xf]
        %v993 = vld [vmem:[#allocation9 + $0x120] sm:$0xff]
        %v994 = vld [vmem:[#allocation9 + $0x128] sm:$0xff]
        %v995 = vld [vmem:[#allocation9 + $0x130] sm:$0xff]
        %v996 = vld [vmem:[#allocation9 + $0x138] sm:$0xff]
        %v997 = vld [vmem:[#allocation9 + $0x140] sm:$0xf]
        %v998 = vld [vmem:[#allocation9 + $0x144] sm:$0xff]
        %v999 = vld [vmem:[#allocation9 + $0x14c] sm:$0xff]
        %v1000 = vld [vmem:[#allocation9 + $0x154] sm:$0xff]
        %v1001 = vld [vmem:[#allocation9 + $0x15c] sm:$0xff]
        %v1002 = vld [vmem:[#allocation9 + $0x164] sm:$0xf]
        %v1003 = vld [vmem:[#allocation9 + $0x168] sm:$0xff]
        %v1004 = vld [vmem:[#allocation9 + $0x170] sm:$0xff]
        %v1005 = vld [vmem:[#allocation9 + $0x178] sm:$0xff]
        %v1006 = vld [vmem:[#allocation9 + $0x180] sm:$0xff]
        %v1007 = vld [vmem:[#allocation9 + $0x188] sm:$0xf]
        %v1008 = vld [vmem:[#allocation9 + $0x18c] sm:$0xff]
        %v1009 = vld [vmem:[#allocation9 + $0x194] sm:$0xff]
        %v1010 = vld [vmem:[#allocation9 + $0x19c] sm:$0xff]
        %v1011 = vld [vmem:[#allocation9 + $0x1a4] sm:$0xff]
        %v1012 = vld [vmem:[#allocation9 + $0x1ac] sm:$0xf]
        %v1013 = vld [vmem:[#allocation9 + $0x1b0] sm:$0xff]
        %v1014 = vld [vmem:[#allocation9 + $0x1b8] sm:$0xff]
        %v1015 = vld [vmem:[#allocation9 + $0x1c0] sm:$0xff]
        %v1016 = vld [vmem:[#allocation9 + $0x1c8] sm:$0xff]
        %v1017 = vld [vmem:[#allocation9 + $0x1d0] sm:$0xf]
        %v1018 = vld [vmem:[#allocation9 + $0x1d4] sm:$0xff]
        %v1019 = vld [vmem:[#allocation9 + $0x1dc] sm:$0xff]
        %v1020 = vld [vmem:[#allocation9 + $0x1e4] sm:$0xff]
        %v1021 = vld [vmem:[#allocation9 + $0x1ec] sm:$0xff]
        %v1022 = vld [vmem:[#allocation9 + $0x1f4] sm:$0xf]
        %v1023 = vld [vmem:[#allocation9 + $0x1f8] sm:$0xff]
        %v1024 = vld [vmem:[#allocation9 + $0x200] sm:$0xff]
        %v1025 = vld [vmem:[#allocation9 + $0x208] sm:$0xff]
        %v1026 = vld [vmem:[#allocation9 + $0x210] sm:$0xff]
        %v1027 = vld [vmem:[#allocation9 + $0x218] sm:$0xf]
        %v1028 = vld [vmem:[#allocation9 + $0x21c] sm:$0xff]
        %v1029 = vld [vmem:[#allocation9 + $0x224] sm:$0xff]
        %v1030 = vld [vmem:[#allocation9 + $0x22c] sm:$0xff]
        %v1031 = vld [vmem:[#allocation9 + $0x234] sm:$0xff]
        %v1032 = vld [vmem:[#allocation9 + $0x23c] sm:$0xf]
        %v1033 = vld [vmem:[#allocation9 + $0x240] sm:$0xff]
        %v1034 = vld [vmem:[#allocation9 + $0x248] sm:$0xff]
        %v1035 = vld [vmem:[#allocation9 + $0x250] sm:$0xff]
        %v1036 = vld [vmem:[#allocation9 + $0x258] sm:$0xff]
        %v1037 = vld [vmem:[#allocation9 + $0x260] sm:$0xf]
        %v1038 = vld [vmem:[#allocation9 + $0x264] sm:$0xff]
        %v1039 = vld [vmem:[#allocation9 + $0x26c] sm:$0xff]
        %v1040 = vld [vmem:[#allocation9 + $0x274] sm:$0xff]
        %v1041 = vld [vmem:[#allocation9 + $0x27c] sm:$0xff]
        %v1042 = vld [vmem:[#allocation9 + $0x284] sm:$0xf]
        %v1043 = vld [vmem:[#allocation9 + $0x288] sm:$0xff]
        %v1044 = vld [vmem:[#allocation9 + $0x290] sm:$0xff]
        %v1045 = vld [vmem:[#allocation9 + $0x298] sm:$0xff]
        %v1046 = vld [vmem:[#allocation9 + $0x2a0] sm:$0xff]
        %v1047 = vld [vmem:[#allocation9 + $0x2a8] sm:$0xf]
        %v1048 = vld [vmem:[#allocation9 + $0x2ac] sm:$0xff]
        %v1049 = vld [vmem:[#allocation9 + $0x2b4] sm:$0xff]
        %v1050 = vld [vmem:[#allocation9 + $0x2bc] sm:$0xff]
        %v1051 = vld [vmem:[#allocation9 + $0x2c4] sm:$0xff]
        %v1052 = vld [vmem:[#allocation9 + $0x2cc] sm:$0xf]
        %v1053 = vld [vmem:[#allocation9 + $0x2d0] sm:$0xff]
        %v1054 = vld [vmem:[#allocation9 + $0x2d8] sm:$0xff]
        %v1055 = vld [vmem:[#allocation9 + $0x2e0] sm:$0xff]
        %v1056 = vld [vmem:[#allocation9 + $0x2e8] sm:$0xff]
        %v1057 = vld [vmem:[#allocation9 + $0x2f0] sm:$0xf]
        %v1058 = vld [vmem:[#allocation9 + $0x2f4] sm:$0xff]
        %v1059 = vld [vmem:[#allocation9 + $0x2fc] sm:$0xff]
        %v1060 = vld [vmem:[#allocation9 + $0x304] sm:$0xff]
        %v1061 = vld [vmem:[#allocation9 + $0x30c] sm:$0xff]
        %v1062 = vld [vmem:[#allocation9 + $0x314] sm:$0xf]
        %v1063 = vld [vmem:[#allocation9 + $0x318] sm:$0xff]
        %v1064 = vld [vmem:[#allocation9 + $0x320] sm:$0xff]
        %v1065 = vld [vmem:[#allocation9 + $0x328] sm:$0xff]
        %v1066 = vld [vmem:[#allocation9 + $0x330] sm:$0xff]
        %v1067 = vld [vmem:[#allocation9 + $0x338] sm:$0xf]
        %v1068 = vld [vmem:[#allocation9 + $0x33c] sm:$0xff]
        %v1069 = vld [vmem:[#allocation9 + $0x344] sm:$0xff]
        %v1070 = vld [vmem:[#allocation9 + $0x34c] sm:$0xff]
        %v1071 = vld [vmem:[#allocation9 + $0x354] sm:$0xff]
        %v1072 = vld [vmem:[#allocation9 + $0x35c] sm:$0xf]
        %v1073 = vld [vmem:[#allocation9 + $0x360] sm:$0xff]
        %v1074 = vld [vmem:[#allocation9 + $0x368] sm:$0xff]
        %v1075 = vld [vmem:[#allocation9 + $0x370] sm:$0xff]
        %v1076 = vld [vmem:[#allocation9 + $0x378] sm:$0xff]
        %v1077 = vld [vmem:[#allocation9 + $0x380] sm:$0xf]
        %v1078 = vld [vmem:[#allocation9 + $0x384] sm:$0xff]
        %v1079 = vld [vmem:[#allocation9 + $0x38c] sm:$0xff]
        %v1080 = vld [vmem:[#allocation9 + $0x394] sm:$0xff]
        %v1081 = vld [vmem:[#allocation9 + $0x39c] sm:$0xff]
        %v1082 = vld [vmem:[#allocation9 + $0x3a4] sm:$0xf]
        %v1083 = vld [vmem:[#allocation9 + $0x3a8] sm:$0xff]
        %v1084 = vld [vmem:[#allocation9 + $0x3b0] sm:$0xff]
        %v1085 = vld [vmem:[#allocation9 + $0x3b8] sm:$0xff]
        %v1086 = vld [vmem:[#allocation9 + $0x3c0] sm:$0xff]
        %v1087 = vld [vmem:[#allocation9 + $0x3c8] sm:$0xf]
        %v1088 = vld [vmem:[#allocation9 + $0x3cc] sm:$0xff]
        %v1089 = vld [vmem:[#allocation9 + $0x3d4] sm:$0xff]
        %v1090 = vld [vmem:[#allocation9 + $0x3dc] sm:$0xff]
        %v1091 = vld [vmem:[#allocation9 + $0x3e4] sm:$0xff]
        %v1092 = vld [vmem:[#allocation9 + $0x3ec] sm:$0xf]
        %v1093 = vld [vmem:[#allocation9 + $0x3f0] sm:$0xff]
        %v1094 = vld [vmem:[#allocation9 + $0x3f8] sm:$0xff]
        %v1095 = vld [vmem:[#allocation9 + $0x400] sm:$0xff]
        %v1096 = vld [vmem:[#allocation9 + $0x408] sm:$0xff]
        %v1097 = vld [vmem:[#allocation9 + $0x410] sm:$0xf]
        %v1098 = vld [vmem:[#allocation9 + $0x414] sm:$0xff]
        %v1099 = vld [vmem:[#allocation9 + $0x41c] sm:$0xff]
        %v1100 = vld [vmem:[#allocation9 + $0x424] sm:$0xff]
        %v1101 = vld [vmem:[#allocation9 + $0x42c] sm:$0xff]
        %v1102 = vld [vmem:[#allocation9 + $0x434] sm:$0xf]
        %v1103 = vld [vmem:[#allocation9 + $0x438] sm:$0xff]
        %v1104 = vld [vmem:[#allocation9 + $0x440] sm:$0xff]
        %v1105 = vld [vmem:[#allocation9 + $0x448] sm:$0xff]
        %v1106 = vld [vmem:[#allocation9 + $0x450] sm:$0xff]
        %v1107 = vld [vmem:[#allocation9 + $0x458] sm:$0xf]
        %v1108 = vld [vmem:[#allocation9 + $0x45c] sm:$0xff]
        %v1109 = vld [vmem:[#allocation9 + $0x464] sm:$0xff]
        %v1110 = vld [vmem:[#allocation9 + $0x46c] sm:$0xff]
        %v1111 = vld [vmem:[#allocation9 + $0x474] sm:$0xff]
        %v1112 = vld [vmem:[#allocation9 + $0x47c] sm:$0xf]
        %v1113 = vld [vmem:[#allocation9 + $0x480] sm:$0xff]
        %v1114 = vld [vmem:[#allocation9 + $0x488] sm:$0xff]
        %v1115 = vld [vmem:[#allocation9 + $0x490] sm:$0xff]
        %v1116 = vld [vmem:[#allocation9 + $0x498] sm:$0xff]
        %v1117 = vld [vmem:[#allocation9 + $0x4a0] sm:$0xf]
        %v1118 = vld [vmem:[#allocation9 + $0x4a4] sm:$0xff]
        %v1119 = vld [vmem:[#allocation9 + $0x4ac] sm:$0xff]
        %v1120 = vld [vmem:[#allocation9 + $0x4b4] sm:$0xff]
        %v1121 = vld [vmem:[#allocation9 + $0x4bc] sm:$0xff]
        %v1122 = vld [vmem:[#allocation9 + $0x4c4] sm:$0xf]
        %v1123 = vld [vmem:[#allocation9 + $0x4c8] sm:$0xff]
        %v1124 = vld [vmem:[#allocation9 + $0x4d0] sm:$0xff]
        %v1125 = vld [vmem:[#allocation9 + $0x4d8] sm:$0xff]
        %v1126 = vld [vmem:[#allocation9 + $0x4e0] sm:$0xff]
        %v1127 = vld [vmem:[#allocation9 + $0x4e8] sm:$0xf]
        %v1128 = vld [vmem:[#allocation9 + $0x4ec] sm:$0xff]
        %v1129 = vld [vmem:[#allocation9 + $0x4f4] sm:$0xff]
        %v1130 = vld [vmem:[#allocation9 + $0x4fc] sm:$0xff]
        %v1131 = vld [vmem:[#allocation9 + $0x504] sm:$0xff]
        %v1132 = vld [vmem:[#allocation9 + $0x50c] sm:$0xf]
        %v1133 = vld [vmem:[#allocation9 + $0x510] sm:$0xff]
        %v1134 = vld [vmem:[#allocation9 + $0x518] sm:$0xff]
        %v1135 = vld [vmem:[#allocation9 + $0x520] sm:$0xff]
        %v1136 = vld [vmem:[#allocation9 + $0x528] sm:$0xff]
        %v1137 = vld [vmem:[#allocation9 + $0x530] sm:$0xf]
        %v1138 = vld [vmem:[#allocation9 + $0x534] sm:$0xff]
        %v1139 = vld [vmem:[#allocation9 + $0x53c] sm:$0xff]
        %v1140 = vld [vmem:[#allocation9 + $0x544] sm:$0xff]
        %v1141 = vld [vmem:[#allocation9 + $0x54c] sm:$0xff]
        %v1142 = vld [vmem:[#allocation9 + $0x554] sm:$0xf]
        %v1143 = vld [vmem:[#allocation9 + $0x558] sm:$0xff]
        %v1144 = vld [vmem:[#allocation9 + $0x560] sm:$0xff]
        %v1145 = vld [vmem:[#allocation9 + $0x568] sm:$0xff]
        %v1146 = vld [vmem:[#allocation9 + $0x570] sm:$0xff]
        %v1147 = vld [vmem:[#allocation9 + $0x578] sm:$0xf]
        %v1148 = vld [vmem:[#allocation9 + $0x57c] sm:$0xff]
        %v1149 = vld [vmem:[#allocation9 + $0x584] sm:$0xff]
        %v1150 = vld [vmem:[#allocation9 + $0x58c] sm:$0xff]
        %v1151 = vld [vmem:[#allocation9 + $0x594] sm:$0xff]
        %v1152 = vld [vmem:[#allocation9 + $0x59c] sm:$0xf]
        %v1153 = vld [vmem:[#allocation9 + $0x5a0] sm:$0xff]
        %v1154 = vld [vmem:[#allocation9 + $0x5a8] sm:$0xff]
        %v1155 = vld [vmem:[#allocation9 + $0x5b0] sm:$0xff]
        %v1156 = vld [vmem:[#allocation9 + $0x5b8] sm:$0xff]
        %v1157 = vld [vmem:[#allocation9 + $0x5c0] sm:$0xf]
        %v1158 = vld [vmem:[#allocation9 + $0x5c4] sm:$0xff]
        %v1159 = vld [vmem:[#allocation9 + $0x5cc] sm:$0xff]
        %v1160 = vld [vmem:[#allocation9 + $0x5d4] sm:$0xff]
        %v1161 = vld [vmem:[#allocation9 + $0x5dc] sm:$0xff]
        %v1162 = vld [vmem:[#allocation9 + $0x5e4] sm:$0xf]
        %v1163 = vld [vmem:[#allocation9 + $0x5e8] sm:$0xff]
        %v1164 = vld [vmem:[#allocation9 + $0x5f0] sm:$0xff]
        %v1165 = vld [vmem:[#allocation9 + $0x5f8] sm:$0xff]
        %v1166 = vld [vmem:[#allocation9 + $0x600] sm:$0xff]
        %v1167 = vld [vmem:[#allocation9 + $0x608] sm:$0xf]
        %v1168 = vld [vmem:[#allocation9 + $0x60c] sm:$0xff]
        %v1169 = vld [vmem:[#allocation9 + $0x614] sm:$0xff]
        %v1170 = vld [vmem:[#allocation9 + $0x61c] sm:$0xff]
        %v1171 = vld [vmem:[#allocation9 + $0x624] sm:$0xff]
        %v1172 = vld [vmem:[#allocation9 + $0x62c] sm:$0xf]
        %v1173 = vld [vmem:[#allocation9 + $0x630] sm:$0xff]
        %v1174 = vld [vmem:[#allocation9 + $0x638] sm:$0xff]
        %v1175 = vld [vmem:[#allocation9 + $0x640] sm:$0xff]
        %v1176 = vld [vmem:[#allocation9 + $0x648] sm:$0xff]
        %v1177 = vld [vmem:[#allocation9 + $0x650] sm:$0xf]
        %v1178 = vld [vmem:[#allocation9 + $0x654] sm:$0xff]
        %v1179 = vld [vmem:[#allocation9 + $0x65c] sm:$0xff]
        %v1180 = vld [vmem:[#allocation9 + $0x664] sm:$0xff]
        %v1181 = vld [vmem:[#allocation9 + $0x66c] sm:$0xff]
        %v1182 = vld [vmem:[#allocation9 + $0x674] sm:$0xf]
        %v1183 = vld [vmem:[#allocation9 + $0x678] sm:$0xff]
        %v1184 = vld [vmem:[#allocation9 + $0x680] sm:$0xff]
        %v1185 = vld [vmem:[#allocation9 + $0x688] sm:$0xff]
        %v1186 = vld [vmem:[#allocation9 + $0x690] sm:$0xff]
        %v1187 = vld [vmem:[#allocation9 + $0x698] sm:$0xf]
        %v1188 = vld [vmem:[#allocation9 + $0x69c] sm:$0xff]
        %v1189 = vld [vmem:[#allocation9 + $0x6a4] sm:$0xff]
        %v1190 = vld [vmem:[#allocation9 + $0x6ac] sm:$0xff]
        %v1191 = vld [vmem:[#allocation9 + $0x6b4] sm:$0xff]
        %v1192 = vld [vmem:[#allocation9 + $0x6bc] sm:$0xf]
        %v1433 = vunpack.c.l.b16 %v953
        %v1434 = vunpack.c.h.b16 %v953
        %v1435 = vunpack.c.l.b16 %v954
        %v1436 = vunpack.c.h.b16 %v954
        %v1437 = vunpack.c.l.b16 %v955
        %v1438 = vunpack.c.h.b16 %v955
        %v1439 = vunpack.c.l.b16 %v956
        %v1440 = vunpack.c.h.b16 %v956
        %v1441 = vunpack.c.l.b16 %v957
        %v1442 = vunpack.c.l.b16 %v958
        %v1443 = vunpack.c.h.b16 %v958
        %v1444 = vunpack.c.l.b16 %v959
        %v1445 = vunpack.c.h.b16 %v959
        %v1446 = vunpack.c.l.b16 %v960
        %v1447 = vunpack.c.h.b16 %v960
        %v1448 = vunpack.c.l.b16 %v961
        %v1449 = vunpack.c.h.b16 %v961
        %v1450 = vunpack.c.l.b16 %v962
        %v1451 = vunpack.c.l.b16 %v963
        %v1452 = vunpack.c.h.b16 %v963
        %v1453 = vunpack.c.l.b16 %v964
        %v1454 = vunpack.c.h.b16 %v964
        %v1455 = vunpack.c.l.b16 %v965
        %v1456 = vunpack.c.h.b16 %v965
        %v1457 = vunpack.c.l.b16 %v966
        %v1458 = vunpack.c.h.b16 %v966
        %v1459 = vunpack.c.l.b16 %v967
        %v1460 = vunpack.c.l.b16 %v968
        %v1461 = vunpack.c.h.b16 %v968
        %v1462 = vunpack.c.l.b16 %v969
        %v1463 = vunpack.c.h.b16 %v969
        %v1464 = vunpack.c.l.b16 %v970
        %v1465 = vunpack.c.h.b16 %v970
        %v1466 = vunpack.c.l.b16 %v971
        %v1467 = vunpack.c.h.b16 %v971
        %v1468 = vunpack.c.l.b16 %v972
        %v1469 = vunpack.c.l.b16 %v973
        %v1470 = vunpack.c.h.b16 %v973
        %v1471 = vunpack.c.l.b16 %v974
        %v1472 = vunpack.c.h.b16 %v974
        %v1473 = vunpack.c.l.b16 %v975
        %v1474 = vunpack.c.h.b16 %v975
        %v1475 = vunpack.c.l.b16 %v976
        %v1476 = vunpack.c.h.b16 %v976
        %v1477 = vunpack.c.l.b16 %v977
        %v1478 = vunpack.c.l.b16 %v978
        %v1479 = vunpack.c.h.b16 %v978
        %v1480 = vunpack.c.l.b16 %v979
        %v1481 = vunpack.c.h.b16 %v979
        %v1482 = vunpack.c.l.b16 %v980
        %v1483 = vunpack.c.h.b16 %v980
        %v1484 = vunpack.c.l.b16 %v981
        %v1485 = vunpack.c.h.b16 %v981
        %v1486 = vunpack.c.l.b16 %v982
        %v1487 = vunpack.c.l.b16 %v983
        %v1488 = vunpack.c.h.b16 %v983
        %v1489 = vunpack.c.l.b16 %v984
        %v1490 = vunpack.c.h.b16 %v984
        %v1491 = vunpack.c.l.b16 %v985
        %v1492 = vunpack.c.h.b16 %v985
        %v1493 = vunpack.c.l.b16 %v986
        %v1494 = vunpack.c.h.b16 %v986
        %v1495 = vunpack.c.l.b16 %v987
        %v1496 = vunpack.c.l.b16 %v988
        %v1497 = vunpack.c.h.b16 %v988
        %v1498 = vunpack.c.l.b16 %v989
        %v1499 = vunpack.c.h.b16 %v989
        %v1500 = vunpack.c.l.b16 %v990
        %v1501 = vunpack.c.h.b16 %v990
        %v1502 = vunpack.c.l.b16 %v991
        %v1503 = vunpack.c.h.b16 %v991
        %v1504 = vunpack.c.l.b16 %v992
        %v1505 = vunpack.c.l.b16 %v993
        %v1506 = vunpack.c.h.b16 %v993
        %v1507 = vunpack.c.l.b16 %v994
        %v1508 = vunpack.c.h.b16 %v994
        %v1509 = vunpack.c.l.b16 %v995
        %v1510 = vunpack.c.h.b16 %v995
        %v1511 = vunpack.c.l.b16 %v996
        %v1512 = vunpack.c.h.b16 %v996
        %v1513 = vunpack.c.l.b16 %v997
        %v1514 = vunpack.c.l.b16 %v998
        %v1515 = vunpack.c.h.b16 %v998
        %v1516 = vunpack.c.l.b16 %v999
        %v1517 = vunpack.c.h.b16 %v999
        %v1518 = vunpack.c.l.b16 %v1000
        %v1519 = vunpack.c.h.b16 %v1000
        %v1520 = vunpack.c.l.b16 %v1001
        %v1521 = vunpack.c.h.b16 %v1001
        %v1522 = vunpack.c.l.b16 %v1002
        %v1523 = vunpack.c.l.b16 %v1003
        %v1524 = vunpack.c.h.b16 %v1003
        %v1525 = vunpack.c.l.b16 %v1004
        %v1526 = vunpack.c.h.b16 %v1004
        %v1527 = vunpack.c.l.b16 %v1005
        %v1528 = vunpack.c.h.b16 %v1005
        %v1529 = vunpack.c.l.b16 %v1006
        %v1530 = vunpack.c.h.b16 %v1006
        %v1531 = vunpack.c.l.b16 %v1007
        %v1532 = vunpack.c.l.b16 %v1008
        %v1533 = vunpack.c.h.b16 %v1008
        %v1534 = vunpack.c.l.b16 %v1009
        %v1535 = vunpack.c.h.b16 %v1009
        %v1536 = vunpack.c.l.b16 %v1010
        %v1537 = vunpack.c.h.b16 %v1010
        %v1538 = vunpack.c.l.b16 %v1011
        %v1539 = vunpack.c.h.b16 %v1011
        %v1540 = vunpack.c.l.b16 %v1012
        %v1541 = vunpack.c.l.b16 %v1013
        %v1542 = vunpack.c.h.b16 %v1013
        %v1543 = vunpack.c.l.b16 %v1014
        %v1544 = vunpack.c.h.b16 %v1014
        %v1545 = vunpack.c.l.b16 %v1015
        %v1546 = vunpack.c.h.b16 %v1015
        %v1547 = vunpack.c.l.b16 %v1016
        %v1548 = vunpack.c.h.b16 %v1016
        %v1549 = vunpack.c.l.b16 %v1017
        %v1550 = vunpack.c.l.b16 %v1018
        %v1551 = vunpack.c.h.b16 %v1018
        %v1552 = vunpack.c.l.b16 %v1019
        %v1553 = vunpack.c.h.b16 %v1019
        %v1554 = vunpack.c.l.b16 %v1020
        %v1555 = vunpack.c.h.b16 %v1020
        %v1556 = vunpack.c.l.b16 %v1021
        %v1557 = vunpack.c.h.b16 %v1021
        %v1558 = vunpack.c.l.b16 %v1022
        %v1559 = vunpack.c.l.b16 %v1023
        %v1560 = vunpack.c.h.b16 %v1023
        %v1561 = vunpack.c.l.b16 %v1024
        %v1562 = vunpack.c.h.b16 %v1024
        %v1563 = vunpack.c.l.b16 %v1025
        %v1564 = vunpack.c.h.b16 %v1025
        %v1565 = vunpack.c.l.b16 %v1026
        %v1566 = vunpack.c.h.b16 %v1026
        %v1567 = vunpack.c.l.b16 %v1027
        %v1568 = vunpack.c.l.b16 %v1028
        %v1569 = vunpack.c.h.b16 %v1028
        %v1570 = vunpack.c.l.b16 %v1029
        %v1571 = vunpack.c.h.b16 %v1029
        %v1572 = vunpack.c.l.b16 %v1030
        %v1573 = vunpack.c.h.b16 %v1030
        %v1574 = vunpack.c.l.b16 %v1031
        %v1575 = vunpack.c.h.b16 %v1031
        %v1576 = vunpack.c.l.b16 %v1032
        %v1577 = vunpack.c.l.b16 %v1033
        %v1578 = vunpack.c.h.b16 %v1033
        %v1579 = vunpack.c.l.b16 %v1034
        %v1580 = vunpack.c.h.b16 %v1034
        %v1581 = vunpack.c.l.b16 %v1035
        %v1582 = vunpack.c.h.b16 %v1035
        %v1583 = vunpack.c.l.b16 %v1036
        %v1584 = vunpack.c.h.b16 %v1036
        %v1585 = vunpack.c.l.b16 %v1037
        %v1586 = vunpack.c.l.b16 %v1038
        %v1587 = vunpack.c.h.b16 %v1038
        %v1588 = vunpack.c.l.b16 %v1039
        %v1589 = vunpack.c.h.b16 %v1039
        %v1590 = vunpack.c.l.b16 %v1040
        %v1591 = vunpack.c.h.b16 %v1040
        %v1592 = vunpack.c.l.b16 %v1041
        %v1593 = vunpack.c.h.b16 %v1041
        %v1594 = vunpack.c.l.b16 %v1042
        %v1595 = vunpack.c.l.b16 %v1043
        %v1596 = vunpack.c.h.b16 %v1043
        %v1597 = vunpack.c.l.b16 %v1044
        %v1598 = vunpack.c.h.b16 %v1044
        %v1599 = vunpack.c.l.b16 %v1045
        %v1600 = vunpack.c.h.b16 %v1045
        %v1601 = vunpack.c.l.b16 %v1046
        %v1602 = vunpack.c.h.b16 %v1046
        %v1603 = vunpack.c.l.b16 %v1047
        %v1604 = vunpack.c.l.b16 %v1048
        %v1605 = vunpack.c.h.b16 %v1048
        %v1606 = vunpack.c.l.b16 %v1049
        %v1607 = vunpack.c.h.b16 %v1049
        %v1608 = vunpack.c.l.b16 %v1050
        %v1609 = vunpack.c.h.b16 %v1050
        %v1610 = vunpack.c.l.b16 %v1051
        %v1611 = vunpack.c.h.b16 %v1051
        %v1612 = vunpack.c.l.b16 %v1052
        %v1613 = vunpack.c.l.b16 %v1053
        %v1614 = vunpack.c.h.b16 %v1053
        %v1615 = vunpack.c.l.b16 %v1054
        %v1616 = vunpack.c.h.b16 %v1054
        %v1617 = vunpack.c.l.b16 %v1055
        %v1618 = vunpack.c.h.b16 %v1055
        %v1619 = vunpack.c.l.b16 %v1056
        %v1620 = vunpack.c.h.b16 %v1056
        %v1621 = vunpack.c.l.b16 %v1057
        %v1622 = vunpack.c.l.b16 %v1058
        %v1623 = vunpack.c.h.b16 %v1058
        %v1624 = vunpack.c.l.b16 %v1059
        %v1625 = vunpack.c.h.b16 %v1059
        %v1626 = vunpack.c.l.b16 %v1060
        %v1627 = vunpack.c.h.b16 %v1060
        %v1628 = vunpack.c.l.b16 %v1061
        %v1629 = vunpack.c.h.b16 %v1061
        %v1630 = vunpack.c.l.b16 %v1062
        %v1631 = vunpack.c.l.b16 %v1063
        %v1632 = vunpack.c.h.b16 %v1063
        %v1633 = vunpack.c.l.b16 %v1064
        %v1634 = vunpack.c.h.b16 %v1064
        %v1635 = vunpack.c.l.b16 %v1065
        %v1636 = vunpack.c.h.b16 %v1065
        %v1637 = vunpack.c.l.b16 %v1066
        %v1638 = vunpack.c.h.b16 %v1066
        %v1639 = vunpack.c.l.b16 %v1067
        %v1640 = vunpack.c.l.b16 %v1068
        %v1641 = vunpack.c.h.b16 %v1068
        %v1642 = vunpack.c.l.b16 %v1069
        %v1643 = vunpack.c.h.b16 %v1069
        %v1644 = vunpack.c.l.b16 %v1070
        %v1645 = vunpack.c.h.b16 %v1070
        %v1646 = vunpack.c.l.b16 %v1071
        %v1647 = vunpack.c.h.b16 %v1071
        %v1648 = vunpack.c.l.b16 %v1072
        %v1649 = vunpack.c.l.b16 %v1073
        %v1650 = vunpack.c.h.b16 %v1073
        %v1651 = vunpack.c.l.b16 %v1074
        %v1652 = vunpack.c.h.b16 %v1074
        %v1653 = vunpack.c.l.b16 %v1075
        %v1654 = vunpack.c.h.b16 %v1075
        %v1655 = vunpack.c.l.b16 %v1076
        %v1656 = vunpack.c.h.b16 %v1076
        %v1657 = vunpack.c.l.b16 %v1077
        %v1658 = vunpack.c.l.b16 %v1078
        %v1659 = vunpack.c.h.b16 %v1078
        %v1660 = vunpack.c.l.b16 %v1079
        %v1661 = vunpack.c.h.b16 %v1079
        %v1662 = vunpack.c.l.b16 %v1080
        %v1663 = vunpack.c.h.b16 %v1080
        %v1664 = vunpack.c.l.b16 %v1081
        %v1665 = vunpack.c.h.b16 %v1081
        %v1666 = vunpack.c.l.b16 %v1082
        %v1667 = vunpack.c.l.b16 %v1083
        %v1668 = vunpack.c.h.b16 %v1083
        %v1669 = vunpack.c.l.b16 %v1084
        %v1670 = vunpack.c.h.b16 %v1084
        %v1671 = vunpack.c.l.b16 %v1085
        %v1672 = vunpack.c.h.b16 %v1085
        %v1673 = vunpack.c.l.b16 %v1086
        %v1674 = vunpack.c.h.b16 %v1086
        %v1675 = vunpack.c.l.b16 %v1087
        %v1676 = vunpack.c.l.b16 %v1088
        %v1677 = vunpack.c.h.b16 %v1088
        %v1678 = vunpack.c.l.b16 %v1089
        %v1679 = vunpack.c.h.b16 %v1089
        %v1680 = vunpack.c.l.b16 %v1090
        %v1681 = vunpack.c.h.b16 %v1090
        %v1682 = vunpack.c.l.b16 %v1091
        %v1683 = vunpack.c.h.b16 %v1091
        %v1684 = vunpack.c.l.b16 %v1092
        %v1685 = vunpack.c.l.b16 %v1093
        %v1686 = vunpack.c.h.b16 %v1093
        %v1687 = vunpack.c.l.b16 %v1094
        %v1688 = vunpack.c.h.b16 %v1094
        %v1689 = vunpack.c.l.b16 %v1095
        %v1690 = vunpack.c.h.b16 %v1095
        %v1691 = vunpack.c.l.b16 %v1096
        %v1692 = vunpack.c.h.b16 %v1096
        %v1693 = vunpack.c.l.b16 %v1097
        %v1694 = vunpack.c.l.b16 %v1098
        %v1695 = vunpack.c.h.b16 %v1098
        %v1696 = vunpack.c.l.b16 %v1099
        %v1697 = vunpack.c.h.b16 %v1099
        %v1698 = vunpack.c.l.b16 %v1100
        %v1699 = vunpack.c.h.b16 %v1100
        %v1700 = vunpack.c.l.b16 %v1101
        %v1701 = vunpack.c.h.b16 %v1101
        %v1702 = vunpack.c.l.b16 %v1102
        %v1703 = vunpack.c.l.b16 %v1103
        %v1704 = vunpack.c.h.b16 %v1103
        %v1705 = vunpack.c.l.b16 %v1104
        %v1706 = vunpack.c.h.b16 %v1104
        %v1707 = vunpack.c.l.b16 %v1105
        %v1708 = vunpack.c.h.b16 %v1105
        %v1709 = vunpack.c.l.b16 %v1106
        %v1710 = vunpack.c.h.b16 %v1106
        %v1711 = vunpack.c.l.b16 %v1107
        %v1712 = vunpack.c.l.b16 %v1108
        %v1713 = vunpack.c.h.b16 %v1108
        %v1714 = vunpack.c.l.b16 %v1109
        %v1715 = vunpack.c.h.b16 %v1109
        %v1716 = vunpack.c.l.b16 %v1110
        %v1717 = vunpack.c.h.b16 %v1110
        %v1718 = vunpack.c.l.b16 %v1111
        %v1719 = vunpack.c.h.b16 %v1111
        %v1720 = vunpack.c.l.b16 %v1112
        %v1721 = vunpack.c.l.b16 %v1113
        %v1722 = vunpack.c.h.b16 %v1113
        %v1723 = vunpack.c.l.b16 %v1114
        %v1724 = vunpack.c.h.b16 %v1114
        %v1725 = vunpack.c.l.b16 %v1115
        %v1726 = vunpack.c.h.b16 %v1115
        %v1727 = vunpack.c.l.b16 %v1116
        %v1728 = vunpack.c.h.b16 %v1116
        %v1729 = vunpack.c.l.b16 %v1117
        %v1730 = vunpack.c.l.b16 %v1118
        %v1731 = vunpack.c.h.b16 %v1118
        %v1732 = vunpack.c.l.b16 %v1119
        %v1733 = vunpack.c.h.b16 %v1119
        %v1734 = vunpack.c.l.b16 %v1120
        %v1735 = vunpack.c.h.b16 %v1120
        %v1736 = vunpack.c.l.b16 %v1121
        %v1737 = vunpack.c.h.b16 %v1121
        %v1738 = vunpack.c.l.b16 %v1122
        %v1739 = vunpack.c.l.b16 %v1123
        %v1740 = vunpack.c.h.b16 %v1123
        %v1741 = vunpack.c.l.b16 %v1124
        %v1742 = vunpack.c.h.b16 %v1124
        %v1743 = vunpack.c.l.b16 %v1125
        %v1744 = vunpack.c.h.b16 %v1125
        %v1745 = vunpack.c.l.b16 %v1126
        %v1746 = vunpack.c.h.b16 %v1126
        %v1747 = vunpack.c.l.b16 %v1127
        %v1748 = vunpack.c.l.b16 %v1128
        %v1749 = vunpack.c.h.b16 %v1128
        %v1750 = vunpack.c.l.b16 %v1129
        %v1751 = vunpack.c.h.b16 %v1129
        %v1752 = vunpack.c.l.b16 %v1130
        %v1753 = vunpack.c.h.b16 %v1130
        %v1754 = vunpack.c.l.b16 %v1131
        %v1755 = vunpack.c.h.b16 %v1131
        %v1756 = vunpack.c.l.b16 %v1132
        %v1757 = vunpack.c.l.b16 %v1133
        %v1758 = vunpack.c.h.b16 %v1133
        %v1759 = vunpack.c.l.b16 %v1134
        %v1760 = vunpack.c.h.b16 %v1134
        %v1761 = vunpack.c.l.b16 %v1135
        %v1762 = vunpack.c.h.b16 %v1135
        %v1763 = vunpack.c.l.b16 %v1136
        %v1764 = vunpack.c.h.b16 %v1136
        %v1765 = vunpack.c.l.b16 %v1137
        %v1766 = vunpack.c.l.b16 %v1138
        %v1767 = vunpack.c.h.b16 %v1138
        %v1768 = vunpack.c.l.b16 %v1139
        %v1769 = vunpack.c.h.b16 %v1139
        %v1770 = vunpack.c.l.b16 %v1140
        %v1771 = vunpack.c.h.b16 %v1140
        %v1772 = vunpack.c.l.b16 %v1141
        %v1773 = vunpack.c.h.b16 %v1141
        %v1774 = vunpack.c.l.b16 %v1142
        %v1775 = vunpack.c.l.b16 %v1143
        %v1776 = vunpack.c.h.b16 %v1143
        %v1777 = vunpack.c.l.b16 %v1144
        %v1778 = vunpack.c.h.b16 %v1144
        %v1779 = vunpack.c.l.b16 %v1145
        %v1780 = vunpack.c.h.b16 %v1145
        %v1781 = vunpack.c.l.b16 %v1146
        %v1782 = vunpack.c.h.b16 %v1146
        %v1783 = vunpack.c.l.b16 %v1147
        %v1784 = vunpack.c.l.b16 %v1148
        %v1785 = vunpack.c.h.b16 %v1148
        %v1786 = vunpack.c.l.b16 %v1149
        %v1787 = vunpack.c.h.b16 %v1149
        %v1788 = vunpack.c.l.b16 %v1150
        %v1789 = vunpack.c.h.b16 %v1150
        %v1790 = vunpack.c.l.b16 %v1151
        %v1791 = vunpack.c.h.b16 %v1151
        %v1792 = vunpack.c.l.b16 %v1152
        %v1793 = vunpack.c.l.b16 %v1153
        %v1794 = vunpack.c.h.b16 %v1153
        %v1795 = vunpack.c.l.b16 %v1154
        %v1796 = vunpack.c.h.b16 %v1154
        %v1797 = vunpack.c.l.b16 %v1155
        %v1798 = vunpack.c.h.b16 %v1155
        %v1799 = vunpack.c.l.b16 %v1156
        %v1800 = vunpack.c.h.b16 %v1156
        %v1801 = vunpack.c.l.b16 %v1157
        %v1802 = vunpack.c.l.b16 %v1158
        %v1803 = vunpack.c.h.b16 %v1158
        %v1804 = vunpack.c.l.b16 %v1159
        %v1805 = vunpack.c.h.b16 %v1159
        %v1806 = vunpack.c.l.b16 %v1160
        %v1807 = vunpack.c.h.b16 %v1160
        %v1808 = vunpack.c.l.b16 %v1161
        %v1809 = vunpack.c.h.b16 %v1161
        %v1810 = vunpack.c.l.b16 %v1162
        %v1811 = vunpack.c.l.b16 %v1163
        %v1812 = vunpack.c.h.b16 %v1163
        %v1813 = vunpack.c.l.b16 %v1164
        %v1814 = vunpack.c.h.b16 %v1164
        %v1815 = vunpack.c.l.b16 %v1165
        %v1816 = vunpack.c.h.b16 %v1165
        %v1817 = vunpack.c.l.b16 %v1166
        %v1818 = vunpack.c.h.b16 %v1166
        %v1819 = vunpack.c.l.b16 %v1167
        %v1820 = vunpack.c.l.b16 %v1168
        %v1821 = vunpack.c.h.b16 %v1168
        %v1822 = vunpack.c.l.b16 %v1169
        %v1823 = vunpack.c.h.b16 %v1169
        %v1824 = vunpack.c.l.b16 %v1170
        %v1825 = vunpack.c.h.b16 %v1170
        %v1826 = vunpack.c.l.b16 %v1171
        %v1827 = vunpack.c.h.b16 %v1171
        %v1828 = vunpack.c.l.b16 %v1172
        %v1829 = vunpack.c.l.b16 %v1173
        %v1830 = vunpack.c.h.b16 %v1173
        %v1831 = vunpack.c.l.b16 %v1174
        %v1832 = vunpack.c.h.b16 %v1174
        %v1833 = vunpack.c.l.b16 %v1175
        %v1834 = vunpack.c.h.b16 %v1175
        %v1835 = vunpack.c.l.b16 %v1176
        %v1836 = vunpack.c.h.b16 %v1176
        %v1837 = vunpack.c.l.b16 %v1177
        %v1838 = vunpack.c.l.b16 %v1178
        %v1839 = vunpack.c.h.b16 %v1178
        %v1840 = vunpack.c.l.b16 %v1179
        %v1841 = vunpack.c.h.b16 %v1179
        %v1842 = vunpack.c.l.b16 %v1180
        %v1843 = vunpack.c.h.b16 %v1180
        %v1844 = vunpack.c.l.b16 %v1181
        %v1845 = vunpack.c.h.b16 %v1181
        %v1846 = vunpack.c.l.b16 %v1182
        %v1847 = vunpack.c.l.b16 %v1183
        %v1848 = vunpack.c.h.b16 %v1183
        %v1849 = vunpack.c.l.b16 %v1184
        %v1850 = vunpack.c.h.b16 %v1184
        %v1851 = vunpack.c.l.b16 %v1185
        %v1852 = vunpack.c.h.b16 %v1185
        %v1853 = vunpack.c.l.b16 %v1186
        %v1854 = vunpack.c.h.b16 %v1186
        %v1855 = vunpack.c.l.b16 %v1187
        %v1856 = vunpack.c.l.b16 %v1188
        %v1857 = vunpack.c.h.b16 %v1188
        %v1858 = vunpack.c.l.b16 %v1189
        %v1859 = vunpack.c.h.b16 %v1189
        %v1860 = vunpack.c.l.b16 %v1190
        %v1861 = vunpack.c.h.b16 %v1190
        %v1862 = vunpack.c.l.b16 %v1191
        %v1863 = vunpack.c.h.b16 %v1191
        %v1864 = vunpack.c.l.b16 %v1192
        %v1865 = vpack.c.b16 %v1442, %v1433
        %v1866 = vpack.c.b16 %v1443, %v1434
        %v1867 = vpack.c.b16 %v1444, %v1435
        %v1868 = vpack.c.b16 %v1445, %v1436
        %v1869 = vpack.c.b16 %v1446, %v1437
        %v1870 = vpack.c.b16 %v1447, %v1438
        %v1871 = vpack.c.b16 %v1448, %v1439
        %v1872 = vpack.c.b16 %v1449, %v1440
        %v1873 = vpack.c.b16 %v1450, %v1441
        %v1874 = vpack.c.b16 %v1460, %v1451
        %v1875 = vpack.c.b16 %v1461, %v1452
        %v1876 = vpack.c.b16 %v1462, %v1453
        %v1877 = vpack.c.b16 %v1463, %v1454
        %v1878 = vpack.c.b16 %v1464, %v1455
        %v1879 = vpack.c.b16 %v1465, %v1456
        %v1880 = vpack.c.b16 %v1466, %v1457
        %v1881 = vpack.c.b16 %v1467, %v1458
        %v1882 = vpack.c.b16 %v1468, %v1459
        %v1883 = vpack.c.b16 %v1478, %v1469
        %v1884 = vpack.c.b16 %v1479, %v1470
        %v1885 = vpack.c.b16 %v1480, %v1471
        %v1886 = vpack.c.b16 %v1481, %v1472
        %v1887 = vpack.c.b16 %v1482, %v1473
        %v1888 = vpack.c.b16 %v1483, %v1474
        %v1889 = vpack.c.b16 %v1484, %v1475
        %v1890 = vpack.c.b16 %v1485, %v1476
        %v1891 = vpack.c.b16 %v1486, %v1477
        %v1892 = vpack.c.b16 %v1496, %v1487
        %v1893 = vpack.c.b16 %v1497, %v1488
        %v1894 = vpack.c.b16 %v1498, %v1489
        %v1895 = vpack.c.b16 %v1499, %v1490
        %v1896 = vpack.c.b16 %v1500, %v1491
        %v1897 = vpack.c.b16 %v1501, %v1492
        %v1898 = vpack.c.b16 %v1502, %v1493
        %v1899 = vpack.c.b16 %v1503, %v1494
        %v1900 = vpack.c.b16 %v1504, %v1495
        %v1901 = vpack.c.b16 %v1514, %v1505
        %v1902 = vpack.c.b16 %v1515, %v1506
        %v1903 = vpack.c.b16 %v1516, %v1507
        %v1904 = vpack.c.b16 %v1517, %v1508
        %v1905 = vpack.c.b16 %v1518, %v1509
        %v1906 = vpack.c.b16 %v1519, %v1510
        %v1907 = vpack.c.b16 %v1520, %v1511
        %v1908 = vpack.c.b16 %v1521, %v1512
        %v1909 = vpack.c.b16 %v1522, %v1513
        %v1910 = vpack.c.b16 %v1532, %v1523
        %v1911 = vpack.c.b16 %v1533, %v1524
        %v1912 = vpack.c.b16 %v1534, %v1525
        %v1913 = vpack.c.b16 %v1535, %v1526
        %v1914 = vpack.c.b16 %v1536, %v1527
        %v1915 = vpack.c.b16 %v1537, %v1528
        %v1916 = vpack.c.b16 %v1538, %v1529
        %v1917 = vpack.c.b16 %v1539, %v1530
        %v1918 = vpack.c.b16 %v1540, %v1531
        %v1919 = vpack.c.b16 %v1550, %v1541
        %v1920 = vpack.c.b16 %v1551, %v1542
        %v1921 = vpack.c.b16 %v1552, %v1543
        %v1922 = vpack.c.b16 %v1553, %v1544
        %v1923 = vpack.c.b16 %v1554, %v1545
        %v1924 = vpack.c.b16 %v1555, %v1546
        %v1925 = vpack.c.b16 %v1556, %v1547
        %v1926 = vpack.c.b16 %v1557, %v1548
        %v1927 = vpack.c.b16 %v1558, %v1549
        %v1928 = vpack.c.b16 %v1568, %v1559
        %v1929 = vpack.c.b16 %v1569, %v1560
        %v1930 = vpack.c.b16 %v1570, %v1561
        %v1931 = vpack.c.b16 %v1571, %v1562
        %v1932 = vpack.c.b16 %v1572, %v1563
        %v1933 = vpack.c.b16 %v1573, %v1564
        %v1934 = vpack.c.b16 %v1574, %v1565
        %v1935 = vpack.c.b16 %v1575, %v1566
        %v1936 = vpack.c.b16 %v1576, %v1567
        %v1937 = vpack.c.b16 %v1586, %v1577
        %v1938 = vpack.c.b16 %v1587, %v1578
        %v1939 = vpack.c.b16 %v1588, %v1579
        %v1940 = vpack.c.b16 %v1589, %v1580
        %v1941 = vpack.c.b16 %v1590, %v1581
        %v1942 = vpack.c.b16 %v1591, %v1582
        %v1943 = vpack.c.b16 %v1592, %v1583
        %v1944 = vpack.c.b16 %v1593, %v1584
        %v1945 = vpack.c.b16 %v1594, %v1585
        %v1946 = vpack.c.b16 %v1604, %v1595
        %v1947 = vpack.c.b16 %v1605, %v1596
        %v1948 = vpack.c.b16 %v1606, %v1597
        %v1949 = vpack.c.b16 %v1607, %v1598
        %v1950 = vpack.c.b16 %v1608, %v1599
        %v1951 = vpack.c.b16 %v1609, %v1600
        %v1952 = vpack.c.b16 %v1610, %v1601
        %v1953 = vpack.c.b16 %v1611, %v1602
        %v1954 = vpack.c.b16 %v1612, %v1603
        %v1955 = vpack.c.b16 %v1622, %v1613
        %v1956 = vpack.c.b16 %v1623, %v1614
        %v1957 = vpack.c.b16 %v1624, %v1615
        %v1958 = vpack.c.b16 %v1625, %v1616
        %v1959 = vpack.c.b16 %v1626, %v1617
        %v1960 = vpack.c.b16 %v1627, %v1618
        %v1961 = vpack.c.b16 %v1628, %v1619
        %v1962 = vpack.c.b16 %v1629, %v1620
        %v1963 = vpack.c.b16 %v1630, %v1621
        %v1964 = vpack.c.b16 %v1640, %v1631
        %v1965 = vpack.c.b16 %v1641, %v1632
        %v1966 = vpack.c.b16 %v1642, %v1633
        %v1967 = vpack.c.b16 %v1643, %v1634
        %v1968 = vpack.c.b16 %v1644, %v1635
        %v1969 = vpack.c.b16 %v1645, %v1636
        %v1970 = vpack.c.b16 %v1646, %v1637
        %v1971 = vpack.c.b16 %v1647, %v1638
        %v1972 = vpack.c.b16 %v1648, %v1639
        %v1973 = vpack.c.b16 %v1658, %v1649
        %v1974 = vpack.c.b16 %v1659, %v1650
        %v1975 = vpack.c.b16 %v1660, %v1651
        %v1976 = vpack.c.b16 %v1661, %v1652
        %v1977 = vpack.c.b16 %v1662, %v1653
        %v1978 = vpack.c.b16 %v1663, %v1654
        %v1979 = vpack.c.b16 %v1664, %v1655
        %v1980 = vpack.c.b16 %v1665, %v1656
        %v1981 = vpack.c.b16 %v1666, %v1657
        %v1982 = vpack.c.b16 %v1676, %v1667
        %v1983 = vpack.c.b16 %v1677, %v1668
        %v1984 = vpack.c.b16 %v1678, %v1669
        %v1985 = vpack.c.b16 %v1679, %v1670
        %v1986 = vpack.c.b16 %v1680, %v1671
        %v1987 = vpack.c.b16 %v1681, %v1672
        %v1988 = vpack.c.b16 %v1682, %v1673
        %v1989 = vpack.c.b16 %v1683, %v1674
        %v1990 = vpack.c.b16 %v1684, %v1675
        %v1991 = vpack.c.b16 %v1694, %v1685
        %v1992 = vpack.c.b16 %v1695, %v1686
        %v1993 = vpack.c.b16 %v1696, %v1687
        %v1994 = vpack.c.b16 %v1697, %v1688
        %v1995 = vpack.c.b16 %v1698, %v1689
        %v1996 = vpack.c.b16 %v1699, %v1690
        %v1997 = vpack.c.b16 %v1700, %v1691
        %v1998 = vpack.c.b16 %v1701, %v1692
        %v1999 = vpack.c.b16 %v1702, %v1693
        %v2000 = vpack.c.b16 %v1712, %v1703
        %v2001 = vpack.c.b16 %v1713, %v1704
        %v2002 = vpack.c.b16 %v1714, %v1705
        %v2003 = vpack.c.b16 %v1715, %v1706
        %v2004 = vpack.c.b16 %v1716, %v1707
        %v2005 = vpack.c.b16 %v1717, %v1708
        %v2006 = vpack.c.b16 %v1718, %v1709
        %v2007 = vpack.c.b16 %v1719, %v1710
        %v2008 = vpack.c.b16 %v1720, %v1711
        %v2009 = vpack.c.b16 %v1730, %v1721
        %v2010 = vpack.c.b16 %v1731, %v1722
        %v2011 = vpack.c.b16 %v1732, %v1723
        %v2012 = vpack.c.b16 %v1733, %v1724
        %v2013 = vpack.c.b16 %v1734, %v1725
        %v2014 = vpack.c.b16 %v1735, %v1726
        %v2015 = vpack.c.b16 %v1736, %v1727
        %v2016 = vpack.c.b16 %v1737, %v1728
        %v2017 = vpack.c.b16 %v1738, %v1729
        %v2018 = vpack.c.b16 %v1748, %v1739
        %v2019 = vpack.c.b16 %v1749, %v1740
        %v2020 = vpack.c.b16 %v1750, %v1741
        %v2021 = vpack.c.b16 %v1751, %v1742
        %v2022 = vpack.c.b16 %v1752, %v1743
        %v2023 = vpack.c.b16 %v1753, %v1744
        %v2024 = vpack.c.b16 %v1754, %v1745
        %v2025 = vpack.c.b16 %v1755, %v1746
        %v2026 = vpack.c.b16 %v1756, %v1747
        %v2027 = vpack.c.b16 %v1766, %v1757
        %v2028 = vpack.c.b16 %v1767, %v1758
        %v2029 = vpack.c.b16 %v1768, %v1759
        %v2030 = vpack.c.b16 %v1769, %v1760
        %v2031 = vpack.c.b16 %v1770, %v1761
        %v2032 = vpack.c.b16 %v1771, %v1762
        %v2033 = vpack.c.b16 %v1772, %v1763
        %v2034 = vpack.c.b16 %v1773, %v1764
        %v2035 = vpack.c.b16 %v1774, %v1765
        %v2036 = vpack.c.b16 %v1784, %v1775
        %v2037 = vpack.c.b16 %v1785, %v1776
        %v2038 = vpack.c.b16 %v1786, %v1777
        %v2039 = vpack.c.b16 %v1787, %v1778
        %v2040 = vpack.c.b16 %v1788, %v1779
        %v2041 = vpack.c.b16 %v1789, %v1780
        %v2042 = vpack.c.b16 %v1790, %v1781
        %v2043 = vpack.c.b16 %v1791, %v1782
        %v2044 = vpack.c.b16 %v1792, %v1783
        %v2045 = vpack.c.b16 %v1802, %v1793
        %v2046 = vpack.c.b16 %v1803, %v1794
        %v2047 = vpack.c.b16 %v1804, %v1795
        %v2048 = vpack.c.b16 %v1805, %v1796
        %v2049 = vpack.c.b16 %v1806, %v1797
        %v2050 = vpack.c.b16 %v1807, %v1798
        %v2051 = vpack.c.b16 %v1808, %v1799
        %v2052 = vpack.c.b16 %v1809, %v1800
        %v2053 = vpack.c.b16 %v1810, %v1801
        %v2054 = vpack.c.b16 %v1820, %v1811
        %v2055 = vpack.c.b16 %v1821, %v1812
        %v2056 = vpack.c.b16 %v1822, %v1813
        %v2057 = vpack.c.b16 %v1823, %v1814
        %v2058 = vpack.c.b16 %v1824, %v1815
        %v2059 = vpack.c.b16 %v1825, %v1816
        %v2060 = vpack.c.b16 %v1826, %v1817
        %v2061 = vpack.c.b16 %v1827, %v1818
        %v2062 = vpack.c.b16 %v1828, %v1819
        %v2063 = vpack.c.b16 %v1838, %v1829
        %v2064 = vpack.c.b16 %v1839, %v1830
        %v2065 = vpack.c.b16 %v1840, %v1831
        %v2066 = vpack.c.b16 %v1841, %v1832
        %v2067 = vpack.c.b16 %v1842, %v1833
        %v2068 = vpack.c.b16 %v1843, %v1834
        %v2069 = vpack.c.b16 %v1844, %v1835
        %v2070 = vpack.c.b16 %v1845, %v1836
        %v2071 = vpack.c.b16 %v1846, %v1837
        %v2072 = vpack.c.b16 %v1856, %v1847
        %v2073 = vpack.c.b16 %v1857, %v1848
        %v2074 = vpack.c.b16 %v1858, %v1849
        %v2075 = vpack.c.b16 %v1859, %v1850
        %v2076 = vpack.c.b16 %v1860, %v1851
        %v2077 = vpack.c.b16 %v1861, %v1852
        %v2078 = vpack.c.b16 %v1862, %v1853
        %v2079 = vpack.c.b16 %v1863, %v1854
        %v2080 = vpack.c.b16 %v1864, %v1855
        %2297 = vmatpush.bf16.msra.mxu0 %v1928
        %2298 = vmatpush.bf16.msra.mxu0 %v1919
        %2299 = vmatpush.bf16.msra.mxu0 %v1910
        %2300 = vmatpush.bf16.msra.mxu0 %v1901
        %2301 = vmatpush.bf16.msra.mxu0 %v1892
        %2302 = vmatpush.bf16.msra.mxu0 %v1883
        %2303 = vmatpush.bf16.msra.mxu0 %v1874
        %2304 = vmatpush.bf16.msra.mxu0 %v1865
        %2305 = vmatmul.bf16.gmra.mxu0 %v941
        %v2306 = vpop.f32.mrf.mxu0
        %v2307 = vadd.f32 0.0, %v2306
        %v2308 = vpop.f32.mrf.mxu0
        %v2309 = vadd.f32 0.0, %v2308
        %2310 = vmatmul.bf16.gmra.mxu0 %v944
        %v2311 = vpop.f32.mrf.mxu0
        %v2312 = vadd.f32 0.0, %v2311
        %v2313 = vpop.f32.mrf.mxu0
        %v2314 = vadd.f32 0.0, %v2313
        %2315 = vmatmul.bf16.gmra.mxu0 %v947
        %v2316 = vpop.f32.mrf.mxu0
        %v2317 = vadd.f32 0.0, %v2316
        %v2318 = vpop.f32.mrf.mxu0
        %v2319 = vadd.f32 0.0, %v2318
        %2320 = vmatmul.bf16.gmra.mxu0 %v950
        %v2321 = vpop.f32.mrf.mxu0
        %v2322 = vadd.f32 0.0, %v2321
        %v2323 = vpop.f32.mrf.mxu0
        %v2324 = vadd.f32 0.0, %v2323
        %2325 = vdwg.mxu0
        %2326 = vmatpush.bf16.msra.mxu0 %v2000
        %2327 = vmatpush.bf16.msra.mxu0 %v1991
        %2328 = vmatpush.bf16.msra.mxu0 %v1982
        %2329 = vmatpush.bf16.msra.mxu0 %v1973
        %2330 = vmatpush.bf16.msra.mxu0 %v1964
        %2331 = vmatpush.bf16.msra.mxu0 %v1955
        %2332 = vmatpush.bf16.msra.mxu0 %v1946
        %2333 = vmatpush.bf16.msra.mxu0 %v1937
        %2334 = vmatmul.bf16.gmra.mxu0 %v942
        %v2335 = vpop.f32.mrf.mxu0
        %v2336 = vadd.f32 %v2307, %v2335
        %v2337 = vpop.f32.mrf.mxu0
        %v2338 = vadd.f32 %v2309, %v2337
        %2339 = vmatmul.bf16.gmra.mxu0 %v945
        %v2340 = vpop.f32.mrf.mxu0
        %v2341 = vadd.f32 %v2312, %v2340
        %v2342 = vpop.f32.mrf.mxu0
        %v2343 = vadd.f32 %v2314, %v2342
        %2344 = vmatmul.bf16.gmra.mxu0 %v948
        %v2345 = vpop.f32.mrf.mxu0
        %v2346 = vadd.f32 %v2317, %v2345
        %v2347 = vpop.f32.mrf.mxu0
        %v2348 = vadd.f32 %v2319, %v2347
        %2349 = vmatmul.bf16.gmra.mxu0 %v951
        %v2350 = vpop.f32.mrf.mxu0
        %v2351 = vadd.f32 %v2322, %v2350
        %v2352 = vpop.f32.mrf.mxu0
        %v2353 = vadd.f32 %v2324, %v2352
        %2354 = vdwg.mxu0
        %2355 = vmatpush.bf16.msra.mxu0 %v2072
        %2356 = vmatpush.bf16.msra.mxu0 %v2063
        %2357 = vmatpush.bf16.msra.mxu0 %v2054
        %2358 = vmatpush.bf16.msra.mxu0 %v2045
        %2359 = vmatpush.bf16.msra.mxu0 %v2036
        %2360 = vmatpush.bf16.msra.mxu0 %v2027
        %2361 = vmatpush.bf16.msra.mxu0 %v2018
        %2362 = vmatpush.bf16.msra.mxu0 %v2009
        %2363 = vmatmul.bf16.gmra.mxu0 %v943
        %v2364 = vpop.f32.mrf.mxu0
        %v2365 = vadd.f32 %v2336, %v2364
        %v2366 = vpop.f32.mrf.mxu0
        %v2367 = vadd.f32 %v2338, %v2366
        %2368 = vmatmul.bf16.gmra.mxu0 %v946
        %v2369 = vpop.f32.mrf.mxu0
        %v2370 = vadd.f32 %v2341, %v2369
        %v2371 = vpop.f32.mrf.mxu0
        %v2372 = vadd.f32 %v2343, %v2371
        %2373 = vmatmul.bf16.gmra.mxu0 %v949
        %v2374 = vpop.f32.mrf.mxu0
        %v2375 = vadd.f32 %v2346, %v2374
        %v2376 = vpop.f32.mrf.mxu0
        %v2377 = vadd.f32 %v2348, %v2376
        %2378 = vmatmul.bf16.gmra.mxu0 %v952
        %v2379 = vpop.f32.mrf.mxu0
        %v2380 = vadd.f32 %v2351, %v2379
        %v2381 = vpop.f32.mrf.mxu0
        %v2382 = vadd.f32 %v2353, %v2381
        %2383 = vdwg.mxu0
        %2384 = vmatpush.bf16.msra.mxu0 %v1929
        %2385 = vmatpush.bf16.msra.mxu0 %v1920
        %2386 = vmatpush.bf16.msra.mxu0 %v1911
        %2387 = vmatpush.bf16.msra.mxu0 %v1902
        %2388 = vmatpush.bf16.msra.mxu0 %v1893
        %2389 = vmatpush.bf16.msra.mxu0 %v1884
        %2390 = vmatpush.bf16.msra.mxu0 %v1875
        %2391 = vmatpush.bf16.msra.mxu0 %v1866
        %2392 = vmatmul.bf16.gmra.mxu0 %v941
        %v2393 = vpop.f32.mrf.mxu0
        %v2394 = vadd.f32 0.0, %v2393
        %v2395 = vpop.f32.mrf.mxu0
        %v2396 = vadd.f32 0.0, %v2395
        %2397 = vmatmul.bf16.gmra.mxu0 %v944
        %v2398 = vpop.f32.mrf.mxu0
        %v2399 = vadd.f32 0.0, %v2398
        %v2400 = vpop.f32.mrf.mxu0
        %v2401 = vadd.f32 0.0, %v2400
        %2402 = vmatmul.bf16.gmra.mxu0 %v947
        %v2403 = vpop.f32.mrf.mxu0
        %v2404 = vadd.f32 0.0, %v2403
        %v2405 = vpop.f32.mrf.mxu0
        %v2406 = vadd.f32 0.0, %v2405
        %2407 = vmatmul.bf16.gmra.mxu0 %v950
        %v2408 = vpop.f32.mrf.mxu0
        %v2409 = vadd.f32 0.0, %v2408
        %v2410 = vpop.f32.mrf.mxu0
        %v2411 = vadd.f32 0.0, %v2410
        %2412 = vdwg.mxu0
        %2413 = vmatpush.bf16.msra.mxu0 %v2001
        %2414 = vmatpush.bf16.msra.mxu0 %v1992
        %2415 = vmatpush.bf16.msra.mxu0 %v1983
        %2416 = vmatpush.bf16.msra.mxu0 %v1974
        %2417 = vmatpush.bf16.msra.mxu0 %v1965
        %2418 = vmatpush.bf16.msra.mxu0 %v1956
        %2419 = vmatpush.bf16.msra.mxu0 %v1947
        %2420 = vmatpush.bf16.msra.mxu0 %v1938
        %2421 = vmatmul.bf16.gmra.mxu0 %v942
        %v2422 = vpop.f32.mrf.mxu0
        %v2423 = vadd.f32 %v2394, %v2422
        %v2424 = vpop.f32.mrf.mxu0
        %v2425 = vadd.f32 %v2396, %v2424
        %2426 = vmatmul.bf16.gmra.mxu0 %v945
        %v2427 = vpop.f32.mrf.mxu0
        %v2428 = vadd.f32 %v2399, %v2427
        %v2429 = vpop.f32.mrf.mxu0
        %v2430 = vadd.f32 %v2401, %v2429
        %2431 = vmatmul.bf16.gmra.mxu0 %v948
        %v2432 = vpop.f32.mrf.mxu0
        %v2433 = vadd.f32 %v2404, %v2432
        %v2434 = vpop.f32.mrf.mxu0
        %v2435 = vadd.f32 %v2406, %v2434
        %2436 = vmatmul.bf16.gmra.mxu0 %v951
        %v2437 = vpop.f32.mrf.mxu0
        %v2438 = vadd.f32 %v2409, %v2437
        %v2439 = vpop.f32.mrf.mxu0
        %v2440 = vadd.f32 %v2411, %v2439
        %2441 = vdwg.mxu0
        %2442 = vmatpush.bf16.msra.mxu0 %v2073
        %2443 = vmatpush.bf16.msra.mxu0 %v2064
        %2444 = vmatpush.bf16.msra.mxu0 %v2055
        %2445 = vmatpush.bf16.msra.mxu0 %v2046
        %2446 = vmatpush.bf16.msra.mxu0 %v2037
        %2447 = vmatpush.bf16.msra.mxu0 %v2028
        %2448 = vmatpush.bf16.msra.mxu0 %v2019
        %2449 = vmatpush.bf16.msra.mxu0 %v2010
        %2450 = vmatmul.bf16.gmra.mxu0 %v943
        %v2451 = vpop.f32.mrf.mxu0
        %v2452 = vadd.f32 %v2423, %v2451
        %v2453 = vpop.f32.mrf.mxu0
        %v2454 = vadd.f32 %v2425, %v2453
        %2455 = vmatmul.bf16.gmra.mxu0 %v946
        %v2456 = vpop.f32.mrf.mxu0
        %v2457 = vadd.f32 %v2428, %v2456
        %v2458 = vpop.f32.mrf.mxu0
        %v2459 = vadd.f32 %v2430, %v2458
        %2460 = vmatmul.bf16.gmra.mxu0 %v949
        %v2461 = vpop.f32.mrf.mxu0
        %v2462 = vadd.f32 %v2433, %v2461
        %v2463 = vpop.f32.mrf.mxu0
        %v2464 = vadd.f32 %v2435, %v2463
        %2465 = vmatmul.bf16.gmra.mxu0 %v952
        %v2466 = vpop.f32.mrf.mxu0
        %v2467 = vadd.f32 %v2438, %v2466
        %v2468 = vpop.f32.mrf.mxu0
        %v2469 = vadd.f32 %v2440, %v2468
        %2470 = vdwg.mxu0
        %2471 = vmatpush.bf16.msra.mxu0 %v1930
        %2472 = vmatpush.bf16.msra.mxu0 %v1921
        %2473 = vmatpush.bf16.msra.mxu0 %v1912
        %2474 = vmatpush.bf16.msra.mxu0 %v1903
        %2475 = vmatpush.bf16.msra.mxu0 %v1894
        %2476 = vmatpush.bf16.msra.mxu0 %v1885
        %2477 = vmatpush.bf16.msra.mxu0 %v1876
        %2478 = vmatpush.bf16.msra.mxu0 %v1867
        %2479 = vmatmul.bf16.gmra.mxu0 %v941
        %v2480 = vpop.f32.mrf.mxu0
        %v2481 = vadd.f32 0.0, %v2480
        %v2482 = vpop.f32.mrf.mxu0
        %v2483 = vadd.f32 0.0, %v2482
        %2484 = vmatmul.bf16.gmra.mxu0 %v944
        %v2485 = vpop.f32.mrf.mxu0
        %v2486 = vadd.f32 0.0, %v2485
        %v2487 = vpop.f32.mrf.mxu0
        %v2488 = vadd.f32 0.0, %v2487
        %2489 = vmatmul.bf16.gmra.mxu0 %v947
        %v2490 = vpop.f32.mrf.mxu0
        %v2491 = vadd.f32 0.0, %v2490
        %v2492 = vpop.f32.mrf.mxu0
        %v2493 = vadd.f32 0.0, %v2492
        %2494 = vmatmul.bf16.gmra.mxu0 %v950
        %v2495 = vpop.f32.mrf.mxu0
        %v2496 = vadd.f32 0.0, %v2495
        %v2497 = vpop.f32.mrf.mxu0
        %v2498 = vadd.f32 0.0, %v2497
        %2499 = vdwg.mxu0
        %2500 = vmatpush.bf16.msra.mxu0 %v2002
        %2501 = vmatpush.bf16.msra.mxu0 %v1993
        %2502 = vmatpush.bf16.msra.mxu0 %v1984
        %2503 = vmatpush.bf16.msra.mxu0 %v1975
        %2504 = vmatpush.bf16.msra.mxu0 %v1966
        %2505 = vmatpush.bf16.msra.mxu0 %v1957
        %2506 = vmatpush.bf16.msra.mxu0 %v1948
        %2507 = vmatpush.bf16.msra.mxu0 %v1939
        %2508 = vmatmul.bf16.gmra.mxu0 %v942
        %v2509 = vpop.f32.mrf.mxu0
        %v2510 = vadd.f32 %v2481, %v2509
        %v2511 = vpop.f32.mrf.mxu0
        %v2512 = vadd.f32 %v2483, %v2511
        %2513 = vmatmul.bf16.gmra.mxu0 %v945
        %v2514 = vpop.f32.mrf.mxu0
        %v2515 = vadd.f32 %v2486, %v2514
        %v2516 = vpop.f32.mrf.mxu0
        %v2517 = vadd.f32 %v2488, %v2516
        %2518 = vmatmul.bf16.gmra.mxu0 %v948
        %v2519 = vpop.f32.mrf.mxu0
        %v2520 = vadd.f32 %v2491, %v2519
        %v2521 = vpop.f32.mrf.mxu0
        %v2522 = vadd.f32 %v2493, %v2521
        %2523 = vmatmul.bf16.gmra.mxu0 %v951
        %v2524 = vpop.f32.mrf.mxu0
        %v2525 = vadd.f32 %v2496, %v2524
        %v2526 = vpop.f32.mrf.mxu0
        %v2527 = vadd.f32 %v2498, %v2526
        %2528 = vdwg.mxu0
        %2529 = vmatpush.bf16.msra.mxu0 %v2074
        %2530 = vmatpush.bf16.msra.mxu0 %v2065
        %2531 = vmatpush.bf16.msra.mxu0 %v2056
        %2532 = vmatpush.bf16.msra.mxu0 %v2047
        %2533 = vmatpush.bf16.msra.mxu0 %v2038
        %2534 = vmatpush.bf16.msra.mxu0 %v2029
        %2535 = vmatpush.bf16.msra.mxu0 %v2020
        %2536 = vmatpush.bf16.msra.mxu0 %v2011
        %2537 = vmatmul.bf16.gmra.mxu0 %v943
        %v2538 = vpop.f32.mrf.mxu0
        %v2539 = vadd.f32 %v2510, %v2538
        %v2540 = vpop.f32.mrf.mxu0
        %v2541 = vadd.f32 %v2512, %v2540
        %2542 = vmatmul.bf16.gmra.mxu0 %v946
        %v2543 = vpop.f32.mrf.mxu0
        %v2544 = vadd.f32 %v2515, %v2543
        %v2545 = vpop.f32.mrf.mxu0
        %v2546 = vadd.f32 %v2517, %v2545
        %2547 = vmatmul.bf16.gmra.mxu0 %v949
        %v2548 = vpop.f32.mrf.mxu0
        %v2549 = vadd.f32 %v2520, %v2548
        %v2550 = vpop.f32.mrf.mxu0
        %v2551 = vadd.f32 %v2522, %v2550
        %2552 = vmatmul.bf16.gmra.mxu0 %v952
        %v2553 = vpop.f32.mrf.mxu0
        %v2554 = vadd.f32 %v2525, %v2553
        %v2555 = vpop.f32.mrf.mxu0
        %v2556 = vadd.f32 %v2527, %v2555
        %2557 = vdwg.mxu0
        %2558 = vmatpush.bf16.msra.mxu0 %v1931
        %2559 = vmatpush.bf16.msra.mxu0 %v1922
        %2560 = vmatpush.bf16.msra.mxu0 %v1913
        %2561 = vmatpush.bf16.msra.mxu0 %v1904
        %2562 = vmatpush.bf16.msra.mxu0 %v1895
        %2563 = vmatpush.bf16.msra.mxu0 %v1886
        %2564 = vmatpush.bf16.msra.mxu0 %v1877
        %2565 = vmatpush.bf16.msra.mxu0 %v1868
        %2566 = vmatmul.bf16.gmra.mxu0 %v941
        %v2567 = vpop.f32.mrf.mxu0
        %v2568 = vadd.f32 0.0, %v2567
        %v2569 = vpop.f32.mrf.mxu0
        %v2570 = vadd.f32 0.0, %v2569
        %2571 = vmatmul.bf16.gmra.mxu0 %v944
        %v2572 = vpop.f32.mrf.mxu0
        %v2573 = vadd.f32 0.0, %v2572
        %v2574 = vpop.f32.mrf.mxu0
        %v2575 = vadd.f32 0.0, %v2574
        %2576 = vmatmul.bf16.gmra.mxu0 %v947
        %v2577 = vpop.f32.mrf.mxu0
        %v2578 = vadd.f32 0.0, %v2577
        %v2579 = vpop.f32.mrf.mxu0
        %v2580 = vadd.f32 0.0, %v2579
        %2581 = vmatmul.bf16.gmra.mxu0 %v950
        %v2582 = vpop.f32.mrf.mxu0
        %v2583 = vadd.f32 0.0, %v2582
        %v2584 = vpop.f32.mrf.mxu0
        %v2585 = vadd.f32 0.0, %v2584
        %2586 = vdwg.mxu0
        %2587 = vmatpush.bf16.msra.mxu0 %v2003
        %2588 = vmatpush.bf16.msra.mxu0 %v1994
        %2589 = vmatpush.bf16.msra.mxu0 %v1985
        %2590 = vmatpush.bf16.msra.mxu0 %v1976
        %2591 = vmatpush.bf16.msra.mxu0 %v1967
        %2592 = vmatpush.bf16.msra.mxu0 %v1958
        %2593 = vmatpush.bf16.msra.mxu0 %v1949
        %2594 = vmatpush.bf16.msra.mxu0 %v1940
        %2595 = vmatmul.bf16.gmra.mxu0 %v942
        %v2596 = vpop.f32.mrf.mxu0
        %v2597 = vadd.f32 %v2568, %v2596
        %v2598 = vpop.f32.mrf.mxu0
        %v2599 = vadd.f32 %v2570, %v2598
        %2600 = vmatmul.bf16.gmra.mxu0 %v945
        %v2601 = vpop.f32.mrf.mxu0
        %v2602 = vadd.f32 %v2573, %v2601
        %v2603 = vpop.f32.mrf.mxu0
        %v2604 = vadd.f32 %v2575, %v2603
        %2605 = vmatmul.bf16.gmra.mxu0 %v948
        %v2606 = vpop.f32.mrf.mxu0
        %v2607 = vadd.f32 %v2578, %v2606
        %v2608 = vpop.f32.mrf.mxu0
        %v2609 = vadd.f32 %v2580, %v2608
        %2610 = vmatmul.bf16.gmra.mxu0 %v951
        %v2611 = vpop.f32.mrf.mxu0
        %v2612 = vadd.f32 %v2583, %v2611
        %v2613 = vpop.f32.mrf.mxu0
        %v2614 = vadd.f32 %v2585, %v2613
        %2615 = vdwg.mxu0
        %2616 = vmatpush.bf16.msra.mxu0 %v2075
        %2617 = vmatpush.bf16.msra.mxu0 %v2066
        %2618 = vmatpush.bf16.msra.mxu0 %v2057
        %2619 = vmatpush.bf16.msra.mxu0 %v2048
        %2620 = vmatpush.bf16.msra.mxu0 %v2039
        %2621 = vmatpush.bf16.msra.mxu0 %v2030
        %2622 = vmatpush.bf16.msra.mxu0 %v2021
        %2623 = vmatpush.bf16.msra.mxu0 %v2012
        %2624 = vmatmul.bf16.gmra.mxu0 %v943
        %v2625 = vpop.f32.mrf.mxu0
        %v2626 = vadd.f32 %v2597, %v2625
        %v2627 = vpop.f32.mrf.mxu0
        %v2628 = vadd.f32 %v2599, %v2627
        %2629 = vmatmul.bf16.gmra.mxu0 %v946
        %v2630 = vpop.f32.mrf.mxu0
        %v2631 = vadd.f32 %v2602, %v2630
        %v2632 = vpop.f32.mrf.mxu0
        %v2633 = vadd.f32 %v2604, %v2632
        %2634 = vmatmul.bf16.gmra.mxu0 %v949
        %v2635 = vpop.f32.mrf.mxu0
        %v2636 = vadd.f32 %v2607, %v2635
        %v2637 = vpop.f32.mrf.mxu0
        %v2638 = vadd.f32 %v2609, %v2637
        %2639 = vmatmul.bf16.gmra.mxu0 %v952
        %v2640 = vpop.f32.mrf.mxu0
        %v2641 = vadd.f32 %v2612, %v2640
        %v2642 = vpop.f32.mrf.mxu0
        %v2643 = vadd.f32 %v2614, %v2642
        %2644 = vdwg.mxu0
        %2645 = vmatpush.bf16.msra.mxu0 %v1932
        %2646 = vmatpush.bf16.msra.mxu0 %v1923
        %2647 = vmatpush.bf16.msra.mxu0 %v1914
        %2648 = vmatpush.bf16.msra.mxu0 %v1905
        %2649 = vmatpush.bf16.msra.mxu0 %v1896
        %2650 = vmatpush.bf16.msra.mxu0 %v1887
        %2651 = vmatpush.bf16.msra.mxu0 %v1878
        %2652 = vmatpush.bf16.msra.mxu0 %v1869
        %2653 = vmatmul.bf16.gmra.mxu0 %v941
        %v2654 = vpop.f32.mrf.mxu0
        %v2655 = vadd.f32 0.0, %v2654
        %v2656 = vpop.f32.mrf.mxu0
        %v2657 = vadd.f32 0.0, %v2656
        %2658 = vmatmul.bf16.gmra.mxu0 %v944
        %v2659 = vpop.f32.mrf.mxu0
        %v2660 = vadd.f32 0.0, %v2659
        %v2661 = vpop.f32.mrf.mxu0
        %v2662 = vadd.f32 0.0, %v2661
        %2663 = vmatmul.bf16.gmra.mxu0 %v947
        %v2664 = vpop.f32.mrf.mxu0
        %v2665 = vadd.f32 0.0, %v2664
        %v2666 = vpop.f32.mrf.mxu0
        %v2667 = vadd.f32 0.0, %v2666
        %2668 = vmatmul.bf16.gmra.mxu0 %v950
        %v2669 = vpop.f32.mrf.mxu0
        %v2670 = vadd.f32 0.0, %v2669
        %v2671 = vpop.f32.mrf.mxu0
        %v2672 = vadd.f32 0.0, %v2671
        %2673 = vdwg.mxu0
        %2674 = vmatpush.bf16.msra.mxu0 %v2004
        %2675 = vmatpush.bf16.msra.mxu0 %v1995
        %2676 = vmatpush.bf16.msra.mxu0 %v1986
        %2677 = vmatpush.bf16.msra.mxu0 %v1977
        %2678 = vmatpush.bf16.msra.mxu0 %v1968
        %2679 = vmatpush.bf16.msra.mxu0 %v1959
        %2680 = vmatpush.bf16.msra.mxu0 %v1950
        %2681 = vmatpush.bf16.msra.mxu0 %v1941
        %2682 = vmatmul.bf16.gmra.mxu0 %v942
        %v2683 = vpop.f32.mrf.mxu0
        %v2684 = vadd.f32 %v2655, %v2683
        %v2685 = vpop.f32.mrf.mxu0
        %v2686 = vadd.f32 %v2657, %v2685
        %2687 = vmatmul.bf16.gmra.mxu0 %v945
        %v2688 = vpop.f32.mrf.mxu0
        %v2689 = vadd.f32 %v2660, %v2688
        %v2690 = vpop.f32.mrf.mxu0
        %v2691 = vadd.f32 %v2662, %v2690
        %2692 = vmatmul.bf16.gmra.mxu0 %v948
        %v2693 = vpop.f32.mrf.mxu0
        %v2694 = vadd.f32 %v2665, %v2693
        %v2695 = vpop.f32.mrf.mxu0
        %v2696 = vadd.f32 %v2667, %v2695
        %2697 = vmatmul.bf16.gmra.mxu0 %v951
        %v2698 = vpop.f32.mrf.mxu0
        %v2699 = vadd.f32 %v2670, %v2698
        %v2700 = vpop.f32.mrf.mxu0
        %v2701 = vadd.f32 %v2672, %v2700
        %2702 = vdwg.mxu0
        %2703 = vmatpush.bf16.msra.mxu0 %v2076
        %2704 = vmatpush.bf16.msra.mxu0 %v2067
        %2705 = vmatpush.bf16.msra.mxu0 %v2058
        %2706 = vmatpush.bf16.msra.mxu0 %v2049
        %2707 = vmatpush.bf16.msra.mxu0 %v2040
        %2708 = vmatpush.bf16.msra.mxu0 %v2031
        %2709 = vmatpush.bf16.msra.mxu0 %v2022
        %2710 = vmatpush.bf16.msra.mxu0 %v2013
        %2711 = vmatmul.bf16.gmra.mxu0 %v943
        %v2712 = vpop.f32.mrf.mxu0
        %v2713 = vadd.f32 %v2684, %v2712
        %v2714 = vpop.f32.mrf.mxu0
        %v2715 = vadd.f32 %v2686, %v2714
        %2716 = vmatmul.bf16.gmra.mxu0 %v946
        %v2717 = vpop.f32.mrf.mxu0
        %v2718 = vadd.f32 %v2689, %v2717
        %v2719 = vpop.f32.mrf.mxu0
        %v2720 = vadd.f32 %v2691, %v2719
        %2721 = vmatmul.bf16.gmra.mxu0 %v949
        %v2722 = vpop.f32.mrf.mxu0
        %v2723 = vadd.f32 %v2694, %v2722
        %v2724 = vpop.f32.mrf.mxu0
        %v2725 = vadd.f32 %v2696, %v2724
        %2726 = vmatmul.bf16.gmra.mxu0 %v952
        %v2727 = vpop.f32.mrf.mxu0
        %v2728 = vadd.f32 %v2699, %v2727
        %v2729 = vpop.f32.mrf.mxu0
        %v2730 = vadd.f32 %v2701, %v2729
        %2731 = vdwg.mxu0
        %2732 = vmatpush.bf16.msra.mxu0 %v1933
        %2733 = vmatpush.bf16.msra.mxu0 %v1924
        %2734 = vmatpush.bf16.msra.mxu0 %v1915
        %2735 = vmatpush.bf16.msra.mxu0 %v1906
        %2736 = vmatpush.bf16.msra.mxu0 %v1897
        %2737 = vmatpush.bf16.msra.mxu0 %v1888
        %2738 = vmatpush.bf16.msra.mxu0 %v1879
        %2739 = vmatpush.bf16.msra.mxu0 %v1870
        %2740 = vmatmul.bf16.gmra.mxu0 %v941
        %v2741 = vpop.f32.mrf.mxu0
        %v2742 = vadd.f32 0.0, %v2741
        %v2743 = vpop.f32.mrf.mxu0
        %v2744 = vadd.f32 0.0, %v2743
        %2745 = vmatmul.bf16.gmra.mxu0 %v944
        %v2746 = vpop.f32.mrf.mxu0
        %v2747 = vadd.f32 0.0, %v2746
        %v2748 = vpop.f32.mrf.mxu0
        %v2749 = vadd.f32 0.0, %v2748
        %2750 = vmatmul.bf16.gmra.mxu0 %v947
        %v2751 = vpop.f32.mrf.mxu0
        %v2752 = vadd.f32 0.0, %v2751
        %v2753 = vpop.f32.mrf.mxu0
        %v2754 = vadd.f32 0.0, %v2753
        %2755 = vmatmul.bf16.gmra.mxu0 %v950
        %v2756 = vpop.f32.mrf.mxu0
        %v2757 = vadd.f32 0.0, %v2756
        %v2758 = vpop.f32.mrf.mxu0
        %v2759 = vadd.f32 0.0, %v2758
        %2760 = vdwg.mxu0
        %2761 = vmatpush.bf16.msra.mxu0 %v2005
        %2762 = vmatpush.bf16.msra.mxu0 %v1996
        %2763 = vmatpush.bf16.msra.mxu0 %v1987
        %2764 = vmatpush.bf16.msra.mxu0 %v1978
        %2765 = vmatpush.bf16.msra.mxu0 %v1969
        %2766 = vmatpush.bf16.msra.mxu0 %v1960
        %2767 = vmatpush.bf16.msra.mxu0 %v1951
        %2768 = vmatpush.bf16.msra.mxu0 %v1942
        %2769 = vmatmul.bf16.gmra.mxu0 %v942
        %v2770 = vpop.f32.mrf.mxu0
        %v2771 = vadd.f32 %v2742, %v2770
        %v2772 = vpop.f32.mrf.mxu0
        %v2773 = vadd.f32 %v2744, %v2772
        %2774 = vmatmul.bf16.gmra.mxu0 %v945
        %v2775 = vpop.f32.mrf.mxu0
        %v2776 = vadd.f32 %v2747, %v2775
        %v2777 = vpop.f32.mrf.mxu0
        %v2778 = vadd.f32 %v2749, %v2777
        %2779 = vmatmul.bf16.gmra.mxu0 %v948
        %v2780 = vpop.f32.mrf.mxu0
        %v2781 = vadd.f32 %v2752, %v2780
        %v2782 = vpop.f32.mrf.mxu0
        %v2783 = vadd.f32 %v2754, %v2782
        %2784 = vmatmul.bf16.gmra.mxu0 %v951
        %v2785 = vpop.f32.mrf.mxu0
        %v2786 = vadd.f32 %v2757, %v2785
        %v2787 = vpop.f32.mrf.mxu0
        %v2788 = vadd.f32 %v2759, %v2787
        %2789 = vdwg.mxu0
        %2790 = vmatpush.bf16.msra.mxu0 %v2077
        %2791 = vmatpush.bf16.msra.mxu0 %v2068
        %2792 = vmatpush.bf16.msra.mxu0 %v2059
        %2793 = vmatpush.bf16.msra.mxu0 %v2050
        %2794 = vmatpush.bf16.msra.mxu0 %v2041
        %2795 = vmatpush.bf16.msra.mxu0 %v2032
        %2796 = vmatpush.bf16.msra.mxu0 %v2023
        %2797 = vmatpush.bf16.msra.mxu0 %v2014
        %2798 = vmatmul.bf16.gmra.mxu0 %v943
        %v2799 = vpop.f32.mrf.mxu0
        %v2800 = vadd.f32 %v2771, %v2799
        %v2801 = vpop.f32.mrf.mxu0
        %v2802 = vadd.f32 %v2773, %v2801
        %2803 = vmatmul.bf16.gmra.mxu0 %v946
        %v2804 = vpop.f32.mrf.mxu0
        %v2805 = vadd.f32 %v2776, %v2804
        %v2806 = vpop.f32.mrf.mxu0
        %v2807 = vadd.f32 %v2778, %v2806
        %2808 = vmatmul.bf16.gmra.mxu0 %v949
        %v2809 = vpop.f32.mrf.mxu0
        %v2810 = vadd.f32 %v2781, %v2809
        %v2811 = vpop.f32.mrf.mxu0
        %v2812 = vadd.f32 %v2783, %v2811
        %2813 = vmatmul.bf16.gmra.mxu0 %v952
        %v2814 = vpop.f32.mrf.mxu0
        %v2815 = vadd.f32 %v2786, %v2814
        %v2816 = vpop.f32.mrf.mxu0
        %v2817 = vadd.f32 %v2788, %v2816
        %2818 = vdwg.mxu0
        %2819 = vmatpush.bf16.msra.mxu0 %v1934
        %2820 = vmatpush.bf16.msra.mxu0 %v1925
        %2821 = vmatpush.bf16.msra.mxu0 %v1916
        %2822 = vmatpush.bf16.msra.mxu0 %v1907
        %2823 = vmatpush.bf16.msra.mxu0 %v1898
        %2824 = vmatpush.bf16.msra.mxu0 %v1889
        %2825 = vmatpush.bf16.msra.mxu0 %v1880
        %2826 = vmatpush.bf16.msra.mxu0 %v1871
        %2827 = vmatmul.bf16.gmra.mxu0 %v941
        %v2828 = vpop.f32.mrf.mxu0
        %v2829 = vadd.f32 0.0, %v2828
        %v2830 = vpop.f32.mrf.mxu0
        %v2831 = vadd.f32 0.0, %v2830
        %2832 = vmatmul.bf16.gmra.mxu0 %v944
        %v2833 = vpop.f32.mrf.mxu0
        %v2834 = vadd.f32 0.0, %v2833
        %v2835 = vpop.f32.mrf.mxu0
        %v2836 = vadd.f32 0.0, %v2835
        %2837 = vmatmul.bf16.gmra.mxu0 %v947
        %v2838 = vpop.f32.mrf.mxu0
        %v2839 = vadd.f32 0.0, %v2838
        %v2840 = vpop.f32.mrf.mxu0
        %v2841 = vadd.f32 0.0, %v2840
        %2842 = vmatmul.bf16.gmra.mxu0 %v950
        %v2843 = vpop.f32.mrf.mxu0
        %v2844 = vadd.f32 0.0, %v2843
        %v2845 = vpop.f32.mrf.mxu0
        %v2846 = vadd.f32 0.0, %v2845
        %2847 = vdwg.mxu0
        %2848 = vmatpush.bf16.msra.mxu0 %v2006
        %2849 = vmatpush.bf16.msra.mxu0 %v1997
        %2850 = vmatpush.bf16.msra.mxu0 %v1988
        %2851 = vmatpush.bf16.msra.mxu0 %v1979
        %2852 = vmatpush.bf16.msra.mxu0 %v1970
        %2853 = vmatpush.bf16.msra.mxu0 %v1961
        %2854 = vmatpush.bf16.msra.mxu0 %v1952
        %2855 = vmatpush.bf16.msra.mxu0 %v1943
        %2856 = vmatmul.bf16.gmra.mxu0 %v942
        %v2857 = vpop.f32.mrf.mxu0
        %v2858 = vadd.f32 %v2829, %v2857
        %v2859 = vpop.f32.mrf.mxu0
        %v2860 = vadd.f32 %v2831, %v2859
        %2861 = vmatmul.bf16.gmra.mxu0 %v945
        %v2862 = vpop.f32.mrf.mxu0
        %v2863 = vadd.f32 %v2834, %v2862
        %v2864 = vpop.f32.mrf.mxu0
        %v2865 = vadd.f32 %v2836, %v2864
        %2866 = vmatmul.bf16.gmra.mxu0 %v948
        %v2867 = vpop.f32.mrf.mxu0
        %v2868 = vadd.f32 %v2839, %v2867
        %v2869 = vpop.f32.mrf.mxu0
        %v2870 = vadd.f32 %v2841, %v2869
        %2871 = vmatmul.bf16.gmra.mxu0 %v951
        %v2872 = vpop.f32.mrf.mxu0
        %v2873 = vadd.f32 %v2844, %v2872
        %v2874 = vpop.f32.mrf.mxu0
        %v2875 = vadd.f32 %v2846, %v2874
        %2876 = vdwg.mxu0
        %2877 = vmatpush.bf16.msra.mxu0 %v2078
        %2878 = vmatpush.bf16.msra.mxu0 %v2069
        %2879 = vmatpush.bf16.msra.mxu0 %v2060
        %2880 = vmatpush.bf16.msra.mxu0 %v2051
        %2881 = vmatpush.bf16.msra.mxu0 %v2042
        %2882 = vmatpush.bf16.msra.mxu0 %v2033
        %2883 = vmatpush.bf16.msra.mxu0 %v2024
        %2884 = vmatpush.bf16.msra.mxu0 %v2015
        %2885 = vmatmul.bf16.gmra.mxu0 %v943
        %v2886 = vpop.f32.mrf.mxu0
        %v2887 = vadd.f32 %v2858, %v2886
        %v2888 = vpop.f32.mrf.mxu0
        %v2889 = vadd.f32 %v2860, %v2888
        %2890 = vmatmul.bf16.gmra.mxu0 %v946
        %v2891 = vpop.f32.mrf.mxu0
        %v2892 = vadd.f32 %v2863, %v2891
        %v2893 = vpop.f32.mrf.mxu0
        %v2894 = vadd.f32 %v2865, %v2893
        %2895 = vmatmul.bf16.gmra.mxu0 %v949
        %v2896 = vpop.f32.mrf.mxu0
        %v2897 = vadd.f32 %v2868, %v2896
        %v2898 = vpop.f32.mrf.mxu0
        %v2899 = vadd.f32 %v2870, %v2898
        %2900 = vmatmul.bf16.gmra.mxu0 %v952
        %v2901 = vpop.f32.mrf.mxu0
        %v2902 = vadd.f32 %v2873, %v2901
        %v2903 = vpop.f32.mrf.mxu0
        %v2904 = vadd.f32 %v2875, %v2903
        %2905 = vdwg.mxu0
        %2906 = vmatpush.bf16.msra.mxu0 %v1935
        %2907 = vmatpush.bf16.msra.mxu0 %v1926
        %2908 = vmatpush.bf16.msra.mxu0 %v1917
        %2909 = vmatpush.bf16.msra.mxu0 %v1908
        %2910 = vmatpush.bf16.msra.mxu0 %v1899
        %2911 = vmatpush.bf16.msra.mxu0 %v1890
        %2912 = vmatpush.bf16.msra.mxu0 %v1881
        %2913 = vmatpush.bf16.msra.mxu0 %v1872
        %2914 = vmatmul.bf16.gmra.mxu0 %v941
        %v2915 = vpop.f32.mrf.mxu0
        %v2916 = vadd.f32 0.0, %v2915
        %v2917 = vpop.f32.mrf.mxu0
        %v2918 = vadd.f32 0.0, %v2917
        %2919 = vmatmul.bf16.gmra.mxu0 %v944
        %v2920 = vpop.f32.mrf.mxu0
        %v2921 = vadd.f32 0.0, %v2920
        %v2922 = vpop.f32.mrf.mxu0
        %v2923 = vadd.f32 0.0, %v2922
        %2924 = vmatmul.bf16.gmra.mxu0 %v947
        %v2925 = vpop.f32.mrf.mxu0
        %v2926 = vadd.f32 0.0, %v2925
        %v2927 = vpop.f32.mrf.mxu0
        %v2928 = vadd.f32 0.0, %v2927
        %2929 = vmatmul.bf16.gmra.mxu0 %v950
        %v2930 = vpop.f32.mrf.mxu0
        %v2931 = vadd.f32 0.0, %v2930
        %v2932 = vpop.f32.mrf.mxu0
        %v2933 = vadd.f32 0.0, %v2932
        %2934 = vdwg.mxu0
        %2935 = vmatpush.bf16.msra.mxu0 %v2007
        %2936 = vmatpush.bf16.msra.mxu0 %v1998
        %2937 = vmatpush.bf16.msra.mxu0 %v1989
        %2938 = vmatpush.bf16.msra.mxu0 %v1980
        %2939 = vmatpush.bf16.msra.mxu0 %v1971
        %2940 = vmatpush.bf16.msra.mxu0 %v1962
        %2941 = vmatpush.bf16.msra.mxu0 %v1953
        %2942 = vmatpush.bf16.msra.mxu0 %v1944
        %2943 = vmatmul.bf16.gmra.mxu0 %v942
        %v2944 = vpop.f32.mrf.mxu0
        %v2945 = vadd.f32 %v2916, %v2944
        %v2946 = vpop.f32.mrf.mxu0
        %v2947 = vadd.f32 %v2918, %v2946
        %2948 = vmatmul.bf16.gmra.mxu0 %v945
        %v2949 = vpop.f32.mrf.mxu0
        %v2950 = vadd.f32 %v2921, %v2949
        %v2951 = vpop.f32.mrf.mxu0
        %v2952 = vadd.f32 %v2923, %v2951
        %2953 = vmatmul.bf16.gmra.mxu0 %v948
        %v2954 = vpop.f32.mrf.mxu0
        %v2955 = vadd.f32 %v2926, %v2954
        %v2956 = vpop.f32.mrf.mxu0
        %v2957 = vadd.f32 %v2928, %v2956
        %2958 = vmatmul.bf16.gmra.mxu0 %v951
        %v2959 = vpop.f32.mrf.mxu0
        %v2960 = vadd.f32 %v2931, %v2959
        %v2961 = vpop.f32.mrf.mxu0
        %v2962 = vadd.f32 %v2933, %v2961
        %2963 = vdwg.mxu0
        %2964 = vmatpush.bf16.msra.mxu0 %v2079
        %2965 = vmatpush.bf16.msra.mxu0 %v2070
        %2966 = vmatpush.bf16.msra.mxu0 %v2061
        %2967 = vmatpush.bf16.msra.mxu0 %v2052
        %2968 = vmatpush.bf16.msra.mxu0 %v2043
        %2969 = vmatpush.bf16.msra.mxu0 %v2034
        %2970 = vmatpush.bf16.msra.mxu0 %v2025
        %2971 = vmatpush.bf16.msra.mxu0 %v2016
        %2972 = vmatmul.bf16.gmra.mxu0 %v943
        %v2973 = vpop.f32.mrf.mxu0
        %v2974 = vadd.f32 %v2945, %v2973
        %v2975 = vpop.f32.mrf.mxu0
        %v2976 = vadd.f32 %v2947, %v2975
        %2977 = vmatmul.bf16.gmra.mxu0 %v946
        %v2978 = vpop.f32.mrf.mxu0
        %v2979 = vadd.f32 %v2950, %v2978
        %v2980 = vpop.f32.mrf.mxu0
        %v2981 = vadd.f32 %v2952, %v2980
        %2982 = vmatmul.bf16.gmra.mxu0 %v949
        %v2983 = vpop.f32.mrf.mxu0
        %v2984 = vadd.f32 %v2955, %v2983
        %v2985 = vpop.f32.mrf.mxu0
        %v2986 = vadd.f32 %v2957, %v2985
        %2987 = vmatmul.bf16.gmra.mxu0 %v952
        %v2988 = vpop.f32.mrf.mxu0
        %v2989 = vadd.f32 %v2960, %v2988
        %v2990 = vpop.f32.mrf.mxu0
        %v2991 = vadd.f32 %v2962, %v2990
        %2992 = vdwg.mxu0
        %2993 = vmatpush.bf16.msra.mxu0 %v1936
        %2994 = vmatpush.bf16.msra.mxu0 %v1927
        %2995 = vmatpush.bf16.msra.mxu0 %v1918
        %2996 = vmatpush.bf16.msra.mxu0 %v1909
        %2997 = vmatpush.bf16.msra.mxu0 %v1900
        %2998 = vmatpush.bf16.msra.mxu0 %v1891
        %2999 = vmatpush.bf16.msra.mxu0 %v1882
        %3000 = vmatpush.bf16.msra.mxu0 %v1873
        %3001 = vmatmul.bf16.gmra.mxu0 %v941
        %v3002 = vpop.f32.mrf.mxu0
        %v3003 = vadd.f32 0.0, %v3002
        %v3004 = vpop.f32.mrf.mxu0
        %v3005 = vadd.f32 0.0, %v3004
        %3006 = vmatmul.bf16.gmra.mxu0 %v944
        %v3007 = vpop.f32.mrf.mxu0
        %v3008 = vadd.f32 0.0, %v3007
        %v3009 = vpop.f32.mrf.mxu0
        %v3010 = vadd.f32 0.0, %v3009
        %3011 = vmatmul.bf16.gmra.mxu0 %v947
        %v3012 = vpop.f32.mrf.mxu0
        %v3013 = vadd.f32 0.0, %v3012
        %v3014 = vpop.f32.mrf.mxu0
        %v3015 = vadd.f32 0.0, %v3014
        %3016 = vmatmul.bf16.gmra.mxu0 %v950
        %v3017 = vpop.f32.mrf.mxu0
        %v3018 = vadd.f32 0.0, %v3017
        %v3019 = vpop.f32.mrf.mxu0
        %v3020 = vadd.f32 0.0, %v3019
        %3021 = vdwg.mxu0
        %3022 = vmatpush.bf16.msra.mxu0 %v2008
        %3023 = vmatpush.bf16.msra.mxu0 %v1999
        %3024 = vmatpush.bf16.msra.mxu0 %v1990
        %3025 = vmatpush.bf16.msra.mxu0 %v1981
        %3026 = vmatpush.bf16.msra.mxu0 %v1972
        %3027 = vmatpush.bf16.msra.mxu0 %v1963
        %3028 = vmatpush.bf16.msra.mxu0 %v1954
        %3029 = vmatpush.bf16.msra.mxu0 %v1945
        %3030 = vmatmul.bf16.gmra.mxu0 %v942
        %v3031 = vpop.f32.mrf.mxu0
        %v3032 = vadd.f32 %v3003, %v3031
        %v3033 = vpop.f32.mrf.mxu0
        %v3034 = vadd.f32 %v3005, %v3033
        %3035 = vmatmul.bf16.gmra.mxu0 %v945
        %v3036 = vpop.f32.mrf.mxu0
        %v3037 = vadd.f32 %v3008, %v3036
        %v3038 = vpop.f32.mrf.mxu0
        %v3039 = vadd.f32 %v3010, %v3038
        %3040 = vmatmul.bf16.gmra.mxu0 %v948
        %v3041 = vpop.f32.mrf.mxu0
        %v3042 = vadd.f32 %v3013, %v3041
        %v3043 = vpop.f32.mrf.mxu0
        %v3044 = vadd.f32 %v3015, %v3043
        %3045 = vmatmul.bf16.gmra.mxu0 %v951
        %v3046 = vpop.f32.mrf.mxu0
        %v3047 = vadd.f32 %v3018, %v3046
        %v3048 = vpop.f32.mrf.mxu0
        %v3049 = vadd.f32 %v3020, %v3048
        %3050 = vdwg.mxu0
        %3051 = vmatpush.bf16.msra.mxu0 %v2080
        %3052 = vmatpush.bf16.msra.mxu0 %v2071
        %3053 = vmatpush.bf16.msra.mxu0 %v2062
        %3054 = vmatpush.bf16.msra.mxu0 %v2053
        %3055 = vmatpush.bf16.msra.mxu0 %v2044
        %3056 = vmatpush.bf16.msra.mxu0 %v2035
        %3057 = vmatpush.bf16.msra.mxu0 %v2026
        %3058 = vmatpush.bf16.msra.mxu0 %v2017
        %3059 = vmatmul.bf16.gmra.mxu0 %v943
        %v3060 = vpop.f32.mrf.mxu0
        %v3061 = vadd.f32 %v3032, %v3060
        %v3062 = vpop.f32.mrf.mxu0
        %v3063 = vadd.f32 %v3034, %v3062
        %3064 = vmatmul.bf16.gmra.mxu0 %v946
        %v3065 = vpop.f32.mrf.mxu0
        %v3066 = vadd.f32 %v3037, %v3065
        %v3067 = vpop.f32.mrf.mxu0
        %v3068 = vadd.f32 %v3039, %v3067
        %3069 = vmatmul.bf16.gmra.mxu0 %v949
        %v3070 = vpop.f32.mrf.mxu0
        %v3071 = vadd.f32 %v3042, %v3070
        %v3072 = vpop.f32.mrf.mxu0
        %v3073 = vadd.f32 %v3044, %v3072
        %3074 = vmatmul.bf16.gmra.mxu0 %v952
        %v3075 = vpop.f32.mrf.mxu0
        %v3076 = vadd.f32 %v3047, %v3075
        %v3077 = vpop.f32.mrf.mxu0
        %v3078 = vadd.f32 %v3049, %v3077
        %3079 = vdwg.mxu0
        %v3080 = vmul.f32 %v2365, 0.125
        %v3081 = vmul.f32 %v2452, 0.125
        %v3082 = vmul.f32 %v2539, 0.125
        %v3083 = vmul.f32 %v2367, 0.125
        %v3084 = vmul.f32 %v2454, 0.125
        %v3085 = vmul.f32 %v2541, 0.125
        %v3086 = vmul.f32 %v2370, 0.125
        %v3087 = vmul.f32 %v2457, 0.125
        %v3088 = vmul.f32 %v2544, 0.125
        %v3089 = vmul.f32 %v2372, 0.125
        %v3090 = vmul.f32 %v2459, 0.125
        %v3091 = vmul.f32 %v2546, 0.125
        %v3092 = vmul.f32 %v2375, 0.125
        %v3093 = vmul.f32 %v2462, 0.125
        %v3094 = vmul.f32 %v2549, 0.125
        %v3095 = vmul.f32 %v2377, 0.125
        %v3096 = vmul.f32 %v2464, 0.125
        %v3097 = vmul.f32 %v2551, 0.125
        %v3098 = vmul.f32 %v2380, 0.125
        %v3099 = vmul.f32 %v2467, 0.125
        %v3100 = vmul.f32 %v2554, 0.125
        %v3101 = vmul.f32 %v2382, 0.125
        %v3102 = vmul.f32 %v2469, 0.125
        %v3103 = vmul.f32 %v2556, 0.125
        %v3104 = vpack.c.bf16 %v3081, %v3080
        %v3105 = vpack.c.bf16 %v3082, %v3082
        %v3106 = vpack.c.bf16 %v3084, %v3083
        %v3107 = vpack.c.bf16 %v3085, %v3085
        %v3108 = vpack.c.bf16 %v3087, %v3086
        %v3109 = vpack.c.bf16 %v3088, %v3088
        %v3110 = vpack.c.bf16 %v3090, %v3089
        %v3111 = vpack.c.bf16 %v3091, %v3091
        %v3112 = vpack.c.bf16 %v3093, %v3092
        %v3113 = vpack.c.bf16 %v3094, %v3094
        %v3114 = vpack.c.bf16 %v3096, %v3095
        %v3115 = vpack.c.bf16 %v3097, %v3097
        %v3116 = vpack.c.bf16 %v3099, %v3098
        %v3117 = vpack.c.bf16 %v3100, %v3100
        %v3118 = vpack.c.bf16 %v3102, %v3101
        %v3119 = vpack.c.bf16 %v3103, %v3103
        %v3120 = vpack.c.bf16 %v2713, %v2626
        %v3121 = vpack.c.bf16 %v2800, %v2800
        %v3122 = vpack.c.bf16 %v2715, %v2628
        %v3123 = vpack.c.bf16 %v2802, %v2802
        %v3124 = vpack.c.bf16 %v2718, %v2631
        %v3125 = vpack.c.bf16 %v2805, %v2805
        %v3126 = vpack.c.bf16 %v2720, %v2633
        %v3127 = vpack.c.bf16 %v2807, %v2807
        %v3128 = vpack.c.bf16 %v2723, %v2636
        %v3129 = vpack.c.bf16 %v2810, %v2810
        %v3130 = vpack.c.bf16 %v2725, %v2638
        %v3131 = vpack.c.bf16 %v2812, %v2812
        %v3132 = vpack.c.bf16 %v2728, %v2641
        %v3133 = vpack.c.bf16 %v2815, %v2815
        %v3134 = vpack.c.bf16 %v2730, %v2643
        %v3135 = vpack.c.bf16 %v2817, %v2817
        %v3136 = vpack.c.bf16 %v2974, %v2887
        %v3137 = vpack.c.bf16 %v3061, %v3061
        %v3138 = vpack.c.bf16 %v2976, %v2889
        %v3139 = vpack.c.bf16 %v3063, %v3063
        %v3140 = vpack.c.bf16 %v2979, %v2892
        %v3141 = vpack.c.bf16 %v3066, %v3066
        %v3142 = vpack.c.bf16 %v2981, %v2894
        %v3143 = vpack.c.bf16 %v3068, %v3068
        %v3144 = vpack.c.bf16 %v2984, %v2897
        %v3145 = vpack.c.bf16 %v3071, %v3071
        %v3146 = vpack.c.bf16 %v2986, %v2899
        %v3147 = vpack.c.bf16 %v3073, %v3073
        %v3148 = vpack.c.bf16 %v2989, %v2902
        %v3149 = vpack.c.bf16 %v3076, %v3076
        %v3150 = vpack.c.bf16 %v2991, %v2904
        %v3151 = vpack.c.bf16 %v3078, %v3078
        %v3152 = vlaneseq
        %v3153 = vshrl.u32 %v3152, 7
        %v3154 = vadd.s32 %v3153, 8
        %v3155 = vadd.s32 %v3153, 16
        %v3156 = vadd.s32 %v3153, 24
        %v3157 = vadd.s32 %v3153, 32
        %v3158 = vadd.s32 %v3153, 40
        %v3159 = vadd.s32 %v3153, 48
        %v3160 = vadd.s32 %v3153, 56
        %v3161 = vlaneseq
        %v3162 = vand.u32 %v3161, 127
        %vm3163 = vcmp.ge.s32.totalorder %v3153, %v3162
        %vm3164 = vcmp.ge.s32.totalorder %v3154, %v3162
        %vm3165 = vcmp.ge.s32.totalorder %v3155, %v3162
        %vm3166 = vcmp.ge.s32.totalorder %v3156, %v3162
        %vm3167 = vcmp.ge.s32.totalorder %v3157, %v3162
        %vm3168 = vcmp.ge.s32.totalorder %v3158, %v3162
        %vm3169 = vcmp.ge.s32.totalorder %v3159, %v3162
        %vm3170 = vcmp.ge.s32.totalorder %v3160, %v3162
        %v3171 = vsel %vm3163, 0.0, -1e+30
        %v3172 = vsel %vm3164, 0.0, -1e+30
        %v3173 = vsel %vm3165, 0.0, -1e+30
        %v3174 = vsel %vm3166, 0.0, -1e+30
        %v3175 = vsel %vm3167, 0.0, -1e+30
        %v3176 = vsel %vm3168, 0.0, -1e+30
        %v3177 = vsel %vm3169, 0.0, -1e+30
        %v3178 = vsel %vm3170, 0.0, -1e+30
        %v3187 = vunpack.c.l.b16 %v3104
        %v3188 = vunpack.c.l.b16 %v3106
        %v3189 = vunpack.c.l.b16 %v3108
        %v3190 = vunpack.c.l.b16 %v3110
        %v3191 = vunpack.c.l.b16 %v3112
        %v3192 = vunpack.c.l.b16 %v3114
        %v3193 = vunpack.c.l.b16 %v3116
        %v3194 = vunpack.c.l.b16 %v3118
        %v3195 = vpack.c.b16 %v3188, %v3187
        %v3196 = vpack.c.b16 %v3190, %v3189
        %v3197 = vpack.c.b16 %v3192, %v3191
        %v3198 = vpack.c.b16 %v3194, %v3193
        %v3207 = vunpack.c.l.b16 %v3120
        %v3208 = vunpack.c.l.b16 %v3122
        %v3209 = vunpack.c.l.b16 %v3124
        %v3210 = vunpack.c.l.b16 %v3126
        %v3211 = vunpack.c.l.b16 %v3128
        %v3212 = vunpack.c.l.b16 %v3130
        %v3213 = vunpack.c.l.b16 %v3132
        %v3214 = vunpack.c.l.b16 %v3134
        %v3215 = vpack.c.b16 %v3208, %v3207
        %v3216 = vpack.c.b16 %v3210, %v3209
        %v3217 = vpack.c.b16 %v3212, %v3211
        %v3218 = vpack.c.b16 %v3214, %v3213
        %vm3219 = vcmask 523264
        %v3221 = vsel %vm3219, %v3195, 0
        %v3224 = vsel %vm3219, %v3196, 0
        %v3227 = vsel %vm3219, %v3197, 0
        %v3230 = vsel %vm3219, %v3198, 0
        %v3233 = vsel %vm3219, %v3215, 0
        %v3236 = vsel %vm3219, %v3216, 0
        %v3239 = vsel %vm3219, %v3217, 0
        %v3242 = vsel %vm3219, %v3218, 0
        %3244 = vmatpush.bf16.xpose.msra.mxu0 0
        %3245 = vmatpush.bf16.xpose.msra.mxu0 0
        %3246 = vmatpush.bf16.xpose.msra.mxu0 0
        %3247 = vmatpush.bf16.xpose.msra.mxu0 0
        %3248 = vmatpush.bf16.xpose.msra.mxu0 %v3242
        %3249 = vmatpush.bf16.xpose.msra.mxu0 %v3239
        %3250 = vmatpush.bf16.xpose.msra.mxu0 %v3236
        %3251 = vmatpush.bf16.xpose.msra.mxu0 %v3233
        %3252 = vmatmul.bf16.gmra.mxu0 %v3221
        %v3253 = vpop.f32.mrf.mxu0
        %v3254 = vadd.f32 %v3171, %v3253
        %v3255 = vpop.f32.mrf.mxu0
        %v3256 = vadd.f32 %v3172, %v3255
        %3257 = vmatmul.bf16.gmra.mxu0 %v3224
        %v3258 = vpop.f32.mrf.mxu0
        %v3259 = vadd.f32 %v3173, %v3258
        %v3260 = vpop.f32.mrf.mxu0
        %v3261 = vadd.f32 %v3174, %v3260
        %3262 = vmatmul.bf16.gmra.mxu0 %v3227
        %v3263 = vpop.f32.mrf.mxu0
        %v3264 = vadd.f32 %v3175, %v3263
        %v3265 = vpop.f32.mrf.mxu0
        %v3266 = vadd.f32 %v3176, %v3265
        %3267 = vmatmul.bf16.gmra.mxu0 %v3230
        %v3268 = vpop.f32.mrf.mxu0
        %v3269 = vadd.f32 %v3177, %v3268
        %v3270 = vpop.f32.mrf.mxu0
        %v3271 = vadd.f32 %v3178, %v3270
        %3272 = vdwg.mxu0
        %v3273 = vsel %vm3219, %v3254, -inf
        %3274 = vmax.xlane.f32.xlu0 %v3273
        %v3275 = vpop.xlane.xlu0 %3274
        %v3276 = vsel %vm3219, %v3256, -inf
        %3277 = vmax.xlane.f32.xlu0 %v3276
        %v3278 = vpop.xlane.xlu0 %3277
        %v3279 = vsel %vm3219, %v3259, -inf
        %3280 = vmax.xlane.f32.xlu0 %v3279
        %v3281 = vpop.xlane.xlu0 %3280
        %v3282 = vsel %vm3219, %v3261, -inf
        %3283 = vmax.xlane.f32.xlu0 %v3282
        %v3284 = vpop.xlane.xlu0 %3283
        %v3285 = vsel %vm3219, %v3264, -inf
        %3286 = vmax.xlane.f32.xlu0 %v3285
        %v3287 = vpop.xlane.xlu0 %3286
        %v3288 = vsel %vm3219, %v3266, -inf
        %3289 = vmax.xlane.f32.xlu0 %v3288
        %v3290 = vpop.xlane.xlu0 %3289
        %v3291 = vsel %vm3219, %v3269, -inf
        %3292 = vmax.xlane.f32.xlu0 %v3291
        %v3293 = vpop.xlane.xlu0 %3292
        %v3294 = vsel %vm3219, %v3271, -inf
        %3295 = vmax.xlane.f32.xlu0 %v3294
        %v3296 = vpop.xlane.xlu0 %3295
        %v3297 = vsub.f32 %v3254, %v3275
        %v3298 = vsub.f32 %v3256, %v3278
        %v3299 = vsub.f32 %v3259, %v3281
        %v3300 = vsub.f32 %v3261, %v3284
        %v3301 = vsub.f32 %v3264, %v3287
        %v3302 = vsub.f32 %v3266, %v3290
        %v3303 = vsub.f32 %v3269, %v3293
        %v3304 = vsub.f32 %v3271, %v3296
        %v3305 = vmul.f32 %v3297, 1.442695
        %v3306 = vpow.pop %v3305
        %v3307 = vmul.f32 %v3298, 1.442695
        %v3308 = vpow.pop %v3307
        %v3309 = vmul.f32 %v3299, 1.442695
        %v3310 = vpow.pop %v3309
        %v3311 = vmul.f32 %v3300, 1.442695
        %v3312 = vpow.pop %v3311
        %v3313 = vmul.f32 %v3301, 1.442695
        %v3314 = vpow.pop %v3313
        %v3315 = vmul.f32 %v3302, 1.442695
        %v3316 = vpow.pop %v3315
        %v3317 = vmul.f32 %v3303, 1.442695
        %v3318 = vpow.pop %v3317
        %v3319 = vmul.f32 %v3304, 1.442695
        %v3320 = vpow.pop %v3319
        %v3321 = vsel %vm3219, %v3306, 0.0
        %3322 = vadd.xlane.f32.xlu0 %v3321
        %v3323 = vpop.xlane.xlu0 %3322
        %v3324 = vsel %vm3219, %v3308, 0.0
        %3325 = vadd.xlane.f32.xlu0 %v3324
        %v3326 = vpop.xlane.xlu0 %3325
        %v3327 = vsel %vm3219, %v3310, 0.0
        %3328 = vadd.xlane.f32.xlu0 %v3327
        %v3329 = vpop.xlane.xlu0 %3328
        %v3330 = vsel %vm3219, %v3312, 0.0
        %3331 = vadd.xlane.f32.xlu0 %v3330
        %v3332 = vpop.xlane.xlu0 %3331
        %v3333 = vsel %vm3219, %v3314, 0.0
        %3334 = vadd.xlane.f32.xlu0 %v3333
        %v3335 = vpop.xlane.xlu0 %3334
        %v3336 = vsel %vm3219, %v3316, 0.0
        %3337 = vadd.xlane.f32.xlu0 %v3336
        %v3338 = vpop.xlane.xlu0 %3337
        %v3339 = vsel %vm3219, %v3318, 0.0
        %3340 = vadd.xlane.f32.xlu0 %v3339
        %v3341 = vpop.xlane.xlu0 %3340
        %v3342 = vsel %vm3219, %v3320, 0.0
        %3343 = vadd.xlane.f32.xlu0 %v3342
        %v3344 = vpop.xlane.xlu0 %3343
        %v3345 = vrcp.pop %v3323
        %v3346 = vrcp.pop %v3326
        %v3347 = vrcp.pop %v3329
        %v3348 = vrcp.pop %v3332
        %v3349 = vrcp.pop %v3335
        %v3350 = vrcp.pop %v3338
        %v3351 = vrcp.pop %v3341
        %v3352 = vrcp.pop %v3344
        %v3353 = vmul.f32 %v3306, %v3345
        %v3354 = vmul.f32 %v3308, %v3346
        %v3355 = vmul.f32 %v3310, %v3347
        %v3356 = vmul.f32 %v3312, %v3348
        %v3357 = vmul.f32 %v3314, %v3349
        %v3358 = vmul.f32 %v3316, %v3350
        %v3359 = vmul.f32 %v3318, %v3351
        %v3360 = vmul.f32 %v3320, %v3352
        %v3361 = vpack.c.bf16 %v3354, %v3353
        %v3362 = vpack.c.bf16 %v3356, %v3355
        %v3363 = vpack.c.bf16 %v3358, %v3357
        %v3364 = vpack.c.bf16 %v3360, %v3359
        %v3373 = vunpack.c.l.b16 %v3136
        %v3374 = vunpack.c.l.b16 %v3138
        %v3375 = vunpack.c.l.b16 %v3140
        %v3376 = vunpack.c.l.b16 %v3142
        %v3377 = vunpack.c.l.b16 %v3144
        %v3378 = vunpack.c.l.b16 %v3146
        %v3379 = vunpack.c.l.b16 %v3148
        %v3380 = vunpack.c.l.b16 %v3150
        %v3381 = vpack.c.b16 %v3374, %v3373
        %v3382 = vpack.c.b16 %v3376, %v3375
        %v3383 = vpack.c.b16 %v3378, %v3377
        %v3384 = vpack.c.b16 %v3380, %v3379
        %v3390 = vsel %vm3219, %v3361, 0
        %v3393 = vsel %vm3219, %v3362, 0
        %v3396 = vsel %vm3219, %v3363, 0
        %v3399 = vsel %vm3219, %v3364, 0
        %3401 = vmatpush.bf16.msra.mxu0 0
        %3402 = vmatpush.bf16.msra.mxu0 0
        %3403 = vmatpush.bf16.msra.mxu0 0
        %3404 = vmatpush.bf16.msra.mxu0 0
        %3405 = vmatpush.bf16.msra.mxu0 %v3384
        %3406 = vmatpush.bf16.msra.mxu0 %v3383
        %3407 = vmatpush.bf16.msra.mxu0 %v3382
        %3408 = vmatpush.bf16.msra.mxu0 %v3381
        %3409 = vmatmul.bf16.gmra.mxu0 %v3390
        %v3410 = vpop.f32.mrf.mxu0
        %v3411 = vadd.f32 0.0, %v3410
        %v3412 = vpop.f32.mrf.mxu0
        %v3413 = vadd.f32 0.0, %v3412
        %3414 = vmatmul.bf16.gmra.mxu0 %v3393
        %v3415 = vpop.f32.mrf.mxu0
        %v3416 = vadd.f32 0.0, %v3415
        %v3417 = vpop.f32.mrf.mxu0
        %v3418 = vadd.f32 0.0, %v3417
        %3419 = vmatmul.bf16.gmra.mxu0 %v3396
        %v3420 = vpop.f32.mrf.mxu0
        %v3421 = vadd.f32 0.0, %v3420
        %v3422 = vpop.f32.mrf.mxu0
        %v3423 = vadd.f32 0.0, %v3422
        %3424 = vmatmul.bf16.gmra.mxu0 %v3399
        %v3425 = vpop.f32.mrf.mxu0
        %v3426 = vadd.f32 0.0, %v3425
        %v3427 = vpop.f32.mrf.mxu0
        %v3428 = vadd.f32 0.0, %v3427
        %3429 = vdwg.mxu0
        %3430 = vst.msk [vmem:[#allocation2] sm:$0xff] %vm3219, %v3411
        %3431 = vst.msk [vmem:[#allocation2 + $0x18] sm:$0xff] %vm3219, %v3413
        %3432 = vst.msk [vmem:[#allocation2 + $0x30] sm:$0xff] %vm3219, %v3416
        %3433 = vst.msk [vmem:[#allocation2 + $0x48] sm:$0xff] %vm3219, %v3418
        %3434 = vst.msk [vmem:[#allocation2 + $0x60] sm:$0xff] %vm3219, %v3421
        %3435 = vst.msk [vmem:[#allocation2 + $0x78] sm:$0xff] %vm3219, %v3423
        %3436 = vst.msk [vmem:[#allocation2 + $0x90] sm:$0xff] %vm3219, %v3426
        %3437 = vst.msk [vmem:[#allocation2 + $0xa8] sm:$0xff] %vm3219, %v3428
        %3438 = vrot.lane.b32.xlu0 %v3195, 64
        %v3439 = vpop.permute.xlu0 %3438
        %3440 = vrot.lane.b32.xlu0 %v3196, 64
        %v3441 = vpop.permute.xlu0 %3440
        %3442 = vrot.lane.b32.xlu0 %v3197, 64
        %v3443 = vpop.permute.xlu0 %3442
        %3444 = vrot.lane.b32.xlu0 %v3198, 64
        %v3445 = vpop.permute.xlu0 %3444
        %3446 = vrot.lane.b32.xlu0 %v3215, 64
        %v3447 = vpop.permute.xlu0 %3446
        %3448 = vrot.lane.b32.xlu0 %v3216, 64
        %v3449 = vpop.permute.xlu0 %3448
        %3450 = vrot.lane.b32.xlu0 %v3217, 64
        %v3451 = vpop.permute.xlu0 %3450
        %3452 = vrot.lane.b32.xlu0 %v3218, 64
        %v3453 = vpop.permute.xlu0 %3452
        %v3455 = vsel %vm3219, %v3439, 0
        %v3458 = vsel %vm3219, %v3441, 0
        %v3461 = vsel %vm3219, %v3443, 0
        %v3464 = vsel %vm3219, %v3445, 0
        %v3467 = vsel %vm3219, %v3447, 0
        %v3470 = vsel %vm3219, %v3449, 0
        %v3473 = vsel %vm3219, %v3451, 0
        %v3476 = vsel %vm3219, %v3453, 0
        %3478 = vmatpush.bf16.xpose.msra.mxu0 0
        %3479 = vmatpush.bf16.xpose.msra.mxu0 0
        %3480 = vmatpush.bf16.xpose.msra.mxu0 0
        %3481 = vmatpush.bf16.xpose.msra.mxu0 0
        %3482 = vmatpush.bf16.xpose.msra.mxu0 %v3476
        %3483 = vmatpush.bf16.xpose.msra.mxu0 %v3473
        %3484 = vmatpush.bf16.xpose.msra.mxu0 %v3470
        %3485 = vmatpush.bf16.xpose.msra.mxu0 %v3467
        %3486 = vmatmul.bf16.gmra.mxu0 %v3455
        %v3487 = vpop.f32.mrf.mxu0
        %v3488 = vadd.f32 %v3171, %v3487
        %v3489 = vpop.f32.mrf.mxu0
        %v3490 = vadd.f32 %v3172, %v3489
        %3491 = vmatmul.bf16.gmra.mxu0 %v3458
        %v3492 = vpop.f32.mrf.mxu0
        %v3493 = vadd.f32 %v3173, %v3492
        %v3494 = vpop.f32.mrf.mxu0
        %v3495 = vadd.f32 %v3174, %v3494
        %3496 = vmatmul.bf16.gmra.mxu0 %v3461
        %v3497 = vpop.f32.mrf.mxu0
        %v3498 = vadd.f32 %v3175, %v3497
        %v3499 = vpop.f32.mrf.mxu0
        %v3500 = vadd.f32 %v3176, %v3499
        %3501 = vmatmul.bf16.gmra.mxu0 %v3464
        %v3502 = vpop.f32.mrf.mxu0
        %v3503 = vadd.f32 %v3177, %v3502
        %v3504 = vpop.f32.mrf.mxu0
        %v3505 = vadd.f32 %v3178, %v3504
        %3506 = vdwg.mxu0
        %v3507 = vsel %vm3219, %v3488, -inf
        %3508 = vmax.xlane.f32.xlu0 %v3507
        %v3509 = vpop.xlane.xlu0 %3508
        %v3510 = vsel %vm3219, %v3490, -inf
        %3511 = vmax.xlane.f32.xlu0 %v3510
        %v3512 = vpop.xlane.xlu0 %3511
        %v3513 = vsel %vm3219, %v3493, -inf
        %3514 = vmax.xlane.f32.xlu0 %v3513
        %v3515 = vpop.xlane.xlu0 %3514
        %v3516 = vsel %vm3219, %v3495, -inf
        %3517 = vmax.xlane.f32.xlu0 %v3516
        %v3518 = vpop.xlane.xlu0 %3517
        %v3519 = vsel %vm3219, %v3498, -inf
        %3520 = vmax.xlane.f32.xlu0 %v3519
        %v3521 = vpop.xlane.xlu0 %3520
        %v3522 = vsel %vm3219, %v3500, -inf
        %3523 = vmax.xlane.f32.xlu0 %v3522
        %v3524 = vpop.xlane.xlu0 %3523
        %v3525 = vsel %vm3219, %v3503, -inf
        %3526 = vmax.xlane.f32.xlu0 %v3525
        %v3527 = vpop.xlane.xlu0 %3526
        %v3528 = vsel %vm3219, %v3505, -inf
        %3529 = vmax.xlane.f32.xlu0 %v3528
        %v3530 = vpop.xlane.xlu0 %3529
        %v3531 = vsub.f32 %v3488, %v3509
        %v3532 = vsub.f32 %v3490, %v3512
        %v3533 = vsub.f32 %v3493, %v3515
        %v3534 = vsub.f32 %v3495, %v3518
        %v3535 = vsub.f32 %v3498, %v3521
        %v3536 = vsub.f32 %v3500, %v3524
        %v3537 = vsub.f32 %v3503, %v3527
        %v3538 = vsub.f32 %v3505, %v3530
        %v3539 = vmul.f32 %v3531, 1.442695
        %v3540 = vpow.pop %v3539
        %v3541 = vmul.f32 %v3532, 1.442695
        %v3542 = vpow.pop %v3541
        %v3543 = vmul.f32 %v3533, 1.442695
        %v3544 = vpow.pop %v3543
        %v3545 = vmul.f32 %v3534, 1.442695
        %v3546 = vpow.pop %v3545
        %v3547 = vmul.f32 %v3535, 1.442695
        %v3548 = vpow.pop %v3547
        %v3549 = vmul.f32 %v3536, 1.442695
        %v3550 = vpow.pop %v3549
        %v3551 = vmul.f32 %v3537, 1.442695
        %v3552 = vpow.pop %v3551
        %v3553 = vmul.f32 %v3538, 1.442695
        %v3554 = vpow.pop %v3553
        %v3555 = vsel %vm3219, %v3540, 0.0
        %3556 = vadd.xlane.f32.xlu0 %v3555
        %v3557 = vpop.xlane.xlu0 %3556
        %v3558 = vsel %vm3219, %v3542, 0.0
        %3559 = vadd.xlane.f32.xlu0 %v3558
        %v3560 = vpop.xlane.xlu0 %3559
        %v3561 = vsel %vm3219, %v3544, 0.0
        %3562 = vadd.xlane.f32.xlu0 %v3561
        %v3563 = vpop.xlane.xlu0 %3562
        %v3564 = vsel %vm3219, %v3546, 0.0
        %3565 = vadd.xlane.f32.xlu0 %v3564
        %v3566 = vpop.xlane.xlu0 %3565
        %v3567 = vsel %vm3219, %v3548, 0.0
        %3568 = vadd.xlane.f32.xlu0 %v3567
        %v3569 = vpop.xlane.xlu0 %3568
        %v3570 = vsel %vm3219, %v3550, 0.0
        %3571 = vadd.xlane.f32.xlu0 %v3570
        %v3572 = vpop.xlane.xlu0 %3571
        %v3573 = vsel %vm3219, %v3552, 0.0
        %3574 = vadd.xlane.f32.xlu0 %v3573
        %v3575 = vpop.xlane.xlu0 %3574
        %v3576 = vsel %vm3219, %v3554, 0.0
        %3577 = vadd.xlane.f32.xlu0 %v3576
        %v3578 = vpop.xlane.xlu0 %3577
        %v3579 = vrcp.pop %v3557
        %v3580 = vrcp.pop %v3560
        %v3581 = vrcp.pop %v3563
        %v3582 = vrcp.pop %v3566
        %v3583 = vrcp.pop %v3569
        %v3584 = vrcp.pop %v3572
        %v3585 = vrcp.pop %v3575
        %v3586 = vrcp.pop %v3578
        %v3587 = vmul.f32 %v3540, %v3579
        %v3588 = vmul.f32 %v3542, %v3580
        %v3589 = vmul.f32 %v3544, %v3581
        %v3590 = vmul.f32 %v3546, %v3582
        %v3591 = vmul.f32 %v3548, %v3583
        %v3592 = vmul.f32 %v3550, %v3584
        %v3593 = vmul.f32 %v3552, %v3585
        %v3594 = vmul.f32 %v3554, %v3586
        %v3595 = vpack.c.bf16 %v3588, %v3587
        %v3596 = vpack.c.bf16 %v3590, %v3589
        %v3597 = vpack.c.bf16 %v3592, %v3591
        %v3598 = vpack.c.bf16 %v3594, %v3593
        %3599 = vrot.lane.b32.xlu0 %v3381, 64
        %v3600 = vpop.permute.xlu0 %3599
        %3601 = vrot.lane.b32.xlu0 %v3382, 64
        %v3602 = vpop.permute.xlu0 %3601
        %3603 = vrot.lane.b32.xlu0 %v3383, 64
        %v3604 = vpop.permute.xlu0 %3603
        %3605 = vrot.lane.b32.xlu0 %v3384, 64
        %v3606 = vpop.permute.xlu0 %3605
        %v3612 = vsel %vm3219, %v3595, 0
        %v3615 = vsel %vm3219, %v3596, 0
        %v3618 = vsel %vm3219, %v3597, 0
        %v3621 = vsel %vm3219, %v3598, 0
        %3623 = vmatpush.bf16.msra.mxu0 0
        %3624 = vmatpush.bf16.msra.mxu0 0
        %3625 = vmatpush.bf16.msra.mxu0 0
        %3626 = vmatpush.bf16.msra.mxu0 0
        %3627 = vmatpush.bf16.msra.mxu0 %v3606
        %3628 = vmatpush.bf16.msra.mxu0 %v3604
        %3629 = vmatpush.bf16.msra.mxu0 %v3602
        %3630 = vmatpush.bf16.msra.mxu0 %v3600
        %3631 = vmatmul.bf16.gmra.mxu0 %v3612
        %v3632 = vpop.f32.mrf.mxu0
        %v3633 = vadd.f32 0.0, %v3632
        %v3634 = vpop.f32.mrf.mxu0
        %v3635 = vadd.f32 0.0, %v3634
        %3636 = vmatmul.bf16.gmra.mxu0 %v3615
        %v3637 = vpop.f32.mrf.mxu0
        %v3638 = vadd.f32 0.0, %v3637
        %v3639 = vpop.f32.mrf.mxu0
        %v3640 = vadd.f32 0.0, %v3639
        %3641 = vmatmul.bf16.gmra.mxu0 %v3618
        %v3642 = vpop.f32.mrf.mxu0
        %v3643 = vadd.f32 0.0, %v3642
        %v3644 = vpop.f32.mrf.mxu0
        %v3645 = vadd.f32 0.0, %v3644
        %3646 = vmatmul.bf16.gmra.mxu0 %v3621
        %v3647 = vpop.f32.mrf.mxu0
        %v3648 = vadd.f32 0.0, %v3647
        %v3649 = vpop.f32.mrf.mxu0
        %v3650 = vadd.f32 0.0, %v3649
        %3651 = vdwg.mxu0
        %3660 = vrot.lane.b32.xlu0 %v3633, 64
        %v3661 = vpop.permute.xlu0 %3660
        %3662 = vrot.lane.b32.xlu0 %v3635, 64
        %v3663 = vpop.permute.xlu0 %3662
        %3664 = vrot.lane.b32.xlu0 %v3638, 64
        %v3665 = vpop.permute.xlu0 %3664
        %3666 = vrot.lane.b32.xlu0 %v3640, 64
        %v3667 = vpop.permute.xlu0 %3666
        %3668 = vrot.lane.b32.xlu0 %v3643, 64
        %v3669 = vpop.permute.xlu0 %3668
        %3670 = vrot.lane.b32.xlu0 %v3645, 64
        %v3671 = vpop.permute.xlu0 %3670
        %3672 = vrot.lane.b32.xlu0 %v3648, 64
        %v3673 = vpop.permute.xlu0 %3672
        %3674 = vrot.lane.b32.xlu0 %v3650, 64
        %v3675 = vpop.permute.xlu0 %3674
        %vm3684 = vcmask 1048064
        %3685 = vst.msk [vmem:[#allocation2] sm:$0xff] %vm3684, %v3661
        %3686 = vst.msk [vmem:[#allocation2 + $0x18] sm:$0xff] %vm3684, %v3663
        %3687 = vst.msk [vmem:[#allocation2 + $0x30] sm:$0xff] %vm3684, %v3665
        %3688 = vst.msk [vmem:[#allocation2 + $0x48] sm:$0xff] %vm3684, %v3667
        %3689 = vst.msk [vmem:[#allocation2 + $0x60] sm:$0xff] %vm3684, %v3669
        %3690 = vst.msk [vmem:[#allocation2 + $0x78] sm:$0xff] %vm3684, %v3671
        %3691 = vst.msk [vmem:[#allocation2 + $0x90] sm:$0xff] %vm3684, %v3673
        %3692 = vst.msk [vmem:[#allocation2 + $0xa8] sm:$0xff] %vm3684, %v3675
        %v3693 = vunpack.c.h.b16 %v3104
        %v3694 = vunpack.c.h.b16 %v3106
        %v3695 = vunpack.c.h.b16 %v3108
        %v3696 = vunpack.c.h.b16 %v3110
        %v3697 = vunpack.c.h.b16 %v3112
        %v3698 = vunpack.c.h.b16 %v3114
        %v3699 = vunpack.c.h.b16 %v3116
        %v3700 = vunpack.c.h.b16 %v3118
        %v3701 = vpack.c.b16 %v3694, %v3693
        %v3702 = vpack.c.b16 %v3696, %v3695
        %v3703 = vpack.c.b16 %v3698, %v3697
        %v3704 = vpack.c.b16 %v3700, %v3699
        %v3705 = vunpack.c.h.b16 %v3120
        %v3706 = vunpack.c.h.b16 %v3122
        %v3707 = vunpack.c.h.b16 %v3124
        %v3708 = vunpack.c.h.b16 %v3126
        %v3709 = vunpack.c.h.b16 %v3128
        %v3710 = vunpack.c.h.b16 %v3130
        %v3711 = vunpack.c.h.b16 %v3132
        %v3712 = vunpack.c.h.b16 %v3134
        %v3713 = vpack.c.b16 %v3706, %v3705
        %v3714 = vpack.c.b16 %v3708, %v3707
        %v3715 = vpack.c.b16 %v3710, %v3709
        %v3716 = vpack.c.b16 %v3712, %v3711
        %v3718 = vsel %vm3219, %v3701, 0
        %v3721 = vsel %vm3219, %v3702, 0
        %v3724 = vsel %vm3219, %v3703, 0
        %v3727 = vsel %vm3219, %v3704, 0
        %v3730 = vsel %vm3219, %v3713, 0
        %v3733 = vsel %vm3219, %v3714, 0
        %v3736 = vsel %vm3219, %v3715, 0
        %v3739 = vsel %vm3219, %v3716, 0
        %3741 = vmatpush.bf16.xpose.msra.mxu0 0
        %3742 = vmatpush.bf16.xpose.msra.mxu0 0
        %3743 = vmatpush.bf16.xpose.msra.mxu0 0
        %3744 = vmatpush.bf16.xpose.msra.mxu0 0
        %3745 = vmatpush.bf16.xpose.msra.mxu0 %v3739
        %3746 = vmatpush.bf16.xpose.msra.mxu0 %v3736
        %3747 = vmatpush.bf16.xpose.msra.mxu0 %v3733
        %3748 = vmatpush.bf16.xpose.msra.mxu0 %v3730
        %3749 = vmatmul.bf16.gmra.mxu0 %v3718
        %v3750 = vpop.f32.mrf.mxu0
        %v3751 = vadd.f32 %v3171, %v3750
        %v3752 = vpop.f32.mrf.mxu0
        %v3753 = vadd.f32 %v3172, %v3752
        %3754 = vmatmul.bf16.gmra.mxu0 %v3721
        %v3755 = vpop.f32.mrf.mxu0
        %v3756 = vadd.f32 %v3173, %v3755
        %v3757 = vpop.f32.mrf.mxu0
        %v3758 = vadd.f32 %v3174, %v3757
        %3759 = vmatmul.bf16.gmra.mxu0 %v3724
        %v3760 = vpop.f32.mrf.mxu0
        %v3761 = vadd.f32 %v3175, %v3760
        %v3762 = vpop.f32.mrf.mxu0
        %v3763 = vadd.f32 %v3176, %v3762
        %3764 = vmatmul.bf16.gmra.mxu0 %v3727
        %v3765 = vpop.f32.mrf.mxu0
        %v3766 = vadd.f32 %v3177, %v3765
        %v3767 = vpop.f32.mrf.mxu0
        %v3768 = vadd.f32 %v3178, %v3767
        %3769 = vdwg.mxu0
        %v3770 = vsel %vm3219, %v3751, -inf
        %3771 = vmax.xlane.f32.xlu0 %v3770
        %v3772 = vpop.xlane.xlu0 %3771
        %v3773 = vsel %vm3219, %v3753, -inf
        %3774 = vmax.xlane.f32.xlu0 %v3773
        %v3775 = vpop.xlane.xlu0 %3774
        %v3776 = vsel %vm3219, %v3756, -inf
        %3777 = vmax.xlane.f32.xlu0 %v3776
        %v3778 = vpop.xlane.xlu0 %3777
        %v3779 = vsel %vm3219, %v3758, -inf
        %3780 = vmax.xlane.f32.xlu0 %v3779
        %v3781 = vpop.xlane.xlu0 %3780
        %v3782 = vsel %vm3219, %v3761, -inf
        %3783 = vmax.xlane.f32.xlu0 %v3782
        %v3784 = vpop.xlane.xlu0 %3783
        %v3785 = vsel %vm3219, %v3763, -inf
        %3786 = vmax.xlane.f32.xlu0 %v3785
        %v3787 = vpop.xlane.xlu0 %3786
        %v3788 = vsel %vm3219, %v3766, -inf
        %3789 = vmax.xlane.f32.xlu0 %v3788
        %v3790 = vpop.xlane.xlu0 %3789
        %v3791 = vsel %vm3219, %v3768, -inf
        %3792 = vmax.xlane.f32.xlu0 %v3791
        %v3793 = vpop.xlane.xlu0 %3792
        %v3794 = vsub.f32 %v3751, %v3772
        %v3795 = vsub.f32 %v3753, %v3775
        %v3796 = vsub.f32 %v3756, %v3778
        %v3797 = vsub.f32 %v3758, %v3781
        %v3798 = vsub.f32 %v3761, %v3784
        %v3799 = vsub.f32 %v3763, %v3787
        %v3800 = vsub.f32 %v3766, %v3790
        %v3801 = vsub.f32 %v3768, %v3793
        %v3802 = vmul.f32 %v3794, 1.442695
        %v3803 = vpow.pop %v3802
        %v3804 = vmul.f32 %v3795, 1.442695
        %v3805 = vpow.pop %v3804
        %v3806 = vmul.f32 %v3796, 1.442695
        %v3807 = vpow.pop %v3806
        %v3808 = vmul.f32 %v3797, 1.442695
        %v3809 = vpow.pop %v3808
        %v3810 = vmul.f32 %v3798, 1.442695
        %v3811 = vpow.pop %v3810
        %v3812 = vmul.f32 %v3799, 1.442695
        %v3813 = vpow.pop %v3812
        %v3814 = vmul.f32 %v3800, 1.442695
        %v3815 = vpow.pop %v3814
        %v3816 = vmul.f32 %v3801, 1.442695
        %v3817 = vpow.pop %v3816
        %v3818 = vsel %vm3219, %v3803, 0.0
        %3819 = vadd.xlane.f32.xlu0 %v3818
        %v3820 = vpop.xlane.xlu0 %3819
        %v3821 = vsel %vm3219, %v3805, 0.0
        %3822 = vadd.xlane.f32.xlu0 %v3821
        %v3823 = vpop.xlane.xlu0 %3822
        %v3824 = vsel %vm3219, %v3807, 0.0
        %3825 = vadd.xlane.f32.xlu0 %v3824
        %v3826 = vpop.xlane.xlu0 %3825
        %v3827 = vsel %vm3219, %v3809, 0.0
        %3828 = vadd.xlane.f32.xlu0 %v3827
        %v3829 = vpop.xlane.xlu0 %3828
        %v3830 = vsel %vm3219, %v3811, 0.0
        %3831 = vadd.xlane.f32.xlu0 %v3830
        %v3832 = vpop.xlane.xlu0 %3831
        %v3833 = vsel %vm3219, %v3813, 0.0
        %3834 = vadd.xlane.f32.xlu0 %v3833
        %v3835 = vpop.xlane.xlu0 %3834
        %v3836 = vsel %vm3219, %v3815, 0.0
        %3837 = vadd.xlane.f32.xlu0 %v3836
        %v3838 = vpop.xlane.xlu0 %3837
        %v3839 = vsel %vm3219, %v3817, 0.0
        %3840 = vadd.xlane.f32.xlu0 %v3839
        %v3841 = vpop.xlane.xlu0 %3840
        %v3842 = vrcp.pop %v3820
        %v3843 = vrcp.pop %v3823
        %v3844 = vrcp.pop %v3826
        %v3845 = vrcp.pop %v3829
        %v3846 = vrcp.pop %v3832
        %v3847 = vrcp.pop %v3835
        %v3848 = vrcp.pop %v3838
        %v3849 = vrcp.pop %v3841
        %v3850 = vmul.f32 %v3803, %v3842
        %v3851 = vmul.f32 %v3805, %v3843
        %v3852 = vmul.f32 %v3807, %v3844
        %v3853 = vmul.f32 %v3809, %v3845
        %v3854 = vmul.f32 %v3811, %v3846
        %v3855 = vmul.f32 %v3813, %v3847
        %v3856 = vmul.f32 %v3815, %v3848
        %v3857 = vmul.f32 %v3817, %v3849
        %v3858 = vpack.c.bf16 %v3851, %v3850
        %v3859 = vpack.c.bf16 %v3853, %v3852
        %v3860 = vpack.c.bf16 %v3855, %v3854
        %v3861 = vpack.c.bf16 %v3857, %v3856
        %v3862 = vunpack.c.h.b16 %v3136
        %v3863 = vunpack.c.h.b16 %v3138
        %v3864 = vunpack.c.h.b16 %v3140
        %v3865 = vunpack.c.h.b16 %v3142
        %v3866 = vunpack.c.h.b16 %v3144
        %v3867 = vunpack.c.h.b16 %v3146
        %v3868 = vunpack.c.h.b16 %v3148
        %v3869 = vunpack.c.h.b16 %v3150
        %v3870 = vpack.c.b16 %v3863, %v3862
        %v3871 = vpack.c.b16 %v3865, %v3864
        %v3872 = vpack.c.b16 %v3867, %v3866
        %v3873 = vpack.c.b16 %v3869, %v3868
        %v3879 = vsel %vm3219, %v3858, 0
        %v3882 = vsel %vm3219, %v3859, 0
        %v3885 = vsel %vm3219, %v3860, 0
        %v3888 = vsel %vm3219, %v3861, 0
        %3890 = vmatpush.bf16.msra.mxu0 0
        %3891 = vmatpush.bf16.msra.mxu0 0
        %3892 = vmatpush.bf16.msra.mxu0 0
        %3893 = vmatpush.bf16.msra.mxu0 0
        %3894 = vmatpush.bf16.msra.mxu0 %v3873
        %3895 = vmatpush.bf16.msra.mxu0 %v3872
        %3896 = vmatpush.bf16.msra.mxu0 %v3871
        %3897 = vmatpush.bf16.msra.mxu0 %v3870
        %3898 = vmatmul.bf16.gmra.mxu0 %v3879
        %v3899 = vpop.f32.mrf.mxu0
        %v3900 = vadd.f32 0.0, %v3899
        %v3901 = vpop.f32.mrf.mxu0
        %v3902 = vadd.f32 0.0, %v3901
        %3903 = vmatmul.bf16.gmra.mxu0 %v3882
        %v3904 = vpop.f32.mrf.mxu0
        %v3905 = vadd.f32 0.0, %v3904
        %v3906 = vpop.f32.mrf.mxu0
        %v3907 = vadd.f32 0.0, %v3906
        %3908 = vmatmul.bf16.gmra.mxu0 %v3885
        %v3909 = vpop.f32.mrf.mxu0
        %v3910 = vadd.f32 0.0, %v3909
        %v3911 = vpop.f32.mrf.mxu0
        %v3912 = vadd.f32 0.0, %v3911
        %3913 = vmatmul.bf16.gmra.mxu0 %v3888
        %v3914 = vpop.f32.mrf.mxu0
        %v3915 = vadd.f32 0.0, %v3914
        %v3916 = vpop.f32.mrf.mxu0
        %v3917 = vadd.f32 0.0, %v3916
        %3918 = vdwg.mxu0
        %3919 = vst.msk [vmem:[#allocation2 + $0x8] sm:$0xff] %vm3219, %v3900
        %3920 = vst.msk [vmem:[#allocation2 + $0x20] sm:$0xff] %vm3219, %v3902
        %3921 = vst.msk [vmem:[#allocation2 + $0x38] sm:$0xff] %vm3219, %v3905
        %3922 = vst.msk [vmem:[#allocation2 + $0x50] sm:$0xff] %vm3219, %v3907
        %3923 = vst.msk [vmem:[#allocation2 + $0x68] sm:$0xff] %vm3219, %v3910
        %3924 = vst.msk [vmem:[#allocation2 + $0x80] sm:$0xff] %vm3219, %v3912
        %3925 = vst.msk [vmem:[#allocation2 + $0x98] sm:$0xff] %vm3219, %v3915
        %3926 = vst.msk [vmem:[#allocation2 + $0xb0] sm:$0xff] %vm3219, %v3917
        %3927 = vrot.lane.b32.xlu0 %v3701, 64
        %v3928 = vpop.permute.xlu0 %3927
        %3929 = vrot.lane.b32.xlu0 %v3702, 64
        %v3930 = vpop.permute.xlu0 %3929
        %3931 = vrot.lane.b32.xlu0 %v3703, 64
        %v3932 = vpop.permute.xlu0 %3931
        %3933 = vrot.lane.b32.xlu0 %v3704, 64
        %v3934 = vpop.permute.xlu0 %3933
        %3935 = vrot.lane.b32.xlu0 %v3713, 64
        %v3936 = vpop.permute.xlu0 %3935
        %3937 = vrot.lane.b32.xlu0 %v3714, 64
        %v3938 = vpop.permute.xlu0 %3937
        %3939 = vrot.lane.b32.xlu0 %v3715, 64
        %v3940 = vpop.permute.xlu0 %3939
        %3941 = vrot.lane.b32.xlu0 %v3716, 64
        %v3942 = vpop.permute.xlu0 %3941
        %v3944 = vsel %vm3219, %v3928, 0
        %v3947 = vsel %vm3219, %v3930, 0
        %v3950 = vsel %vm3219, %v3932, 0
        %v3953 = vsel %vm3219, %v3934, 0
        %v3956 = vsel %vm3219, %v3936, 0
        %v3959 = vsel %vm3219, %v3938, 0
        %v3962 = vsel %vm3219, %v3940, 0
        %v3965 = vsel %vm3219, %v3942, 0
        %3967 = vmatpush.bf16.xpose.msra.mxu0 0
        %3968 = vmatpush.bf16.xpose.msra.mxu0 0
        %3969 = vmatpush.bf16.xpose.msra.mxu0 0
        %3970 = vmatpush.bf16.xpose.msra.mxu0 0
        %3971 = vmatpush.bf16.xpose.msra.mxu0 %v3965
        %3972 = vmatpush.bf16.xpose.msra.mxu0 %v3962
        %3973 = vmatpush.bf16.xpose.msra.mxu0 %v3959
        %3974 = vmatpush.bf16.xpose.msra.mxu0 %v3956
        %3975 = vmatmul.bf16.gmra.mxu0 %v3944
        %v3976 = vpop.f32.mrf.mxu0
        %v3977 = vadd.f32 %v3171, %v3976
        %v3978 = vpop.f32.mrf.mxu0
        %v3979 = vadd.f32 %v3172, %v3978
        %3980 = vmatmul.bf16.gmra.mxu0 %v3947
        %v3981 = vpop.f32.mrf.mxu0
        %v3982 = vadd.f32 %v3173, %v3981
        %v3983 = vpop.f32.mrf.mxu0
        %v3984 = vadd.f32 %v3174, %v3983
        %3985 = vmatmul.bf16.gmra.mxu0 %v3950
        %v3986 = vpop.f32.mrf.mxu0
        %v3987 = vadd.f32 %v3175, %v3986
        %v3988 = vpop.f32.mrf.mxu0
        %v3989 = vadd.f32 %v3176, %v3988
        %3990 = vmatmul.bf16.gmra.mxu0 %v3953
        %v3991 = vpop.f32.mrf.mxu0
        %v3992 = vadd.f32 %v3177, %v3991
        %v3993 = vpop.f32.mrf.mxu0
        %v3994 = vadd.f32 %v3178, %v3993
        %3995 = vdwg.mxu0
        %v3996 = vsel %vm3219, %v3977, -inf
        %3997 = vmax.xlane.f32.xlu0 %v3996
        %v3998 = vpop.xlane.xlu0 %3997
        %v3999 = vsel %vm3219, %v3979, -inf
        %4000 = vmax.xlane.f32.xlu0 %v3999
        %v4001 = vpop.xlane.xlu0 %4000
        %v4002 = vsel %vm3219, %v3982, -inf
        %4003 = vmax.xlane.f32.xlu0 %v4002
        %v4004 = vpop.xlane.xlu0 %4003
        %v4005 = vsel %vm3219, %v3984, -inf
        %4006 = vmax.xlane.f32.xlu0 %v4005
        %v4007 = vpop.xlane.xlu0 %4006
        %v4008 = vsel %vm3219, %v3987, -inf
        %4009 = vmax.xlane.f32.xlu0 %v4008
        %v4010 = vpop.xlane.xlu0 %4009
        %v4011 = vsel %vm3219, %v3989, -inf
        %4012 = vmax.xlane.f32.xlu0 %v4011
        %v4013 = vpop.xlane.xlu0 %4012
        %v4014 = vsel %vm3219, %v3992, -inf
        %4015 = vmax.xlane.f32.xlu0 %v4014
        %v4016 = vpop.xlane.xlu0 %4015
        %v4017 = vsel %vm3219, %v3994, -inf
        %4018 = vmax.xlane.f32.xlu0 %v4017
        %v4019 = vpop.xlane.xlu0 %4018
        %v4020 = vsub.f32 %v3977, %v3998
        %v4021 = vsub.f32 %v3979, %v4001
        %v4022 = vsub.f32 %v3982, %v4004
        %v4023 = vsub.f32 %v3984, %v4007
        %v4024 = vsub.f32 %v3987, %v4010
        %v4025 = vsub.f32 %v3989, %v4013
        %v4026 = vsub.f32 %v3992, %v4016
        %v4027 = vsub.f32 %v3994, %v4019
        %v4028 = vmul.f32 %v4020, 1.442695
        %v4029 = vpow.pop %v4028
        %v4030 = vmul.f32 %v4021, 1.442695
        %v4031 = vpow.pop %v4030
        %v4032 = vmul.f32 %v4022, 1.442695
        %v4033 = vpow.pop %v4032
        %v4034 = vmul.f32 %v4023, 1.442695
        %v4035 = vpow.pop %v4034
        %v4036 = vmul.f32 %v4024, 1.442695
        %v4037 = vpow.pop %v4036
        %v4038 = vmul.f32 %v4025, 1.442695
        %v4039 = vpow.pop %v4038
        %v4040 = vmul.f32 %v4026, 1.442695
        %v4041 = vpow.pop %v4040
        %v4042 = vmul.f32 %v4027, 1.442695
        %v4043 = vpow.pop %v4042
        %v4044 = vsel %vm3219, %v4029, 0.0
        %4045 = vadd.xlane.f32.xlu0 %v4044
        %v4046 = vpop.xlane.xlu0 %4045
        %v4047 = vsel %vm3219, %v4031, 0.0
        %4048 = vadd.xlane.f32.xlu0 %v4047
        %v4049 = vpop.xlane.xlu0 %4048
        %v4050 = vsel %vm3219, %v4033, 0.0
        %4051 = vadd.xlane.f32.xlu0 %v4050
        %v4052 = vpop.xlane.xlu0 %4051
        %v4053 = vsel %vm3219, %v4035, 0.0
        %4054 = vadd.xlane.f32.xlu0 %v4053
        %v4055 = vpop.xlane.xlu0 %4054
        %v4056 = vsel %vm3219, %v4037, 0.0
        %4057 = vadd.xlane.f32.xlu0 %v4056
        %v4058 = vpop.xlane.xlu0 %4057
        %v4059 = vsel %vm3219, %v4039, 0.0
        %4060 = vadd.xlane.f32.xlu0 %v4059
        %v4061 = vpop.xlane.xlu0 %4060
        %v4062 = vsel %vm3219, %v4041, 0.0
        %4063 = vadd.xlane.f32.xlu0 %v4062
        %v4064 = vpop.xlane.xlu0 %4063
        %v4065 = vsel %vm3219, %v4043, 0.0
        %4066 = vadd.xlane.f32.xlu0 %v4065
        %v4067 = vpop.xlane.xlu0 %4066
        %v4068 = vrcp.pop %v4046
        %v4069 = vrcp.pop %v4049
        %v4070 = vrcp.pop %v4052
        %v4071 = vrcp.pop %v4055
        %v4072 = vrcp.pop %v4058
        %v4073 = vrcp.pop %v4061
        %v4074 = vrcp.pop %v4064
        %v4075 = vrcp.pop %v4067
        %v4076 = vmul.f32 %v4029, %v4068
        %v4077 = vmul.f32 %v4031, %v4069
        %v4078 = vmul.f32 %v4033, %v4070
        %v4079 = vmul.f32 %v4035, %v4071
        %v4080 = vmul.f32 %v4037, %v4072
        %v4081 = vmul.f32 %v4039, %v4073
        %v4082 = vmul.f32 %v4041, %v4074
        %v4083 = vmul.f32 %v4043, %v4075
        %v4084 = vpack.c.bf16 %v4077, %v4076
        %v4085 = vpack.c.bf16 %v4079, %v4078
        %v4086 = vpack.c.bf16 %v4081, %v4080
        %v4087 = vpack.c.bf16 %v4083, %v4082
        %4088 = vrot.lane.b32.xlu0 %v3870, 64
        %v4089 = vpop.permute.xlu0 %4088
        %4090 = vrot.lane.b32.xlu0 %v3871, 64
        %v4091 = vpop.permute.xlu0 %4090
        %4092 = vrot.lane.b32.xlu0 %v3872, 64
        %v4093 = vpop.permute.xlu0 %4092
        %4094 = vrot.lane.b32.xlu0 %v3873, 64
        %v4095 = vpop.permute.xlu0 %4094
        %v4101 = vsel %vm3219, %v4084, 0
        %v4104 = vsel %vm3219, %v4085, 0
        %v4107 = vsel %vm3219, %v4086, 0
        %v4110 = vsel %vm3219, %v4087, 0
        %4112 = vmatpush.bf16.msra.mxu0 0
        %4113 = vmatpush.bf16.msra.mxu0 0
        %4114 = vmatpush.bf16.msra.mxu0 0
        %4115 = vmatpush.bf16.msra.mxu0 0
        %4116 = vmatpush.bf16.msra.mxu0 %v4095
        %4117 = vmatpush.bf16.msra.mxu0 %v4093
        %4118 = vmatpush.bf16.msra.mxu0 %v4091
        %4119 = vmatpush.bf16.msra.mxu0 %v4089
        %4120 = vmatmul.bf16.gmra.mxu0 %v4101
        %v4121 = vpop.f32.mrf.mxu0
        %v4122 = vadd.f32 0.0, %v4121
        %v4123 = vpop.f32.mrf.mxu0
        %v4124 = vadd.f32 0.0, %v4123
        %4125 = vmatmul.bf16.gmra.mxu0 %v4104
        %v4126 = vpop.f32.mrf.mxu0
        %v4127 = vadd.f32 0.0, %v4126
        %v4128 = vpop.f32.mrf.mxu0
        %v4129 = vadd.f32 0.0, %v4128
        %4130 = vmatmul.bf16.gmra.mxu0 %v4107
        %v4131 = vpop.f32.mrf.mxu0
        %v4132 = vadd.f32 0.0, %v4131
        %v4133 = vpop.f32.mrf.mxu0
        %v4134 = vadd.f32 0.0, %v4133
        %4135 = vmatmul.bf16.gmra.mxu0 %v4110
        %v4136 = vpop.f32.mrf.mxu0
        %v4137 = vadd.f32 0.0, %v4136
        %v4138 = vpop.f32.mrf.mxu0
        %v4139 = vadd.f32 0.0, %v4138
        %4140 = vdwg.mxu0
        %4149 = vrot.lane.b32.xlu0 %v4122, 64
        %v4150 = vpop.permute.xlu0 %4149
        %4151 = vrot.lane.b32.xlu0 %v4124, 64
        %v4152 = vpop.permute.xlu0 %4151
        %4153 = vrot.lane.b32.xlu0 %v4127, 64
        %v4154 = vpop.permute.xlu0 %4153
        %4155 = vrot.lane.b32.xlu0 %v4129, 64
        %v4156 = vpop.permute.xlu0 %4155
        %4157 = vrot.lane.b32.xlu0 %v4132, 64
        %v4158 = vpop.permute.xlu0 %4157
        %4159 = vrot.lane.b32.xlu0 %v4134, 64
        %v4160 = vpop.permute.xlu0 %4159
        %4161 = vrot.lane.b32.xlu0 %v4137, 64
        %v4162 = vpop.permute.xlu0 %4161
        %4163 = vrot.lane.b32.xlu0 %v4139, 64
        %v4164 = vpop.permute.xlu0 %4163
        %4173 = vst.msk [vmem:[#allocation2 + $0x8] sm:$0xff] %vm3684, %v4150
        %4174 = vst.msk [vmem:[#allocation2 + $0x20] sm:$0xff] %vm3684, %v4152
        %4175 = vst.msk [vmem:[#allocation2 + $0x38] sm:$0xff] %vm3684, %v4154
        %4176 = vst.msk [vmem:[#allocation2 + $0x50] sm:$0xff] %vm3684, %v4156
        %4177 = vst.msk [vmem:[#allocation2 + $0x68] sm:$0xff] %vm3684, %v4158
        %4178 = vst.msk [vmem:[#allocation2 + $0x80] sm:$0xff] %vm3684, %v4160
        %4179 = vst.msk [vmem:[#allocation2 + $0x98] sm:$0xff] %vm3684, %v4162
        %4180 = vst.msk [vmem:[#allocation2 + $0xb0] sm:$0xff] %vm3684, %v4164
        %v4189 = vunpack.c.l.b16 %v3105
        %v4190 = vunpack.c.l.b16 %v3107
        %v4191 = vunpack.c.l.b16 %v3109
        %v4192 = vunpack.c.l.b16 %v3111
        %v4193 = vunpack.c.l.b16 %v3113
        %v4194 = vunpack.c.l.b16 %v3115
        %v4195 = vunpack.c.l.b16 %v3117
        %v4196 = vunpack.c.l.b16 %v3119
        %v4197 = vpack.c.b16 %v4190, %v4189
        %v4198 = vpack.c.b16 %v4192, %v4191
        %v4199 = vpack.c.b16 %v4194, %v4193
        %v4200 = vpack.c.b16 %v4196, %v4195
        %v4209 = vunpack.c.l.b16 %v3121
        %v4210 = vunpack.c.l.b16 %v3123
        %v4211 = vunpack.c.l.b16 %v3125
        %v4212 = vunpack.c.l.b16 %v3127
        %v4213 = vunpack.c.l.b16 %v3129
        %v4214 = vunpack.c.l.b16 %v3131
        %v4215 = vunpack.c.l.b16 %v3133
        %v4216 = vunpack.c.l.b16 %v3135
        %v4217 = vpack.c.b16 %v4210, %v4209
        %v4218 = vpack.c.b16 %v4212, %v4211
        %v4219 = vpack.c.b16 %v4214, %v4213
        %v4220 = vpack.c.b16 %v4216, %v4215
        %v4222 = vsel %vm3219, %v4197, 0
        %v4225 = vsel %vm3219, %v4198, 0
        %v4228 = vsel %vm3219, %v4199, 0
        %v4231 = vsel %vm3219, %v4200, 0
        %v4234 = vsel %vm3219, %v4217, 0
        %v4237 = vsel %vm3219, %v4218, 0
        %v4240 = vsel %vm3219, %v4219, 0
        %v4243 = vsel %vm3219, %v4220, 0
        %4245 = vmatpush.bf16.xpose.msra.mxu0 0
        %4246 = vmatpush.bf16.xpose.msra.mxu0 0
        %4247 = vmatpush.bf16.xpose.msra.mxu0 0
        %4248 = vmatpush.bf16.xpose.msra.mxu0 0
        %4249 = vmatpush.bf16.xpose.msra.mxu0 %v4243
        %4250 = vmatpush.bf16.xpose.msra.mxu0 %v4240
        %4251 = vmatpush.bf16.xpose.msra.mxu0 %v4237
        %4252 = vmatpush.bf16.xpose.msra.mxu0 %v4234
        %4253 = vmatmul.bf16.gmra.mxu0 %v4222
        %v4254 = vpop.f32.mrf.mxu0
        %v4255 = vadd.f32 %v3171, %v4254
        %v4256 = vpop.f32.mrf.mxu0
        %v4257 = vadd.f32 %v3172, %v4256
        %4258 = vmatmul.bf16.gmra.mxu0 %v4225
        %v4259 = vpop.f32.mrf.mxu0
        %v4260 = vadd.f32 %v3173, %v4259
        %v4261 = vpop.f32.mrf.mxu0
        %v4262 = vadd.f32 %v3174, %v4261
        %4263 = vmatmul.bf16.gmra.mxu0 %v4228
        %v4264 = vpop.f32.mrf.mxu0
        %v4265 = vadd.f32 %v3175, %v4264
        %v4266 = vpop.f32.mrf.mxu0
        %v4267 = vadd.f32 %v3176, %v4266
        %4268 = vmatmul.bf16.gmra.mxu0 %v4231
        %v4269 = vpop.f32.mrf.mxu0
        %v4270 = vadd.f32 %v3177, %v4269
        %v4271 = vpop.f32.mrf.mxu0
        %v4272 = vadd.f32 %v3178, %v4271
        %4273 = vdwg.mxu0
        %v4274 = vsel %vm3219, %v4255, -inf
        %4275 = vmax.xlane.f32.xlu0 %v4274
        %v4276 = vpop.xlane.xlu0 %4275
        %v4277 = vsel %vm3219, %v4257, -inf
        %4278 = vmax.xlane.f32.xlu0 %v4277
        %v4279 = vpop.xlane.xlu0 %4278
        %v4280 = vsel %vm3219, %v4260, -inf
        %4281 = vmax.xlane.f32.xlu0 %v4280
        %v4282 = vpop.xlane.xlu0 %4281
        %v4283 = vsel %vm3219, %v4262, -inf
        %4284 = vmax.xlane.f32.xlu0 %v4283
        %v4285 = vpop.xlane.xlu0 %4284
        %v4286 = vsel %vm3219, %v4265, -inf
        %4287 = vmax.xlane.f32.xlu0 %v4286
        %v4288 = vpop.xlane.xlu0 %4287
        %v4289 = vsel %vm3219, %v4267, -inf
        %4290 = vmax.xlane.f32.xlu0 %v4289
        %v4291 = vpop.xlane.xlu0 %4290
        %v4292 = vsel %vm3219, %v4270, -inf
        %4293 = vmax.xlane.f32.xlu0 %v4292
        %v4294 = vpop.xlane.xlu0 %4293
        %v4295 = vsel %vm3219, %v4272, -inf
        %4296 = vmax.xlane.f32.xlu0 %v4295
        %v4297 = vpop.xlane.xlu0 %4296
        %v4298 = vsub.f32 %v4255, %v4276
        %v4299 = vsub.f32 %v4257, %v4279
        %v4300 = vsub.f32 %v4260, %v4282
        %v4301 = vsub.f32 %v4262, %v4285
        %v4302 = vsub.f32 %v4265, %v4288
        %v4303 = vsub.f32 %v4267, %v4291
        %v4304 = vsub.f32 %v4270, %v4294
        %v4305 = vsub.f32 %v4272, %v4297
        %v4306 = vmul.f32 %v4298, 1.442695
        %v4307 = vpow.pop %v4306
        %v4308 = vmul.f32 %v4299, 1.442695
        %v4309 = vpow.pop %v4308
        %v4310 = vmul.f32 %v4300, 1.442695
        %v4311 = vpow.pop %v4310
        %v4312 = vmul.f32 %v4301, 1.442695
        %v4313 = vpow.pop %v4312
        %v4314 = vmul.f32 %v4302, 1.442695
        %v4315 = vpow.pop %v4314
        %v4316 = vmul.f32 %v4303, 1.442695
        %v4317 = vpow.pop %v4316
        %v4318 = vmul.f32 %v4304, 1.442695
        %v4319 = vpow.pop %v4318
        %v4320 = vmul.f32 %v4305, 1.442695
        %v4321 = vpow.pop %v4320
        %v4322 = vsel %vm3219, %v4307, 0.0
        %4323 = vadd.xlane.f32.xlu0 %v4322
        %v4324 = vpop.xlane.xlu0 %4323
        %v4325 = vsel %vm3219, %v4309, 0.0
        %4326 = vadd.xlane.f32.xlu0 %v4325
        %v4327 = vpop.xlane.xlu0 %4326
        %v4328 = vsel %vm3219, %v4311, 0.0
        %4329 = vadd.xlane.f32.xlu0 %v4328
        %v4330 = vpop.xlane.xlu0 %4329
        %v4331 = vsel %vm3219, %v4313, 0.0
        %4332 = vadd.xlane.f32.xlu0 %v4331
        %v4333 = vpop.xlane.xlu0 %4332
        %v4334 = vsel %vm3219, %v4315, 0.0
        %4335 = vadd.xlane.f32.xlu0 %v4334
        %v4336 = vpop.xlane.xlu0 %4335
        %v4337 = vsel %vm3219, %v4317, 0.0
        %4338 = vadd.xlane.f32.xlu0 %v4337
        %v4339 = vpop.xlane.xlu0 %4338
        %v4340 = vsel %vm3219, %v4319, 0.0
        %4341 = vadd.xlane.f32.xlu0 %v4340
        %v4342 = vpop.xlane.xlu0 %4341
        %v4343 = vsel %vm3219, %v4321, 0.0
        %4344 = vadd.xlane.f32.xlu0 %v4343
        %v4345 = vpop.xlane.xlu0 %4344
        %v4346 = vrcp.pop %v4324
        %v4347 = vrcp.pop %v4327
        %v4348 = vrcp.pop %v4330
        %v4349 = vrcp.pop %v4333
        %v4350 = vrcp.pop %v4336
        %v4351 = vrcp.pop %v4339
        %v4352 = vrcp.pop %v4342
        %v4353 = vrcp.pop %v4345
        %v4354 = vmul.f32 %v4307, %v4346
        %v4355 = vmul.f32 %v4309, %v4347
        %v4356 = vmul.f32 %v4311, %v4348
        %v4357 = vmul.f32 %v4313, %v4349
        %v4358 = vmul.f32 %v4315, %v4350
        %v4359 = vmul.f32 %v4317, %v4351
        %v4360 = vmul.f32 %v4319, %v4352
        %v4361 = vmul.f32 %v4321, %v4353
        %v4362 = vpack.c.bf16 %v4355, %v4354
        %v4363 = vpack.c.bf16 %v4357, %v4356
        %v4364 = vpack.c.bf16 %v4359, %v4358
        %v4365 = vpack.c.bf16 %v4361, %v4360
        %v4374 = vunpack.c.l.b16 %v3137
        %v4375 = vunpack.c.l.b16 %v3139
        %v4376 = vunpack.c.l.b16 %v3141
        %v4377 = vunpack.c.l.b16 %v3143
        %v4378 = vunpack.c.l.b16 %v3145
        %v4379 = vunpack.c.l.b16 %v3147
        %v4380 = vunpack.c.l.b16 %v3149
        %v4381 = vunpack.c.l.b16 %v3151
        %v4382 = vpack.c.b16 %v4375, %v4374
        %v4383 = vpack.c.b16 %v4377, %v4376
        %v4384 = vpack.c.b16 %v4379, %v4378
        %v4385 = vpack.c.b16 %v4381, %v4380
        %v4391 = vsel %vm3219, %v4362, 0
        %v4394 = vsel %vm3219, %v4363, 0
        %v4397 = vsel %vm3219, %v4364, 0
        %v4400 = vsel %vm3219, %v4365, 0
        %4402 = vmatpush.bf16.msra.mxu0 0
        %4403 = vmatpush.bf16.msra.mxu0 0
        %4404 = vmatpush.bf16.msra.mxu0 0
        %4405 = vmatpush.bf16.msra.mxu0 0
        %4406 = vmatpush.bf16.msra.mxu0 %v4385
        %4407 = vmatpush.bf16.msra.mxu0 %v4384
        %4408 = vmatpush.bf16.msra.mxu0 %v4383
        %4409 = vmatpush.bf16.msra.mxu0 %v4382
        %4410 = vmatmul.bf16.gmra.mxu0 %v4391
        %v4411 = vpop.f32.mrf.mxu0
        %v4412 = vadd.f32 0.0, %v4411
        %v4413 = vpop.f32.mrf.mxu0
        %v4414 = vadd.f32 0.0, %v4413
        %4415 = vmatmul.bf16.gmra.mxu0 %v4394
        %v4416 = vpop.f32.mrf.mxu0
        %v4417 = vadd.f32 0.0, %v4416
        %v4418 = vpop.f32.mrf.mxu0
        %v4419 = vadd.f32 0.0, %v4418
        %4420 = vmatmul.bf16.gmra.mxu0 %v4397
        %v4421 = vpop.f32.mrf.mxu0
        %v4422 = vadd.f32 0.0, %v4421
        %v4423 = vpop.f32.mrf.mxu0
        %v4424 = vadd.f32 0.0, %v4423
        %4425 = vmatmul.bf16.gmra.mxu0 %v4400
        %v4426 = vpop.f32.mrf.mxu0
        %v4427 = vadd.f32 0.0, %v4426
        %v4428 = vpop.f32.mrf.mxu0
        %v4429 = vadd.f32 0.0, %v4428
        %4430 = vdwg.mxu0
        %4431 = vst.msk [vmem:[#allocation2 + $0x10] sm:$0xff] %vm3219, %v4412
        %4432 = vst.msk [vmem:[#allocation2 + $0x28] sm:$0xff] %vm3219, %v4414
        %4433 = vst.msk [vmem:[#allocation2 + $0x40] sm:$0xff] %vm3219, %v4417
        %4434 = vst.msk [vmem:[#allocation2 + $0x58] sm:$0xff] %vm3219, %v4419
        %4435 = vst.msk [vmem:[#allocation2 + $0x70] sm:$0xff] %vm3219, %v4422
        %4436 = vst.msk [vmem:[#allocation2 + $0x88] sm:$0xff] %vm3219, %v4424
        %4437 = vst.msk [vmem:[#allocation2 + $0xa0] sm:$0xff] %vm3219, %v4427
        %4438 = vst.msk [vmem:[#allocation2 + $0xb8] sm:$0xff] %vm3219, %v4429
        %4439 = vrot.lane.b32.xlu0 %v4197, 64
        %v4440 = vpop.permute.xlu0 %4439
        %4441 = vrot.lane.b32.xlu0 %v4198, 64
        %v4442 = vpop.permute.xlu0 %4441
        %4443 = vrot.lane.b32.xlu0 %v4199, 64
        %v4444 = vpop.permute.xlu0 %4443
        %4445 = vrot.lane.b32.xlu0 %v4200, 64
        %v4446 = vpop.permute.xlu0 %4445
        %4447 = vrot.lane.b32.xlu0 %v4217, 64
        %v4448 = vpop.permute.xlu0 %4447
        %4449 = vrot.lane.b32.xlu0 %v4218, 64
        %v4450 = vpop.permute.xlu0 %4449
        %4451 = vrot.lane.b32.xlu0 %v4219, 64
        %v4452 = vpop.permute.xlu0 %4451
        %4453 = vrot.lane.b32.xlu0 %v4220, 64
        %v4454 = vpop.permute.xlu0 %4453
        %v4456 = vsel %vm3219, %v4440, 0
        %v4459 = vsel %vm3219, %v4442, 0
        %v4462 = vsel %vm3219, %v4444, 0
        %v4465 = vsel %vm3219, %v4446, 0
        %v4468 = vsel %vm3219, %v4448, 0
        %v4471 = vsel %vm3219, %v4450, 0
        %v4474 = vsel %vm3219, %v4452, 0
        %v4477 = vsel %vm3219, %v4454, 0
        %4479 = vmatpush.bf16.xpose.msra.mxu0 0
        %4480 = vmatpush.bf16.xpose.msra.mxu0 0
        %4481 = vmatpush.bf16.xpose.msra.mxu0 0
        %4482 = vmatpush.bf16.xpose.msra.mxu0 0
        %4483 = vmatpush.bf16.xpose.msra.mxu0 %v4477
        %4484 = vmatpush.bf16.xpose.msra.mxu0 %v4474
        %4485 = vmatpush.bf16.xpose.msra.mxu0 %v4471
        %4486 = vmatpush.bf16.xpose.msra.mxu0 %v4468
        %4487 = vmatmul.bf16.gmra.mxu0 %v4456
        %v4488 = vpop.f32.mrf.mxu0
        %v4489 = vadd.f32 %v3171, %v4488
        %v4490 = vpop.f32.mrf.mxu0
        %v4491 = vadd.f32 %v3172, %v4490
        %4492 = vmatmul.bf16.gmra.mxu0 %v4459
        %v4493 = vpop.f32.mrf.mxu0
        %v4494 = vadd.f32 %v3173, %v4493
        %v4495 = vpop.f32.mrf.mxu0
        %v4496 = vadd.f32 %v3174, %v4495
        %4497 = vmatmul.bf16.gmra.mxu0 %v4462
        %v4498 = vpop.f32.mrf.mxu0
        %v4499 = vadd.f32 %v3175, %v4498
        %v4500 = vpop.f32.mrf.mxu0
        %v4501 = vadd.f32 %v3176, %v4500
        %4502 = vmatmul.bf16.gmra.mxu0 %v4465
        %v4503 = vpop.f32.mrf.mxu0
        %v4504 = vadd.f32 %v3177, %v4503
        %v4505 = vpop.f32.mrf.mxu0
        %v4506 = vadd.f32 %v3178, %v4505
        %4507 = vdwg.mxu0
        %v4508 = vsel %vm3219, %v4489, -inf
        %4509 = vmax.xlane.f32.xlu0 %v4508
        %v4510 = vpop.xlane.xlu0 %4509
        %v4511 = vsel %vm3219, %v4491, -inf
        %4512 = vmax.xlane.f32.xlu0 %v4511
        %v4513 = vpop.xlane.xlu0 %4512
        %v4514 = vsel %vm3219, %v4494, -inf
        %4515 = vmax.xlane.f32.xlu0 %v4514
        %v4516 = vpop.xlane.xlu0 %4515
        %v4517 = vsel %vm3219, %v4496, -inf
        %4518 = vmax.xlane.f32.xlu0 %v4517
        %v4519 = vpop.xlane.xlu0 %4518
        %v4520 = vsel %vm3219, %v4499, -inf
        %4521 = vmax.xlane.f32.xlu0 %v4520
        %v4522 = vpop.xlane.xlu0 %4521
        %v4523 = vsel %vm3219, %v4501, -inf
        %4524 = vmax.xlane.f32.xlu0 %v4523
        %v4525 = vpop.xlane.xlu0 %4524
        %v4526 = vsel %vm3219, %v4504, -inf
        %4527 = vmax.xlane.f32.xlu0 %v4526
        %v4528 = vpop.xlane.xlu0 %4527
        %v4529 = vsel %vm3219, %v4506, -inf
        %4530 = vmax.xlane.f32.xlu0 %v4529
        %v4531 = vpop.xlane.xlu0 %4530
        %v4532 = vsub.f32 %v4489, %v4510
        %v4533 = vsub.f32 %v4491, %v4513
        %v4534 = vsub.f32 %v4494, %v4516
        %v4535 = vsub.f32 %v4496, %v4519
        %v4536 = vsub.f32 %v4499, %v4522
        %v4537 = vsub.f32 %v4501, %v4525
        %v4538 = vsub.f32 %v4504, %v4528
        %v4539 = vsub.f32 %v4506, %v4531
        %v4540 = vmul.f32 %v4532, 1.442695
        %v4541 = vpow.pop %v4540
        %v4542 = vmul.f32 %v4533, 1.442695
        %v4543 = vpow.pop %v4542
        %v4544 = vmul.f32 %v4534, 1.442695
        %v4545 = vpow.pop %v4544
        %v4546 = vmul.f32 %v4535, 1.442695
        %v4547 = vpow.pop %v4546
        %v4548 = vmul.f32 %v4536, 1.442695
        %v4549 = vpow.pop %v4548
        %v4550 = vmul.f32 %v4537, 1.442695
        %v4551 = vpow.pop %v4550
        %v4552 = vmul.f32 %v4538, 1.442695
        %v4553 = vpow.pop %v4552
        %v4554 = vmul.f32 %v4539, 1.442695
        %v4555 = vpow.pop %v4554
        %v4556 = vsel %vm3219, %v4541, 0.0
        %4557 = vadd.xlane.f32.xlu0 %v4556
        %v4558 = vpop.xlane.xlu0 %4557
        %v4559 = vsel %vm3219, %v4543, 0.0
        %4560 = vadd.xlane.f32.xlu0 %v4559
        %v4561 = vpop.xlane.xlu0 %4560
        %v4562 = vsel %vm3219, %v4545, 0.0
        %4563 = vadd.xlane.f32.xlu0 %v4562
        %v4564 = vpop.xlane.xlu0 %4563
        %v4565 = vsel %vm3219, %v4547, 0.0
        %4566 = vadd.xlane.f32.xlu0 %v4565
        %v4567 = vpop.xlane.xlu0 %4566
        %v4568 = vsel %vm3219, %v4549, 0.0
        %4569 = vadd.xlane.f32.xlu0 %v4568
        %v4570 = vpop.xlane.xlu0 %4569
        %v4571 = vsel %vm3219, %v4551, 0.0
        %4572 = vadd.xlane.f32.xlu0 %v4571
        %v4573 = vpop.xlane.xlu0 %4572
        %v4574 = vsel %vm3219, %v4553, 0.0
        %4575 = vadd.xlane.f32.xlu0 %v4574
        %v4576 = vpop.xlane.xlu0 %4575
        %v4577 = vsel %vm3219, %v4555, 0.0
        %4578 = vadd.xlane.f32.xlu0 %v4577
        %v4579 = vpop.xlane.xlu0 %4578
        %v4580 = vrcp.pop %v4558
        %v4581 = vrcp.pop %v4561
        %v4582 = vrcp.pop %v4564
        %v4583 = vrcp.pop %v4567
        %v4584 = vrcp.pop %v4570
        %v4585 = vrcp.pop %v4573
        %v4586 = vrcp.pop %v4576
        %v4587 = vrcp.pop %v4579
        %v4588 = vmul.f32 %v4541, %v4580
        %v4589 = vmul.f32 %v4543, %v4581
        %v4590 = vmul.f32 %v4545, %v4582
        %v4591 = vmul.f32 %v4547, %v4583
        %v4592 = vmul.f32 %v4549, %v4584
        %v4593 = vmul.f32 %v4551, %v4585
        %v4594 = vmul.f32 %v4553, %v4586
        %v4595 = vmul.f32 %v4555, %v4587
        %v4596 = vpack.c.bf16 %v4589, %v4588
        %v4597 = vpack.c.bf16 %v4591, %v4590
        %v4598 = vpack.c.bf16 %v4593, %v4592
        %v4599 = vpack.c.bf16 %v4595, %v4594
        %4600 = vrot.lane.b32.xlu0 %v4382, 64
        %v4601 = vpop.permute.xlu0 %4600
        %4602 = vrot.lane.b32.xlu0 %v4383, 64
        %v4603 = vpop.permute.xlu0 %4602
        %4604 = vrot.lane.b32.xlu0 %v4384, 64
        %v4605 = vpop.permute.xlu0 %4604
        %4606 = vrot.lane.b32.xlu0 %v4385, 64
        %v4607 = vpop.permute.xlu0 %4606
        %v4613 = vsel %vm3219, %v4596, 0
        %v4616 = vsel %vm3219, %v4597, 0
        %v4619 = vsel %vm3219, %v4598, 0
        %v4622 = vsel %vm3219, %v4599, 0
        %4624 = vmatpush.bf16.msra.mxu0 0
        %4625 = vmatpush.bf16.msra.mxu0 0
        %4626 = vmatpush.bf16.msra.mxu0 0
        %4627 = vmatpush.bf16.msra.mxu0 0
        %4628 = vmatpush.bf16.msra.mxu0 %v4607
        %4629 = vmatpush.bf16.msra.mxu0 %v4605
        %4630 = vmatpush.bf16.msra.mxu0 %v4603
        %4631 = vmatpush.bf16.msra.mxu0 %v4601
        %4632 = vmatmul.bf16.gmra.mxu0 %v4613
        %v4633 = vpop.f32.mrf.mxu0
        %v4634 = vadd.f32 0.0, %v4633
        %v4635 = vpop.f32.mrf.mxu0
        %v4636 = vadd.f32 0.0, %v4635
        %4637 = vmatmul.bf16.gmra.mxu0 %v4616
        %v4638 = vpop.f32.mrf.mxu0
        %v4639 = vadd.f32 0.0, %v4638
        %v4640 = vpop.f32.mrf.mxu0
        %v4641 = vadd.f32 0.0, %v4640
        %4642 = vmatmul.bf16.gmra.mxu0 %v4619
        %v4643 = vpop.f32.mrf.mxu0
        %v4644 = vadd.f32 0.0, %v4643
        %v4645 = vpop.f32.mrf.mxu0
        %v4646 = vadd.f32 0.0, %v4645
        %4647 = vmatmul.bf16.gmra.mxu0 %v4622
        %v4648 = vpop.f32.mrf.mxu0
        %v4649 = vadd.f32 0.0, %v4648
        %v4650 = vpop.f32.mrf.mxu0
        %v4651 = vadd.f32 0.0, %v4650
        %4652 = vdwg.mxu0
        %4661 = vrot.lane.b32.xlu0 %v4634, 64
        %v4662 = vpop.permute.xlu0 %4661
        %4663 = vrot.lane.b32.xlu0 %v4636, 64
        %v4664 = vpop.permute.xlu0 %4663
        %4665 = vrot.lane.b32.xlu0 %v4639, 64
        %v4666 = vpop.permute.xlu0 %4665
        %4667 = vrot.lane.b32.xlu0 %v4641, 64
        %v4668 = vpop.permute.xlu0 %4667
        %4669 = vrot.lane.b32.xlu0 %v4644, 64
        %v4670 = vpop.permute.xlu0 %4669
        %4671 = vrot.lane.b32.xlu0 %v4646, 64
        %v4672 = vpop.permute.xlu0 %4671
        %4673 = vrot.lane.b32.xlu0 %v4649, 64
        %v4674 = vpop.permute.xlu0 %4673
        %4675 = vrot.lane.b32.xlu0 %v4651, 64
        %v4676 = vpop.permute.xlu0 %4675
        %4685 = vst.msk [vmem:[#allocation2 + $0x10] sm:$0xff] %vm3684, %v4662
        %4686 = vst.msk [vmem:[#allocation2 + $0x28] sm:$0xff] %vm3684, %v4664
        %4687 = vst.msk [vmem:[#allocation2 + $0x40] sm:$0xff] %vm3684, %v4666
        %4688 = vst.msk [vmem:[#allocation2 + $0x58] sm:$0xff] %vm3684, %v4668
        %4689 = vst.msk [vmem:[#allocation2 + $0x70] sm:$0xff] %vm3684, %v4670
        %4690 = vst.msk [vmem:[#allocation2 + $0x88] sm:$0xff] %vm3684, %v4672
        %4691 = vst.msk [vmem:[#allocation2 + $0xa0] sm:$0xff] %vm3684, %v4674
        %4692 = vst.msk [vmem:[#allocation2 + $0xb8] sm:$0xff] %vm3684, %v4676
        %v4693 = vld [vmem:[#allocation2] sm:$0xff]
        %v4694 = vld [vmem:[#allocation2 + $0x8] sm:$0xff]
        %v4695 = vld [vmem:[#allocation2 + $0x10] sm:$0xff]
        %v4696 = vld [vmem:[#allocation2 + $0x18] sm:$0xff]
        %v4697 = vld [vmem:[#allocation2 + $0x20] sm:$0xff]
        %v4698 = vld [vmem:[#allocation2 + $0x28] sm:$0xff]
        %v4699 = vld [vmem:[#allocation2 + $0x30] sm:$0xff]
        %v4700 = vld [vmem:[#allocation2 + $0x38] sm:$0xff]
        %v4701 = vld [vmem:[#allocation2 + $0x40] sm:$0xff]
        %v4702 = vld [vmem:[#allocation2 + $0x48] sm:$0xff]
        %v4703 = vld [vmem:[#allocation2 + $0x50] sm:$0xff]
        %v4704 = vld [vmem:[#allocation2 + $0x58] sm:$0xff]
        %v4705 = vld [vmem:[#allocation2 + $0x60] sm:$0xff]
        %v4706 = vld [vmem:[#allocation2 + $0x68] sm:$0xff]
        %v4707 = vld [vmem:[#allocation2 + $0x70] sm:$0xff]
        %v4708 = vld [vmem:[#allocation2 + $0x78] sm:$0xff]
        %v4709 = vld [vmem:[#allocation2 + $0x80] sm:$0xff]
        %v4710 = vld [vmem:[#allocation2 + $0x88] sm:$0xff]
        %v4711 = vld [vmem:[#allocation2 + $0x90] sm:$0xff]
        %v4712 = vld [vmem:[#allocation2 + $0x98] sm:$0xff]
        %v4713 = vld [vmem:[#allocation2 + $0xa0] sm:$0xff]
        %v4714 = vld [vmem:[#allocation2 + $0xa8] sm:$0xff]
        %v4715 = vld [vmem:[#allocation2 + $0xb0] sm:$0xff]
        %v4716 = vld [vmem:[#allocation2 + $0xb8] sm:$0xff]
        %v4717 = vpack.c.bf16 %v4696, %v4693
        %v4718 = vpack.c.bf16 %v4697, %v4694
        %v4719 = vpack.c.bf16 %v4698, %v4695
        %v4720 = vpack.c.bf16 %v4702, %v4699
        %v4721 = vpack.c.bf16 %v4703, %v4700
        %v4722 = vpack.c.bf16 %v4704, %v4701
        %v4723 = vpack.c.bf16 %v4708, %v4705
        %v4724 = vpack.c.bf16 %v4709, %v4706
        %v4725 = vpack.c.bf16 %v4710, %v4707
        %v4726 = vpack.c.bf16 %v4714, %v4711
        %v4727 = vpack.c.bf16 %v4715, %v4712
        %v4728 = vpack.c.bf16 %v4716, %v4713
        %v4729 = vld [vmem:[#allocation11] sm:$0xff]
        %v4730 = vld [vmem:[#allocation11 + $0x8] sm:$0xf]
        %v4731 = vld [vmem:[#allocation11 + $0xc] sm:$0xff]
        %v4732 = vld [vmem:[#allocation11 + $0x14] sm:$0xf]
        %v4733 = vld [vmem:[#allocation11 + $0x18] sm:$0xff]
        %v4734 = vld [vmem:[#allocation11 + $0x20] sm:$0xf]
        %v4735 = vld [vmem:[#allocation11 + $0x24] sm:$0xff]
        %v4736 = vld [vmem:[#allocation11 + $0x2c] sm:$0xf]
        %v4737 = vld [vmem:[#allocation11 + $0x30] sm:$0xff]
        %v4738 = vld [vmem:[#allocation11 + $0x38] sm:$0xf]
        %v4739 = vld [vmem:[#allocation11 + $0x3c] sm:$0xff]
        %v4740 = vld [vmem:[#allocation11 + $0x44] sm:$0xf]
        %v4741 = vld [vmem:[#allocation11 + $0x48] sm:$0xff]
        %v4742 = vld [vmem:[#allocation11 + $0x50] sm:$0xf]
        %v4743 = vld [vmem:[#allocation11 + $0x54] sm:$0xff]
        %v4744 = vld [vmem:[#allocation11 + $0x5c] sm:$0xf]
        %v4745 = vld [vmem:[#allocation11 + $0x60] sm:$0xff]
        %v4746 = vld [vmem:[#allocation11 + $0x68] sm:$0xf]
        %v4747 = vld [vmem:[#allocation11 + $0x6c] sm:$0xff]
        %v4748 = vld [vmem:[#allocation11 + $0x74] sm:$0xf]
        %v4749 = vld [vmem:[#allocation11 + $0x78] sm:$0xff]
        %v4750 = vld [vmem:[#allocation11 + $0x80] sm:$0xf]
        %v4751 = vld [vmem:[#allocation11 + $0x84] sm:$0xff]
        %v4752 = vld [vmem:[#allocation11 + $0x8c] sm:$0xf]
        %v4753 = vld [vmem:[#allocation11 + $0x90] sm:$0xff]
        %v4754 = vld [vmem:[#allocation11 + $0x98] sm:$0xf]
        %v4755 = vld [vmem:[#allocation11 + $0x9c] sm:$0xff]
        %v4756 = vld [vmem:[#allocation11 + $0xa4] sm:$0xf]
        %v4757 = vld [vmem:[#allocation11 + $0xa8] sm:$0xff]
        %v4758 = vld [vmem:[#allocation11 + $0xb0] sm:$0xf]
        %v4759 = vld [vmem:[#allocation11 + $0xb4] sm:$0xff]
        %v4760 = vld [vmem:[#allocation11 + $0xbc] sm:$0xf]
        %v4761 = vld [vmem:[#allocation11 + $0xc0] sm:$0xff]
        %v4762 = vld [vmem:[#allocation11 + $0xc8] sm:$0xf]
        %v4763 = vld [vmem:[#allocation11 + $0xcc] sm:$0xff]
        %v4764 = vld [vmem:[#allocation11 + $0xd4] sm:$0xf]
        %v4765 = vld [vmem:[#allocation11 + $0xd8] sm:$0xff]
        %v4766 = vld [vmem:[#allocation11 + $0xe0] sm:$0xf]
        %v4767 = vld [vmem:[#allocation11 + $0xe4] sm:$0xff]
        %v4768 = vld [vmem:[#allocation11 + $0xec] sm:$0xf]
        %v4769 = vld [vmem:[#allocation11 + $0xf0] sm:$0xff]
        %v4770 = vld [vmem:[#allocation11 + $0xf8] sm:$0xf]
        %v4771 = vld [vmem:[#allocation11 + $0xfc] sm:$0xff]
        %v4772 = vld [vmem:[#allocation11 + $0x104] sm:$0xf]
        %v4773 = vld [vmem:[#allocation11 + $0x108] sm:$0xff]
        %v4774 = vld [vmem:[#allocation11 + $0x110] sm:$0xf]
        %v4775 = vld [vmem:[#allocation11 + $0x114] sm:$0xff]
        %v4776 = vld [vmem:[#allocation11 + $0x11c] sm:$0xf]
        %v4777 = vld [vmem:[#allocation11 + $0x120] sm:$0xff]
        %v4778 = vld [vmem:[#allocation11 + $0x128] sm:$0xf]
        %v4779 = vld [vmem:[#allocation11 + $0x12c] sm:$0xff]
        %v4780 = vld [vmem:[#allocation11 + $0x134] sm:$0xf]
        %v4781 = vld [vmem:[#allocation11 + $0x138] sm:$0xff]
        %v4782 = vld [vmem:[#allocation11 + $0x140] sm:$0xf]
        %v4783 = vld [vmem:[#allocation11 + $0x144] sm:$0xff]
        %v4784 = vld [vmem:[#allocation11 + $0x14c] sm:$0xf]
        %v4785 = vld [vmem:[#allocation11 + $0x150] sm:$0xff]
        %v4786 = vld [vmem:[#allocation11 + $0x158] sm:$0xf]
        %v4787 = vld [vmem:[#allocation11 + $0x15c] sm:$0xff]
        %v4788 = vld [vmem:[#allocation11 + $0x164] sm:$0xf]
        %v4789 = vld [vmem:[#allocation11 + $0x168] sm:$0xff]
        %v4790 = vld [vmem:[#allocation11 + $0x170] sm:$0xf]
        %v4791 = vld [vmem:[#allocation11 + $0x174] sm:$0xff]
        %v4792 = vld [vmem:[#allocation11 + $0x17c] sm:$0xf]
        %v4793 = vld [vmem:[#allocation11 + $0x180] sm:$0xff]
        %v4794 = vld [vmem:[#allocation11 + $0x188] sm:$0xf]
        %v4795 = vld [vmem:[#allocation11 + $0x18c] sm:$0xff]
        %v4796 = vld [vmem:[#allocation11 + $0x194] sm:$0xf]
        %v4797 = vld [vmem:[#allocation11 + $0x198] sm:$0xff]
        %v4798 = vld [vmem:[#allocation11 + $0x1a0] sm:$0xf]
        %v4799 = vld [vmem:[#allocation11 + $0x1a4] sm:$0xff]
        %v4800 = vld [vmem:[#allocation11 + $0x1ac] sm:$0xf]
        %v4801 = vld [vmem:[#allocation11 + $0x1b0] sm:$0xff]
        %v4802 = vld [vmem:[#allocation11 + $0x1b8] sm:$0xf]
        %v4803 = vld [vmem:[#allocation11 + $0x1bc] sm:$0xff]
        %v4804 = vld [vmem:[#allocation11 + $0x1c4] sm:$0xf]
        %v4805 = vld [vmem:[#allocation11 + $0x1c8] sm:$0xff]
        %v4806 = vld [vmem:[#allocation11 + $0x1d0] sm:$0xf]
        %v4807 = vld [vmem:[#allocation11 + $0x1d4] sm:$0xff]
        %v4808 = vld [vmem:[#allocation11 + $0x1dc] sm:$0xf]
        %v4809 = vld [vmem:[#allocation11 + $0x1e0] sm:$0xff]
        %v4810 = vld [vmem:[#allocation11 + $0x1e8] sm:$0xf]
        %v4811 = vld [vmem:[#allocation11 + $0x1ec] sm:$0xff]
        %v4812 = vld [vmem:[#allocation11 + $0x1f4] sm:$0xf]
        %v4813 = vld [vmem:[#allocation11 + $0x1f8] sm:$0xff]
        %v4814 = vld [vmem:[#allocation11 + $0x200] sm:$0xf]
        %v4815 = vld [vmem:[#allocation11 + $0x204] sm:$0xff]
        %v4816 = vld [vmem:[#allocation11 + $0x20c] sm:$0xf]
        %v4817 = vld [vmem:[#allocation11 + $0x210] sm:$0xff]
        %v4818 = vld [vmem:[#allocation11 + $0x218] sm:$0xf]
        %v4819 = vld [vmem:[#allocation11 + $0x21c] sm:$0xff]
        %v4820 = vld [vmem:[#allocation11 + $0x224] sm:$0xf]
        %v4821 = vld [vmem:[#allocation11 + $0x228] sm:$0xff]
        %v4822 = vld [vmem:[#allocation11 + $0x230] sm:$0xf]
        %v4823 = vld [vmem:[#allocation11 + $0x234] sm:$0xff]
        %v4824 = vld [vmem:[#allocation11 + $0x23c] sm:$0xf]
        %v4825 = vld [vmem:[#allocation12] sm:$0x7]
        %v4827 = vperm.slane %v4825, 0
        %v4828 = vperm.slane %v4825, 1
        %v4829 = vperm.slane %v4825, 2
        %v4929 = vunpack.c.l.b16 %v4729
        %v4930 = vunpack.c.h.b16 %v4729
        %v4931 = vunpack.c.l.b16 %v4730
        %v4932 = vunpack.c.l.b16 %v4731
        %v4933 = vunpack.c.h.b16 %v4731
        %v4934 = vunpack.c.l.b16 %v4732
        %v4935 = vunpack.c.l.b16 %v4733
        %v4936 = vunpack.c.h.b16 %v4733
        %v4937 = vunpack.c.l.b16 %v4734
        %v4938 = vunpack.c.l.b16 %v4735
        %v4939 = vunpack.c.h.b16 %v4735
        %v4940 = vunpack.c.l.b16 %v4736
        %v4941 = vunpack.c.l.b16 %v4737
        %v4942 = vunpack.c.h.b16 %v4737
        %v4943 = vunpack.c.l.b16 %v4738
        %v4944 = vunpack.c.l.b16 %v4739
        %v4945 = vunpack.c.h.b16 %v4739
        %v4946 = vunpack.c.l.b16 %v4740
        %v4947 = vunpack.c.l.b16 %v4741
        %v4948 = vunpack.c.h.b16 %v4741
        %v4949 = vunpack.c.l.b16 %v4742
        %v4950 = vunpack.c.l.b16 %v4743
        %v4951 = vunpack.c.h.b16 %v4743
        %v4952 = vunpack.c.l.b16 %v4744
        %v4953 = vunpack.c.l.b16 %v4745
        %v4954 = vunpack.c.h.b16 %v4745
        %v4955 = vunpack.c.l.b16 %v4746
        %v4956 = vunpack.c.l.b16 %v4747
        %v4957 = vunpack.c.h.b16 %v4747
        %v4958 = vunpack.c.l.b16 %v4748
        %v4959 = vunpack.c.l.b16 %v4749
        %v4960 = vunpack.c.h.b16 %v4749
        %v4961 = vunpack.c.l.b16 %v4750
        %v4962 = vunpack.c.l.b16 %v4751
        %v4963 = vunpack.c.h.b16 %v4751
        %v4964 = vunpack.c.l.b16 %v4752
        %v4965 = vunpack.c.l.b16 %v4753
        %v4966 = vunpack.c.h.b16 %v4753
        %v4967 = vunpack.c.l.b16 %v4754
        %v4968 = vunpack.c.l.b16 %v4755
        %v4969 = vunpack.c.h.b16 %v4755
        %v4970 = vunpack.c.l.b16 %v4756
        %v4971 = vunpack.c.l.b16 %v4757
        %v4972 = vunpack.c.h.b16 %v4757
        %v4973 = vunpack.c.l.b16 %v4758
        %v4974 = vunpack.c.l.b16 %v4759
        %v4975 = vunpack.c.h.b16 %v4759
        %v4976 = vunpack.c.l.b16 %v4760
        %v4977 = vunpack.c.l.b16 %v4761
        %v4978 = vunpack.c.h.b16 %v4761
        %v4979 = vunpack.c.l.b16 %v4762
        %v4980 = vunpack.c.l.b16 %v4763
        %v4981 = vunpack.c.h.b16 %v4763
        %v4982 = vunpack.c.l.b16 %v4764
        %v4983 = vunpack.c.l.b16 %v4765
        %v4984 = vunpack.c.h.b16 %v4765
        %v4985 = vunpack.c.l.b16 %v4766
        %v4986 = vunpack.c.l.b16 %v4767
        %v4987 = vunpack.c.h.b16 %v4767
        %v4988 = vunpack.c.l.b16 %v4768
        %v4989 = vunpack.c.l.b16 %v4769
        %v4990 = vunpack.c.h.b16 %v4769
        %v4991 = vunpack.c.l.b16 %v4770
        %v4992 = vunpack.c.l.b16 %v4771
        %v4993 = vunpack.c.h.b16 %v4771
        %v4994 = vunpack.c.l.b16 %v4772
        %v4995 = vunpack.c.l.b16 %v4773
        %v4996 = vunpack.c.h.b16 %v4773
        %v4997 = vunpack.c.l.b16 %v4774
        %v4998 = vunpack.c.l.b16 %v4775
        %v4999 = vunpack.c.h.b16 %v4775
        %v5000 = vunpack.c.l.b16 %v4776
        %v5001 = vunpack.c.l.b16 %v4777
        %v5002 = vunpack.c.h.b16 %v4777
        %v5003 = vunpack.c.l.b16 %v4778
        %v5004 = vunpack.c.l.b16 %v4779
        %v5005 = vunpack.c.h.b16 %v4779
        %v5006 = vunpack.c.l.b16 %v4780
        %v5007 = vunpack.c.l.b16 %v4781
        %v5008 = vunpack.c.h.b16 %v4781
        %v5009 = vunpack.c.l.b16 %v4782
        %v5010 = vunpack.c.l.b16 %v4783
        %v5011 = vunpack.c.h.b16 %v4783
        %v5012 = vunpack.c.l.b16 %v4784
        %v5013 = vunpack.c.l.b16 %v4785
        %v5014 = vunpack.c.h.b16 %v4785
        %v5015 = vunpack.c.l.b16 %v4786
        %v5016 = vunpack.c.l.b16 %v4787
        %v5017 = vunpack.c.h.b16 %v4787
        %v5018 = vunpack.c.l.b16 %v4788
        %v5019 = vunpack.c.l.b16 %v4789
        %v5020 = vunpack.c.h.b16 %v4789
        %v5021 = vunpack.c.l.b16 %v4790
        %v5022 = vunpack.c.l.b16 %v4791
        %v5023 = vunpack.c.h.b16 %v4791
        %v5024 = vunpack.c.l.b16 %v4792
        %v5025 = vunpack.c.l.b16 %v4793
        %v5026 = vunpack.c.h.b16 %v4793
        %v5027 = vunpack.c.l.b16 %v4794
        %v5028 = vunpack.c.l.b16 %v4795
        %v5029 = vunpack.c.h.b16 %v4795
        %v5030 = vunpack.c.l.b16 %v4796
        %v5031 = vunpack.c.l.b16 %v4797
        %v5032 = vunpack.c.h.b16 %v4797
        %v5033 = vunpack.c.l.b16 %v4798
        %v5034 = vunpack.c.l.b16 %v4799
        %v5035 = vunpack.c.h.b16 %v4799
        %v5036 = vunpack.c.l.b16 %v4800
        %v5037 = vunpack.c.l.b16 %v4801
        %v5038 = vunpack.c.h.b16 %v4801
        %v5039 = vunpack.c.l.b16 %v4802
        %v5040 = vunpack.c.l.b16 %v4803
        %v5041 = vunpack.c.h.b16 %v4803
        %v5042 = vunpack.c.l.b16 %v4804
        %v5043 = vunpack.c.l.b16 %v4805
        %v5044 = vunpack.c.h.b16 %v4805
        %v5045 = vunpack.c.l.b16 %v4806
        %v5046 = vunpack.c.l.b16 %v4807
        %v5047 = vunpack.c.h.b16 %v4807
        %v5048 = vunpack.c.l.b16 %v4808
        %v5049 = vunpack.c.l.b16 %v4809
        %v5050 = vunpack.c.h.b16 %v4809
        %v5051 = vunpack.c.l.b16 %v4810
        %v5052 = vunpack.c.l.b16 %v4811
        %v5053 = vunpack.c.h.b16 %v4811
        %v5054 = vunpack.c.l.b16 %v4812
        %v5055 = vunpack.c.l.b16 %v4813
        %v5056 = vunpack.c.h.b16 %v4813
        %v5057 = vunpack.c.l.b16 %v4814
        %v5058 = vunpack.c.l.b16 %v4815
        %v5059 = vunpack.c.h.b16 %v4815
        %v5060 = vunpack.c.l.b16 %v4816
        %v5061 = vunpack.c.l.b16 %v4817
        %v5062 = vunpack.c.h.b16 %v4817
        %v5063 = vunpack.c.l.b16 %v4818
        %v5064 = vunpack.c.l.b16 %v4819
        %v5065 = vunpack.c.h.b16 %v4819
        %v5066 = vunpack.c.l.b16 %v4820
        %v5067 = vunpack.c.l.b16 %v4821
        %v5068 = vunpack.c.h.b16 %v4821
        %v5069 = vunpack.c.l.b16 %v4822
        %v5070 = vunpack.c.l.b16 %v4823
        %v5071 = vunpack.c.h.b16 %v4823
        %v5072 = vunpack.c.l.b16 %v4824
        %v5073 = vpack.c.b16 %v4932, %v4929
        %v5074 = vpack.c.b16 %v4933, %v4930
        %v5075 = vpack.c.b16 %v4934, %v4931
        %v5076 = vpack.c.b16 %v4938, %v4935
        %v5077 = vpack.c.b16 %v4939, %v4936
        %v5078 = vpack.c.b16 %v4940, %v4937
        %v5079 = vpack.c.b16 %v4944, %v4941
        %v5080 = vpack.c.b16 %v4945, %v4942
        %v5081 = vpack.c.b16 %v4946, %v4943
        %v5082 = vpack.c.b16 %v4950, %v4947
        %v5083 = vpack.c.b16 %v4951, %v4948
        %v5084 = vpack.c.b16 %v4952, %v4949
        %v5085 = vpack.c.b16 %v4956, %v4953
        %v5086 = vpack.c.b16 %v4957, %v4954
        %v5087 = vpack.c.b16 %v4958, %v4955
        %v5088 = vpack.c.b16 %v4962, %v4959
        %v5089 = vpack.c.b16 %v4963, %v4960
        %v5090 = vpack.c.b16 %v4964, %v4961
        %v5091 = vpack.c.b16 %v4968, %v4965
        %v5092 = vpack.c.b16 %v4969, %v4966
        %v5093 = vpack.c.b16 %v4970, %v4967
        %v5094 = vpack.c.b16 %v4974, %v4971
        %v5095 = vpack.c.b16 %v4975, %v4972
        %v5096 = vpack.c.b16 %v4976, %v4973
        %v5097 = vpack.c.b16 %v4980, %v4977
        %v5098 = vpack.c.b16 %v4981, %v4978
        %v5099 = vpack.c.b16 %v4982, %v4979
        %v5100 = vpack.c.b16 %v4986, %v4983
        %v5101 = vpack.c.b16 %v4987, %v4984
        %v5102 = vpack.c.b16 %v4988, %v4985
        %v5103 = vpack.c.b16 %v4992, %v4989
        %v5104 = vpack.c.b16 %v4993, %v4990
        %v5105 = vpack.c.b16 %v4994, %v4991
        %v5106 = vpack.c.b16 %v4998, %v4995
        %v5107 = vpack.c.b16 %v4999, %v4996
        %v5108 = vpack.c.b16 %v5000, %v4997
        %v5109 = vpack.c.b16 %v5004, %v5001
        %v5110 = vpack.c.b16 %v5005, %v5002
        %v5111 = vpack.c.b16 %v5006, %v5003
        %v5112 = vpack.c.b16 %v5010, %v5007
        %v5113 = vpack.c.b16 %v5011, %v5008
        %v5114 = vpack.c.b16 %v5012, %v5009
        %v5115 = vpack.c.b16 %v5016, %v5013
        %v5116 = vpack.c.b16 %v5017, %v5014
        %v5117 = vpack.c.b16 %v5018, %v5015
        %v5118 = vpack.c.b16 %v5022, %v5019
        %v5119 = vpack.c.b16 %v5023, %v5020
        %v5120 = vpack.c.b16 %v5024, %v5021
        %v5121 = vpack.c.b16 %v5028, %v5025
        %v5122 = vpack.c.b16 %v5029, %v5026
        %v5123 = vpack.c.b16 %v5030, %v5027
        %v5124 = vpack.c.b16 %v5034, %v5031
        %v5125 = vpack.c.b16 %v5035, %v5032
        %v5126 = vpack.c.b16 %v5036, %v5033
        %v5127 = vpack.c.b16 %v5040, %v5037
        %v5128 = vpack.c.b16 %v5041, %v5038
        %v5129 = vpack.c.b16 %v5042, %v5039
        %v5130 = vpack.c.b16 %v5046, %v5043
        %v5131 = vpack.c.b16 %v5047, %v5044
        %v5132 = vpack.c.b16 %v5048, %v5045
        %v5133 = vpack.c.b16 %v5052, %v5049
        %v5134 = vpack.c.b16 %v5053, %v5050
        %v5135 = vpack.c.b16 %v5054, %v5051
        %v5136 = vpack.c.b16 %v5058, %v5055
        %v5137 = vpack.c.b16 %v5059, %v5056
        %v5138 = vpack.c.b16 %v5060, %v5057
        %v5139 = vpack.c.b16 %v5064, %v5061
        %v5140 = vpack.c.b16 %v5065, %v5062
        %v5141 = vpack.c.b16 %v5066, %v5063
        %v5142 = vpack.c.b16 %v5070, %v5067
        %v5143 = vpack.c.b16 %v5071, %v5068
        %v5144 = vpack.c.b16 %v5072, %v5069
        %5217 = vmatpush.bf16.msra.mxu0 %v5094
        %5218 = vmatpush.bf16.msra.mxu0 %v5091
        %5219 = vmatpush.bf16.msra.mxu0 %v5088
        %5220 = vmatpush.bf16.msra.mxu0 %v5085
        %5221 = vmatpush.bf16.msra.mxu0 %v5082
        %5222 = vmatpush.bf16.msra.mxu0 %v5079
        %5223 = vmatpush.bf16.msra.mxu0 %v5076
        %5224 = vmatpush.bf16.msra.mxu0 %v5073
        %5225 = vmatmul.bf16.gmra.mxu0 %v4717
        %v5226 = vpop.f32.mrf.mxu0
        %v5227 = vadd.f32 %v4827, %v5226
        %v5228 = vpop.f32.mrf.mxu0
        %v5229 = vadd.f32 %v4827, %v5228
        %5230 = vmatmul.bf16.gmra.mxu0 %v4720
        %v5231 = vpop.f32.mrf.mxu0
        %v5232 = vadd.f32 %v4827, %v5231
        %v5233 = vpop.f32.mrf.mxu0
        %v5234 = vadd.f32 %v4827, %v5233
        %5235 = vmatmul.bf16.gmra.mxu0 %v4723
        %v5236 = vpop.f32.mrf.mxu0
        %v5237 = vadd.f32 %v4827, %v5236
        %v5238 = vpop.f32.mrf.mxu0
        %v5239 = vadd.f32 %v4827, %v5238
        %5240 = vmatmul.bf16.gmra.mxu0 %v4726
        %v5241 = vpop.f32.mrf.mxu0
        %v5242 = vadd.f32 %v4827, %v5241
        %v5243 = vpop.f32.mrf.mxu0
        %v5244 = vadd.f32 %v4827, %v5243
        %5245 = vdwg.mxu0
        %5246 = vmatpush.bf16.msra.mxu0 %v5118
        %5247 = vmatpush.bf16.msra.mxu0 %v5115
        %5248 = vmatpush.bf16.msra.mxu0 %v5112
        %5249 = vmatpush.bf16.msra.mxu0 %v5109
        %5250 = vmatpush.bf16.msra.mxu0 %v5106
        %5251 = vmatpush.bf16.msra.mxu0 %v5103
        %5252 = vmatpush.bf16.msra.mxu0 %v5100
        %5253 = vmatpush.bf16.msra.mxu0 %v5097
        %5254 = vmatmul.bf16.gmra.mxu0 %v4718
        %v5255 = vpop.f32.mrf.mxu0
        %v5256 = vadd.f32 %v5227, %v5255
        %v5257 = vpop.f32.mrf.mxu0
        %v5258 = vadd.f32 %v5229, %v5257
        %5259 = vmatmul.bf16.gmra.mxu0 %v4721
        %v5260 = vpop.f32.mrf.mxu0
        %v5261 = vadd.f32 %v5232, %v5260
        %v5262 = vpop.f32.mrf.mxu0
        %v5263 = vadd.f32 %v5234, %v5262
        %5264 = vmatmul.bf16.gmra.mxu0 %v4724
        %v5265 = vpop.f32.mrf.mxu0
        %v5266 = vadd.f32 %v5237, %v5265
        %v5267 = vpop.f32.mrf.mxu0
        %v5268 = vadd.f32 %v5239, %v5267
        %5269 = vmatmul.bf16.gmra.mxu0 %v4727
        %v5270 = vpop.f32.mrf.mxu0
        %v5271 = vadd.f32 %v5242, %v5270
        %v5272 = vpop.f32.mrf.mxu0
        %v5273 = vadd.f32 %v5244, %v5272
        %5274 = vdwg.mxu0
        %5275 = vmatpush.bf16.msra.mxu0 %v5142
        %5276 = vmatpush.bf16.msra.mxu0 %v5139
        %5277 = vmatpush.bf16.msra.mxu0 %v5136
        %5278 = vmatpush.bf16.msra.mxu0 %v5133
        %5279 = vmatpush.bf16.msra.mxu0 %v5130
        %5280 = vmatpush.bf16.msra.mxu0 %v5127
        %5281 = vmatpush.bf16.msra.mxu0 %v5124
        %5282 = vmatpush.bf16.msra.mxu0 %v5121
        %5283 = vmatmul.bf16.gmra.mxu0 %v4719
        %v5284 = vpop.f32.mrf.mxu0
        %v5285 = vadd.f32 %v5256, %v5284
        %v5286 = vpop.f32.mrf.mxu0
        %v5287 = vadd.f32 %v5258, %v5286
        %5288 = vmatmul.bf16.gmra.mxu0 %v4722
        %v5289 = vpop.f32.mrf.mxu0
        %v5290 = vadd.f32 %v5261, %v5289
        %v5291 = vpop.f32.mrf.mxu0
        %v5292 = vadd.f32 %v5263, %v5291
        %5293 = vmatmul.bf16.gmra.mxu0 %v4725
        %v5294 = vpop.f32.mrf.mxu0
        %v5295 = vadd.f32 %v5266, %v5294
        %v5296 = vpop.f32.mrf.mxu0
        %v5297 = vadd.f32 %v5268, %v5296
        %5298 = vmatmul.bf16.gmra.mxu0 %v4728
        %v5299 = vpop.f32.mrf.mxu0
        %v5300 = vadd.f32 %v5271, %v5299
        %v5301 = vpop.f32.mrf.mxu0
        %v5302 = vadd.f32 %v5273, %v5301
        %5303 = vdwg.mxu0
        %5304 = vmatpush.bf16.msra.mxu0 %v5095
        %5305 = vmatpush.bf16.msra.mxu0 %v5092
        %5306 = vmatpush.bf16.msra.mxu0 %v5089
        %5307 = vmatpush.bf16.msra.mxu0 %v5086
        %5308 = vmatpush.bf16.msra.mxu0 %v5083
        %5309 = vmatpush.bf16.msra.mxu0 %v5080
        %5310 = vmatpush.bf16.msra.mxu0 %v5077
        %5311 = vmatpush.bf16.msra.mxu0 %v5074
        %5312 = vmatmul.bf16.gmra.mxu0 %v4717
        %v5313 = vpop.f32.mrf.mxu0
        %v5314 = vadd.f32 %v4828, %v5313
        %v5315 = vpop.f32.mrf.mxu0
        %v5316 = vadd.f32 %v4828, %v5315
        %5317 = vmatmul.bf16.gmra.mxu0 %v4720
        %v5318 = vpop.f32.mrf.mxu0
        %v5319 = vadd.f32 %v4828, %v5318
        %v5320 = vpop.f32.mrf.mxu0
        %v5321 = vadd.f32 %v4828, %v5320
        %5322 = vmatmul.bf16.gmra.mxu0 %v4723
        %v5323 = vpop.f32.mrf.mxu0
        %v5324 = vadd.f32 %v4828, %v5323
        %v5325 = vpop.f32.mrf.mxu0
        %v5326 = vadd.f32 %v4828, %v5325
        %5327 = vmatmul.bf16.gmra.mxu0 %v4726
        %v5328 = vpop.f32.mrf.mxu0
        %v5329 = vadd.f32 %v4828, %v5328
        %v5330 = vpop.f32.mrf.mxu0
        %v5331 = vadd.f32 %v4828, %v5330
        %5332 = vdwg.mxu0
        %5333 = vmatpush.bf16.msra.mxu0 %v5119
        %5334 = vmatpush.bf16.msra.mxu0 %v5116
        %5335 = vmatpush.bf16.msra.mxu0 %v5113
        %5336 = vmatpush.bf16.msra.mxu0 %v5110
        %5337 = vmatpush.bf16.msra.mxu0 %v5107
        %5338 = vmatpush.bf16.msra.mxu0 %v5104
        %5339 = vmatpush.bf16.msra.mxu0 %v5101
        %5340 = vmatpush.bf16.msra.mxu0 %v5098
        %5341 = vmatmul.bf16.gmra.mxu0 %v4718
        %v5342 = vpop.f32.mrf.mxu0
        %v5343 = vadd.f32 %v5314, %v5342
        %v5344 = vpop.f32.mrf.mxu0
        %v5345 = vadd.f32 %v5316, %v5344
        %5346 = vmatmul.bf16.gmra.mxu0 %v4721
        %v5347 = vpop.f32.mrf.mxu0
        %v5348 = vadd.f32 %v5319, %v5347
        %v5349 = vpop.f32.mrf.mxu0
        %v5350 = vadd.f32 %v5321, %v5349
        %5351 = vmatmul.bf16.gmra.mxu0 %v4724
        %v5352 = vpop.f32.mrf.mxu0
        %v5353 = vadd.f32 %v5324, %v5352
        %v5354 = vpop.f32.mrf.mxu0
        %v5355 = vadd.f32 %v5326, %v5354
        %5356 = vmatmul.bf16.gmra.mxu0 %v4727
        %v5357 = vpop.f32.mrf.mxu0
        %v5358 = vadd.f32 %v5329, %v5357
        %v5359 = vpop.f32.mrf.mxu0
        %v5360 = vadd.f32 %v5331, %v5359
        %5361 = vdwg.mxu0
        %5362 = vmatpush.bf16.msra.mxu0 %v5143
        %5363 = vmatpush.bf16.msra.mxu0 %v5140
        %5364 = vmatpush.bf16.msra.mxu0 %v5137
        %5365 = vmatpush.bf16.msra.mxu0 %v5134
        %5366 = vmatpush.bf16.msra.mxu0 %v5131
        %5367 = vmatpush.bf16.msra.mxu0 %v5128
        %5368 = vmatpush.bf16.msra.mxu0 %v5125
        %5369 = vmatpush.bf16.msra.mxu0 %v5122
        %5370 = vmatmul.bf16.gmra.mxu0 %v4719
        %v5371 = vpop.f32.mrf.mxu0
        %v5372 = vadd.f32 %v5343, %v5371
        %v5373 = vpop.f32.mrf.mxu0
        %v5374 = vadd.f32 %v5345, %v5373
        %5375 = vmatmul.bf16.gmra.mxu0 %v4722
        %v5376 = vpop.f32.mrf.mxu0
        %v5377 = vadd.f32 %v5348, %v5376
        %v5378 = vpop.f32.mrf.mxu0
        %v5379 = vadd.f32 %v5350, %v5378
        %5380 = vmatmul.bf16.gmra.mxu0 %v4725
        %v5381 = vpop.f32.mrf.mxu0
        %v5382 = vadd.f32 %v5353, %v5381
        %v5383 = vpop.f32.mrf.mxu0
        %v5384 = vadd.f32 %v5355, %v5383
        %5385 = vmatmul.bf16.gmra.mxu0 %v4728
        %v5386 = vpop.f32.mrf.mxu0
        %v5387 = vadd.f32 %v5358, %v5386
        %v5388 = vpop.f32.mrf.mxu0
        %v5389 = vadd.f32 %v5360, %v5388
        %5390 = vdwg.mxu0
        %5391 = vmatpush.bf16.msra.mxu0 %v5096
        %5392 = vmatpush.bf16.msra.mxu0 %v5093
        %5393 = vmatpush.bf16.msra.mxu0 %v5090
        %5394 = vmatpush.bf16.msra.mxu0 %v5087
        %5395 = vmatpush.bf16.msra.mxu0 %v5084
        %5396 = vmatpush.bf16.msra.mxu0 %v5081
        %5397 = vmatpush.bf16.msra.mxu0 %v5078
        %5398 = vmatpush.bf16.msra.mxu0 %v5075
        %5399 = vmatmul.bf16.gmra.mxu0 %v4717
        %v5400 = vpop.f32.mrf.mxu0
        %v5401 = vadd.f32 %v4829, %v5400
        %v5402 = vpop.f32.mrf.mxu0
        %v5403 = vadd.f32 %v4829, %v5402
        %5404 = vmatmul.bf16.gmra.mxu0 %v4720
        %v5405 = vpop.f32.mrf.mxu0
        %v5406 = vadd.f32 %v4829, %v5405
        %v5407 = vpop.f32.mrf.mxu0
        %v5408 = vadd.f32 %v4829, %v5407
        %5409 = vmatmul.bf16.gmra.mxu0 %v4723
        %v5410 = vpop.f32.mrf.mxu0
        %v5411 = vadd.f32 %v4829, %v5410
        %v5412 = vpop.f32.mrf.mxu0
        %v5413 = vadd.f32 %v4829, %v5412
        %5414 = vmatmul.bf16.gmra.mxu0 %v4726
        %v5415 = vpop.f32.mrf.mxu0
        %v5416 = vadd.f32 %v4829, %v5415
        %v5417 = vpop.f32.mrf.mxu0
        %v5418 = vadd.f32 %v4829, %v5417
        %5419 = vdwg.mxu0
        %5420 = vmatpush.bf16.msra.mxu0 %v5120
        %5421 = vmatpush.bf16.msra.mxu0 %v5117
        %5422 = vmatpush.bf16.msra.mxu0 %v5114
        %5423 = vmatpush.bf16.msra.mxu0 %v5111
        %5424 = vmatpush.bf16.msra.mxu0 %v5108
        %5425 = vmatpush.bf16.msra.mxu0 %v5105
        %5426 = vmatpush.bf16.msra.mxu0 %v5102
        %5427 = vmatpush.bf16.msra.mxu0 %v5099
        %5428 = vmatmul.bf16.gmra.mxu0 %v4718
        %v5429 = vpop.f32.mrf.mxu0
        %v5430 = vadd.f32 %v5401, %v5429
        %v5431 = vpop.f32.mrf.mxu0
        %v5432 = vadd.f32 %v5403, %v5431
        %5433 = vmatmul.bf16.gmra.mxu0 %v4721
        %v5434 = vpop.f32.mrf.mxu0
        %v5435 = vadd.f32 %v5406, %v5434
        %v5436 = vpop.f32.mrf.mxu0
        %v5437 = vadd.f32 %v5408, %v5436
        %5438 = vmatmul.bf16.gmra.mxu0 %v4724
        %v5439 = vpop.f32.mrf.mxu0
        %v5440 = vadd.f32 %v5411, %v5439
        %v5441 = vpop.f32.mrf.mxu0
        %v5442 = vadd.f32 %v5413, %v5441
        %5443 = vmatmul.bf16.gmra.mxu0 %v4727
        %v5444 = vpop.f32.mrf.mxu0
        %v5445 = vadd.f32 %v5416, %v5444
        %v5446 = vpop.f32.mrf.mxu0
        %v5447 = vadd.f32 %v5418, %v5446
        %5448 = vdwg.mxu0
        %5449 = vmatpush.bf16.msra.mxu0 %v5144
        %5450 = vmatpush.bf16.msra.mxu0 %v5141
        %5451 = vmatpush.bf16.msra.mxu0 %v5138
        %5452 = vmatpush.bf16.msra.mxu0 %v5135
        %5453 = vmatpush.bf16.msra.mxu0 %v5132
        %5454 = vmatpush.bf16.msra.mxu0 %v5129
        %5455 = vmatpush.bf16.msra.mxu0 %v5126
        %5456 = vmatpush.bf16.msra.mxu0 %v5123
        %5457 = vmatmul.bf16.gmra.mxu0 %v4719
        %v5458 = vpop.f32.mrf.mxu0
        %v5459 = vadd.f32 %v5430, %v5458
        %v5460 = vpop.f32.mrf.mxu0
        %v5461 = vadd.f32 %v5432, %v5460
        %5462 = vmatmul.bf16.gmra.mxu0 %v4722
        %v5463 = vpop.f32.mrf.mxu0
        %v5464 = vadd.f32 %v5435, %v5463
        %v5465 = vpop.f32.mrf.mxu0
        %v5466 = vadd.f32 %v5437, %v5465
        %5467 = vmatmul.bf16.gmra.mxu0 %v4725
        %v5468 = vpop.f32.mrf.mxu0
        %v5469 = vadd.f32 %v5440, %v5468
        %v5470 = vpop.f32.mrf.mxu0
        %v5471 = vadd.f32 %v5442, %v5470
        %5472 = vmatmul.bf16.gmra.mxu0 %v4728
        %v5473 = vpop.f32.mrf.mxu0
        %v5474 = vadd.f32 %v5445, %v5473
        %v5475 = vpop.f32.mrf.mxu0
        %v5476 = vadd.f32 %v5447, %v5475
        %5477 = vdwg.mxu0
        %v5478 = vadd.f32 %v606, %v5285
        %v5479 = vadd.f32 %v607, %v5372
        %v5480 = vadd.f32 %v608, %v5459
        %v5481 = vadd.f32 %v609, %v5287
        %v5482 = vadd.f32 %v610, %v5374
        %v5483 = vadd.f32 %v611, %v5461
        %v5484 = vadd.f32 %v612, %v5290
        %v5485 = vadd.f32 %v613, %v5377
        %v5486 = vadd.f32 %v614, %v5464
        %v5487 = vadd.f32 %v615, %v5292
        %v5488 = vadd.f32 %v616, %v5379
        %v5489 = vadd.f32 %v617, %v5466
        %v5490 = vadd.f32 %v618, %v5295
        %v5491 = vadd.f32 %v619, %v5382
        %v5492 = vadd.f32 %v620, %v5469
        %v5493 = vadd.f32 %v621, %v5297
        %v5494 = vadd.f32 %v622, %v5384
        %v5495 = vadd.f32 %v623, %v5471
        %v5496 = vadd.f32 %v624, %v5300
        %v5497 = vadd.f32 %v625, %v5387
        %v5498 = vadd.f32 %v626, %v5474
        %v5499 = vadd.f32 %v627, %v5302
        %v5500 = vadd.f32 %v628, %v5389
        %v5501 = vadd.f32 %v629, %v5476
        %v5502 = vld [vmem:[#allocation14] sm:$0x7]
        %v5503 = vld [vmem:[#allocation15] sm:$0x7]
        %v5504 = vadd.f32 %v5478, %v5479
        %v5505 = vadd.f32 %v5504, %v5480
        %5506 = vadd.xlane.f32.xlu0 %v5505
        %v5507 = vpop.xlane.xlu0 %5506
        %v5508 = vadd.f32 %v5481, %v5482
        %v5509 = vadd.f32 %v5508, %v5483
        %5510 = vadd.xlane.f32.xlu0 %v5509
        %v5511 = vpop.xlane.xlu0 %5510
        %v5512 = vadd.f32 %v5484, %v5485
        %v5513 = vadd.f32 %v5512, %v5486
        %5514 = vadd.xlane.f32.xlu0 %v5513
        %v5515 = vpop.xlane.xlu0 %5514
        %v5516 = vadd.f32 %v5487, %v5488
        %v5517 = vadd.f32 %v5516, %v5489
        %5518 = vadd.xlane.f32.xlu0 %v5517
        %v5519 = vpop.xlane.xlu0 %5518
        %v5520 = vadd.f32 %v5490, %v5491
        %v5521 = vadd.f32 %v5520, %v5492
        %5522 = vadd.xlane.f32.xlu0 %v5521
        %v5523 = vpop.xlane.xlu0 %5522
        %v5524 = vadd.f32 %v5493, %v5494
        %v5525 = vadd.f32 %v5524, %v5495
        %5526 = vadd.xlane.f32.xlu0 %v5525
        %v5527 = vpop.xlane.xlu0 %5526
        %v5528 = vadd.f32 %v5496, %v5497
        %v5529 = vadd.f32 %v5528, %v5498
        %5530 = vadd.xlane.f32.xlu0 %v5529
        %v5531 = vpop.xlane.xlu0 %5530
        %v5532 = vadd.f32 %v5499, %v5500
        %v5533 = vadd.f32 %v5532, %v5501
        %5534 = vadd.xlane.f32.xlu0 %v5533
        %v5535 = vpop.xlane.xlu0 %5534
        %v5536 = vmul.f32 %v5507, %v670
        %v5537 = vmul.f32 %v5511, %v670
        %v5538 = vmul.f32 %v5515, %v670
        %v5539 = vmul.f32 %v5519, %v670
        %v5540 = vmul.f32 %v5523, %v670
        %v5541 = vmul.f32 %v5527, %v670
        %v5542 = vmul.f32 %v5531, %v670
        %v5543 = vmul.f32 %v5535, %v670
        %v5544 = vsub.f32 %v5478, %v5536
        %v5545 = vsub.f32 %v5479, %v5536
        %v5546 = vsub.f32 %v5480, %v5536
        %v5547 = vsub.f32 %v5481, %v5537
        %v5548 = vsub.f32 %v5482, %v5537
        %v5549 = vsub.f32 %v5483, %v5537
        %v5550 = vsub.f32 %v5484, %v5538
        %v5551 = vsub.f32 %v5485, %v5538
        %v5552 = vsub.f32 %v5486, %v5538
        %v5553 = vsub.f32 %v5487, %v5539
        %v5554 = vsub.f32 %v5488, %v5539
        %v5555 = vsub.f32 %v5489, %v5539
        %v5556 = vsub.f32 %v5490, %v5540
        %v5557 = vsub.f32 %v5491, %v5540
        %v5558 = vsub.f32 %v5492, %v5540
        %v5559 = vsub.f32 %v5493, %v5541
        %v5560 = vsub.f32 %v5494, %v5541
        %v5561 = vsub.f32 %v5495, %v5541
        %v5562 = vsub.f32 %v5496, %v5542
        %v5563 = vsub.f32 %v5497, %v5542
        %v5564 = vsub.f32 %v5498, %v5542
        %v5565 = vsub.f32 %v5499, %v5543
        %v5566 = vsub.f32 %v5500, %v5543
        %v5567 = vsub.f32 %v5501, %v5543
        %v5568 = vmul.f32 %v5544, %v5544
        %v5569 = vmul.f32 %v5545, %v5545
        %v5570 = vmul.f32 %v5546, %v5546
        %v5571 = vmul.f32 %v5547, %v5547
        %v5572 = vmul.f32 %v5548, %v5548
        %v5573 = vmul.f32 %v5549, %v5549
        %v5574 = vmul.f32 %v5550, %v5550
        %v5575 = vmul.f32 %v5551, %v5551
        %v5576 = vmul.f32 %v5552, %v5552
        %v5577 = vmul.f32 %v5553, %v5553
        %v5578 = vmul.f32 %v5554, %v5554
        %v5579 = vmul.f32 %v5555, %v5555
        %v5580 = vmul.f32 %v5556, %v5556
        %v5581 = vmul.f32 %v5557, %v5557
        %v5582 = vmul.f32 %v5558, %v5558
        %v5583 = vmul.f32 %v5559, %v5559
        %v5584 = vmul.f32 %v5560, %v5560
        %v5585 = vmul.f32 %v5561, %v5561
        %v5586 = vmul.f32 %v5562, %v5562
        %v5587 = vmul.f32 %v5563, %v5563
        %v5588 = vmul.f32 %v5564, %v5564
        %v5589 = vmul.f32 %v5565, %v5565
        %v5590 = vmul.f32 %v5566, %v5566
        %v5591 = vmul.f32 %v5567, %v5567
        %v5592 = vadd.f32 %v5568, %v5569
        %v5593 = vadd.f32 %v5592, %v5570
        %5594 = vadd.xlane.f32.xlu0 %v5593
        %v5595 = vpop.xlane.xlu0 %5594
        %v5596 = vadd.f32 %v5571, %v5572
        %v5597 = vadd.f32 %v5596, %v5573
        %5598 = vadd.xlane.f32.xlu0 %v5597
        %v5599 = vpop.xlane.xlu0 %5598
        %v5600 = vadd.f32 %v5574, %v5575
        %v5601 = vadd.f32 %v5600, %v5576
        %5602 = vadd.xlane.f32.xlu0 %v5601
        %v5603 = vpop.xlane.xlu0 %5602
        %v5604 = vadd.f32 %v5577, %v5578
        %v5605 = vadd.f32 %v5604, %v5579
        %5606 = vadd.xlane.f32.xlu0 %v5605
        %v5607 = vpop.xlane.xlu0 %5606
        %v5608 = vadd.f32 %v5580, %v5581
        %v5609 = vadd.f32 %v5608, %v5582
        %5610 = vadd.xlane.f32.xlu0 %v5609
        %v5611 = vpop.xlane.xlu0 %5610
        %v5612 = vadd.f32 %v5583, %v5584
        %v5613 = vadd.f32 %v5612, %v5585
        %5614 = vadd.xlane.f32.xlu0 %v5613
        %v5615 = vpop.xlane.xlu0 %5614
        %v5616 = vadd.f32 %v5586, %v5587
        %v5617 = vadd.f32 %v5616, %v5588
        %5618 = vadd.xlane.f32.xlu0 %v5617
        %v5619 = vpop.xlane.xlu0 %5618
        %v5620 = vadd.f32 %v5589, %v5590
        %v5621 = vadd.f32 %v5620, %v5591
        %5622 = vadd.xlane.f32.xlu0 %v5621
        %v5623 = vpop.xlane.xlu0 %5622
        %v5624 = vmul.f32 %v5595, %v670
        %v5625 = vmul.f32 %v5599, %v670
        %v5626 = vmul.f32 %v5603, %v670
        %v5627 = vmul.f32 %v5607, %v670
        %v5628 = vmul.f32 %v5611, %v670
        %v5629 = vmul.f32 %v5615, %v670
        %v5630 = vmul.f32 %v5619, %v670
        %v5631 = vmul.f32 %v5623, %v670
        %v5632 = vadd.f32 %v5624, 1e-05
        %v5633 = vadd.f32 %v5625, 1e-05
        %v5634 = vadd.f32 %v5626, 1e-05
        %v5635 = vadd.f32 %v5627, 1e-05
        %v5636 = vadd.f32 %v5628, 1e-05
        %v5637 = vadd.f32 %v5629, 1e-05
        %v5638 = vadd.f32 %v5630, 1e-05
        %v5639 = vadd.f32 %v5631, 1e-05
        %v5640 = vrsqrt.pop %v5632
        %v5641 = vmul.f32 %v5640, %v5632
        %v5642 = vmul.f32 %v5641, %v5640
        %v5643 = vmul.f32 0.5, %v5642
        %v5644 = vsub.f32 1.5, %v5643
        %v5645 = vmul.f32 %v5640, %v5644
        %vm5646 = vweird.f32 %v5632
        %vm5647 = vweird.f32 %v5640
        %vm5648 = vmor %vm5646, %vm5647
        %v5649 = vsel %vm5648, %v5640, %v5645
        %v5650 = vrsqrt.pop %v5633
        %v5651 = vmul.f32 %v5650, %v5633
        %v5652 = vmul.f32 %v5651, %v5650
        %v5653 = vmul.f32 0.5, %v5652
        %v5654 = vsub.f32 1.5, %v5653
        %v5655 = vmul.f32 %v5650, %v5654
        %vm5656 = vweird.f32 %v5633
        %vm5657 = vweird.f32 %v5650
        %vm5658 = vmor %vm5656, %vm5657
        %v5659 = vsel %vm5658, %v5650, %v5655
        %v5660 = vrsqrt.pop %v5634
        %v5661 = vmul.f32 %v5660, %v5634
        %v5662 = vmul.f32 %v5661, %v5660
        %v5663 = vmul.f32 0.5, %v5662
        %v5664 = vsub.f32 1.5, %v5663
        %v5665 = vmul.f32 %v5660, %v5664
        %vm5666 = vweird.f32 %v5634
        %vm5667 = vweird.f32 %v5660
        %vm5668 = vmor %vm5666, %vm5667
        %v5669 = vsel %vm5668, %v5660, %v5665
        %v5670 = vrsqrt.pop %v5635
        %v5671 = vmul.f32 %v5670, %v5635
        %v5672 = vmul.f32 %v5671, %v5670
        %v5673 = vmul.f32 0.5, %v5672
        %v5674 = vsub.f32 1.5, %v5673
        %v5675 = vmul.f32 %v5670, %v5674
        %vm5676 = vweird.f32 %v5635
        %vm5677 = vweird.f32 %v5670
        %vm5678 = vmor %vm5676, %vm5677
        %v5679 = vsel %vm5678, %v5670, %v5675
        %v5680 = vrsqrt.pop %v5636
        %v5681 = vmul.f32 %v5680, %v5636
        %v5682 = vmul.f32 %v5681, %v5680
        %v5683 = vmul.f32 0.5, %v5682
        %v5684 = vsub.f32 1.5, %v5683
        %v5685 = vmul.f32 %v5680, %v5684
        %vm5686 = vweird.f32 %v5636
        %vm5687 = vweird.f32 %v5680
        %vm5688 = vmor %vm5686, %vm5687
        %v5689 = vsel %vm5688, %v5680, %v5685
        %v5690 = vrsqrt.pop %v5637
        %v5691 = vmul.f32 %v5690, %v5637
        %v5692 = vmul.f32 %v5691, %v5690
        %v5693 = vmul.f32 0.5, %v5692
        %v5694 = vsub.f32 1.5, %v5693
        %v5695 = vmul.f32 %v5690, %v5694
        %vm5696 = vweird.f32 %v5637
        %vm5697 = vweird.f32 %v5690
        %vm5698 = vmor %vm5696, %vm5697
        %v5699 = vsel %vm5698, %v5690, %v5695
        %v5700 = vrsqrt.pop %v5638
        %v5701 = vmul.f32 %v5700, %v5638
        %v5702 = vmul.f32 %v5701, %v5700
        %v5703 = vmul.f32 0.5, %v5702
        %v5704 = vsub.f32 1.5, %v5703
        %v5705 = vmul.f32 %v5700, %v5704
        %vm5706 = vweird.f32 %v5638
        %vm5707 = vweird.f32 %v5700
        %vm5708 = vmor %vm5706, %vm5707
        %v5709 = vsel %vm5708, %v5700, %v5705
        %v5710 = vrsqrt.pop %v5639
        %v5711 = vmul.f32 %v5710, %v5639
        %v5712 = vmul.f32 %v5711, %v5710
        %v5713 = vmul.f32 0.5, %v5712
        %v5714 = vsub.f32 1.5, %v5713
        %v5715 = vmul.f32 %v5710, %v5714
        %vm5716 = vweird.f32 %v5639
        %vm5717 = vweird.f32 %v5710
        %vm5718 = vmor %vm5716, %vm5717
        %v5719 = vsel %vm5718, %v5710, %v5715
        %v5720 = vmul.f32 %v5544, %v5649
        %v5721 = vmul.f32 %v5545, %v5649
        %v5722 = vmul.f32 %v5546, %v5649
        %v5723 = vmul.f32 %v5547, %v5659
        %v5724 = vmul.f32 %v5548, %v5659
        %v5725 = vmul.f32 %v5549, %v5659
        %v5726 = vmul.f32 %v5550, %v5669
        %v5727 = vmul.f32 %v5551, %v5669
        %v5728 = vmul.f32 %v5552, %v5669
        %v5729 = vmul.f32 %v5553, %v5679
        %v5730 = vmul.f32 %v5554, %v5679
        %v5731 = vmul.f32 %v5555, %v5679
        %v5732 = vmul.f32 %v5556, %v5689
        %v5733 = vmul.f32 %v5557, %v5689
        %v5734 = vmul.f32 %v5558, %v5689
        %v5735 = vmul.f32 %v5559, %v5699
        %v5736 = vmul.f32 %v5560, %v5699
        %v5737 = vmul.f32 %v5561, %v5699
        %v5738 = vmul.f32 %v5562, %v5709
        %v5739 = vmul.f32 %v5563, %v5709
        %v5740 = vmul.f32 %v5564, %v5709
        %v5741 = vmul.f32 %v5565, %v5719
        %v5742 = vmul.f32 %v5566, %v5719
        %v5743 = vmul.f32 %v5567, %v5719
        %v5745 = vperm.slane %v5502, 0
        %v5746 = vperm.slane %v5502, 1
        %v5747 = vperm.slane %v5502, 2
        %v5751 = vmul.f32 %v5720, %v5745
        %v5752 = vmul.f32 %v5721, %v5746
        %v5753 = vmul.f32 %v5722, %v5747
        %v5754 = vmul.f32 %v5723, %v5745
        %v5755 = vmul.f32 %v5724, %v5746
        %v5756 = vmul.f32 %v5725, %v5747
        %v5757 = vmul.f32 %v5726, %v5745
        %v5758 = vmul.f32 %v5727, %v5746
        %v5759 = vmul.f32 %v5728, %v5747
        %v5760 = vmul.f32 %v5729, %v5745
        %v5761 = vmul.f32 %v5730, %v5746
        %v5762 = vmul.f32 %v5731, %v5747
        %v5763 = vmul.f32 %v5732, %v5745
        %v5764 = vmul.f32 %v5733, %v5746
        %v5765 = vmul.f32 %v5734, %v5747
        %v5766 = vmul.f32 %v5735, %v5745
        %v5767 = vmul.f32 %v5736, %v5746
        %v5768 = vmul.f32 %v5737, %v5747
        %v5769 = vmul.f32 %v5738, %v5745
        %v5770 = vmul.f32 %v5739, %v5746
        %v5771 = vmul.f32 %v5740, %v5747
        %v5772 = vmul.f32 %v5741, %v5745
        %v5773 = vmul.f32 %v5742, %v5746
        %v5774 = vmul.f32 %v5743, %v5747
        %v5776 = vperm.slane %v5503, 0
        %v5777 = vperm.slane %v5503, 1
        %v5778 = vperm.slane %v5503, 2
        %v5782 = vadd.f32 %v5751, %v5776
        %v5783 = vadd.f32 %v5752, %v5777
        %v5784 = vadd.f32 %v5753, %v5778
        %v5785 = vadd.f32 %v5754, %v5776
        %v5786 = vadd.f32 %v5755, %v5777
        %v5787 = vadd.f32 %v5756, %v5778
        %v5788 = vadd.f32 %v5757, %v5776
        %v5789 = vadd.f32 %v5758, %v5777
        %v5790 = vadd.f32 %v5759, %v5778
        %v5791 = vadd.f32 %v5760, %v5776
        %v5792 = vadd.f32 %v5761, %v5777
        %v5793 = vadd.f32 %v5762, %v5778
        %v5794 = vadd.f32 %v5763, %v5776
        %v5795 = vadd.f32 %v5764, %v5777
        %v5796 = vadd.f32 %v5765, %v5778
        %v5797 = vadd.f32 %v5766, %v5776
        %v5798 = vadd.f32 %v5767, %v5777
        %v5799 = vadd.f32 %v5768, %v5778
        %v5800 = vadd.f32 %v5769, %v5776
        %v5801 = vadd.f32 %v5770, %v5777
        %v5802 = vadd.f32 %v5771, %v5778
        %v5803 = vadd.f32 %v5772, %v5776
        %v5804 = vadd.f32 %v5773, %v5777
        %v5805 = vadd.f32 %v5774, %v5778
        %v5806 = vpack.c.bf16 %v5785, %v5782
        %v5807 = vpack.c.bf16 %v5786, %v5783
        %v5808 = vpack.c.bf16 %v5787, %v5784
        %v5809 = vpack.c.bf16 %v5791, %v5788
        %v5810 = vpack.c.bf16 %v5792, %v5789
        %v5811 = vpack.c.bf16 %v5793, %v5790
        %v5812 = vpack.c.bf16 %v5797, %v5794
        %v5813 = vpack.c.bf16 %v5798, %v5795
        %v5814 = vpack.c.bf16 %v5799, %v5796
        %v5815 = vpack.c.bf16 %v5803, %v5800
        %v5816 = vpack.c.bf16 %v5804, %v5801
        %v5817 = vpack.c.bf16 %v5805, %v5802
        %v5818 = vld [vmem:[#allocation17] sm:$0xff]
        %v5819 = vld [vmem:[#allocation17 + $0x8] sm:$0xff]
        %v5820 = vld [vmem:[#allocation17 + $0x10] sm:$0xff]
        %v5821 = vld [vmem:[#allocation17 + $0x18] sm:$0xff]
        %v5822 = vld [vmem:[#allocation17 + $0x20] sm:$0xff]
        %v5823 = vld [vmem:[#allocation17 + $0x28] sm:$0xff]
        %v5824 = vld [vmem:[#allocation17 + $0x30] sm:$0xff]
        %v5825 = vld [vmem:[#allocation17 + $0x38] sm:$0xff]
        %v5826 = vld [vmem:[#allocation17 + $0x40] sm:$0xff]
        %v5827 = vld [vmem:[#allocation17 + $0x48] sm:$0xff]
        %v5828 = vld [vmem:[#allocation17 + $0x50] sm:$0xff]
        %v5829 = vld [vmem:[#allocation17 + $0x58] sm:$0xff]
        %v5830 = vld [vmem:[#allocation17 + $0x60] sm:$0xff]
        %v5831 = vld [vmem:[#allocation17 + $0x68] sm:$0xff]
        %v5832 = vld [vmem:[#allocation17 + $0x70] sm:$0xff]
        %v5833 = vld [vmem:[#allocation17 + $0x78] sm:$0xff]
        %v5834 = vld [vmem:[#allocation17 + $0x80] sm:$0xff]
        %v5835 = vld [vmem:[#allocation17 + $0x88] sm:$0xff]
        %v5836 = vld [vmem:[#allocation17 + $0x90] sm:$0xff]
        %v5837 = vld [vmem:[#allocation17 + $0x98] sm:$0xff]
        %v5838 = vld [vmem:[#allocation17 + $0xa0] sm:$0xff]
        %v5839 = vld [vmem:[#allocation17 + $0xa8] sm:$0xff]
        %v5840 = vld [vmem:[#allocation17 + $0xb0] sm:$0xff]
        %v5841 = vld [vmem:[#allocation17 + $0xb8] sm:$0xff]
        %v5842 = vld [vmem:[#allocation17 + $0xc0] sm:$0xff]
        %v5843 = vld [vmem:[#allocation17 + $0xc8] sm:$0xff]
        %v5844 = vld [vmem:[#allocation17 + $0xd0] sm:$0xff]
        %v5845 = vld [vmem:[#allocation17 + $0xd8] sm:$0xff]
        %v5846 = vld [vmem:[#allocation17 + $0xe0] sm:$0xff]
        %v5847 = vld [vmem:[#allocation17 + $0xe8] sm:$0xff]
        %v5848 = vld [vmem:[#allocation17 + $0xf0] sm:$0xff]
        %v5849 = vld [vmem:[#allocation17 + $0xf8] sm:$0xff]
        %v5850 = vld [vmem:[#allocation17 + $0x100] sm:$0xff]
        %v5851 = vld [vmem:[#allocation17 + $0x108] sm:$0xff]
        %v5852 = vld [vmem:[#allocation17 + $0x110] sm:$0xff]
        %v5853 = vld [vmem:[#allocation17 + $0x118] sm:$0xff]
        %v5854 = vld [vmem:[#allocation17 + $0x120] sm:$0xff]
        %v5855 = vld [vmem:[#allocation17 + $0x128] sm:$0xff]
        %v5856 = vld [vmem:[#allocation17 + $0x130] sm:$0xff]
        %v5857 = vld [vmem:[#allocation17 + $0x138] sm:$0xff]
        %v5858 = vld [vmem:[#allocation17 + $0x140] sm:$0xff]
        %v5859 = vld [vmem:[#allocation17 + $0x148] sm:$0xff]
        %v5860 = vld [vmem:[#allocation17 + $0x150] sm:$0xff]
        %v5861 = vld [vmem:[#allocation17 + $0x158] sm:$0xff]
        %v5862 = vld [vmem:[#allocation17 + $0x160] sm:$0xff]
        %v5863 = vld [vmem:[#allocation17 + $0x168] sm:$0xff]
        %v5864 = vld [vmem:[#allocation17 + $0x170] sm:$0xff]
        %v5865 = vld [vmem:[#allocation17 + $0x178] sm:$0xff]
        %v5866 = vld [vmem:[#allocation17 + $0x180] sm:$0xff]
        %v5867 = vld [vmem:[#allocation17 + $0x188] sm:$0xff]
        %v5868 = vld [vmem:[#allocation17 + $0x190] sm:$0xff]
        %v5869 = vld [vmem:[#allocation17 + $0x198] sm:$0xff]
        %v5870 = vld [vmem:[#allocation17 + $0x1a0] sm:$0xff]
        %v5871 = vld [vmem:[#allocation17 + $0x1a8] sm:$0xff]
        %v5872 = vld [vmem:[#allocation17 + $0x1b0] sm:$0xff]
        %v5873 = vld [vmem:[#allocation17 + $0x1b8] sm:$0xff]
        %v5874 = vld [vmem:[#allocation17 + $0x1c0] sm:$0xff]
        %v5875 = vld [vmem:[#allocation17 + $0x1c8] sm:$0xff]
        %v5876 = vld [vmem:[#allocation17 + $0x1d0] sm:$0xff]
        %v5877 = vld [vmem:[#allocation17 + $0x1d8] sm:$0xff]
        %v5878 = vld [vmem:[#allocation17 + $0x1e0] sm:$0xff]
        %v5879 = vld [vmem:[#allocation17 + $0x1e8] sm:$0xff]
        %v5880 = vld [vmem:[#allocation17 + $0x1f0] sm:$0xff]
        %v5881 = vld [vmem:[#allocation17 + $0x1f8] sm:$0xff]
        %v5882 = vld [vmem:[#allocation17 + $0x200] sm:$0xff]
        %v5883 = vld [vmem:[#allocation17 + $0x208] sm:$0xff]
        %v5884 = vld [vmem:[#allocation17 + $0x210] sm:$0xff]
        %v5885 = vld [vmem:[#allocation17 + $0x218] sm:$0xff]
        %v5886 = vld [vmem:[#allocation17 + $0x220] sm:$0xff]
        %v5887 = vld [vmem:[#allocation17 + $0x228] sm:$0xff]
        %v5888 = vld [vmem:[#allocation17 + $0x230] sm:$0xff]
        %v5889 = vld [vmem:[#allocation17 + $0x238] sm:$0xff]
        %v5890 = vld [vmem:[#allocation17 + $0x240] sm:$0xff]
        %v5891 = vld [vmem:[#allocation17 + $0x248] sm:$0xff]
        %v5892 = vld [vmem:[#allocation17 + $0x250] sm:$0xff]
        %v5893 = vld [vmem:[#allocation17 + $0x258] sm:$0xff]
        %v5894 = vld [vmem:[#allocation17 + $0x260] sm:$0xff]
        %v5895 = vld [vmem:[#allocation17 + $0x268] sm:$0xff]
        %v5896 = vld [vmem:[#allocation17 + $0x270] sm:$0xff]
        %v5897 = vld [vmem:[#allocation17 + $0x278] sm:$0xff]
        %v5898 = vld [vmem:[#allocation17 + $0x280] sm:$0xff]
        %v5899 = vld [vmem:[#allocation17 + $0x288] sm:$0xff]
        %v5900 = vld [vmem:[#allocation17 + $0x290] sm:$0xff]
        %v5901 = vld [vmem:[#allocation17 + $0x298] sm:$0xff]
        %v5902 = vld [vmem:[#allocation17 + $0x2a0] sm:$0xff]
        %v5903 = vld [vmem:[#allocation17 + $0x2a8] sm:$0xff]
        %v5904 = vld [vmem:[#allocation17 + $0x2b0] sm:$0xff]
        %v5905 = vld [vmem:[#allocation17 + $0x2b8] sm:$0xff]
        %v5906 = vld [vmem:[#allocation17 + $0x2c0] sm:$0xff]
        %v5907 = vld [vmem:[#allocation17 + $0x2c8] sm:$0xff]
        %v5908 = vld [vmem:[#allocation17 + $0x2d0] sm:$0xff]
        %v5909 = vld [vmem:[#allocation17 + $0x2d8] sm:$0xff]
        %v5910 = vld [vmem:[#allocation17 + $0x2e0] sm:$0xff]
        %v5911 = vld [vmem:[#allocation17 + $0x2e8] sm:$0xff]
        %v5912 = vld [vmem:[#allocation17 + $0x2f0] sm:$0xff]
        %v5913 = vld [vmem:[#allocation17 + $0x2f8] sm:$0xff]
        %v5914 = vld [vmem:[#allocation17 + $0x300] sm:$0xff]
        %v5915 = vld [vmem:[#allocation17 + $0x308] sm:$0xff]
        %v5916 = vld [vmem:[#allocation17 + $0x310] sm:$0xff]
        %v5917 = vld [vmem:[#allocation17 + $0x318] sm:$0xff]
        %v5918 = vld [vmem:[#allocation17 + $0x320] sm:$0xff]
        %v5919 = vld [vmem:[#allocation17 + $0x328] sm:$0xff]
        %v5920 = vld [vmem:[#allocation17 + $0x330] sm:$0xff]
        %v5921 = vld [vmem:[#allocation17 + $0x338] sm:$0xff]
        %v5922 = vld [vmem:[#allocation17 + $0x340] sm:$0xff]
        %v5923 = vld [vmem:[#allocation17 + $0x348] sm:$0xff]
        %v5924 = vld [vmem:[#allocation17 + $0x350] sm:$0xff]
        %v5925 = vld [vmem:[#allocation17 + $0x358] sm:$0xff]
        %v5926 = vld [vmem:[#allocation17 + $0x360] sm:$0xff]
        %v5927 = vld [vmem:[#allocation17 + $0x368] sm:$0xff]
        %v5928 = vld [vmem:[#allocation17 + $0x370] sm:$0xff]
        %v5929 = vld [vmem:[#allocation17 + $0x378] sm:$0xff]
        %v5930 = vld [vmem:[#allocation17 + $0x380] sm:$0xff]
        %v5931 = vld [vmem:[#allocation17 + $0x388] sm:$0xff]
        %v5932 = vld [vmem:[#allocation17 + $0x390] sm:$0xff]
        %v5933 = vld [vmem:[#allocation17 + $0x398] sm:$0xff]
        %v5934 = vld [vmem:[#allocation17 + $0x3a0] sm:$0xff]
        %v5935 = vld [vmem:[#allocation17 + $0x3a8] sm:$0xff]
        %v5936 = vld [vmem:[#allocation17 + $0x3b0] sm:$0xff]
        %v5937 = vld [vmem:[#allocation17 + $0x3b8] sm:$0xff]
        %v5938 = vld [vmem:[#allocation17 + $0x3c0] sm:$0xff]
        %v5939 = vld [vmem:[#allocation17 + $0x3c8] sm:$0xff]
        %v5940 = vld [vmem:[#allocation17 + $0x3d0] sm:$0xff]
        %v5941 = vld [vmem:[#allocation17 + $0x3d8] sm:$0xff]
        %v5942 = vld [vmem:[#allocation17 + $0x3e0] sm:$0xff]
        %v5943 = vld [vmem:[#allocation17 + $0x3e8] sm:$0xff]
        %v5944 = vld [vmem:[#allocation17 + $0x3f0] sm:$0xff]
        %v5945 = vld [vmem:[#allocation17 + $0x3f8] sm:$0xff]
        %v5946 = vld [vmem:[#allocation17 + $0x400] sm:$0xff]
        %v5947 = vld [vmem:[#allocation17 + $0x408] sm:$0xff]
        %v5948 = vld [vmem:[#allocation17 + $0x410] sm:$0xff]
        %v5949 = vld [vmem:[#allocation17 + $0x418] sm:$0xff]
        %v5950 = vld [vmem:[#allocation17 + $0x420] sm:$0xff]
        %v5951 = vld [vmem:[#allocation17 + $0x428] sm:$0xff]
        %v5952 = vld [vmem:[#allocation17 + $0x430] sm:$0xff]
        %v5953 = vld [vmem:[#allocation17 + $0x438] sm:$0xff]
        %v5954 = vld [vmem:[#allocation17 + $0x440] sm:$0xff]
        %v5955 = vld [vmem:[#allocation17 + $0x448] sm:$0xff]
        %v5956 = vld [vmem:[#allocation17 + $0x450] sm:$0xff]
        %v5957 = vld [vmem:[#allocation17 + $0x458] sm:$0xff]
        %v5958 = vld [vmem:[#allocation17 + $0x460] sm:$0xff]
        %v5959 = vld [vmem:[#allocation17 + $0x468] sm:$0xff]
        %v5960 = vld [vmem:[#allocation17 + $0x470] sm:$0xff]
        %v5961 = vld [vmem:[#allocation17 + $0x478] sm:$0xff]
        %v5962 = vld [vmem:[#allocation17 + $0x480] sm:$0xff]
        %v5963 = vld [vmem:[#allocation17 + $0x488] sm:$0xff]
        %v5964 = vld [vmem:[#allocation17 + $0x490] sm:$0xff]
        %v5965 = vld [vmem:[#allocation17 + $0x498] sm:$0xff]
        %v5966 = vld [vmem:[#allocation17 + $0x4a0] sm:$0xff]
        %v5967 = vld [vmem:[#allocation17 + $0x4a8] sm:$0xff]
        %v5968 = vld [vmem:[#allocation17 + $0x4b0] sm:$0xff]
        %v5969 = vld [vmem:[#allocation17 + $0x4b8] sm:$0xff]
        %v5970 = vld [vmem:[#allocation17 + $0x4c0] sm:$0xff]
        %v5971 = vld [vmem:[#allocation17 + $0x4c8] sm:$0xff]
        %v5972 = vld [vmem:[#allocation17 + $0x4d0] sm:$0xff]
        %v5973 = vld [vmem:[#allocation17 + $0x4d8] sm:$0xff]
        %v5974 = vld [vmem:[#allocation17 + $0x4e0] sm:$0xff]
        %v5975 = vld [vmem:[#allocation17 + $0x4e8] sm:$0xff]
        %v5976 = vld [vmem:[#allocation17 + $0x4f0] sm:$0xff]
        %v5977 = vld [vmem:[#allocation17 + $0x4f8] sm:$0xff]
        %v5978 = vld [vmem:[#allocation17 + $0x500] sm:$0xff]
        %v5979 = vld [vmem:[#allocation17 + $0x508] sm:$0xff]
        %v5980 = vld [vmem:[#allocation17 + $0x510] sm:$0xff]
        %v5981 = vld [vmem:[#allocation17 + $0x518] sm:$0xff]
        %v5982 = vld [vmem:[#allocation17 + $0x520] sm:$0xff]
        %v5983 = vld [vmem:[#allocation17 + $0x528] sm:$0xff]
        %v5984 = vld [vmem:[#allocation17 + $0x530] sm:$0xff]
        %v5985 = vld [vmem:[#allocation17 + $0x538] sm:$0xff]
        %v5986 = vld [vmem:[#allocation17 + $0x540] sm:$0xff]
        %v5987 = vld [vmem:[#allocation17 + $0x548] sm:$0xff]
        %v5988 = vld [vmem:[#allocation17 + $0x550] sm:$0xff]
        %v5989 = vld [vmem:[#allocation17 + $0x558] sm:$0xff]
        %v5990 = vld [vmem:[#allocation17 + $0x560] sm:$0xff]
        %v5991 = vld [vmem:[#allocation17 + $0x568] sm:$0xff]
        %v5992 = vld [vmem:[#allocation17 + $0x570] sm:$0xff]
        %v5993 = vld [vmem:[#allocation17 + $0x578] sm:$0xff]
        %v5994 = vld [vmem:[#allocation17 + $0x580] sm:$0xff]
        %v5995 = vld [vmem:[#allocation17 + $0x588] sm:$0xff]
        %v5996 = vld [vmem:[#allocation17 + $0x590] sm:$0xff]
        %v5997 = vld [vmem:[#allocation17 + $0x598] sm:$0xff]
        %v5998 = vld [vmem:[#allocation17 + $0x5a0] sm:$0xff]
        %v5999 = vld [vmem:[#allocation17 + $0x5a8] sm:$0xff]
        %v6000 = vld [vmem:[#allocation17 + $0x5b0] sm:$0xff]
        %v6001 = vld [vmem:[#allocation17 + $0x5b8] sm:$0xff]
        %v6002 = vld [vmem:[#allocation17 + $0x5c0] sm:$0xff]
        %v6003 = vld [vmem:[#allocation17 + $0x5c8] sm:$0xff]
        %v6004 = vld [vmem:[#allocation17 + $0x5d0] sm:$0xff]
        %v6005 = vld [vmem:[#allocation17 + $0x5d8] sm:$0xff]
        %v6006 = vld [vmem:[#allocation17 + $0x5e0] sm:$0xff]
        %v6007 = vld [vmem:[#allocation17 + $0x5e8] sm:$0xff]
        %v6008 = vld [vmem:[#allocation17 + $0x5f0] sm:$0xff]
        %v6009 = vld [vmem:[#allocation17 + $0x5f8] sm:$0xff]
        %v6010 = vld [vmem:[#allocation17 + $0x600] sm:$0xff]
        %v6011 = vld [vmem:[#allocation17 + $0x608] sm:$0xff]
        %v6012 = vld [vmem:[#allocation17 + $0x610] sm:$0xff]
        %v6013 = vld [vmem:[#allocation17 + $0x618] sm:$0xff]
        %v6014 = vld [vmem:[#allocation17 + $0x620] sm:$0xff]
        %v6015 = vld [vmem:[#allocation17 + $0x628] sm:$0xff]
        %v6016 = vld [vmem:[#allocation17 + $0x630] sm:$0xff]
        %v6017 = vld [vmem:[#allocation17 + $0x638] sm:$0xff]
        %v6018 = vld [vmem:[#allocation17 + $0x640] sm:$0xff]
        %v6019 = vld [vmem:[#allocation17 + $0x648] sm:$0xff]
        %v6020 = vld [vmem:[#allocation17 + $0x650] sm:$0xff]
        %v6021 = vld [vmem:[#allocation17 + $0x658] sm:$0xff]
        %v6022 = vld [vmem:[#allocation17 + $0x660] sm:$0xff]
        %v6023 = vld [vmem:[#allocation17 + $0x668] sm:$0xff]
        %v6024 = vld [vmem:[#allocation17 + $0x670] sm:$0xff]
        %v6025 = vld [vmem:[#allocation17 + $0x678] sm:$0xff]
        %v6026 = vld [vmem:[#allocation17 + $0x680] sm:$0xff]
        %v6027 = vld [vmem:[#allocation17 + $0x688] sm:$0xff]
        %v6028 = vld [vmem:[#allocation17 + $0x690] sm:$0xff]
        %v6029 = vld [vmem:[#allocation17 + $0x698] sm:$0xff]
        %v6030 = vld [vmem:[#allocation17 + $0x6a0] sm:$0xff]
        %v6031 = vld [vmem:[#allocation17 + $0x6a8] sm:$0xff]
        %v6032 = vld [vmem:[#allocation17 + $0x6b0] sm:$0xff]
        %v6033 = vld [vmem:[#allocation17 + $0x6b8] sm:$0xff]
        %v6034 = vld [vmem:[#allocation17 + $0x6c0] sm:$0xff]
        %v6035 = vld [vmem:[#allocation17 + $0x6c8] sm:$0xff]
        %v6036 = vld [vmem:[#allocation17 + $0x6d0] sm:$0xff]
        %v6037 = vld [vmem:[#allocation17 + $0x6d8] sm:$0xff]
        %v6038 = vld [vmem:[#allocation17 + $0x6e0] sm:$0xff]
        %v6039 = vld [vmem:[#allocation17 + $0x6e8] sm:$0xff]
        %v6040 = vld [vmem:[#allocation17 + $0x6f0] sm:$0xff]
        %v6041 = vld [vmem:[#allocation17 + $0x6f8] sm:$0xff]
        %v6042 = vld [vmem:[#allocation17 + $0x700] sm:$0xff]
        %v6043 = vld [vmem:[#allocation17 + $0x708] sm:$0xff]
        %v6044 = vld [vmem:[#allocation17 + $0x710] sm:$0xff]
        %v6045 = vld [vmem:[#allocation17 + $0x718] sm:$0xff]
        %v6046 = vld [vmem:[#allocation17 + $0x720] sm:$0xff]
        %v6047 = vld [vmem:[#allocation17 + $0x728] sm:$0xff]
        %v6048 = vld [vmem:[#allocation17 + $0x730] sm:$0xff]
        %v6049 = vld [vmem:[#allocation17 + $0x738] sm:$0xff]
        %v6050 = vld [vmem:[#allocation17 + $0x740] sm:$0xff]
        %v6051 = vld [vmem:[#allocation17 + $0x748] sm:$0xff]
        %v6052 = vld [vmem:[#allocation17 + $0x750] sm:$0xff]
        %v6053 = vld [vmem:[#allocation17 + $0x758] sm:$0xff]
        %v6054 = vld [vmem:[#allocation17 + $0x760] sm:$0xff]
        %v6055 = vld [vmem:[#allocation17 + $0x768] sm:$0xff]
        %v6056 = vld [vmem:[#allocation17 + $0x770] sm:$0xff]
        %v6057 = vld [vmem:[#allocation17 + $0x778] sm:$0xff]
        %v6058 = vld [vmem:[#allocation17 + $0x780] sm:$0xff]
        %v6059 = vld [vmem:[#allocation17 + $0x788] sm:$0xff]
        %v6060 = vld [vmem:[#allocation17 + $0x790] sm:$0xff]
        %v6061 = vld [vmem:[#allocation17 + $0x798] sm:$0xff]
        %v6062 = vld [vmem:[#allocation17 + $0x7a0] sm:$0xff]
        %v6063 = vld [vmem:[#allocation17 + $0x7a8] sm:$0xff]
        %v6064 = vld [vmem:[#allocation17 + $0x7b0] sm:$0xff]
        %v6065 = vld [vmem:[#allocation17 + $0x7b8] sm:$0xff]
        %v6066 = vld [vmem:[#allocation17 + $0x7c0] sm:$0xff]
        %v6067 = vld [vmem:[#allocation17 + $0x7c8] sm:$0xff]
        %v6068 = vld [vmem:[#allocation17 + $0x7d0] sm:$0xff]
        %v6069 = vld [vmem:[#allocation17 + $0x7d8] sm:$0xff]
        %v6070 = vld [vmem:[#allocation17 + $0x7e0] sm:$0xff]
        %v6071 = vld [vmem:[#allocation17 + $0x7e8] sm:$0xff]
        %v6072 = vld [vmem:[#allocation17 + $0x7f0] sm:$0xff]
        %v6073 = vld [vmem:[#allocation17 + $0x7f8] sm:$0xff]
        %v6074 = vld [vmem:[#allocation17 + $0x800] sm:$0xff]
        %v6075 = vld [vmem:[#allocation17 + $0x808] sm:$0xff]
        %v6076 = vld [vmem:[#allocation17 + $0x810] sm:$0xff]
        %v6077 = vld [vmem:[#allocation17 + $0x818] sm:$0xff]
        %v6078 = vld [vmem:[#allocation17 + $0x820] sm:$0xff]
        %v6079 = vld [vmem:[#allocation17 + $0x828] sm:$0xff]
        %v6080 = vld [vmem:[#allocation17 + $0x830] sm:$0xff]
        %v6081 = vld [vmem:[#allocation17 + $0x838] sm:$0xff]
        %v6082 = vld [vmem:[#allocation17 + $0x840] sm:$0xff]
        %v6083 = vld [vmem:[#allocation17 + $0x848] sm:$0xff]
        %v6084 = vld [vmem:[#allocation17 + $0x850] sm:$0xff]
        %v6085 = vld [vmem:[#allocation17 + $0x858] sm:$0xff]
        %v6086 = vld [vmem:[#allocation17 + $0x860] sm:$0xff]
        %v6087 = vld [vmem:[#allocation17 + $0x868] sm:$0xff]
        %v6088 = vld [vmem:[#allocation17 + $0x870] sm:$0xff]
        %v6089 = vld [vmem:[#allocation17 + $0x878] sm:$0xff]
        %v6090 = vld [vmem:[#allocation17 + $0x880] sm:$0xff]
        %v6091 = vld [vmem:[#allocation17 + $0x888] sm:$0xff]
        %v6092 = vld [vmem:[#allocation17 + $0x890] sm:$0xff]
        %v6093 = vld [vmem:[#allocation17 + $0x898] sm:$0xff]
        %v6094 = vld [vmem:[#allocation17 + $0x8a0] sm:$0xff]
        %v6095 = vld [vmem:[#allocation17 + $0x8a8] sm:$0xff]
        %v6096 = vld [vmem:[#allocation17 + $0x8b0] sm:$0xff]
        %v6097 = vld [vmem:[#allocation17 + $0x8b8] sm:$0xff]
        %v6098 = vld [vmem:[#allocation17 + $0x8c0] sm:$0xff]
        %v6099 = vld [vmem:[#allocation17 + $0x8c8] sm:$0xff]
        %v6100 = vld [vmem:[#allocation17 + $0x8d0] sm:$0xff]
        %v6101 = vld [vmem:[#allocation17 + $0x8d8] sm:$0xff]
        %v6102 = vld [vmem:[#allocation17 + $0x8e0] sm:$0xff]
        %v6103 = vld [vmem:[#allocation17 + $0x8e8] sm:$0xff]
        %v6104 = vld [vmem:[#allocation17 + $0x8f0] sm:$0xff]
        %v6105 = vld [vmem:[#allocation17 + $0x8f8] sm:$0xff]
        %v6106 = vld [vmem:[#allocation18] sm:$0xff]
        %v6107 = vld [vmem:[#allocation18 + $0x8] sm:$0xf]
        %v6110 = vperm.slane %v6106, 0
        %v6111 = vperm.slane %v6106, 1
        %v6112 = vperm.slane %v6106, 2
        %v6113 = vperm.slane %v6106, 3
        %v6114 = vperm.slane %v6106, 4
        %v6115 = vperm.slane %v6106, 5
        %v6116 = vperm.slane %v6106, 6
        %v6117 = vperm.slane %v6106, 7
        %v6118 = vperm.slane %v6107, 0
        %v6119 = vperm.slane %v6107, 1
        %v6120 = vperm.slane %v6107, 2
        %v6121 = vperm.slane %v6107, 3
        %v6422 = vunpack.c.l.b16 %v5818
        %v6423 = vunpack.c.h.b16 %v5818
        %v6424 = vunpack.c.l.b16 %v5819
        %v6425 = vunpack.c.h.b16 %v5819
        %v6426 = vunpack.c.l.b16 %v5820
        %v6427 = vunpack.c.h.b16 %v5820
        %v6428 = vunpack.c.l.b16 %v5821
        %v6429 = vunpack.c.h.b16 %v5821
        %v6430 = vunpack.c.l.b16 %v5822
        %v6431 = vunpack.c.h.b16 %v5822
        %v6432 = vunpack.c.l.b16 %v5823
        %v6433 = vunpack.c.h.b16 %v5823
        %v6434 = vunpack.c.l.b16 %v5824
        %v6435 = vunpack.c.h.b16 %v5824
        %v6436 = vunpack.c.l.b16 %v5825
        %v6437 = vunpack.c.h.b16 %v5825
        %v6438 = vunpack.c.l.b16 %v5826
        %v6439 = vunpack.c.h.b16 %v5826
        %v6440 = vunpack.c.l.b16 %v5827
        %v6441 = vunpack.c.h.b16 %v5827
        %v6442 = vunpack.c.l.b16 %v5828
        %v6443 = vunpack.c.h.b16 %v5828
        %v6444 = vunpack.c.l.b16 %v5829
        %v6445 = vunpack.c.h.b16 %v5829
        %v6446 = vunpack.c.l.b16 %v5830
        %v6447 = vunpack.c.h.b16 %v5830
        %v6448 = vunpack.c.l.b16 %v5831
        %v6449 = vunpack.c.h.b16 %v5831
        %v6450 = vunpack.c.l.b16 %v5832
        %v6451 = vunpack.c.h.b16 %v5832
        %v6452 = vunpack.c.l.b16 %v5833
        %v6453 = vunpack.c.h.b16 %v5833
        %v6454 = vunpack.c.l.b16 %v5834
        %v6455 = vunpack.c.h.b16 %v5834
        %v6456 = vunpack.c.l.b16 %v5835
        %v6457 = vunpack.c.h.b16 %v5835
        %v6458 = vunpack.c.l.b16 %v5836
        %v6459 = vunpack.c.h.b16 %v5836
        %v6460 = vunpack.c.l.b16 %v5837
        %v6461 = vunpack.c.h.b16 %v5837
        %v6462 = vunpack.c.l.b16 %v5838
        %v6463 = vunpack.c.h.b16 %v5838
        %v6464 = vunpack.c.l.b16 %v5839
        %v6465 = vunpack.c.h.b16 %v5839
        %v6466 = vunpack.c.l.b16 %v5840
        %v6467 = vunpack.c.h.b16 %v5840
        %v6468 = vunpack.c.l.b16 %v5841
        %v6469 = vunpack.c.h.b16 %v5841
        %v6470 = vunpack.c.l.b16 %v5842
        %v6471 = vunpack.c.h.b16 %v5842
        %v6472 = vunpack.c.l.b16 %v5843
        %v6473 = vunpack.c.h.b16 %v5843
        %v6474 = vunpack.c.l.b16 %v5844
        %v6475 = vunpack.c.h.b16 %v5844
        %v6476 = vunpack.c.l.b16 %v5845
        %v6477 = vunpack.c.h.b16 %v5845
        %v6478 = vunpack.c.l.b16 %v5846
        %v6479 = vunpack.c.h.b16 %v5846
        %v6480 = vunpack.c.l.b16 %v5847
        %v6481 = vunpack.c.h.b16 %v5847
        %v6482 = vunpack.c.l.b16 %v5848
        %v6483 = vunpack.c.h.b16 %v5848
        %v6484 = vunpack.c.l.b16 %v5849
        %v6485 = vunpack.c.h.b16 %v5849
        %v6486 = vunpack.c.l.b16 %v5850
        %v6487 = vunpack.c.h.b16 %v5850
        %v6488 = vunpack.c.l.b16 %v5851
        %v6489 = vunpack.c.h.b16 %v5851
        %v6490 = vunpack.c.l.b16 %v5852
        %v6491 = vunpack.c.h.b16 %v5852
        %v6492 = vunpack.c.l.b16 %v5853
        %v6493 = vunpack.c.h.b16 %v5853
        %v6494 = vunpack.c.l.b16 %v5854
        %v6495 = vunpack.c.h.b16 %v5854
        %v6496 = vunpack.c.l.b16 %v5855
        %v6497 = vunpack.c.h.b16 %v5855
        %v6498 = vunpack.c.l.b16 %v5856
        %v6499 = vunpack.c.h.b16 %v5856
        %v6500 = vunpack.c.l.b16 %v5857
        %v6501 = vunpack.c.h.b16 %v5857
        %v6502 = vunpack.c.l.b16 %v5858
        %v6503 = vunpack.c.h.b16 %v5858
        %v6504 = vunpack.c.l.b16 %v5859
        %v6505 = vunpack.c.h.b16 %v5859
        %v6506 = vunpack.c.l.b16 %v5860
        %v6507 = vunpack.c.h.b16 %v5860
        %v6508 = vunpack.c.l.b16 %v5861
        %v6509 = vunpack.c.h.b16 %v5861
        %v6510 = vunpack.c.l.b16 %v5862
        %v6511 = vunpack.c.h.b16 %v5862
        %v6512 = vunpack.c.l.b16 %v5863
        %v6513 = vunpack.c.h.b16 %v5863
        %v6514 = vunpack.c.l.b16 %v5864
        %v6515 = vunpack.c.h.b16 %v5864
        %v6516 = vunpack.c.l.b16 %v5865
        %v6517 = vunpack.c.h.b16 %v5865
        %v6518 = vunpack.c.l.b16 %v5866
        %v6519 = vunpack.c.h.b16 %v5866
        %v6520 = vunpack.c.l.b16 %v5867
        %v6521 = vunpack.c.h.b16 %v5867
        %v6522 = vunpack.c.l.b16 %v5868
        %v6523 = vunpack.c.h.b16 %v5868
        %v6524 = vunpack.c.l.b16 %v5869
        %v6525 = vunpack.c.h.b16 %v5869
        %v6526 = vunpack.c.l.b16 %v5870
        %v6527 = vunpack.c.h.b16 %v5870
        %v6528 = vunpack.c.l.b16 %v5871
        %v6529 = vunpack.c.h.b16 %v5871
        %v6530 = vunpack.c.l.b16 %v5872
        %v6531 = vunpack.c.h.b16 %v5872
        %v6532 = vunpack.c.l.b16 %v5873
        %v6533 = vunpack.c.h.b16 %v5873
        %v6534 = vunpack.c.l.b16 %v5874
        %v6535 = vunpack.c.h.b16 %v5874
        %v6536 = vunpack.c.l.b16 %v5875
        %v6537 = vunpack.c.h.b16 %v5875
        %v6538 = vunpack.c.l.b16 %v5876
        %v6539 = vunpack.c.h.b16 %v5876
        %v6540 = vunpack.c.l.b16 %v5877
        %v6541 = vunpack.c.h.b16 %v5877
        %v6542 = vunpack.c.l.b16 %v5878
        %v6543 = vunpack.c.h.b16 %v5878
        %v6544 = vunpack.c.l.b16 %v5879
        %v6545 = vunpack.c.h.b16 %v5879
        %v6546 = vunpack.c.l.b16 %v5880
        %v6547 = vunpack.c.h.b16 %v5880
        %v6548 = vunpack.c.l.b16 %v5881
        %v6549 = vunpack.c.h.b16 %v5881
        %v6550 = vunpack.c.l.b16 %v5882
        %v6551 = vunpack.c.h.b16 %v5882
        %v6552 = vunpack.c.l.b16 %v5883
        %v6553 = vunpack.c.h.b16 %v5883
        %v6554 = vunpack.c.l.b16 %v5884
        %v6555 = vunpack.c.h.b16 %v5884
        %v6556 = vunpack.c.l.b16 %v5885
        %v6557 = vunpack.c.h.b16 %v5885
        %v6558 = vunpack.c.l.b16 %v5886
        %v6559 = vunpack.c.h.b16 %v5886
        %v6560 = vunpack.c.l.b16 %v5887
        %v6561 = vunpack.c.h.b16 %v5887
        %v6562 = vunpack.c.l.b16 %v5888
        %v6563 = vunpack.c.h.b16 %v5888
        %v6564 = vunpack.c.l.b16 %v5889
        %v6565 = vunpack.c.h.b16 %v5889
        %v6566 = vunpack.c.l.b16 %v5890
        %v6567 = vunpack.c.h.b16 %v5890
        %v6568 = vunpack.c.l.b16 %v5891
        %v6569 = vunpack.c.h.b16 %v5891
        %v6570 = vunpack.c.l.b16 %v5892
        %v6571 = vunpack.c.h.b16 %v5892
        %v6572 = vunpack.c.l.b16 %v5893
        %v6573 = vunpack.c.h.b16 %v5893
        %v6574 = vunpack.c.l.b16 %v5894
        %v6575 = vunpack.c.h.b16 %v5894
        %v6576 = vunpack.c.l.b16 %v5895
        %v6577 = vunpack.c.h.b16 %v5895
        %v6578 = vunpack.c.l.b16 %v5896
        %v6579 = vunpack.c.h.b16 %v5896
        %v6580 = vunpack.c.l.b16 %v5897
        %v6581 = vunpack.c.h.b16 %v5897
        %v6582 = vunpack.c.l.b16 %v5898
        %v6583 = vunpack.c.h.b16 %v5898
        %v6584 = vunpack.c.l.b16 %v5899
        %v6585 = vunpack.c.h.b16 %v5899
        %v6586 = vunpack.c.l.b16 %v5900
        %v6587 = vunpack.c.h.b16 %v5900
        %v6588 = vunpack.c.l.b16 %v5901
        %v6589 = vunpack.c.h.b16 %v5901
        %v6590 = vunpack.c.l.b16 %v5902
        %v6591 = vunpack.c.h.b16 %v5902
        %v6592 = vunpack.c.l.b16 %v5903
        %v6593 = vunpack.c.h.b16 %v5903
        %v6594 = vunpack.c.l.b16 %v5904
        %v6595 = vunpack.c.h.b16 %v5904
        %v6596 = vunpack.c.l.b16 %v5905
        %v6597 = vunpack.c.h.b16 %v5905
        %v6598 = vunpack.c.l.b16 %v5906
        %v6599 = vunpack.c.h.b16 %v5906
        %v6600 = vunpack.c.l.b16 %v5907
        %v6601 = vunpack.c.h.b16 %v5907
        %v6602 = vunpack.c.l.b16 %v5908
        %v6603 = vunpack.c.h.b16 %v5908
        %v6604 = vunpack.c.l.b16 %v5909
        %v6605 = vunpack.c.h.b16 %v5909
        %v6606 = vunpack.c.l.b16 %v5910
        %v6607 = vunpack.c.h.b16 %v5910
        %v6608 = vunpack.c.l.b16 %v5911
        %v6609 = vunpack.c.h.b16 %v5911
        %v6610 = vunpack.c.l.b16 %v5912
        %v6611 = vunpack.c.h.b16 %v5912
        %v6612 = vunpack.c.l.b16 %v5913
        %v6613 = vunpack.c.h.b16 %v5913
        %v6614 = vunpack.c.l.b16 %v5914
        %v6615 = vunpack.c.h.b16 %v5914
        %v6616 = vunpack.c.l.b16 %v5915
        %v6617 = vunpack.c.h.b16 %v5915
        %v6618 = vunpack.c.l.b16 %v5916
        %v6619 = vunpack.c.h.b16 %v5916
        %v6620 = vunpack.c.l.b16 %v5917
        %v6621 = vunpack.c.h.b16 %v5917
        %v6622 = vunpack.c.l.b16 %v5918
        %v6623 = vunpack.c.h.b16 %v5918
        %v6624 = vunpack.c.l.b16 %v5919
        %v6625 = vunpack.c.h.b16 %v5919
        %v6626 = vunpack.c.l.b16 %v5920
        %v6627 = vunpack.c.h.b16 %v5920
        %v6628 = vunpack.c.l.b16 %v5921
        %v6629 = vunpack.c.h.b16 %v5921
        %v6630 = vunpack.c.l.b16 %v5922
        %v6631 = vunpack.c.h.b16 %v5922
        %v6632 = vunpack.c.l.b16 %v5923
        %v6633 = vunpack.c.h.b16 %v5923
        %v6634 = vunpack.c.l.b16 %v5924
        %v6635 = vunpack.c.h.b16 %v5924
        %v6636 = vunpack.c.l.b16 %v5925
        %v6637 = vunpack.c.h.b16 %v5925
        %v6638 = vunpack.c.l.b16 %v5926
        %v6639 = vunpack.c.h.b16 %v5926
        %v6640 = vunpack.c.l.b16 %v5927
        %v6641 = vunpack.c.h.b16 %v5927
        %v6642 = vunpack.c.l.b16 %v5928
        %v6643 = vunpack.c.h.b16 %v5928
        %v6644 = vunpack.c.l.b16 %v5929
        %v6645 = vunpack.c.h.b16 %v5929
        %v6646 = vunpack.c.l.b16 %v5930
        %v6647 = vunpack.c.h.b16 %v5930
        %v6648 = vunpack.c.l.b16 %v5931
        %v6649 = vunpack.c.h.b16 %v5931
        %v6650 = vunpack.c.l.b16 %v5932
        %v6651 = vunpack.c.h.b16 %v5932
        %v6652 = vunpack.c.l.b16 %v5933
        %v6653 = vunpack.c.h.b16 %v5933
        %v6654 = vunpack.c.l.b16 %v5934
        %v6655 = vunpack.c.h.b16 %v5934
        %v6656 = vunpack.c.l.b16 %v5935
        %v6657 = vunpack.c.h.b16 %v5935
        %v6658 = vunpack.c.l.b16 %v5936
        %v6659 = vunpack.c.h.b16 %v5936
        %v6660 = vunpack.c.l.b16 %v5937
        %v6661 = vunpack.c.h.b16 %v5937
        %v6662 = vunpack.c.l.b16 %v5938
        %v6663 = vunpack.c.h.b16 %v5938
        %v6664 = vunpack.c.l.b16 %v5939
        %v6665 = vunpack.c.h.b16 %v5939
        %v6666 = vunpack.c.l.b16 %v5940
        %v6667 = vunpack.c.h.b16 %v5940
        %v6668 = vunpack.c.l.b16 %v5941
        %v6669 = vunpack.c.h.b16 %v5941
        %v6670 = vunpack.c.l.b16 %v5942
        %v6671 = vunpack.c.h.b16 %v5942
        %v6672 = vunpack.c.l.b16 %v5943
        %v6673 = vunpack.c.h.b16 %v5943
        %v6674 = vunpack.c.l.b16 %v5944
        %v6675 = vunpack.c.h.b16 %v5944
        %v6676 = vunpack.c.l.b16 %v5945
        %v6677 = vunpack.c.h.b16 %v5945
        %v6678 = vunpack.c.l.b16 %v5946
        %v6679 = vunpack.c.h.b16 %v5946
        %v6680 = vunpack.c.l.b16 %v5947
        %v6681 = vunpack.c.h.b16 %v5947
        %v6682 = vunpack.c.l.b16 %v5948
        %v6683 = vunpack.c.h.b16 %v5948
        %v6684 = vunpack.c.l.b16 %v5949
        %v6685 = vunpack.c.h.b16 %v5949
        %v6686 = vunpack.c.l.b16 %v5950
        %v6687 = vunpack.c.h.b16 %v5950
        %v6688 = vunpack.c.l.b16 %v5951
        %v6689 = vunpack.c.h.b16 %v5951
        %v6690 = vunpack.c.l.b16 %v5952
        %v6691 = vunpack.c.h.b16 %v5952
        %v6692 = vunpack.c.l.b16 %v5953
        %v6693 = vunpack.c.h.b16 %v5953
        %v6694 = vunpack.c.l.b16 %v5954
        %v6695 = vunpack.c.h.b16 %v5954
        %v6696 = vunpack.c.l.b16 %v5955
        %v6697 = vunpack.c.h.b16 %v5955
        %v6698 = vunpack.c.l.b16 %v5956
        %v6699 = vunpack.c.h.b16 %v5956
        %v6700 = vunpack.c.l.b16 %v5957
        %v6701 = vunpack.c.h.b16 %v5957
        %v6702 = vunpack.c.l.b16 %v5958
        %v6703 = vunpack.c.h.b16 %v5958
        %v6704 = vunpack.c.l.b16 %v5959
        %v6705 = vunpack.c.h.b16 %v5959
        %v6706 = vunpack.c.l.b16 %v5960
        %v6707 = vunpack.c.h.b16 %v5960
        %v6708 = vunpack.c.l.b16 %v5961
        %v6709 = vunpack.c.h.b16 %v5961
        %v6710 = vunpack.c.l.b16 %v5962
        %v6711 = vunpack.c.h.b16 %v5962
        %v6712 = vunpack.c.l.b16 %v5963
        %v6713 = vunpack.c.h.b16 %v5963
        %v6714 = vunpack.c.l.b16 %v5964
        %v6715 = vunpack.c.h.b16 %v5964
        %v6716 = vunpack.c.l.b16 %v5965
        %v6717 = vunpack.c.h.b16 %v5965
        %v6718 = vunpack.c.l.b16 %v5966
        %v6719 = vunpack.c.h.b16 %v5966
        %v6720 = vunpack.c.l.b16 %v5967
        %v6721 = vunpack.c.h.b16 %v5967
        %v6722 = vunpack.c.l.b16 %v5968
        %v6723 = vunpack.c.h.b16 %v5968
        %v6724 = vunpack.c.l.b16 %v5969
        %v6725 = vunpack.c.h.b16 %v5969
        %v6726 = vunpack.c.l.b16 %v5970
        %v6727 = vunpack.c.h.b16 %v5970
        %v6728 = vunpack.c.l.b16 %v5971
        %v6729 = vunpack.c.h.b16 %v5971
        %v6730 = vunpack.c.l.b16 %v5972
        %v6731 = vunpack.c.h.b16 %v5972
        %v6732 = vunpack.c.l.b16 %v5973
        %v6733 = vunpack.c.h.b16 %v5973
        %v6734 = vunpack.c.l.b16 %v5974
        %v6735 = vunpack.c.h.b16 %v5974
        %v6736 = vunpack.c.l.b16 %v5975
        %v6737 = vunpack.c.h.b16 %v5975
        %v6738 = vunpack.c.l.b16 %v5976
        %v6739 = vunpack.c.h.b16 %v5976
        %v6740 = vunpack.c.l.b16 %v5977
        %v6741 = vunpack.c.h.b16 %v5977
        %v6742 = vunpack.c.l.b16 %v5978
        %v6743 = vunpack.c.h.b16 %v5978
        %v6744 = vunpack.c.l.b16 %v5979
        %v6745 = vunpack.c.h.b16 %v5979
        %v6746 = vunpack.c.l.b16 %v5980
        %v6747 = vunpack.c.h.b16 %v5980
        %v6748 = vunpack.c.l.b16 %v5981
        %v6749 = vunpack.c.h.b16 %v5981
        %v6750 = vunpack.c.l.b16 %v5982
        %v6751 = vunpack.c.h.b16 %v5982
        %v6752 = vunpack.c.l.b16 %v5983
        %v6753 = vunpack.c.h.b16 %v5983
        %v6754 = vunpack.c.l.b16 %v5984
        %v6755 = vunpack.c.h.b16 %v5984
        %v6756 = vunpack.c.l.b16 %v5985
        %v6757 = vunpack.c.h.b16 %v5985
        %v6758 = vunpack.c.l.b16 %v5986
        %v6759 = vunpack.c.h.b16 %v5986
        %v6760 = vunpack.c.l.b16 %v5987
        %v6761 = vunpack.c.h.b16 %v5987
        %v6762 = vunpack.c.l.b16 %v5988
        %v6763 = vunpack.c.h.b16 %v5988
        %v6764 = vunpack.c.l.b16 %v5989
        %v6765 = vunpack.c.h.b16 %v5989
        %v6766 = vunpack.c.l.b16 %v5990
        %v6767 = vunpack.c.h.b16 %v5990
        %v6768 = vunpack.c.l.b16 %v5991
        %v6769 = vunpack.c.h.b16 %v5991
        %v6770 = vunpack.c.l.b16 %v5992
        %v6771 = vunpack.c.h.b16 %v5992
        %v6772 = vunpack.c.l.b16 %v5993
        %v6773 = vunpack.c.h.b16 %v5993
        %v6774 = vunpack.c.l.b16 %v5994
        %v6775 = vunpack.c.h.b16 %v5994
        %v6776 = vunpack.c.l.b16 %v5995
        %v6777 = vunpack.c.h.b16 %v5995
        %v6778 = vunpack.c.l.b16 %v5996
        %v6779 = vunpack.c.h.b16 %v5996
        %v6780 = vunpack.c.l.b16 %v5997
        %v6781 = vunpack.c.h.b16 %v5997
        %v6782 = vunpack.c.l.b16 %v5998
        %v6783 = vunpack.c.h.b16 %v5998
        %v6784 = vunpack.c.l.b16 %v5999
        %v6785 = vunpack.c.h.b16 %v5999
        %v6786 = vunpack.c.l.b16 %v6000
        %v6787 = vunpack.c.h.b16 %v6000
        %v6788 = vunpack.c.l.b16 %v6001
        %v6789 = vunpack.c.h.b16 %v6001
        %v6790 = vunpack.c.l.b16 %v6002
        %v6791 = vunpack.c.h.b16 %v6002
        %v6792 = vunpack.c.l.b16 %v6003
        %v6793 = vunpack.c.h.b16 %v6003
        %v6794 = vunpack.c.l.b16 %v6004
        %v6795 = vunpack.c.h.b16 %v6004
        %v6796 = vunpack.c.l.b16 %v6005
        %v6797 = vunpack.c.h.b16 %v6005
        %v6798 = vunpack.c.l.b16 %v6006
        %v6799 = vunpack.c.h.b16 %v6006
        %v6800 = vunpack.c.l.b16 %v6007
        %v6801 = vunpack.c.h.b16 %v6007
        %v6802 = vunpack.c.l.b16 %v6008
        %v6803 = vunpack.c.h.b16 %v6008
        %v6804 = vunpack.c.l.b16 %v6009
        %v6805 = vunpack.c.h.b16 %v6009
        %v6806 = vunpack.c.l.b16 %v6010
        %v6807 = vunpack.c.h.b16 %v6010
        %v6808 = vunpack.c.l.b16 %v6011
        %v6809 = vunpack.c.h.b16 %v6011
        %v6810 = vunpack.c.l.b16 %v6012
        %v6811 = vunpack.c.h.b16 %v6012
        %v6812 = vunpack.c.l.b16 %v6013
        %v6813 = vunpack.c.h.b16 %v6013
        %v6814 = vunpack.c.l.b16 %v6014
        %v6815 = vunpack.c.h.b16 %v6014
        %v6816 = vunpack.c.l.b16 %v6015
        %v6817 = vunpack.c.h.b16 %v6015
        %v6818 = vunpack.c.l.b16 %v6016
        %v6819 = vunpack.c.h.b16 %v6016
        %v6820 = vunpack.c.l.b16 %v6017
        %v6821 = vunpack.c.h.b16 %v6017
        %v6822 = vunpack.c.l.b16 %v6018
        %v6823 = vunpack.c.h.b16 %v6018
        %v6824 = vunpack.c.l.b16 %v6019
        %v6825 = vunpack.c.h.b16 %v6019
        %v6826 = vunpack.c.l.b16 %v6020
        %v6827 = vunpack.c.h.b16 %v6020
        %v6828 = vunpack.c.l.b16 %v6021
        %v6829 = vunpack.c.h.b16 %v6021
        %v6830 = vunpack.c.l.b16 %v6022
        %v6831 = vunpack.c.h.b16 %v6022
        %v6832 = vunpack.c.l.b16 %v6023
        %v6833 = vunpack.c.h.b16 %v6023
        %v6834 = vunpack.c.l.b16 %v6024
        %v6835 = vunpack.c.h.b16 %v6024
        %v6836 = vunpack.c.l.b16 %v6025
        %v6837 = vunpack.c.h.b16 %v6025
        %v6838 = vunpack.c.l.b16 %v6026
        %v6839 = vunpack.c.h.b16 %v6026
        %v6840 = vunpack.c.l.b16 %v6027
        %v6841 = vunpack.c.h.b16 %v6027
        %v6842 = vunpack.c.l.b16 %v6028
        %v6843 = vunpack.c.h.b16 %v6028
        %v6844 = vunpack.c.l.b16 %v6029
        %v6845 = vunpack.c.h.b16 %v6029
        %v6846 = vunpack.c.l.b16 %v6030
        %v6847 = vunpack.c.h.b16 %v6030
        %v6848 = vunpack.c.l.b16 %v6031
        %v6849 = vunpack.c.h.b16 %v6031
        %v6850 = vunpack.c.l.b16 %v6032
        %v6851 = vunpack.c.h.b16 %v6032
        %v6852 = vunpack.c.l.b16 %v6033
        %v6853 = vunpack.c.h.b16 %v6033
        %v6854 = vunpack.c.l.b16 %v6034
        %v6855 = vunpack.c.h.b16 %v6034
        %v6856 = vunpack.c.l.b16 %v6035
        %v6857 = vunpack.c.h.b16 %v6035
        %v6858 = vunpack.c.l.b16 %v6036
        %v6859 = vunpack.c.h.b16 %v6036
        %v6860 = vunpack.c.l.b16 %v6037
        %v6861 = vunpack.c.h.b16 %v6037
        %v6862 = vunpack.c.l.b16 %v6038
        %v6863 = vunpack.c.h.b16 %v6038
        %v6864 = vunpack.c.l.b16 %v6039
        %v6865 = vunpack.c.h.b16 %v6039
        %v6866 = vunpack.c.l.b16 %v6040
        %v6867 = vunpack.c.h.b16 %v6040
        %v6868 = vunpack.c.l.b16 %v6041
        %v6869 = vunpack.c.h.b16 %v6041
        %v6870 = vunpack.c.l.b16 %v6042
        %v6871 = vunpack.c.h.b16 %v6042
        %v6872 = vunpack.c.l.b16 %v6043
        %v6873 = vunpack.c.h.b16 %v6043
        %v6874 = vunpack.c.l.b16 %v6044
        %v6875 = vunpack.c.h.b16 %v6044
        %v6876 = vunpack.c.l.b16 %v6045
        %v6877 = vunpack.c.h.b16 %v6045
        %v6878 = vunpack.c.l.b16 %v6046
        %v6879 = vunpack.c.h.b16 %v6046
        %v6880 = vunpack.c.l.b16 %v6047
        %v6881 = vunpack.c.h.b16 %v6047
        %v6882 = vunpack.c.l.b16 %v6048
        %v6883 = vunpack.c.h.b16 %v6048
        %v6884 = vunpack.c.l.b16 %v6049
        %v6885 = vunpack.c.h.b16 %v6049
        %v6886 = vunpack.c.l.b16 %v6050
        %v6887 = vunpack.c.h.b16 %v6050
        %v6888 = vunpack.c.l.b16 %v6051
        %v6889 = vunpack.c.h.b16 %v6051
        %v6890 = vunpack.c.l.b16 %v6052
        %v6891 = vunpack.c.h.b16 %v6052
        %v6892 = vunpack.c.l.b16 %v6053
        %v6893 = vunpack.c.h.b16 %v6053
        %v6894 = vunpack.c.l.b16 %v6054
        %v6895 = vunpack.c.h.b16 %v6054
        %v6896 = vunpack.c.l.b16 %v6055
        %v6897 = vunpack.c.h.b16 %v6055
        %v6898 = vunpack.c.l.b16 %v6056
        %v6899 = vunpack.c.h.b16 %v6056
        %v6900 = vunpack.c.l.b16 %v6057
        %v6901 = vunpack.c.h.b16 %v6057
        %v6902 = vunpack.c.l.b16 %v6058
        %v6903 = vunpack.c.h.b16 %v6058
        %v6904 = vunpack.c.l.b16 %v6059
        %v6905 = vunpack.c.h.b16 %v6059
        %v6906 = vunpack.c.l.b16 %v6060
        %v6907 = vunpack.c.h.b16 %v6060
        %v6908 = vunpack.c.l.b16 %v6061
        %v6909 = vunpack.c.h.b16 %v6061
        %v6910 = vunpack.c.l.b16 %v6062
        %v6911 = vunpack.c.h.b16 %v6062
        %v6912 = vunpack.c.l.b16 %v6063
        %v6913 = vunpack.c.h.b16 %v6063
        %v6914 = vunpack.c.l.b16 %v6064
        %v6915 = vunpack.c.h.b16 %v6064
        %v6916 = vunpack.c.l.b16 %v6065
        %v6917 = vunpack.c.h.b16 %v6065
        %v6918 = vunpack.c.l.b16 %v6066
        %v6919 = vunpack.c.h.b16 %v6066
        %v6920 = vunpack.c.l.b16 %v6067
        %v6921 = vunpack.c.h.b16 %v6067
        %v6922 = vunpack.c.l.b16 %v6068
        %v6923 = vunpack.c.h.b16 %v6068
        %v6924 = vunpack.c.l.b16 %v6069
        %v6925 = vunpack.c.h.b16 %v6069
        %v6926 = vunpack.c.l.b16 %v6070
        %v6927 = vunpack.c.h.b16 %v6070
        %v6928 = vunpack.c.l.b16 %v6071
        %v6929 = vunpack.c.h.b16 %v6071
        %v6930 = vunpack.c.l.b16 %v6072
        %v6931 = vunpack.c.h.b16 %v6072
        %v6932 = vunpack.c.l.b16 %v6073
        %v6933 = vunpack.c.h.b16 %v6073
        %v6934 = vunpack.c.l.b16 %v6074
        %v6935 = vunpack.c.h.b16 %v6074
        %v6936 = vunpack.c.l.b16 %v6075
        %v6937 = vunpack.c.h.b16 %v6075
        %v6938 = vunpack.c.l.b16 %v6076
        %v6939 = vunpack.c.h.b16 %v6076
        %v6940 = vunpack.c.l.b16 %v6077
        %v6941 = vunpack.c.h.b16 %v6077
        %v6942 = vunpack.c.l.b16 %v6078
        %v6943 = vunpack.c.h.b16 %v6078
        %v6944 = vunpack.c.l.b16 %v6079
        %v6945 = vunpack.c.h.b16 %v6079
        %v6946 = vunpack.c.l.b16 %v6080
        %v6947 = vunpack.c.h.b16 %v6080
        %v6948 = vunpack.c.l.b16 %v6081
        %v6949 = vunpack.c.h.b16 %v6081
        %v6950 = vunpack.c.l.b16 %v6082
        %v6951 = vunpack.c.h.b16 %v6082
        %v6952 = vunpack.c.l.b16 %v6083
        %v6953 = vunpack.c.h.b16 %v6083
        %v6954 = vunpack.c.l.b16 %v6084
        %v6955 = vunpack.c.h.b16 %v6084
        %v6956 = vunpack.c.l.b16 %v6085
        %v6957 = vunpack.c.h.b16 %v6085
        %v6958 = vunpack.c.l.b16 %v6086
        %v6959 = vunpack.c.h.b16 %v6086
        %v6960 = vunpack.c.l.b16 %v6087
        %v6961 = vunpack.c.h.b16 %v6087
        %v6962 = vunpack.c.l.b16 %v6088
        %v6963 = vunpack.c.h.b16 %v6088
        %v6964 = vunpack.c.l.b16 %v6089
        %v6965 = vunpack.c.h.b16 %v6089
        %v6966 = vunpack.c.l.b16 %v6090
        %v6967 = vunpack.c.h.b16 %v6090
        %v6968 = vunpack.c.l.b16 %v6091
        %v6969 = vunpack.c.h.b16 %v6091
        %v6970 = vunpack.c.l.b16 %v6092
        %v6971 = vunpack.c.h.b16 %v6092
        %v6972 = vunpack.c.l.b16 %v6093
        %v6973 = vunpack.c.h.b16 %v6093
        %v6974 = vunpack.c.l.b16 %v6094
        %v6975 = vunpack.c.h.b16 %v6094
        %v6976 = vunpack.c.l.b16 %v6095
        %v6977 = vunpack.c.h.b16 %v6095
        %v6978 = vunpack.c.l.b16 %v6096
        %v6979 = vunpack.c.h.b16 %v6096
        %v6980 = vunpack.c.l.b16 %v6097
        %v6981 = vunpack.c.h.b16 %v6097
        %v6982 = vunpack.c.l.b16 %v6098
        %v6983 = vunpack.c.h.b16 %v6098
        %v6984 = vunpack.c.l.b16 %v6099
        %v6985 = vunpack.c.h.b16 %v6099
        %v6986 = vunpack.c.l.b16 %v6100
        %v6987 = vunpack.c.h.b16 %v6100
        %v6988 = vunpack.c.l.b16 %v6101
        %v6989 = vunpack.c.h.b16 %v6101
        %v6990 = vunpack.c.l.b16 %v6102
        %v6991 = vunpack.c.h.b16 %v6102
        %v6992 = vunpack.c.l.b16 %v6103
        %v6993 = vunpack.c.h.b16 %v6103
        %v6994 = vunpack.c.l.b16 %v6104
        %v6995 = vunpack.c.h.b16 %v6104
        %v6996 = vunpack.c.l.b16 %v6105
        %v6997 = vunpack.c.h.b16 %v6105
        %v6998 = vpack.c.b16 %v6434, %v6422
        %v6999 = vpack.c.b16 %v6435, %v6423
        %v7000 = vpack.c.b16 %v6436, %v6424
        %v7001 = vpack.c.b16 %v6437, %v6425
        %v7002 = vpack.c.b16 %v6438, %v6426
        %v7003 = vpack.c.b16 %v6439, %v6427
        %v7004 = vpack.c.b16 %v6440, %v6428
        %v7005 = vpack.c.b16 %v6441, %v6429
        %v7006 = vpack.c.b16 %v6442, %v6430
        %v7007 = vpack.c.b16 %v6443, %v6431
        %v7008 = vpack.c.b16 %v6444, %v6432
        %v7009 = vpack.c.b16 %v6445, %v6433
        %v7010 = vpack.c.b16 %v6458, %v6446
        %v7011 = vpack.c.b16 %v6459, %v6447
        %v7012 = vpack.c.b16 %v6460, %v6448
        %v7013 = vpack.c.b16 %v6461, %v6449
        %v7014 = vpack.c.b16 %v6462, %v6450
        %v7015 = vpack.c.b16 %v6463, %v6451
        %v7016 = vpack.c.b16 %v6464, %v6452
        %v7017 = vpack.c.b16 %v6465, %v6453
        %v7018 = vpack.c.b16 %v6466, %v6454
        %v7019 = vpack.c.b16 %v6467, %v6455
        %v7020 = vpack.c.b16 %v6468, %v6456
        %v7021 = vpack.c.b16 %v6469, %v6457
        %v7022 = vpack.c.b16 %v6482, %v6470
        %v7023 = vpack.c.b16 %v6483, %v6471
        %v7024 = vpack.c.b16 %v6484, %v6472
        %v7025 = vpack.c.b16 %v6485, %v6473
        %v7026 = vpack.c.b16 %v6486, %v6474
        %v7027 = vpack.c.b16 %v6487, %v6475
        %v7028 = vpack.c.b16 %v6488, %v6476
        %v7029 = vpack.c.b16 %v6489, %v6477
        %v7030 = vpack.c.b16 %v6490, %v6478
        %v7031 = vpack.c.b16 %v6491, %v6479
        %v7032 = vpack.c.b16 %v6492, %v6480
        %v7033 = vpack.c.b16 %v6493, %v6481
        %v7034 = vpack.c.b16 %v6506, %v6494
        %v7035 = vpack.c.b16 %v6507, %v6495
        %v7036 = vpack.c.b16 %v6508, %v6496
        %v7037 = vpack.c.b16 %v6509, %v6497
        %v7038 = vpack.c.b16 %v6510, %v6498
        %v7039 = vpack.c.b16 %v6511, %v6499
        %v7040 = vpack.c.b16 %v6512, %v6500
        %v7041 = vpack.c.b16 %v6513, %v6501
        %v7042 = vpack.c.b16 %v6514, %v6502
        %v7043 = vpack.c.b16 %v6515, %v6503
        %v7044 = vpack.c.b16 %v6516, %v6504
        %v7045 = vpack.c.b16 %v6517, %v6505
        %v7046 = vpack.c.b16 %v6530, %v6518
        %v7047 = vpack.c.b16 %v6531, %v6519
        %v7048 = vpack.c.b16 %v6532, %v6520
        %v7049 = vpack.c.b16 %v6533, %v6521
        %v7050 = vpack.c.b16 %v6534, %v6522
        %v7051 = vpack.c.b16 %v6535, %v6523
        %v7052 = vpack.c.b16 %v6536, %v6524
        %v7053 = vpack.c.b16 %v6537, %v6525
        %v7054 = vpack.c.b16 %v6538, %v6526
        %v7055 = vpack.c.b16 %v6539, %v6527
        %v7056 = vpack.c.b16 %v6540, %v6528
        %v7057 = vpack.c.b16 %v6541, %v6529
        %v7058 = vpack.c.b16 %v6554, %v6542
        %v7059 = vpack.c.b16 %v6555, %v6543
        %v7060 = vpack.c.b16 %v6556, %v6544
        %v7061 = vpack.c.b16 %v6557, %v6545
        %v7062 = vpack.c.b16 %v6558, %v6546
        %v7063 = vpack.c.b16 %v6559, %v6547
        %v7064 = vpack.c.b16 %v6560, %v6548
        %v7065 = vpack.c.b16 %v6561, %v6549
        %v7066 = vpack.c.b16 %v6562, %v6550
        %v7067 = vpack.c.b16 %v6563, %v6551
        %v7068 = vpack.c.b16 %v6564, %v6552
        %v7069 = vpack.c.b16 %v6565, %v6553
        %v7070 = vpack.c.b16 %v6578, %v6566
        %v7071 = vpack.c.b16 %v6579, %v6567
        %v7072 = vpack.c.b16 %v6580, %v6568
        %v7073 = vpack.c.b16 %v6581, %v6569
        %v7074 = vpack.c.b16 %v6582, %v6570
        %v7075 = vpack.c.b16 %v6583, %v6571
        %v7076 = vpack.c.b16 %v6584, %v6572
        %v7077 = vpack.c.b16 %v6585, %v6573
        %v7078 = vpack.c.b16 %v6586, %v6574
        %v7079 = vpack.c.b16 %v6587, %v6575
        %v7080 = vpack.c.b16 %v6588, %v6576
        %v7081 = vpack.c.b16 %v6589, %v6577
        %v7082 = vpack.c.b16 %v6602, %v6590
        %v7083 = vpack.c.b16 %v6603, %v6591
        %v7084 = vpack.c.b16 %v6604, %v6592
        %v7085 = vpack.c.b16 %v6605, %v6593
        %v7086 = vpack.c.b16 %v6606, %v6594
        %v7087 = vpack.c.b16 %v6607, %v6595
        %v7088 = vpack.c.b16 %v6608, %v6596
        %v7089 = vpack.c.b16 %v6609, %v6597
        %v7090 = vpack.c.b16 %v6610, %v6598
        %v7091 = vpack.c.b16 %v6611, %v6599
        %v7092 = vpack.c.b16 %v6612, %v6600
        %v7093 = vpack.c.b16 %v6613, %v6601
        %v7094 = vpack.c.b16 %v6626, %v6614
        %v7095 = vpack.c.b16 %v6627, %v6615
        %v7096 = vpack.c.b16 %v6628, %v6616
        %v7097 = vpack.c.b16 %v6629, %v6617
        %v7098 = vpack.c.b16 %v6630, %v6618
        %v7099 = vpack.c.b16 %v6631, %v6619
        %v7100 = vpack.c.b16 %v6632, %v6620
        %v7101 = vpack.c.b16 %v6633, %v6621
        %v7102 = vpack.c.b16 %v6634, %v6622
        %v7103 = vpack.c.b16 %v6635, %v6623
        %v7104 = vpack.c.b16 %v6636, %v6624
        %v7105 = vpack.c.b16 %v6637, %v6625
        %v7106 = vpack.c.b16 %v6650, %v6638
        %v7107 = vpack.c.b16 %v6651, %v6639
        %v7108 = vpack.c.b16 %v6652, %v6640
        %v7109 = vpack.c.b16 %v6653, %v6641
        %v7110 = vpack.c.b16 %v6654, %v6642
        %v7111 = vpack.c.b16 %v6655, %v6643
        %v7112 = vpack.c.b16 %v6656, %v6644
        %v7113 = vpack.c.b16 %v6657, %v6645
        %v7114 = vpack.c.b16 %v6658, %v6646
        %v7115 = vpack.c.b16 %v6659, %v6647
        %v7116 = vpack.c.b16 %v6660, %v6648
        %v7117 = vpack.c.b16 %v6661, %v6649
        %v7118 = vpack.c.b16 %v6674, %v6662
        %v7119 = vpack.c.b16 %v6675, %v6663
        %v7120 = vpack.c.b16 %v6676, %v6664
        %v7121 = vpack.c.b16 %v6677, %v6665
        %v7122 = vpack.c.b16 %v6678, %v6666
        %v7123 = vpack.c.b16 %v6679, %v6667
        %v7124 = vpack.c.b16 %v6680, %v6668
        %v7125 = vpack.c.b16 %v6681, %v6669
        %v7126 = vpack.c.b16 %v6682, %v6670
        %v7127 = vpack.c.b16 %v6683, %v6671
        %v7128 = vpack.c.b16 %v6684, %v6672
        %v7129 = vpack.c.b16 %v6685, %v6673
        %v7130 = vpack.c.b16 %v6698, %v6686
        %v7131 = vpack.c.b16 %v6699, %v6687
        %v7132 = vpack.c.b16 %v6700, %v6688
        %v7133 = vpack.c.b16 %v6701, %v6689
        %v7134 = vpack.c.b16 %v6702, %v6690
        %v7135 = vpack.c.b16 %v6703, %v6691
        %v7136 = vpack.c.b16 %v6704, %v6692
        %v7137 = vpack.c.b16 %v6705, %v6693
        %v7138 = vpack.c.b16 %v6706, %v6694
        %v7139 = vpack.c.b16 %v6707, %v6695
        %v7140 = vpack.c.b16 %v6708, %v6696
        %v7141 = vpack.c.b16 %v6709, %v6697
        %v7142 = vpack.c.b16 %v6722, %v6710
        %v7143 = vpack.c.b16 %v6723, %v6711
        %v7144 = vpack.c.b16 %v6724, %v6712
        %v7145 = vpack.c.b16 %v6725, %v6713
        %v7146 = vpack.c.b16 %v6726, %v6714
        %v7147 = vpack.c.b16 %v6727, %v6715
        %v7148 = vpack.c.b16 %v6728, %v6716
        %v7149 = vpack.c.b16 %v6729, %v6717
        %v7150 = vpack.c.b16 %v6730, %v6718
        %v7151 = vpack.c.b16 %v6731, %v6719
        %v7152 = vpack.c.b16 %v6732, %v6720
        %v7153 = vpack.c.b16 %v6733, %v6721
        %v7154 = vpack.c.b16 %v6746, %v6734
        %v7155 = vpack.c.b16 %v6747, %v6735
        %v7156 = vpack.c.b16 %v6748, %v6736
        %v7157 = vpack.c.b16 %v6749, %v6737
        %v7158 = vpack.c.b16 %v6750, %v6738
        %v7159 = vpack.c.b16 %v6751, %v6739
        %v7160 = vpack.c.b16 %v6752, %v6740
        %v7161 = vpack.c.b16 %v6753, %v6741
        %v7162 = vpack.c.b16 %v6754, %v6742
        %v7163 = vpack.c.b16 %v6755, %v6743
        %v7164 = vpack.c.b16 %v6756, %v6744
        %v7165 = vpack.c.b16 %v6757, %v6745
        %v7166 = vpack.c.b16 %v6770, %v6758
        %v7167 = vpack.c.b16 %v6771, %v6759
        %v7168 = vpack.c.b16 %v6772, %v6760
        %v7169 = vpack.c.b16 %v6773, %v6761
        %v7170 = vpack.c.b16 %v6774, %v6762
        %v7171 = vpack.c.b16 %v6775, %v6763
        %v7172 = vpack.c.b16 %v6776, %v6764
        %v7173 = vpack.c.b16 %v6777, %v6765
        %v7174 = vpack.c.b16 %v6778, %v6766
        %v7175 = vpack.c.b16 %v6779, %v6767
        %v7176 = vpack.c.b16 %v6780, %v6768
        %v7177 = vpack.c.b16 %v6781, %v6769
        %v7178 = vpack.c.b16 %v6794, %v6782
        %v7179 = vpack.c.b16 %v6795, %v6783
        %v7180 = vpack.c.b16 %v6796, %v6784
        %v7181 = vpack.c.b16 %v6797, %v6785
        %v7182 = vpack.c.b16 %v6798, %v6786
        %v7183 = vpack.c.b16 %v6799, %v6787
        %v7184 = vpack.c.b16 %v6800, %v6788
        %v7185 = vpack.c.b16 %v6801, %v6789
        %v7186 = vpack.c.b16 %v6802, %v6790
        %v7187 = vpack.c.b16 %v6803, %v6791
        %v7188 = vpack.c.b16 %v6804, %v6792
        %v7189 = vpack.c.b16 %v6805, %v6793
        %v7190 = vpack.c.b16 %v6818, %v6806
        %v7191 = vpack.c.b16 %v6819, %v6807
        %v7192 = vpack.c.b16 %v6820, %v6808
        %v7193 = vpack.c.b16 %v6821, %v6809
        %v7194 = vpack.c.b16 %v6822, %v6810
        %v7195 = vpack.c.b16 %v6823, %v6811
        %v7196 = vpack.c.b16 %v6824, %v6812
        %v7197 = vpack.c.b16 %v6825, %v6813
        %v7198 = vpack.c.b16 %v6826, %v6814
        %v7199 = vpack.c.b16 %v6827, %v6815
        %v7200 = vpack.c.b16 %v6828, %v6816
        %v7201 = vpack.c.b16 %v6829, %v6817
        %v7202 = vpack.c.b16 %v6842, %v6830
        %v7203 = vpack.c.b16 %v6843, %v6831
        %v7204 = vpack.c.b16 %v6844, %v6832
        %v7205 = vpack.c.b16 %v6845, %v6833
        %v7206 = vpack.c.b16 %v6846, %v6834
        %v7207 = vpack.c.b16 %v6847, %v6835
        %v7208 = vpack.c.b16 %v6848, %v6836
        %v7209 = vpack.c.b16 %v6849, %v6837
        %v7210 = vpack.c.b16 %v6850, %v6838
        %v7211 = vpack.c.b16 %v6851, %v6839
        %v7212 = vpack.c.b16 %v6852, %v6840
        %v7213 = vpack.c.b16 %v6853, %v6841
        %v7214 = vpack.c.b16 %v6866, %v6854
        %v7215 = vpack.c.b16 %v6867, %v6855
        %v7216 = vpack.c.b16 %v6868, %v6856
        %v7217 = vpack.c.b16 %v6869, %v6857
        %v7218 = vpack.c.b16 %v6870, %v6858
        %v7219 = vpack.c.b16 %v6871, %v6859
        %v7220 = vpack.c.b16 %v6872, %v6860
        %v7221 = vpack.c.b16 %v6873, %v6861
        %v7222 = vpack.c.b16 %v6874, %v6862
        %v7223 = vpack.c.b16 %v6875, %v6863
        %v7224 = vpack.c.b16 %v6876, %v6864
        %v7225 = vpack.c.b16 %v6877, %v6865
        %v7226 = vpack.c.b16 %v6890, %v6878
        %v7227 = vpack.c.b16 %v6891, %v6879
        %v7228 = vpack.c.b16 %v6892, %v6880
        %v7229 = vpack.c.b16 %v6893, %v6881
        %v7230 = vpack.c.b16 %v6894, %v6882
        %v7231 = vpack.c.b16 %v6895, %v6883
        %v7232 = vpack.c.b16 %v6896, %v6884
        %v7233 = vpack.c.b16 %v6897, %v6885
        %v7234 = vpack.c.b16 %v6898, %v6886
        %v7235 = vpack.c.b16 %v6899, %v6887
        %v7236 = vpack.c.b16 %v6900, %v6888
        %v7237 = vpack.c.b16 %v6901, %v6889
        %v7238 = vpack.c.b16 %v6914, %v6902
        %v7239 = vpack.c.b16 %v6915, %v6903
        %v7240 = vpack.c.b16 %v6916, %v6904
        %v7241 = vpack.c.b16 %v6917, %v6905
        %v7242 = vpack.c.b16 %v6918, %v6906
        %v7243 = vpack.c.b16 %v6919, %v6907
        %v7244 = vpack.c.b16 %v6920, %v6908
        %v7245 = vpack.c.b16 %v6921, %v6909
        %v7246 = vpack.c.b16 %v6922, %v6910
        %v7247 = vpack.c.b16 %v6923, %v6911
        %v7248 = vpack.c.b16 %v6924, %v6912
        %v7249 = vpack.c.b16 %v6925, %v6913
        %v7250 = vpack.c.b16 %v6938, %v6926
        %v7251 = vpack.c.b16 %v6939, %v6927
        %v7252 = vpack.c.b16 %v6940, %v6928
        %v7253 = vpack.c.b16 %v6941, %v6929
        %v7254 = vpack.c.b16 %v6942, %v6930
        %v7255 = vpack.c.b16 %v6943, %v6931
        %v7256 = vpack.c.b16 %v6944, %v6932
        %v7257 = vpack.c.b16 %v6945, %v6933
        %v7258 = vpack.c.b16 %v6946, %v6934
        %v7259 = vpack.c.b16 %v6947, %v6935
        %v7260 = vpack.c.b16 %v6948, %v6936
        %v7261 = vpack.c.b16 %v6949, %v6937
        %v7262 = vpack.c.b16 %v6962, %v6950
        %v7263 = vpack.c.b16 %v6963, %v6951
        %v7264 = vpack.c.b16 %v6964, %v6952
        %v7265 = vpack.c.b16 %v6965, %v6953
        %v7266 = vpack.c.b16 %v6966, %v6954
        %v7267 = vpack.c.b16 %v6967, %v6955
        %v7268 = vpack.c.b16 %v6968, %v6956
        %v7269 = vpack.c.b16 %v6969, %v6957
        %v7270 = vpack.c.b16 %v6970, %v6958
        %v7271 = vpack.c.b16 %v6971, %v6959
        %v7272 = vpack.c.b16 %v6972, %v6960
        %v7273 = vpack.c.b16 %v6973, %v6961
        %v7274 = vpack.c.b16 %v6986, %v6974
        %v7275 = vpack.c.b16 %v6987, %v6975
        %v7276 = vpack.c.b16 %v6988, %v6976
        %v7277 = vpack.c.b16 %v6989, %v6977
        %v7278 = vpack.c.b16 %v6990, %v6978
        %v7279 = vpack.c.b16 %v6991, %v6979
        %v7280 = vpack.c.b16 %v6992, %v6980
        %v7281 = vpack.c.b16 %v6993, %v6981
        %v7282 = vpack.c.b16 %v6994, %v6982
        %v7283 = vpack.c.b16 %v6995, %v6983
        %v7284 = vpack.c.b16 %v6996, %v6984
        %v7285 = vpack.c.b16 %v6997, %v6985
        %7574 = vmatpush.bf16.msra.mxu0 %v7082
        %7575 = vmatpush.bf16.msra.mxu0 %v7070
        %7576 = vmatpush.bf16.msra.mxu0 %v7058
        %7577 = vmatpush.bf16.msra.mxu0 %v7046
        %7578 = vmatpush.bf16.msra.mxu0 %v7034
        %7579 = vmatpush.bf16.msra.mxu0 %v7022
        %7580 = vmatpush.bf16.msra.mxu0 %v7010
        %7581 = vmatpush.bf16.msra.mxu0 %v6998
        %7582 = vmatmul.bf16.gmra.mxu0 %v5806
        %v7583 = vpop.f32.mrf.mxu0
        %v7584 = vadd.f32 %v6110, %v7583
        %v7585 = vpop.f32.mrf.mxu0
        %v7586 = vadd.f32 %v6110, %v7585
        %7587 = vmatmul.bf16.gmra.mxu0 %v5809
        %v7588 = vpop.f32.mrf.mxu0
        %v7589 = vadd.f32 %v6110, %v7588
        %v7590 = vpop.f32.mrf.mxu0
        %v7591 = vadd.f32 %v6110, %v7590
        %7592 = vmatmul.bf16.gmra.mxu0 %v5812
        %v7593 = vpop.f32.mrf.mxu0
        %v7594 = vadd.f32 %v6110, %v7593
        %v7595 = vpop.f32.mrf.mxu0
        %v7596 = vadd.f32 %v6110, %v7595
        %7597 = vmatmul.bf16.gmra.mxu0 %v5815
        %v7598 = vpop.f32.mrf.mxu0
        %v7599 = vadd.f32 %v6110, %v7598
        %v7600 = vpop.f32.mrf.mxu0
        %v7601 = vadd.f32 %v6110, %v7600
        %7602 = vdwg.mxu0
        %7603 = vmatpush.bf16.msra.mxu0 %v7178
        %7604 = vmatpush.bf16.msra.mxu0 %v7166
        %7605 = vmatpush.bf16.msra.mxu0 %v7154
        %7606 = vmatpush.bf16.msra.mxu0 %v7142
        %7607 = vmatpush.bf16.msra.mxu0 %v7130
        %7608 = vmatpush.bf16.msra.mxu0 %v7118
        %7609 = vmatpush.bf16.msra.mxu0 %v7106
        %7610 = vmatpush.bf16.msra.mxu0 %v7094
        %7611 = vmatmul.bf16.gmra.mxu0 %v5807
        %v7612 = vpop.f32.mrf.mxu0
        %v7613 = vadd.f32 %v7584, %v7612
        %v7614 = vpop.f32.mrf.mxu0
        %v7615 = vadd.f32 %v7586, %v7614
        %7616 = vmatmul.bf16.gmra.mxu0 %v5810
        %v7617 = vpop.f32.mrf.mxu0
        %v7618 = vadd.f32 %v7589, %v7617
        %v7619 = vpop.f32.mrf.mxu0
        %v7620 = vadd.f32 %v7591, %v7619
        %7621 = vmatmul.bf16.gmra.mxu0 %v5813
        %v7622 = vpop.f32.mrf.mxu0
        %v7623 = vadd.f32 %v7594, %v7622
        %v7624 = vpop.f32.mrf.mxu0
        %v7625 = vadd.f32 %v7596, %v7624
        %7626 = vmatmul.bf16.gmra.mxu0 %v5816
        %v7627 = vpop.f32.mrf.mxu0
        %v7628 = vadd.f32 %v7599, %v7627
        %v7629 = vpop.f32.mrf.mxu0
        %v7630 = vadd.f32 %v7601, %v7629
        %7631 = vdwg.mxu0
        %7632 = vmatpush.bf16.msra.mxu0 %v7274
        %7633 = vmatpush.bf16.msra.mxu0 %v7262
        %7634 = vmatpush.bf16.msra.mxu0 %v7250
        %7635 = vmatpush.bf16.msra.mxu0 %v7238
        %7636 = vmatpush.bf16.msra.mxu0 %v7226
        %7637 = vmatpush.bf16.msra.mxu0 %v7214
        %7638 = vmatpush.bf16.msra.mxu0 %v7202
        %7639 = vmatpush.bf16.msra.mxu0 %v7190
        %7640 = vmatmul.bf16.gmra.mxu0 %v5808
        %v7641 = vpop.f32.mrf.mxu0
        %v7642 = vadd.f32 %v7613, %v7641
        %v7643 = vpop.f32.mrf.mxu0
        %v7644 = vadd.f32 %v7615, %v7643
        %7645 = vmatmul.bf16.gmra.mxu0 %v5811
        %v7646 = vpop.f32.mrf.mxu0
        %v7647 = vadd.f32 %v7618, %v7646
        %v7648 = vpop.f32.mrf.mxu0
        %v7649 = vadd.f32 %v7620, %v7648
        %7650 = vmatmul.bf16.gmra.mxu0 %v5814
        %v7651 = vpop.f32.mrf.mxu0
        %v7652 = vadd.f32 %v7623, %v7651
        %v7653 = vpop.f32.mrf.mxu0
        %v7654 = vadd.f32 %v7625, %v7653
        %7655 = vmatmul.bf16.gmra.mxu0 %v5817
        %v7656 = vpop.f32.mrf.mxu0
        %v7657 = vadd.f32 %v7628, %v7656
        %v7658 = vpop.f32.mrf.mxu0
        %v7659 = vadd.f32 %v7630, %v7658
        %7660 = vdwg.mxu0
        %7661 = vmatpush.bf16.msra.mxu0 %v7083
        %7662 = vmatpush.bf16.msra.mxu0 %v7071
        %7663 = vmatpush.bf16.msra.mxu0 %v7059
        %7664 = vmatpush.bf16.msra.mxu0 %v7047
        %7665 = vmatpush.bf16.msra.mxu0 %v7035
        %7666 = vmatpush.bf16.msra.mxu0 %v7023
        %7667 = vmatpush.bf16.msra.mxu0 %v7011
        %7668 = vmatpush.bf16.msra.mxu0 %v6999
        %7669 = vmatmul.bf16.gmra.mxu0 %v5806
        %v7670 = vpop.f32.mrf.mxu0
        %v7671 = vadd.f32 %v6111, %v7670
        %v7672 = vpop.f32.mrf.mxu0
        %v7673 = vadd.f32 %v6111, %v7672
        %7674 = vmatmul.bf16.gmra.mxu0 %v5809
        %v7675 = vpop.f32.mrf.mxu0
        %v7676 = vadd.f32 %v6111, %v7675
        %v7677 = vpop.f32.mrf.mxu0
        %v7678 = vadd.f32 %v6111, %v7677
        %7679 = vmatmul.bf16.gmra.mxu0 %v5812
        %v7680 = vpop.f32.mrf.mxu0
        %v7681 = vadd.f32 %v6111, %v7680
        %v7682 = vpop.f32.mrf.mxu0
        %v7683 = vadd.f32 %v6111, %v7682
        %7684 = vmatmul.bf16.gmra.mxu0 %v5815
        %v7685 = vpop.f32.mrf.mxu0
        %v7686 = vadd.f32 %v6111, %v7685
        %v7687 = vpop.f32.mrf.mxu0
        %v7688 = vadd.f32 %v6111, %v7687
        %7689 = vdwg.mxu0
        %7690 = vmatpush.bf16.msra.mxu0 %v7179
        %7691 = vmatpush.bf16.msra.mxu0 %v7167
        %7692 = vmatpush.bf16.msra.mxu0 %v7155
        %7693 = vmatpush.bf16.msra.mxu0 %v7143
        %7694 = vmatpush.bf16.msra.mxu0 %v7131
        %7695 = vmatpush.bf16.msra.mxu0 %v7119
        %7696 = vmatpush.bf16.msra.mxu0 %v7107
        %7697 = vmatpush.bf16.msra.mxu0 %v7095
        %7698 = vmatmul.bf16.gmra.mxu0 %v5807
        %v7699 = vpop.f32.mrf.mxu0
        %v7700 = vadd.f32 %v7671, %v7699
        %v7701 = vpop.f32.mrf.mxu0
        %v7702 = vadd.f32 %v7673, %v7701
        %7703 = vmatmul.bf16.gmra.mxu0 %v5810
        %v7704 = vpop.f32.mrf.mxu0
        %v7705 = vadd.f32 %v7676, %v7704
        %v7706 = vpop.f32.mrf.mxu0
        %v7707 = vadd.f32 %v7678, %v7706
        %7708 = vmatmul.bf16.gmra.mxu0 %v5813
        %v7709 = vpop.f32.mrf.mxu0
        %v7710 = vadd.f32 %v7681, %v7709
        %v7711 = vpop.f32.mrf.mxu0
        %v7712 = vadd.f32 %v7683, %v7711
        %7713 = vmatmul.bf16.gmra.mxu0 %v5816
        %v7714 = vpop.f32.mrf.mxu0
        %v7715 = vadd.f32 %v7686, %v7714
        %v7716 = vpop.f32.mrf.mxu0
        %v7717 = vadd.f32 %v7688, %v7716
        %7718 = vdwg.mxu0
        %7719 = vmatpush.bf16.msra.mxu0 %v7275
        %7720 = vmatpush.bf16.msra.mxu0 %v7263
        %7721 = vmatpush.bf16.msra.mxu0 %v7251
        %7722 = vmatpush.bf16.msra.mxu0 %v7239
        %7723 = vmatpush.bf16.msra.mxu0 %v7227
        %7724 = vmatpush.bf16.msra.mxu0 %v7215
        %7725 = vmatpush.bf16.msra.mxu0 %v7203
        %7726 = vmatpush.bf16.msra.mxu0 %v7191
        %7727 = vmatmul.bf16.gmra.mxu0 %v5808
        %v7728 = vpop.f32.mrf.mxu0
        %v7729 = vadd.f32 %v7700, %v7728
        %v7730 = vpop.f32.mrf.mxu0
        %v7731 = vadd.f32 %v7702, %v7730
        %7732 = vmatmul.bf16.gmra.mxu0 %v5811
        %v7733 = vpop.f32.mrf.mxu0
        %v7734 = vadd.f32 %v7705, %v7733
        %v7735 = vpop.f32.mrf.mxu0
        %v7736 = vadd.f32 %v7707, %v7735
        %7737 = vmatmul.bf16.gmra.mxu0 %v5814
        %v7738 = vpop.f32.mrf.mxu0
        %v7739 = vadd.f32 %v7710, %v7738
        %v7740 = vpop.f32.mrf.mxu0
        %v7741 = vadd.f32 %v7712, %v7740
        %7742 = vmatmul.bf16.gmra.mxu0 %v5817
        %v7743 = vpop.f32.mrf.mxu0
        %v7744 = vadd.f32 %v7715, %v7743
        %v7745 = vpop.f32.mrf.mxu0
        %v7746 = vadd.f32 %v7717, %v7745
        %7747 = vdwg.mxu0
        %7748 = vmatpush.bf16.msra.mxu0 %v7084
        %7749 = vmatpush.bf16.msra.mxu0 %v7072
        %7750 = vmatpush.bf16.msra.mxu0 %v7060
        %7751 = vmatpush.bf16.msra.mxu0 %v7048
        %7752 = vmatpush.bf16.msra.mxu0 %v7036
        %7753 = vmatpush.bf16.msra.mxu0 %v7024
        %7754 = vmatpush.bf16.msra.mxu0 %v7012
        %7755 = vmatpush.bf16.msra.mxu0 %v7000
        %7756 = vmatmul.bf16.gmra.mxu0 %v5806
        %v7757 = vpop.f32.mrf.mxu0
        %v7758 = vadd.f32 %v6112, %v7757
        %v7759 = vpop.f32.mrf.mxu0
        %v7760 = vadd.f32 %v6112, %v7759
        %7761 = vmatmul.bf16.gmra.mxu0 %v5809
        %v7762 = vpop.f32.mrf.mxu0
        %v7763 = vadd.f32 %v6112, %v7762
        %v7764 = vpop.f32.mrf.mxu0
        %v7765 = vadd.f32 %v6112, %v7764
        %7766 = vmatmul.bf16.gmra.mxu0 %v5812
        %v7767 = vpop.f32.mrf.mxu0
        %v7768 = vadd.f32 %v6112, %v7767
        %v7769 = vpop.f32.mrf.mxu0
        %v7770 = vadd.f32 %v6112, %v7769
        %7771 = vmatmul.bf16.gmra.mxu0 %v5815
        %v7772 = vpop.f32.mrf.mxu0
        %v7773 = vadd.f32 %v6112, %v7772
        %v7774 = vpop.f32.mrf.mxu0
        %v7775 = vadd.f32 %v6112, %v7774
        %7776 = vdwg.mxu0
        %7777 = vmatpush.bf16.msra.mxu0 %v7180
        %7778 = vmatpush.bf16.msra.mxu0 %v7168
        %7779 = vmatpush.bf16.msra.mxu0 %v7156
        %7780 = vmatpush.bf16.msra.mxu0 %v7144
        %7781 = vmatpush.bf16.msra.mxu0 %v7132
        %7782 = vmatpush.bf16.msra.mxu0 %v7120
        %7783 = vmatpush.bf16.msra.mxu0 %v7108
        %7784 = vmatpush.bf16.msra.mxu0 %v7096
        %7785 = vmatmul.bf16.gmra.mxu0 %v5807
        %v7786 = vpop.f32.mrf.mxu0
        %v7787 = vadd.f32 %v7758, %v7786
        %v7788 = vpop.f32.mrf.mxu0
        %v7789 = vadd.f32 %v7760, %v7788
        %7790 = vmatmul.bf16.gmra.mxu0 %v5810
        %v7791 = vpop.f32.mrf.mxu0
        %v7792 = vadd.f32 %v7763, %v7791
        %v7793 = vpop.f32.mrf.mxu0
        %v7794 = vadd.f32 %v7765, %v7793
        %7795 = vmatmul.bf16.gmra.mxu0 %v5813
        %v7796 = vpop.f32.mrf.mxu0
        %v7797 = vadd.f32 %v7768, %v7796
        %v7798 = vpop.f32.mrf.mxu0
        %v7799 = vadd.f32 %v7770, %v7798
        %7800 = vmatmul.bf16.gmra.mxu0 %v5816
        %v7801 = vpop.f32.mrf.mxu0
        %v7802 = vadd.f32 %v7773, %v7801
        %v7803 = vpop.f32.mrf.mxu0
        %v7804 = vadd.f32 %v7775, %v7803
        %7805 = vdwg.mxu0
        %7806 = vmatpush.bf16.msra.mxu0 %v7276
        %7807 = vmatpush.bf16.msra.mxu0 %v7264
        %7808 = vmatpush.bf16.msra.mxu0 %v7252
        %7809 = vmatpush.bf16.msra.mxu0 %v7240
        %7810 = vmatpush.bf16.msra.mxu0 %v7228
        %7811 = vmatpush.bf16.msra.mxu0 %v7216
        %7812 = vmatpush.bf16.msra.mxu0 %v7204
        %7813 = vmatpush.bf16.msra.mxu0 %v7192
        %7814 = vmatmul.bf16.gmra.mxu0 %v5808
        %v7815 = vpop.f32.mrf.mxu0
        %v7816 = vadd.f32 %v7787, %v7815
        %v7817 = vpop.f32.mrf.mxu0
        %v7818 = vadd.f32 %v7789, %v7817
        %7819 = vmatmul.bf16.gmra.mxu0 %v5811
        %v7820 = vpop.f32.mrf.mxu0
        %v7821 = vadd.f32 %v7792, %v7820
        %v7822 = vpop.f32.mrf.mxu0
        %v7823 = vadd.f32 %v7794, %v7822
        %7824 = vmatmul.bf16.gmra.mxu0 %v5814
        %v7825 = vpop.f32.mrf.mxu0
        %v7826 = vadd.f32 %v7797, %v7825
        %v7827 = vpop.f32.mrf.mxu0
        %v7828 = vadd.f32 %v7799, %v7827
        %7829 = vmatmul.bf16.gmra.mxu0 %v5817
        %v7830 = vpop.f32.mrf.mxu0
        %v7831 = vadd.f32 %v7802, %v7830
        %v7832 = vpop.f32.mrf.mxu0
        %v7833 = vadd.f32 %v7804, %v7832
        %7834 = vdwg.mxu0
        %7835 = vmatpush.bf16.msra.mxu0 %v7085
        %7836 = vmatpush.bf16.msra.mxu0 %v7073
        %7837 = vmatpush.bf16.msra.mxu0 %v7061
        %7838 = vmatpush.bf16.msra.mxu0 %v7049
        %7839 = vmatpush.bf16.msra.mxu0 %v7037
        %7840 = vmatpush.bf16.msra.mxu0 %v7025
        %7841 = vmatpush.bf16.msra.mxu0 %v7013
        %7842 = vmatpush.bf16.msra.mxu0 %v7001
        %7843 = vmatmul.bf16.gmra.mxu0 %v5806
        %v7844 = vpop.f32.mrf.mxu0
        %v7845 = vadd.f32 %v6113, %v7844
        %v7846 = vpop.f32.mrf.mxu0
        %v7847 = vadd.f32 %v6113, %v7846
        %7848 = vmatmul.bf16.gmra.mxu0 %v5809
        %v7849 = vpop.f32.mrf.mxu0
        %v7850 = vadd.f32 %v6113, %v7849
        %v7851 = vpop.f32.mrf.mxu0
        %v7852 = vadd.f32 %v6113, %v7851
        %7853 = vmatmul.bf16.gmra.mxu0 %v5812
        %v7854 = vpop.f32.mrf.mxu0
        %v7855 = vadd.f32 %v6113, %v7854
        %v7856 = vpop.f32.mrf.mxu0
        %v7857 = vadd.f32 %v6113, %v7856
        %7858 = vmatmul.bf16.gmra.mxu0 %v5815
        %v7859 = vpop.f32.mrf.mxu0
        %v7860 = vadd.f32 %v6113, %v7859
        %v7861 = vpop.f32.mrf.mxu0
        %v7862 = vadd.f32 %v6113, %v7861
        %7863 = vdwg.mxu0
        %7864 = vmatpush.bf16.msra.mxu0 %v7181
        %7865 = vmatpush.bf16.msra.mxu0 %v7169
        %7866 = vmatpush.bf16.msra.mxu0 %v7157
        %7867 = vmatpush.bf16.msra.mxu0 %v7145
        %7868 = vmatpush.bf16.msra.mxu0 %v7133
        %7869 = vmatpush.bf16.msra.mxu0 %v7121
        %7870 = vmatpush.bf16.msra.mxu0 %v7109
        %7871 = vmatpush.bf16.msra.mxu0 %v7097
        %7872 = vmatmul.bf16.gmra.mxu0 %v5807
        %v7873 = vpop.f32.mrf.mxu0
        %v7874 = vadd.f32 %v7845, %v7873
        %v7875 = vpop.f32.mrf.mxu0
        %v7876 = vadd.f32 %v7847, %v7875
        %7877 = vmatmul.bf16.gmra.mxu0 %v5810
        %v7878 = vpop.f32.mrf.mxu0
        %v7879 = vadd.f32 %v7850, %v7878
        %v7880 = vpop.f32.mrf.mxu0
        %v7881 = vadd.f32 %v7852, %v7880
        %7882 = vmatmul.bf16.gmra.mxu0 %v5813
        %v7883 = vpop.f32.mrf.mxu0
        %v7884 = vadd.f32 %v7855, %v7883
        %v7885 = vpop.f32.mrf.mxu0
        %v7886 = vadd.f32 %v7857, %v7885
        %7887 = vmatmul.bf16.gmra.mxu0 %v5816
        %v7888 = vpop.f32.mrf.mxu0
        %v7889 = vadd.f32 %v7860, %v7888
        %v7890 = vpop.f32.mrf.mxu0
        %v7891 = vadd.f32 %v7862, %v7890
        %7892 = vdwg.mxu0
        %7893 = vmatpush.bf16.msra.mxu0 %v7277
        %7894 = vmatpush.bf16.msra.mxu0 %v7265
        %7895 = vmatpush.bf16.msra.mxu0 %v7253
        %7896 = vmatpush.bf16.msra.mxu0 %v7241
        %7897 = vmatpush.bf16.msra.mxu0 %v7229
        %7898 = vmatpush.bf16.msra.mxu0 %v7217
        %7899 = vmatpush.bf16.msra.mxu0 %v7205
        %7900 = vmatpush.bf16.msra.mxu0 %v7193
        %7901 = vmatmul.bf16.gmra.mxu0 %v5808
        %v7902 = vpop.f32.mrf.mxu0
        %v7903 = vadd.f32 %v7874, %v7902
        %v7904 = vpop.f32.mrf.mxu0
        %v7905 = vadd.f32 %v7876, %v7904
        %7906 = vmatmul.bf16.gmra.mxu0 %v5811
        %v7907 = vpop.f32.mrf.mxu0
        %v7908 = vadd.f32 %v7879, %v7907
        %v7909 = vpop.f32.mrf.mxu0
        %v7910 = vadd.f32 %v7881, %v7909
        %7911 = vmatmul.bf16.gmra.mxu0 %v5814
        %v7912 = vpop.f32.mrf.mxu0
        %v7913 = vadd.f32 %v7884, %v7912
        %v7914 = vpop.f32.mrf.mxu0
        %v7915 = vadd.f32 %v7886, %v7914
        %7916 = vmatmul.bf16.gmra.mxu0 %v5817
        %v7917 = vpop.f32.mrf.mxu0
        %v7918 = vadd.f32 %v7889, %v7917
        %v7919 = vpop.f32.mrf.mxu0
        %v7920 = vadd.f32 %v7891, %v7919
        %7921 = vdwg.mxu0
        %7922 = vmatpush.bf16.msra.mxu0 %v7086
        %7923 = vmatpush.bf16.msra.mxu0 %v7074
        %7924 = vmatpush.bf16.msra.mxu0 %v7062
        %7925 = vmatpush.bf16.msra.mxu0 %v7050
        %7926 = vmatpush.bf16.msra.mxu0 %v7038
        %7927 = vmatpush.bf16.msra.mxu0 %v7026
        %7928 = vmatpush.bf16.msra.mxu0 %v7014
        %7929 = vmatpush.bf16.msra.mxu0 %v7002
        %7930 = vmatmul.bf16.gmra.mxu0 %v5806
        %v7931 = vpop.f32.mrf.mxu0
        %v7932 = vadd.f32 %v6114, %v7931
        %v7933 = vpop.f32.mrf.mxu0
        %v7934 = vadd.f32 %v6114, %v7933
        %7935 = vmatmul.bf16.gmra.mxu0 %v5809
        %v7936 = vpop.f32.mrf.mxu0
        %v7937 = vadd.f32 %v6114, %v7936
        %v7938 = vpop.f32.mrf.mxu0
        %v7939 = vadd.f32 %v6114, %v7938
        %7940 = vmatmul.bf16.gmra.mxu0 %v5812
        %v7941 = vpop.f32.mrf.mxu0
        %v7942 = vadd.f32 %v6114, %v7941
        %v7943 = vpop.f32.mrf.mxu0
        %v7944 = vadd.f32 %v6114, %v7943
        %7945 = vmatmul.bf16.gmra.mxu0 %v5815
        %v7946 = vpop.f32.mrf.mxu0
        %v7947 = vadd.f32 %v6114, %v7946
        %v7948 = vpop.f32.mrf.mxu0
        %v7949 = vadd.f32 %v6114, %v7948
        %7950 = vdwg.mxu0
        %7951 = vmatpush.bf16.msra.mxu0 %v7182
        %7952 = vmatpush.bf16.msra.mxu0 %v7170
        %7953 = vmatpush.bf16.msra.mxu0 %v7158
        %7954 = vmatpush.bf16.msra.mxu0 %v7146
        %7955 = vmatpush.bf16.msra.mxu0 %v7134
        %7956 = vmatpush.bf16.msra.mxu0 %v7122
        %7957 = vmatpush.bf16.msra.mxu0 %v7110
        %7958 = vmatpush.bf16.msra.mxu0 %v7098
        %7959 = vmatmul.bf16.gmra.mxu0 %v5807
        %v7960 = vpop.f32.mrf.mxu0
        %v7961 = vadd.f32 %v7932, %v7960
        %v7962 = vpop.f32.mrf.mxu0
        %v7963 = vadd.f32 %v7934, %v7962
        %7964 = vmatmul.bf16.gmra.mxu0 %v5810
        %v7965 = vpop.f32.mrf.mxu0
        %v7966 = vadd.f32 %v7937, %v7965
        %v7967 = vpop.f32.mrf.mxu0
        %v7968 = vadd.f32 %v7939, %v7967
        %7969 = vmatmul.bf16.gmra.mxu0 %v5813
        %v7970 = vpop.f32.mrf.mxu0
        %v7971 = vadd.f32 %v7942, %v7970
        %v7972 = vpop.f32.mrf.mxu0
        %v7973 = vadd.f32 %v7944, %v7972
        %7974 = vmatmul.bf16.gmra.mxu0 %v5816
        %v7975 = vpop.f32.mrf.mxu0
        %v7976 = vadd.f32 %v7947, %v7975
        %v7977 = vpop.f32.mrf.mxu0
        %v7978 = vadd.f32 %v7949, %v7977
        %7979 = vdwg.mxu0
        %7980 = vmatpush.bf16.msra.mxu0 %v7278
        %7981 = vmatpush.bf16.msra.mxu0 %v7266
        %7982 = vmatpush.bf16.msra.mxu0 %v7254
        %7983 = vmatpush.bf16.msra.mxu0 %v7242
        %7984 = vmatpush.bf16.msra.mxu0 %v7230
        %7985 = vmatpush.bf16.msra.mxu0 %v7218
        %7986 = vmatpush.bf16.msra.mxu0 %v7206
        %7987 = vmatpush.bf16.msra.mxu0 %v7194
        %7988 = vmatmul.bf16.gmra.mxu0 %v5808
        %v7989 = vpop.f32.mrf.mxu0
        %v7990 = vadd.f32 %v7961, %v7989
        %v7991 = vpop.f32.mrf.mxu0
        %v7992 = vadd.f32 %v7963, %v7991
        %7993 = vmatmul.bf16.gmra.mxu0 %v5811
        %v7994 = vpop.f32.mrf.mxu0
        %v7995 = vadd.f32 %v7966, %v7994
        %v7996 = vpop.f32.mrf.mxu0
        %v7997 = vadd.f32 %v7968, %v7996
        %7998 = vmatmul.bf16.gmra.mxu0 %v5814
        %v7999 = vpop.f32.mrf.mxu0
        %v8000 = vadd.f32 %v7971, %v7999
        %v8001 = vpop.f32.mrf.mxu0
        %v8002 = vadd.f32 %v7973, %v8001
        %8003 = vmatmul.bf16.gmra.mxu0 %v5817
        %v8004 = vpop.f32.mrf.mxu0
        %v8005 = vadd.f32 %v7976, %v8004
        %v8006 = vpop.f32.mrf.mxu0
        %v8007 = vadd.f32 %v7978, %v8006
        %8008 = vdwg.mxu0
        %8009 = vmatpush.bf16.msra.mxu0 %v7087
        %8010 = vmatpush.bf16.msra.mxu0 %v7075
        %8011 = vmatpush.bf16.msra.mxu0 %v7063
        %8012 = vmatpush.bf16.msra.mxu0 %v7051
        %8013 = vmatpush.bf16.msra.mxu0 %v7039
        %8014 = vmatpush.bf16.msra.mxu0 %v7027
        %8015 = vmatpush.bf16.msra.mxu0 %v7015
        %8016 = vmatpush.bf16.msra.mxu0 %v7003
        %8017 = vmatmul.bf16.gmra.mxu0 %v5806
        %v8018 = vpop.f32.mrf.mxu0
        %v8019 = vadd.f32 %v6115, %v8018
        %v8020 = vpop.f32.mrf.mxu0
        %v8021 = vadd.f32 %v6115, %v8020
        %8022 = vmatmul.bf16.gmra.mxu0 %v5809
        %v8023 = vpop.f32.mrf.mxu0
        %v8024 = vadd.f32 %v6115, %v8023
        %v8025 = vpop.f32.mrf.mxu0
        %v8026 = vadd.f32 %v6115, %v8025
        %8027 = vmatmul.bf16.gmra.mxu0 %v5812
        %v8028 = vpop.f32.mrf.mxu0
        %v8029 = vadd.f32 %v6115, %v8028
        %v8030 = vpop.f32.mrf.mxu0
        %v8031 = vadd.f32 %v6115, %v8030
        %8032 = vmatmul.bf16.gmra.mxu0 %v5815
        %v8033 = vpop.f32.mrf.mxu0
        %v8034 = vadd.f32 %v6115, %v8033
        %v8035 = vpop.f32.mrf.mxu0
        %v8036 = vadd.f32 %v6115, %v8035
        %8037 = vdwg.mxu0
        %8038 = vmatpush.bf16.msra.mxu0 %v7183
        %8039 = vmatpush.bf16.msra.mxu0 %v7171
        %8040 = vmatpush.bf16.msra.mxu0 %v7159
        %8041 = vmatpush.bf16.msra.mxu0 %v7147
        %8042 = vmatpush.bf16.msra.mxu0 %v7135
        %8043 = vmatpush.bf16.msra.mxu0 %v7123
        %8044 = vmatpush.bf16.msra.mxu0 %v7111
        %8045 = vmatpush.bf16.msra.mxu0 %v7099
        %8046 = vmatmul.bf16.gmra.mxu0 %v5807
        %v8047 = vpop.f32.mrf.mxu0
        %v8048 = vadd.f32 %v8019, %v8047
        %v8049 = vpop.f32.mrf.mxu0
        %v8050 = vadd.f32 %v8021, %v8049
        %8051 = vmatmul.bf16.gmra.mxu0 %v5810
        %v8052 = vpop.f32.mrf.mxu0
        %v8053 = vadd.f32 %v8024, %v8052
        %v8054 = vpop.f32.mrf.mxu0
        %v8055 = vadd.f32 %v8026, %v8054
        %8056 = vmatmul.bf16.gmra.mxu0 %v5813
        %v8057 = vpop.f32.mrf.mxu0
        %v8058 = vadd.f32 %v8029, %v8057
        %v8059 = vpop.f32.mrf.mxu0
        %v8060 = vadd.f32 %v8031, %v8059
        %8061 = vmatmul.bf16.gmra.mxu0 %v5816
        %v8062 = vpop.f32.mrf.mxu0
        %v8063 = vadd.f32 %v8034, %v8062
        %v8064 = vpop.f32.mrf.mxu0
        %v8065 = vadd.f32 %v8036, %v8064
        %8066 = vdwg.mxu0
        %8067 = vmatpush.bf16.msra.mxu0 %v7279
        %8068 = vmatpush.bf16.msra.mxu0 %v7267
        %8069 = vmatpush.bf16.msra.mxu0 %v7255
        %8070 = vmatpush.bf16.msra.mxu0 %v7243
        %8071 = vmatpush.bf16.msra.mxu0 %v7231
        %8072 = vmatpush.bf16.msra.mxu0 %v7219
        %8073 = vmatpush.bf16.msra.mxu0 %v7207
        %8074 = vmatpush.bf16.msra.mxu0 %v7195
        %8075 = vmatmul.bf16.gmra.mxu0 %v5808
        %v8076 = vpop.f32.mrf.mxu0
        %v8077 = vadd.f32 %v8048, %v8076
        %v8078 = vpop.f32.mrf.mxu0
        %v8079 = vadd.f32 %v8050, %v8078
        %8080 = vmatmul.bf16.gmra.mxu0 %v5811
        %v8081 = vpop.f32.mrf.mxu0
        %v8082 = vadd.f32 %v8053, %v8081
        %v8083 = vpop.f32.mrf.mxu0
        %v8084 = vadd.f32 %v8055, %v8083
        %8085 = vmatmul.bf16.gmra.mxu0 %v5814
        %v8086 = vpop.f32.mrf.mxu0
        %v8087 = vadd.f32 %v8058, %v8086
        %v8088 = vpop.f32.mrf.mxu0
        %v8089 = vadd.f32 %v8060, %v8088
        %8090 = vmatmul.bf16.gmra.mxu0 %v5817
        %v8091 = vpop.f32.mrf.mxu0
        %v8092 = vadd.f32 %v8063, %v8091
        %v8093 = vpop.f32.mrf.mxu0
        %v8094 = vadd.f32 %v8065, %v8093
        %8095 = vdwg.mxu0
        %8096 = vmatpush.bf16.msra.mxu0 %v7088
        %8097 = vmatpush.bf16.msra.mxu0 %v7076
        %8098 = vmatpush.bf16.msra.mxu0 %v7064
        %8099 = vmatpush.bf16.msra.mxu0 %v7052
        %8100 = vmatpush.bf16.msra.mxu0 %v7040
        %8101 = vmatpush.bf16.msra.mxu0 %v7028
        %8102 = vmatpush.bf16.msra.mxu0 %v7016
        %8103 = vmatpush.bf16.msra.mxu0 %v7004
        %8104 = vmatmul.bf16.gmra.mxu0 %v5806
        %v8105 = vpop.f32.mrf.mxu0
        %v8106 = vadd.f32 %v6116, %v8105
        %v8107 = vpop.f32.mrf.mxu0
        %v8108 = vadd.f32 %v6116, %v8107
        %8109 = vmatmul.bf16.gmra.mxu0 %v5809
        %v8110 = vpop.f32.mrf.mxu0
        %v8111 = vadd.f32 %v6116, %v8110
        %v8112 = vpop.f32.mrf.mxu0
        %v8113 = vadd.f32 %v6116, %v8112
        %8114 = vmatmul.bf16.gmra.mxu0 %v5812
        %v8115 = vpop.f32.mrf.mxu0
        %v8116 = vadd.f32 %v6116, %v8115
        %v8117 = vpop.f32.mrf.mxu0
        %v8118 = vadd.f32 %v6116, %v8117
        %8119 = vmatmul.bf16.gmra.mxu0 %v5815
        %v8120 = vpop.f32.mrf.mxu0
        %v8121 = vadd.f32 %v6116, %v8120
        %v8122 = vpop.f32.mrf.mxu0
        %v8123 = vadd.f32 %v6116, %v8122
        %8124 = vdwg.mxu0
        %8125 = vmatpush.bf16.msra.mxu0 %v7184
        %8126 = vmatpush.bf16.msra.mxu0 %v7172
        %8127 = vmatpush.bf16.msra.mxu0 %v7160
        %8128 = vmatpush.bf16.msra.mxu0 %v7148
        %8129 = vmatpush.bf16.msra.mxu0 %v7136
        %8130 = vmatpush.bf16.msra.mxu0 %v7124
        %8131 = vmatpush.bf16.msra.mxu0 %v7112
        %8132 = vmatpush.bf16.msra.mxu0 %v7100
        %8133 = vmatmul.bf16.gmra.mxu0 %v5807
        %v8134 = vpop.f32.mrf.mxu0
        %v8135 = vadd.f32 %v8106, %v8134
        %v8136 = vpop.f32.mrf.mxu0
        %v8137 = vadd.f32 %v8108, %v8136
        %8138 = vmatmul.bf16.gmra.mxu0 %v5810
        %v8139 = vpop.f32.mrf.mxu0
        %v8140 = vadd.f32 %v8111, %v8139
        %v8141 = vpop.f32.mrf.mxu0
        %v8142 = vadd.f32 %v8113, %v8141
        %8143 = vmatmul.bf16.gmra.mxu0 %v5813
        %v8144 = vpop.f32.mrf.mxu0
        %v8145 = vadd.f32 %v8116, %v8144
        %v8146 = vpop.f32.mrf.mxu0
        %v8147 = vadd.f32 %v8118, %v8146
        %8148 = vmatmul.bf16.gmra.mxu0 %v5816
        %v8149 = vpop.f32.mrf.mxu0
        %v8150 = vadd.f32 %v8121, %v8149
        %v8151 = vpop.f32.mrf.mxu0
        %v8152 = vadd.f32 %v8123, %v8151
        %8153 = vdwg.mxu0
        %8154 = vmatpush.bf16.msra.mxu0 %v7280
        %8155 = vmatpush.bf16.msra.mxu0 %v7268
        %8156 = vmatpush.bf16.msra.mxu0 %v7256
        %8157 = vmatpush.bf16.msra.mxu0 %v7244
        %8158 = vmatpush.bf16.msra.mxu0 %v7232
        %8159 = vmatpush.bf16.msra.mxu0 %v7220
        %8160 = vmatpush.bf16.msra.mxu0 %v7208
        %8161 = vmatpush.bf16.msra.mxu0 %v7196
        %8162 = vmatmul.bf16.gmra.mxu0 %v5808
        %v8163 = vpop.f32.mrf.mxu0
        %v8164 = vadd.f32 %v8135, %v8163
        %v8165 = vpop.f32.mrf.mxu0
        %v8166 = vadd.f32 %v8137, %v8165
        %8167 = vmatmul.bf16.gmra.mxu0 %v5811
        %v8168 = vpop.f32.mrf.mxu0
        %v8169 = vadd.f32 %v8140, %v8168
        %v8170 = vpop.f32.mrf.mxu0
        %v8171 = vadd.f32 %v8142, %v8170
        %8172 = vmatmul.bf16.gmra.mxu0 %v5814
        %v8173 = vpop.f32.mrf.mxu0
        %v8174 = vadd.f32 %v8145, %v8173
        %v8175 = vpop.f32.mrf.mxu0
        %v8176 = vadd.f32 %v8147, %v8175
        %8177 = vmatmul.bf16.gmra.mxu0 %v5817
        %v8178 = vpop.f32.mrf.mxu0
        %v8179 = vadd.f32 %v8150, %v8178
        %v8180 = vpop.f32.mrf.mxu0
        %v8181 = vadd.f32 %v8152, %v8180
        %8182 = vdwg.mxu0
        %8183 = vmatpush.bf16.msra.mxu0 %v7089
        %8184 = vmatpush.bf16.msra.mxu0 %v7077
        %8185 = vmatpush.bf16.msra.mxu0 %v7065
        %8186 = vmatpush.bf16.msra.mxu0 %v7053
        %8187 = vmatpush.bf16.msra.mxu0 %v7041
        %8188 = vmatpush.bf16.msra.mxu0 %v7029
        %8189 = vmatpush.bf16.msra.mxu0 %v7017
        %8190 = vmatpush.bf16.msra.mxu0 %v7005
        %8191 = vmatmul.bf16.gmra.mxu0 %v5806
        %v8192 = vpop.f32.mrf.mxu0
        %v8193 = vadd.f32 %v6117, %v8192
        %v8194 = vpop.f32.mrf.mxu0
        %v8195 = vadd.f32 %v6117, %v8194
        %8196 = vmatmul.bf16.gmra.mxu0 %v5809
        %v8197 = vpop.f32.mrf.mxu0
        %v8198 = vadd.f32 %v6117, %v8197
        %v8199 = vpop.f32.mrf.mxu0
        %v8200 = vadd.f32 %v6117, %v8199
        %8201 = vmatmul.bf16.gmra.mxu0 %v5812
        %v8202 = vpop.f32.mrf.mxu0
        %v8203 = vadd.f32 %v6117, %v8202
        %v8204 = vpop.f32.mrf.mxu0
        %v8205 = vadd.f32 %v6117, %v8204
        %8206 = vmatmul.bf16.gmra.mxu0 %v5815
        %v8207 = vpop.f32.mrf.mxu0
        %v8208 = vadd.f32 %v6117, %v8207
        %v8209 = vpop.f32.mrf.mxu0
        %v8210 = vadd.f32 %v6117, %v8209
        %8211 = vdwg.mxu0
        %8212 = vmatpush.bf16.msra.mxu0 %v7185
        %8213 = vmatpush.bf16.msra.mxu0 %v7173
        %8214 = vmatpush.bf16.msra.mxu0 %v7161
        %8215 = vmatpush.bf16.msra.mxu0 %v7149
        %8216 = vmatpush.bf16.msra.mxu0 %v7137
        %8217 = vmatpush.bf16.msra.mxu0 %v7125
        %8218 = vmatpush.bf16.msra.mxu0 %v7113
        %8219 = vmatpush.bf16.msra.mxu0 %v7101
        %8220 = vmatmul.bf16.gmra.mxu0 %v5807
        %v8221 = vpop.f32.mrf.mxu0
        %v8222 = vadd.f32 %v8193, %v8221
        %v8223 = vpop.f32.mrf.mxu0
        %v8224 = vadd.f32 %v8195, %v8223
        %8225 = vmatmul.bf16.gmra.mxu0 %v5810
        %v8226 = vpop.f32.mrf.mxu0
        %v8227 = vadd.f32 %v8198, %v8226
        %v8228 = vpop.f32.mrf.mxu0
        %v8229 = vadd.f32 %v8200, %v8228
        %8230 = vmatmul.bf16.gmra.mxu0 %v5813
        %v8231 = vpop.f32.mrf.mxu0
        %v8232 = vadd.f32 %v8203, %v8231
        %v8233 = vpop.f32.mrf.mxu0
        %v8234 = vadd.f32 %v8205, %v8233
        %8235 = vmatmul.bf16.gmra.mxu0 %v5816
        %v8236 = vpop.f32.mrf.mxu0
        %v8237 = vadd.f32 %v8208, %v8236
        %v8238 = vpop.f32.mrf.mxu0
        %v8239 = vadd.f32 %v8210, %v8238
        %8240 = vdwg.mxu0
        %8241 = vmatpush.bf16.msra.mxu0 %v7281
        %8242 = vmatpush.bf16.msra.mxu0 %v7269
        %8243 = vmatpush.bf16.msra.mxu0 %v7257
        %8244 = vmatpush.bf16.msra.mxu0 %v7245
        %8245 = vmatpush.bf16.msra.mxu0 %v7233
        %8246 = vmatpush.bf16.msra.mxu0 %v7221
        %8247 = vmatpush.bf16.msra.mxu0 %v7209
        %8248 = vmatpush.bf16.msra.mxu0 %v7197
        %8249 = vmatmul.bf16.gmra.mxu0 %v5808
        %v8250 = vpop.f32.mrf.mxu0
        %v8251 = vadd.f32 %v8222, %v8250
        %v8252 = vpop.f32.mrf.mxu0
        %v8253 = vadd.f32 %v8224, %v8252
        %8254 = vmatmul.bf16.gmra.mxu0 %v5811
        %v8255 = vpop.f32.mrf.mxu0
        %v8256 = vadd.f32 %v8227, %v8255
        %v8257 = vpop.f32.mrf.mxu0
        %v8258 = vadd.f32 %v8229, %v8257
        %8259 = vmatmul.bf16.gmra.mxu0 %v5814
        %v8260 = vpop.f32.mrf.mxu0
        %v8261 = vadd.f32 %v8232, %v8260
        %v8262 = vpop.f32.mrf.mxu0
        %v8263 = vadd.f32 %v8234, %v8262
        %8264 = vmatmul.bf16.gmra.mxu0 %v5817
        %v8265 = vpop.f32.mrf.mxu0
        %v8266 = vadd.f32 %v8237, %v8265
        %v8267 = vpop.f32.mrf.mxu0
        %v8268 = vadd.f32 %v8239, %v8267
        %8269 = vdwg.mxu0
        %8270 = vmatpush.bf16.msra.mxu0 %v7090
        %8271 = vmatpush.bf16.msra.mxu0 %v7078
        %8272 = vmatpush.bf16.msra.mxu0 %v7066
        %8273 = vmatpush.bf16.msra.mxu0 %v7054
        %8274 = vmatpush.bf16.msra.mxu0 %v7042
        %8275 = vmatpush.bf16.msra.mxu0 %v7030
        %8276 = vmatpush.bf16.msra.mxu0 %v7018
        %8277 = vmatpush.bf16.msra.mxu0 %v7006
        %8278 = vmatmul.bf16.gmra.mxu0 %v5806
        %v8279 = vpop.f32.mrf.mxu0
        %v8280 = vadd.f32 %v6118, %v8279
        %v8281 = vpop.f32.mrf.mxu0
        %v8282 = vadd.f32 %v6118, %v8281
        %8283 = vmatmul.bf16.gmra.mxu0 %v5809
        %v8284 = vpop.f32.mrf.mxu0
        %v8285 = vadd.f32 %v6118, %v8284
        %v8286 = vpop.f32.mrf.mxu0
        %v8287 = vadd.f32 %v6118, %v8286
        %8288 = vmatmul.bf16.gmra.mxu0 %v5812
        %v8289 = vpop.f32.mrf.mxu0
        %v8290 = vadd.f32 %v6118, %v8289
        %v8291 = vpop.f32.mrf.mxu0
        %v8292 = vadd.f32 %v6118, %v8291
        %8293 = vmatmul.bf16.gmra.mxu0 %v5815
        %v8294 = vpop.f32.mrf.mxu0
        %v8295 = vadd.f32 %v6118, %v8294
        %v8296 = vpop.f32.mrf.mxu0
        %v8297 = vadd.f32 %v6118, %v8296
        %8298 = vdwg.mxu0
        %8299 = vmatpush.bf16.msra.mxu0 %v7186
        %8300 = vmatpush.bf16.msra.mxu0 %v7174
        %8301 = vmatpush.bf16.msra.mxu0 %v7162
        %8302 = vmatpush.bf16.msra.mxu0 %v7150
        %8303 = vmatpush.bf16.msra.mxu0 %v7138
        %8304 = vmatpush.bf16.msra.mxu0 %v7126
        %8305 = vmatpush.bf16.msra.mxu0 %v7114
        %8306 = vmatpush.bf16.msra.mxu0 %v7102
        %8307 = vmatmul.bf16.gmra.mxu0 %v5807
        %v8308 = vpop.f32.mrf.mxu0
        %v8309 = vadd.f32 %v8280, %v8308
        %v8310 = vpop.f32.mrf.mxu0
        %v8311 = vadd.f32 %v8282, %v8310
        %8312 = vmatmul.bf16.gmra.mxu0 %v5810
        %v8313 = vpop.f32.mrf.mxu0
        %v8314 = vadd.f32 %v8285, %v8313
        %v8315 = vpop.f32.mrf.mxu0
        %v8316 = vadd.f32 %v8287, %v8315
        %8317 = vmatmul.bf16.gmra.mxu0 %v5813
        %v8318 = vpop.f32.mrf.mxu0
        %v8319 = vadd.f32 %v8290, %v8318
        %v8320 = vpop.f32.mrf.mxu0
        %v8321 = vadd.f32 %v8292, %v8320
        %8322 = vmatmul.bf16.gmra.mxu0 %v5816
        %v8323 = vpop.f32.mrf.mxu0
        %v8324 = vadd.f32 %v8295, %v8323
        %v8325 = vpop.f32.mrf.mxu0
        %v8326 = vadd.f32 %v8297, %v8325
        %8327 = vdwg.mxu0
        %8328 = vmatpush.bf16.msra.mxu0 %v7282
        %8329 = vmatpush.bf16.msra.mxu0 %v7270
        %8330 = vmatpush.bf16.msra.mxu0 %v7258
        %8331 = vmatpush.bf16.msra.mxu0 %v7246
        %8332 = vmatpush.bf16.msra.mxu0 %v7234
        %8333 = vmatpush.bf16.msra.mxu0 %v7222
        %8334 = vmatpush.bf16.msra.mxu0 %v7210
        %8335 = vmatpush.bf16.msra.mxu0 %v7198
        %8336 = vmatmul.bf16.gmra.mxu0 %v5808
        %v8337 = vpop.f32.mrf.mxu0
        %v8338 = vadd.f32 %v8309, %v8337
        %v8339 = vpop.f32.mrf.mxu0
        %v8340 = vadd.f32 %v8311, %v8339
        %8341 = vmatmul.bf16.gmra.mxu0 %v5811
        %v8342 = vpop.f32.mrf.mxu0
        %v8343 = vadd.f32 %v8314, %v8342
        %v8344 = vpop.f32.mrf.mxu0
        %v8345 = vadd.f32 %v8316, %v8344
        %8346 = vmatmul.bf16.gmra.mxu0 %v5814
        %v8347 = vpop.f32.mrf.mxu0
        %v8348 = vadd.f32 %v8319, %v8347
        %v8349 = vpop.f32.mrf.mxu0
        %v8350 = vadd.f32 %v8321, %v8349
        %8351 = vmatmul.bf16.gmra.mxu0 %v5817
        %v8352 = vpop.f32.mrf.mxu0
        %v8353 = vadd.f32 %v8324, %v8352
        %v8354 = vpop.f32.mrf.mxu0
        %v8355 = vadd.f32 %v8326, %v8354
        %8356 = vdwg.mxu0
        %8357 = vmatpush.bf16.msra.mxu0 %v7091
        %8358 = vmatpush.bf16.msra.mxu0 %v7079
        %8359 = vmatpush.bf16.msra.mxu0 %v7067
        %8360 = vmatpush.bf16.msra.mxu0 %v7055
        %8361 = vmatpush.bf16.msra.mxu0 %v7043
        %8362 = vmatpush.bf16.msra.mxu0 %v7031
        %8363 = vmatpush.bf16.msra.mxu0 %v7019
        %8364 = vmatpush.bf16.msra.mxu0 %v7007
        %8365 = vmatmul.bf16.gmra.mxu0 %v5806
        %v8366 = vpop.f32.mrf.mxu0
        %v8367 = vadd.f32 %v6119, %v8366
        %v8368 = vpop.f32.mrf.mxu0
        %v8369 = vadd.f32 %v6119, %v8368
        %8370 = vmatmul.bf16.gmra.mxu0 %v5809
        %v8371 = vpop.f32.mrf.mxu0
        %v8372 = vadd.f32 %v6119, %v8371
        %v8373 = vpop.f32.mrf.mxu0
        %v8374 = vadd.f32 %v6119, %v8373
        %8375 = vmatmul.bf16.gmra.mxu0 %v5812
        %v8376 = vpop.f32.mrf.mxu0
        %v8377 = vadd.f32 %v6119, %v8376
        %v8378 = vpop.f32.mrf.mxu0
        %v8379 = vadd.f32 %v6119, %v8378
        %8380 = vmatmul.bf16.gmra.mxu0 %v5815
        %v8381 = vpop.f32.mrf.mxu0
        %v8382 = vadd.f32 %v6119, %v8381
        %v8383 = vpop.f32.mrf.mxu0
        %v8384 = vadd.f32 %v6119, %v8383
        %8385 = vdwg.mxu0
        %8386 = vmatpush.bf16.msra.mxu0 %v7187
        %8387 = vmatpush.bf16.msra.mxu0 %v7175
        %8388 = vmatpush.bf16.msra.mxu0 %v7163
        %8389 = vmatpush.bf16.msra.mxu0 %v7151
        %8390 = vmatpush.bf16.msra.mxu0 %v7139
        %8391 = vmatpush.bf16.msra.mxu0 %v7127
        %8392 = vmatpush.bf16.msra.mxu0 %v7115
        %8393 = vmatpush.bf16.msra.mxu0 %v7103
        %8394 = vmatmul.bf16.gmra.mxu0 %v5807
        %v8395 = vpop.f32.mrf.mxu0
        %v8396 = vadd.f32 %v8367, %v8395
        %v8397 = vpop.f32.mrf.mxu0
        %v8398 = vadd.f32 %v8369, %v8397
        %8399 = vmatmul.bf16.gmra.mxu0 %v5810
        %v8400 = vpop.f32.mrf.mxu0
        %v8401 = vadd.f32 %v8372, %v8400
        %v8402 = vpop.f32.mrf.mxu0
        %v8403 = vadd.f32 %v8374, %v8402
        %8404 = vmatmul.bf16.gmra.mxu0 %v5813
        %v8405 = vpop.f32.mrf.mxu0
        %v8406 = vadd.f32 %v8377, %v8405
        %v8407 = vpop.f32.mrf.mxu0
        %v8408 = vadd.f32 %v8379, %v8407
        %8409 = vmatmul.bf16.gmra.mxu0 %v5816
        %v8410 = vpop.f32.mrf.mxu0
        %v8411 = vadd.f32 %v8382, %v8410
        %v8412 = vpop.f32.mrf.mxu0
        %v8413 = vadd.f32 %v8384, %v8412
        %8414 = vdwg.mxu0
        %8415 = vmatpush.bf16.msra.mxu0 %v7283
        %8416 = vmatpush.bf16.msra.mxu0 %v7271
        %8417 = vmatpush.bf16.msra.mxu0 %v7259
        %8418 = vmatpush.bf16.msra.mxu0 %v7247
        %8419 = vmatpush.bf16.msra.mxu0 %v7235
        %8420 = vmatpush.bf16.msra.mxu0 %v7223
        %8421 = vmatpush.bf16.msra.mxu0 %v7211
        %8422 = vmatpush.bf16.msra.mxu0 %v7199
        %8423 = vmatmul.bf16.gmra.mxu0 %v5808
        %v8424 = vpop.f32.mrf.mxu0
        %v8425 = vadd.f32 %v8396, %v8424
        %v8426 = vpop.f32.mrf.mxu0
        %v8427 = vadd.f32 %v8398, %v8426
        %8428 = vmatmul.bf16.gmra.mxu0 %v5811
        %v8429 = vpop.f32.mrf.mxu0
        %v8430 = vadd.f32 %v8401, %v8429
        %v8431 = vpop.f32.mrf.mxu0
        %v8432 = vadd.f32 %v8403, %v8431
        %8433 = vmatmul.bf16.gmra.mxu0 %v5814
        %v8434 = vpop.f32.mrf.mxu0
        %v8435 = vadd.f32 %v8406, %v8434
        %v8436 = vpop.f32.mrf.mxu0
        %v8437 = vadd.f32 %v8408, %v8436
        %8438 = vmatmul.bf16.gmra.mxu0 %v5817
        %v8439 = vpop.f32.mrf.mxu0
        %v8440 = vadd.f32 %v8411, %v8439
        %v8441 = vpop.f32.mrf.mxu0
        %v8442 = vadd.f32 %v8413, %v8441
        %8443 = vdwg.mxu0
        %8444 = vmatpush.bf16.msra.mxu0 %v7092
        %8445 = vmatpush.bf16.msra.mxu0 %v7080
        %8446 = vmatpush.bf16.msra.mxu0 %v7068
        %8447 = vmatpush.bf16.msra.mxu0 %v7056
        %8448 = vmatpush.bf16.msra.mxu0 %v7044
        %8449 = vmatpush.bf16.msra.mxu0 %v7032
        %8450 = vmatpush.bf16.msra.mxu0 %v7020
        %8451 = vmatpush.bf16.msra.mxu0 %v7008
        %8452 = vmatmul.bf16.gmra.mxu0 %v5806
        %v8453 = vpop.f32.mrf.mxu0
        %v8454 = vadd.f32 %v6120, %v8453
        %v8455 = vpop.f32.mrf.mxu0
        %v8456 = vadd.f32 %v6120, %v8455
        %8457 = vmatmul.bf16.gmra.mxu0 %v5809
        %v8458 = vpop.f32.mrf.mxu0
        %v8459 = vadd.f32 %v6120, %v8458
        %v8460 = vpop.f32.mrf.mxu0
        %v8461 = vadd.f32 %v6120, %v8460
        %8462 = vmatmul.bf16.gmra.mxu0 %v5812
        %v8463 = vpop.f32.mrf.mxu0
        %v8464 = vadd.f32 %v6120, %v8463
        %v8465 = vpop.f32.mrf.mxu0
        %v8466 = vadd.f32 %v6120, %v8465
        %8467 = vmatmul.bf16.gmra.mxu0 %v5815
        %v8468 = vpop.f32.mrf.mxu0
        %v8469 = vadd.f32 %v6120, %v8468
        %v8470 = vpop.f32.mrf.mxu0
        %v8471 = vadd.f32 %v6120, %v8470
        %8472 = vdwg.mxu0
        %8473 = vmatpush.bf16.msra.mxu0 %v7188
        %8474 = vmatpush.bf16.msra.mxu0 %v7176
        %8475 = vmatpush.bf16.msra.mxu0 %v7164
        %8476 = vmatpush.bf16.msra.mxu0 %v7152
        %8477 = vmatpush.bf16.msra.mxu0 %v7140
        %8478 = vmatpush.bf16.msra.mxu0 %v7128
        %8479 = vmatpush.bf16.msra.mxu0 %v7116
        %8480 = vmatpush.bf16.msra.mxu0 %v7104
        %8481 = vmatmul.bf16.gmra.mxu0 %v5807
        %v8482 = vpop.f32.mrf.mxu0
        %v8483 = vadd.f32 %v8454, %v8482
        %v8484 = vpop.f32.mrf.mxu0
        %v8485 = vadd.f32 %v8456, %v8484
        %8486 = vmatmul.bf16.gmra.mxu0 %v5810
        %v8487 = vpop.f32.mrf.mxu0
        %v8488 = vadd.f32 %v8459, %v8487
        %v8489 = vpop.f32.mrf.mxu0
        %v8490 = vadd.f32 %v8461, %v8489
        %8491 = vmatmul.bf16.gmra.mxu0 %v5813
        %v8492 = vpop.f32.mrf.mxu0
        %v8493 = vadd.f32 %v8464, %v8492
        %v8494 = vpop.f32.mrf.mxu0
        %v8495 = vadd.f32 %v8466, %v8494
        %8496 = vmatmul.bf16.gmra.mxu0 %v5816
        %v8497 = vpop.f32.mrf.mxu0
        %v8498 = vadd.f32 %v8469, %v8497
        %v8499 = vpop.f32.mrf.mxu0
        %v8500 = vadd.f32 %v8471, %v8499
        %8501 = vdwg.mxu0
        %8502 = vmatpush.bf16.msra.mxu0 %v7284
        %8503 = vmatpush.bf16.msra.mxu0 %v7272
        %8504 = vmatpush.bf16.msra.mxu0 %v7260
        %8505 = vmatpush.bf16.msra.mxu0 %v7248
        %8506 = vmatpush.bf16.msra.mxu0 %v7236
        %8507 = vmatpush.bf16.msra.mxu0 %v7224
        %8508 = vmatpush.bf16.msra.mxu0 %v7212
        %8509 = vmatpush.bf16.msra.mxu0 %v7200
        %8510 = vmatmul.bf16.gmra.mxu0 %v5808
        %v8511 = vpop.f32.mrf.mxu0
        %v8512 = vadd.f32 %v8483, %v8511
        %v8513 = vpop.f32.mrf.mxu0
        %v8514 = vadd.f32 %v8485, %v8513
        %8515 = vmatmul.bf16.gmra.mxu0 %v5811
        %v8516 = vpop.f32.mrf.mxu0
        %v8517 = vadd.f32 %v8488, %v8516
        %v8518 = vpop.f32.mrf.mxu0
        %v8519 = vadd.f32 %v8490, %v8518
        %8520 = vmatmul.bf16.gmra.mxu0 %v5814
        %v8521 = vpop.f32.mrf.mxu0
        %v8522 = vadd.f32 %v8493, %v8521
        %v8523 = vpop.f32.mrf.mxu0
        %v8524 = vadd.f32 %v8495, %v8523
        %8525 = vmatmul.bf16.gmra.mxu0 %v5817
        %v8526 = vpop.f32.mrf.mxu0
        %v8527 = vadd.f32 %v8498, %v8526
        %v8528 = vpop.f32.mrf.mxu0
        %v8529 = vadd.f32 %v8500, %v8528
        %8530 = vdwg.mxu0
        %8531 = vmatpush.bf16.msra.mxu0 %v7093
        %8532 = vmatpush.bf16.msra.mxu0 %v7081
        %8533 = vmatpush.bf16.msra.mxu0 %v7069
        %8534 = vmatpush.bf16.msra.mxu0 %v7057
        %8535 = vmatpush.bf16.msra.mxu0 %v7045
        %8536 = vmatpush.bf16.msra.mxu0 %v7033
        %8537 = vmatpush.bf16.msra.mxu0 %v7021
        %8538 = vmatpush.bf16.msra.mxu0 %v7009
        %8539 = vmatmul.bf16.gmra.mxu0 %v5806
        %v8540 = vpop.f32.mrf.mxu0
        %v8541 = vadd.f32 %v6121, %v8540
        %v8542 = vpop.f32.mrf.mxu0
        %v8543 = vadd.f32 %v6121, %v8542
        %8544 = vmatmul.bf16.gmra.mxu0 %v5809
        %v8545 = vpop.f32.mrf.mxu0
        %v8546 = vadd.f32 %v6121, %v8545
        %v8547 = vpop.f32.mrf.mxu0
        %v8548 = vadd.f32 %v6121, %v8547
        %8549 = vmatmul.bf16.gmra.mxu0 %v5812
        %v8550 = vpop.f32.mrf.mxu0
        %v8551 = vadd.f32 %v6121, %v8550
        %v8552 = vpop.f32.mrf.mxu0
        %v8553 = vadd.f32 %v6121, %v8552
        %8554 = vmatmul.bf16.gmra.mxu0 %v5815
        %v8555 = vpop.f32.mrf.mxu0
        %v8556 = vadd.f32 %v6121, %v8555
        %v8557 = vpop.f32.mrf.mxu0
        %v8558 = vadd.f32 %v6121, %v8557
        %8559 = vdwg.mxu0
        %8560 = vmatpush.bf16.msra.mxu0 %v7189
        %8561 = vmatpush.bf16.msra.mxu0 %v7177
        %8562 = vmatpush.bf16.msra.mxu0 %v7165
        %8563 = vmatpush.bf16.msra.mxu0 %v7153
        %8564 = vmatpush.bf16.msra.mxu0 %v7141
        %8565 = vmatpush.bf16.msra.mxu0 %v7129
        %8566 = vmatpush.bf16.msra.mxu0 %v7117
        %8567 = vmatpush.bf16.msra.mxu0 %v7105
        %8568 = vmatmul.bf16.gmra.mxu0 %v5807
        %v8569 = vpop.f32.mrf.mxu0
        %v8570 = vadd.f32 %v8541, %v8569
        %v8571 = vpop.f32.mrf.mxu0
        %v8572 = vadd.f32 %v8543, %v8571
        %8573 = vmatmul.bf16.gmra.mxu0 %v5810
        %v8574 = vpop.f32.mrf.mxu0
        %v8575 = vadd.f32 %v8546, %v8574
        %v8576 = vpop.f32.mrf.mxu0
        %v8577 = vadd.f32 %v8548, %v8576
        %8578 = vmatmul.bf16.gmra.mxu0 %v5813
        %v8579 = vpop.f32.mrf.mxu0
        %v8580 = vadd.f32 %v8551, %v8579
        %v8581 = vpop.f32.mrf.mxu0
        %v8582 = vadd.f32 %v8553, %v8581
        %8583 = vmatmul.bf16.gmra.mxu0 %v5816
        %v8584 = vpop.f32.mrf.mxu0
        %v8585 = vadd.f32 %v8556, %v8584
        %v8586 = vpop.f32.mrf.mxu0
        %v8587 = vadd.f32 %v8558, %v8586
        %8588 = vdwg.mxu0
        %8589 = vmatpush.bf16.msra.mxu0 %v7285
        %8590 = vmatpush.bf16.msra.mxu0 %v7273
        %8591 = vmatpush.bf16.msra.mxu0 %v7261
        %8592 = vmatpush.bf16.msra.mxu0 %v7249
        %8593 = vmatpush.bf16.msra.mxu0 %v7237
        %8594 = vmatpush.bf16.msra.mxu0 %v7225
        %8595 = vmatpush.bf16.msra.mxu0 %v7213
        %8596 = vmatpush.bf16.msra.mxu0 %v7201
        %8597 = vmatmul.bf16.gmra.mxu0 %v5808
        %v8598 = vpop.f32.mrf.mxu0
        %v8599 = vadd.f32 %v8570, %v8598
        %v8600 = vpop.f32.mrf.mxu0
        %v8601 = vadd.f32 %v8572, %v8600
        %8602 = vmatmul.bf16.gmra.mxu0 %v5811
        %v8603 = vpop.f32.mrf.mxu0
        %v8604 = vadd.f32 %v8575, %v8603
        %v8605 = vpop.f32.mrf.mxu0
        %v8606 = vadd.f32 %v8577, %v8605
        %8607 = vmatmul.bf16.gmra.mxu0 %v5814
        %v8608 = vpop.f32.mrf.mxu0
        %v8609 = vadd.f32 %v8580, %v8608
        %v8610 = vpop.f32.mrf.mxu0
        %v8611 = vadd.f32 %v8582, %v8610
        %8612 = vmatmul.bf16.gmra.mxu0 %v5817
        %v8613 = vpop.f32.mrf.mxu0
        %v8614 = vadd.f32 %v8585, %v8613
        %v8615 = vpop.f32.mrf.mxu0
        %v8616 = vadd.f32 %v8587, %v8615
        %8617 = vdwg.mxu0
        %v8618 = vmax.f32 %v7642, 0.0
        %v8619 = vmax.f32 %v7729, 0.0
        %v8620 = vmax.f32 %v7816, 0.0
        %v8621 = vmax.f32 %v7903, 0.0
        %v8622 = vmax.f32 %v7990, 0.0
        %v8623 = vmax.f32 %v8077, 0.0
        %v8624 = vmax.f32 %v8164, 0.0
        %v8625 = vmax.f32 %v8251, 0.0
        %v8626 = vmax.f32 %v8338, 0.0
        %v8627 = vmax.f32 %v8425, 0.0
        %v8628 = vmax.f32 %v8512, 0.0
        %v8629 = vmax.f32 %v8599, 0.0
        %v8630 = vmax.f32 %v7644, 0.0
        %v8631 = vmax.f32 %v7731, 0.0
        %v8632 = vmax.f32 %v7818, 0.0
        %v8633 = vmax.f32 %v7905, 0.0
        %v8634 = vmax.f32 %v7992, 0.0
        %v8635 = vmax.f32 %v8079, 0.0
        %v8636 = vmax.f32 %v8166, 0.0
        %v8637 = vmax.f32 %v8253, 0.0
        %v8638 = vmax.f32 %v8340, 0.0
        %v8639 = vmax.f32 %v8427, 0.0
        %v8640 = vmax.f32 %v8514, 0.0
        %v8641 = vmax.f32 %v8601, 0.0
        %v8642 = vmax.f32 %v7647, 0.0
        %v8643 = vmax.f32 %v7734, 0.0
        %v8644 = vmax.f32 %v7821, 0.0
        %v8645 = vmax.f32 %v7908, 0.0
        %v8646 = vmax.f32 %v7995, 0.0
        %v8647 = vmax.f32 %v8082, 0.0
        %v8648 = vmax.f32 %v8169, 0.0
        %v8649 = vmax.f32 %v8256, 0.0
        %v8650 = vmax.f32 %v8343, 0.0
        %v8651 = vmax.f32 %v8430, 0.0
        %v8652 = vmax.f32 %v8517, 0.0
        %v8653 = vmax.f32 %v8604, 0.0
        %v8654 = vmax.f32 %v7649, 0.0
        %v8655 = vmax.f32 %v7736, 0.0
        %v8656 = vmax.f32 %v7823, 0.0
        %v8657 = vmax.f32 %v7910, 0.0
        %v8658 = vmax.f32 %v7997, 0.0
        %v8659 = vmax.f32 %v8084, 0.0
        %v8660 = vmax.f32 %v8171, 0.0
        %v8661 = vmax.f32 %v8258, 0.0
        %v8662 = vmax.f32 %v8345, 0.0
        %v8663 = vmax.f32 %v8432, 0.0
        %v8664 = vmax.f32 %v8519, 0.0
        %v8665 = vmax.f32 %v8606, 0.0
        %v8666 = vmax.f32 %v7652, 0.0
        %v8667 = vmax.f32 %v7739, 0.0
        %v8668 = vmax.f32 %v7826, 0.0
        %v8669 = vmax.f32 %v7913, 0.0
        %v8670 = vmax.f32 %v8000, 0.0
        %v8671 = vmax.f32 %v8087, 0.0
        %v8672 = vmax.f32 %v8174, 0.0
        %v8673 = vmax.f32 %v8261, 0.0
        %v8674 = vmax.f32 %v8348, 0.0
        %v8675 = vmax.f32 %v8435, 0.0
        %v8676 = vmax.f32 %v8522, 0.0
        %v8677 = vmax.f32 %v8609, 0.0
        %v8678 = vmax.f32 %v7654, 0.0
        %v8679 = vmax.f32 %v7741, 0.0
        %v8680 = vmax.f32 %v7828, 0.0
        %v8681 = vmax.f32 %v7915, 0.0
        %v8682 = vmax.f32 %v8002, 0.0
        %v8683 = vmax.f32 %v8089, 0.0
        %v8684 = vmax.f32 %v8176, 0.0
        %v8685 = vmax.f32 %v8263, 0.0
        %v8686 = vmax.f32 %v8350, 0.0
        %v8687 = vmax.f32 %v8437, 0.0
        %v8688 = vmax.f32 %v8524, 0.0
        %v8689 = vmax.f32 %v8611, 0.0
        %v8690 = vmax.f32 %v7657, 0.0
        %v8691 = vmax.f32 %v7744, 0.0
        %v8692 = vmax.f32 %v7831, 0.0
        %v8693 = vmax.f32 %v7918, 0.0
        %v8694 = vmax.f32 %v8005, 0.0
        %v8695 = vmax.f32 %v8092, 0.0
        %v8696 = vmax.f32 %v8179, 0.0
        %v8697 = vmax.f32 %v8266, 0.0
        %v8698 = vmax.f32 %v8353, 0.0
        %v8699 = vmax.f32 %v8440, 0.0
        %v8700 = vmax.f32 %v8527, 0.0
        %v8701 = vmax.f32 %v8614, 0.0
        %v8702 = vmax.f32 %v7659, 0.0
        %v8703 = vmax.f32 %v7746, 0.0
        %v8704 = vmax.f32 %v7833, 0.0
        %v8705 = vmax.f32 %v7920, 0.0
        %v8706 = vmax.f32 %v8007, 0.0
        %v8707 = vmax.f32 %v8094, 0.0
        %v8708 = vmax.f32 %v8181, 0.0
        %v8709 = vmax.f32 %v8268, 0.0
        %v8710 = vmax.f32 %v8355, 0.0
        %v8711 = vmax.f32 %v8442, 0.0
        %v8712 = vmax.f32 %v8529, 0.0
        %v8713 = vmax.f32 %v8616, 0.0
        %v8714 = vpack.c.bf16 %v8630, %v8618
        %v8715 = vpack.c.bf16 %v8631, %v8619
        %v8716 = vpack.c.bf16 %v8632, %v8620
        %v8717 = vpack.c.bf16 %v8633, %v8621
        %v8718 = vpack.c.bf16 %v8634, %v8622
        %v8719 = vpack.c.bf16 %v8635, %v8623
        %v8720 = vpack.c.bf16 %v8636, %v8624
        %v8721 = vpack.c.bf16 %v8637, %v8625
        %v8722 = vpack.c.bf16 %v8638, %v8626
        %v8723 = vpack.c.bf16 %v8639, %v8627
        %v8724 = vpack.c.bf16 %v8640, %v8628
        %v8725 = vpack.c.bf16 %v8641, %v8629
        %v8726 = vpack.c.bf16 %v8654, %v8642
        %v8727 = vpack.c.bf16 %v8655, %v8643
        %v8728 = vpack.c.bf16 %v8656, %v8644
        %v8729 = vpack.c.bf16 %v8657, %v8645
        %v8730 = vpack.c.bf16 %v8658, %v8646
        %v8731 = vpack.c.bf16 %v8659, %v8647
        %v8732 = vpack.c.bf16 %v8660, %v8648
        %v8733 = vpack.c.bf16 %v8661, %v8649
        %v8734 = vpack.c.bf16 %v8662, %v8650
        %v8735 = vpack.c.bf16 %v8663, %v8651
        %v8736 = vpack.c.bf16 %v8664, %v8652
        %v8737 = vpack.c.bf16 %v8665, %v8653
        %v8738 = vpack.c.bf16 %v8678, %v8666
        %v8739 = vpack.c.bf16 %v8679, %v8667
        %v8740 = vpack.c.bf16 %v8680, %v8668
        %v8741 = vpack.c.bf16 %v8681, %v8669
        %v8742 = vpack.c.bf16 %v8682, %v8670
        %v8743 = vpack.c.bf16 %v8683, %v8671
        %v8744 = vpack.c.bf16 %v8684, %v8672
        %v8745 = vpack.c.bf16 %v8685, %v8673
        %v8746 = vpack.c.bf16 %v8686, %v8674
        %v8747 = vpack.c.bf16 %v8687, %v8675
        %v8748 = vpack.c.bf16 %v8688, %v8676
        %v8749 = vpack.c.bf16 %v8689, %v8677
        %v8750 = vpack.c.bf16 %v8702, %v8690
        %v8751 = vpack.c.bf16 %v8703, %v8691
        %v8752 = vpack.c.bf16 %v8704, %v8692
        %v8753 = vpack.c.bf16 %v8705, %v8693
        %v8754 = vpack.c.bf16 %v8706, %v8694
        %v8755 = vpack.c.bf16 %v8707, %v8695
        %v8756 = vpack.c.bf16 %v8708, %v8696
        %v8757 = vpack.c.bf16 %v8709, %v8697
        %v8758 = vpack.c.bf16 %v8710, %v8698
        %v8759 = vpack.c.bf16 %v8711, %v8699
        %v8760 = vpack.c.bf16 %v8712, %v8700
        %v8761 = vpack.c.bf16 %v8713, %v8701
        %v8762 = vld [vmem:[#allocation20] sm:$0xff]
        %v8763 = vld [vmem:[#allocation20 + $0x8] sm:$0xf]
        %v8764 = vld [vmem:[#allocation20 + $0xc] sm:$0xff]
        %v8765 = vld [vmem:[#allocation20 + $0x14] sm:$0xf]
        %v8766 = vld [vmem:[#allocation20 + $0x18] sm:$0xff]
        %v8767 = vld [vmem:[#allocation20 + $0x20] sm:$0xf]
        %v8768 = vld [vmem:[#allocation20 + $0x24] sm:$0xff]
        %v8769 = vld [vmem:[#allocation20 + $0x2c] sm:$0xf]
        %v8770 = vld [vmem:[#allocation20 + $0x30] sm:$0xff]
        %v8771 = vld [vmem:[#allocation20 + $0x38] sm:$0xf]
        %v8772 = vld [vmem:[#allocation20 + $0x3c] sm:$0xff]
        %v8773 = vld [vmem:[#allocation20 + $0x44] sm:$0xf]
        %v8774 = vld [vmem:[#allocation20 + $0x48] sm:$0xff]
        %v8775 = vld [vmem:[#allocation20 + $0x50] sm:$0xf]
        %v8776 = vld [vmem:[#allocation20 + $0x54] sm:$0xff]
        %v8777 = vld [vmem:[#allocation20 + $0x5c] sm:$0xf]
        %v8778 = vld [vmem:[#allocation20 + $0x60] sm:$0xff]
        %v8779 = vld [vmem:[#allocation20 + $0x68] sm:$0xf]
        %v8780 = vld [vmem:[#allocation20 + $0x6c] sm:$0xff]
        %v8781 = vld [vmem:[#allocation20 + $0x74] sm:$0xf]
        %v8782 = vld [vmem:[#allocation20 + $0x78] sm:$0xff]
        %v8783 = vld [vmem:[#allocation20 + $0x80] sm:$0xf]
        %v8784 = vld [vmem:[#allocation20 + $0x84] sm:$0xff]
        %v8785 = vld [vmem:[#allocation20 + $0x8c] sm:$0xf]
        %v8786 = vld [vmem:[#allocation20 + $0x90] sm:$0xff]
        %v8787 = vld [vmem:[#allocation20 + $0x98] sm:$0xf]
        %v8788 = vld [vmem:[#allocation20 + $0x9c] sm:$0xff]
        %v8789 = vld [vmem:[#allocation20 + $0xa4] sm:$0xf]
        %v8790 = vld [vmem:[#allocation20 + $0xa8] sm:$0xff]
        %v8791 = vld [vmem:[#allocation20 + $0xb0] sm:$0xf]
        %v8792 = vld [vmem:[#allocation20 + $0xb4] sm:$0xff]
        %v8793 = vld [vmem:[#allocation20 + $0xbc] sm:$0xf]
        %v8794 = vld [vmem:[#allocation20 + $0xc0] sm:$0xff]
        %v8795 = vld [vmem:[#allocation20 + $0xc8] sm:$0xf]
        %v8796 = vld [vmem:[#allocation20 + $0xcc] sm:$0xff]
        %v8797 = vld [vmem:[#allocation20 + $0xd4] sm:$0xf]
        %v8798 = vld [vmem:[#allocation20 + $0xd8] sm:$0xff]
        %v8799 = vld [vmem:[#allocation20 + $0xe0] sm:$0xf]
        %v8800 = vld [vmem:[#allocation20 + $0xe4] sm:$0xff]
        %v8801 = vld [vmem:[#allocation20 + $0xec] sm:$0xf]
        %v8802 = vld [vmem:[#allocation20 + $0xf0] sm:$0xff]
        %v8803 = vld [vmem:[#allocation20 + $0xf8] sm:$0xf]
        %v8804 = vld [vmem:[#allocation20 + $0xfc] sm:$0xff]
        %v8805 = vld [vmem:[#allocation20 + $0x104] sm:$0xf]
        %v8806 = vld [vmem:[#allocation20 + $0x108] sm:$0xff]
        %v8807 = vld [vmem:[#allocation20 + $0x110] sm:$0xf]
        %v8808 = vld [vmem:[#allocation20 + $0x114] sm:$0xff]
        %v8809 = vld [vmem:[#allocation20 + $0x11c] sm:$0xf]
        %v8810 = vld [vmem:[#allocation20 + $0x120] sm:$0xff]
        %v8811 = vld [vmem:[#allocation20 + $0x128] sm:$0xf]
        %v8812 = vld [vmem:[#allocation20 + $0x12c] sm:$0xff]
        %v8813 = vld [vmem:[#allocation20 + $0x134] sm:$0xf]
        %v8814 = vld [vmem:[#allocation20 + $0x138] sm:$0xff]
        %v8815 = vld [vmem:[#allocation20 + $0x140] sm:$0xf]
        %v8816 = vld [vmem:[#allocation20 + $0x144] sm:$0xff]
        %v8817 = vld [vmem:[#allocation20 + $0x14c] sm:$0xf]
        %v8818 = vld [vmem:[#allocation20 + $0x150] sm:$0xff]
        %v8819 = vld [vmem:[#allocation20 + $0x158] sm:$0xf]
        %v8820 = vld [vmem:[#allocation20 + $0x15c] sm:$0xff]
        %v8821 = vld [vmem:[#allocation20 + $0x164] sm:$0xf]
        %v8822 = vld [vmem:[#allocation20 + $0x168] sm:$0xff]
        %v8823 = vld [vmem:[#allocation20 + $0x170] sm:$0xf]
        %v8824 = vld [vmem:[#allocation20 + $0x174] sm:$0xff]
        %v8825 = vld [vmem:[#allocation20 + $0x17c] sm:$0xf]
        %v8826 = vld [vmem:[#allocation20 + $0x180] sm:$0xff]
        %v8827 = vld [vmem:[#allocation20 + $0x188] sm:$0xf]
        %v8828 = vld [vmem:[#allocation20 + $0x18c] sm:$0xff]
        %v8829 = vld [vmem:[#allocation20 + $0x194] sm:$0xf]
        %v8830 = vld [vmem:[#allocation20 + $0x198] sm:$0xff]
        %v8831 = vld [vmem:[#allocation20 + $0x1a0] sm:$0xf]
        %v8832 = vld [vmem:[#allocation20 + $0x1a4] sm:$0xff]
        %v8833 = vld [vmem:[#allocation20 + $0x1ac] sm:$0xf]
        %v8834 = vld [vmem:[#allocation20 + $0x1b0] sm:$0xff]
        %v8835 = vld [vmem:[#allocation20 + $0x1b8] sm:$0xf]
        %v8836 = vld [vmem:[#allocation20 + $0x1bc] sm:$0xff]
        %v8837 = vld [vmem:[#allocation20 + $0x1c4] sm:$0xf]
        %v8838 = vld [vmem:[#allocation20 + $0x1c8] sm:$0xff]
        %v8839 = vld [vmem:[#allocation20 + $0x1d0] sm:$0xf]
        %v8840 = vld [vmem:[#allocation20 + $0x1d4] sm:$0xff]
        %v8841 = vld [vmem:[#allocation20 + $0x1dc] sm:$0xf]
        %v8842 = vld [vmem:[#allocation20 + $0x1e0] sm:$0xff]
        %v8843 = vld [vmem:[#allocation20 + $0x1e8] sm:$0xf]
        %v8844 = vld [vmem:[#allocation20 + $0x1ec] sm:$0xff]
        %v8845 = vld [vmem:[#allocation20 + $0x1f4] sm:$0xf]
        %v8846 = vld [vmem:[#allocation20 + $0x1f8] sm:$0xff]
        %v8847 = vld [vmem:[#allocation20 + $0x200] sm:$0xf]
        %v8848 = vld [vmem:[#allocation20 + $0x204] sm:$0xff]
        %v8849 = vld [vmem:[#allocation20 + $0x20c] sm:$0xf]
        %v8850 = vld [vmem:[#allocation20 + $0x210] sm:$0xff]
        %v8851 = vld [vmem:[#allocation20 + $0x218] sm:$0xf]
        %v8852 = vld [vmem:[#allocation20 + $0x21c] sm:$0xff]
        %v8853 = vld [vmem:[#allocation20 + $0x224] sm:$0xf]
        %v8854 = vld [vmem:[#allocation20 + $0x228] sm:$0xff]
        %v8855 = vld [vmem:[#allocation20 + $0x230] sm:$0xf]
        %v8856 = vld [vmem:[#allocation20 + $0x234] sm:$0xff]
        %v8857 = vld [vmem:[#allocation20 + $0x23c] sm:$0xf]
        %v8858 = vld [vmem:[#allocation20 + $0x240] sm:$0xff]
        %v8859 = vld [vmem:[#allocation20 + $0x248] sm:$0xf]
        %v8860 = vld [vmem:[#allocation20 + $0x24c] sm:$0xff]
        %v8861 = vld [vmem:[#allocation20 + $0x254] sm:$0xf]
        %v8862 = vld [vmem:[#allocation20 + $0x258] sm:$0xff]
        %v8863 = vld [vmem:[#allocation20 + $0x260] sm:$0xf]
        %v8864 = vld [vmem:[#allocation20 + $0x264] sm:$0xff]
        %v8865 = vld [vmem:[#allocation20 + $0x26c] sm:$0xf]
        %v8866 = vld [vmem:[#allocation20 + $0x270] sm:$0xff]
        %v8867 = vld [vmem:[#allocation20 + $0x278] sm:$0xf]
        %v8868 = vld [vmem:[#allocation20 + $0x27c] sm:$0xff]
        %v8869 = vld [vmem:[#allocation20 + $0x284] sm:$0xf]
        %v8870 = vld [vmem:[#allocation20 + $0x288] sm:$0xff]
        %v8871 = vld [vmem:[#allocation20 + $0x290] sm:$0xf]
        %v8872 = vld [vmem:[#allocation20 + $0x294] sm:$0xff]
        %v8873 = vld [vmem:[#allocation20 + $0x29c] sm:$0xf]
        %v8874 = vld [vmem:[#allocation20 + $0x2a0] sm:$0xff]
        %v8875 = vld [vmem:[#allocation20 + $0x2a8] sm:$0xf]
        %v8876 = vld [vmem:[#allocation20 + $0x2ac] sm:$0xff]
        %v8877 = vld [vmem:[#allocation20 + $0x2b4] sm:$0xf]
        %v8878 = vld [vmem:[#allocation20 + $0x2b8] sm:$0xff]
        %v8879 = vld [vmem:[#allocation20 + $0x2c0] sm:$0xf]
        %v8880 = vld [vmem:[#allocation20 + $0x2c4] sm:$0xff]
        %v8881 = vld [vmem:[#allocation20 + $0x2cc] sm:$0xf]
        %v8882 = vld [vmem:[#allocation20 + $0x2d0] sm:$0xff]
        %v8883 = vld [vmem:[#allocation20 + $0x2d8] sm:$0xf]
        %v8884 = vld [vmem:[#allocation20 + $0x2dc] sm:$0xff]
        %v8885 = vld [vmem:[#allocation20 + $0x2e4] sm:$0xf]
        %v8886 = vld [vmem:[#allocation20 + $0x2e8] sm:$0xff]
        %v8887 = vld [vmem:[#allocation20 + $0x2f0] sm:$0xf]
        %v8888 = vld [vmem:[#allocation20 + $0x2f4] sm:$0xff]
        %v8889 = vld [vmem:[#allocation20 + $0x2fc] sm:$0xf]
        %v8890 = vld [vmem:[#allocation20 + $0x300] sm:$0xff]
        %v8891 = vld [vmem:[#allocation20 + $0x308] sm:$0xf]
        %v8892 = vld [vmem:[#allocation20 + $0x30c] sm:$0xff]
        %v8893 = vld [vmem:[#allocation20 + $0x314] sm:$0xf]
        %v8894 = vld [vmem:[#allocation20 + $0x318] sm:$0xff]
        %v8895 = vld [vmem:[#allocation20 + $0x320] sm:$0xf]
        %v8896 = vld [vmem:[#allocation20 + $0x324] sm:$0xff]
        %v8897 = vld [vmem:[#allocation20 + $0x32c] sm:$0xf]
        %v8898 = vld [vmem:[#allocation20 + $0x330] sm:$0xff]
        %v8899 = vld [vmem:[#allocation20 + $0x338] sm:$0xf]
        %v8900 = vld [vmem:[#allocation20 + $0x33c] sm:$0xff]
        %v8901 = vld [vmem:[#allocation20 + $0x344] sm:$0xf]
        %v8902 = vld [vmem:[#allocation20 + $0x348] sm:$0xff]
        %v8903 = vld [vmem:[#allocation20 + $0x350] sm:$0xf]
        %v8904 = vld [vmem:[#allocation20 + $0x354] sm:$0xff]
        %v8905 = vld [vmem:[#allocation20 + $0x35c] sm:$0xf]
        %v8906 = vld [vmem:[#allocation20 + $0x360] sm:$0xff]
        %v8907 = vld [vmem:[#allocation20 + $0x368] sm:$0xf]
        %v8908 = vld [vmem:[#allocation20 + $0x36c] sm:$0xff]
        %v8909 = vld [vmem:[#allocation20 + $0x374] sm:$0xf]
        %v8910 = vld [vmem:[#allocation20 + $0x378] sm:$0xff]
        %v8911 = vld [vmem:[#allocation20 + $0x380] sm:$0xf]
        %v8912 = vld [vmem:[#allocation20 + $0x384] sm:$0xff]
        %v8913 = vld [vmem:[#allocation20 + $0x38c] sm:$0xf]
        %v8914 = vld [vmem:[#allocation20 + $0x390] sm:$0xff]
        %v8915 = vld [vmem:[#allocation20 + $0x398] sm:$0xf]
        %v8916 = vld [vmem:[#allocation20 + $0x39c] sm:$0xff]
        %v8917 = vld [vmem:[#allocation20 + $0x3a4] sm:$0xf]
        %v8918 = vld [vmem:[#allocation20 + $0x3a8] sm:$0xff]
        %v8919 = vld [vmem:[#allocation20 + $0x3b0] sm:$0xf]
        %v8920 = vld [vmem:[#allocation20 + $0x3b4] sm:$0xff]
        %v8921 = vld [vmem:[#allocation20 + $0x3bc] sm:$0xf]
        %v8922 = vld [vmem:[#allocation20 + $0x3c0] sm:$0xff]
        %v8923 = vld [vmem:[#allocation20 + $0x3c8] sm:$0xf]
        %v8924 = vld [vmem:[#allocation20 + $0x3cc] sm:$0xff]
        %v8925 = vld [vmem:[#allocation20 + $0x3d4] sm:$0xf]
        %v8926 = vld [vmem:[#allocation20 + $0x3d8] sm:$0xff]
        %v8927 = vld [vmem:[#allocation20 + $0x3e0] sm:$0xf]
        %v8928 = vld [vmem:[#allocation20 + $0x3e4] sm:$0xff]
        %v8929 = vld [vmem:[#allocation20 + $0x3ec] sm:$0xf]
        %v8930 = vld [vmem:[#allocation20 + $0x3f0] sm:$0xff]
        %v8931 = vld [vmem:[#allocation20 + $0x3f8] sm:$0xf]
        %v8932 = vld [vmem:[#allocation20 + $0x3fc] sm:$0xff]
        %v8933 = vld [vmem:[#allocation20 + $0x404] sm:$0xf]
        %v8934 = vld [vmem:[#allocation20 + $0x408] sm:$0xff]
        %v8935 = vld [vmem:[#allocation20 + $0x410] sm:$0xf]
        %v8936 = vld [vmem:[#allocation20 + $0x414] sm:$0xff]
        %v8937 = vld [vmem:[#allocation20 + $0x41c] sm:$0xf]
        %v8938 = vld [vmem:[#allocation20 + $0x420] sm:$0xff]
        %v8939 = vld [vmem:[#allocation20 + $0x428] sm:$0xf]
        %v8940 = vld [vmem:[#allocation20 + $0x42c] sm:$0xff]
        %v8941 = vld [vmem:[#allocation20 + $0x434] sm:$0xf]
        %v8942 = vld [vmem:[#allocation20 + $0x438] sm:$0xff]
        %v8943 = vld [vmem:[#allocation20 + $0x440] sm:$0xf]
        %v8944 = vld [vmem:[#allocation20 + $0x444] sm:$0xff]
        %v8945 = vld [vmem:[#allocation20 + $0x44c] sm:$0xf]
        %v8946 = vld [vmem:[#allocation20 + $0x450] sm:$0xff]
        %v8947 = vld [vmem:[#allocation20 + $0x458] sm:$0xf]
        %v8948 = vld [vmem:[#allocation20 + $0x45c] sm:$0xff]
        %v8949 = vld [vmem:[#allocation20 + $0x464] sm:$0xf]
        %v8950 = vld [vmem:[#allocation20 + $0x468] sm:$0xff]
        %v8951 = vld [vmem:[#allocation20 + $0x470] sm:$0xf]
        %v8952 = vld [vmem:[#allocation20 + $0x474] sm:$0xff]
        %v8953 = vld [vmem:[#allocation20 + $0x47c] sm:$0xf]
        %v8954 = vld [vmem:[#allocation20 + $0x480] sm:$0xff]
        %v8955 = vld [vmem:[#allocation20 + $0x488] sm:$0xf]
        %v8956 = vld [vmem:[#allocation20 + $0x48c] sm:$0xff]
        %v8957 = vld [vmem:[#allocation20 + $0x494] sm:$0xf]
        %v8958 = vld [vmem:[#allocation20 + $0x498] sm:$0xff]
        %v8959 = vld [vmem:[#allocation20 + $0x4a0] sm:$0xf]
        %v8960 = vld [vmem:[#allocation20 + $0x4a4] sm:$0xff]
        %v8961 = vld [vmem:[#allocation20 + $0x4ac] sm:$0xf]
        %v8962 = vld [vmem:[#allocation20 + $0x4b0] sm:$0xff]
        %v8963 = vld [vmem:[#allocation20 + $0x4b8] sm:$0xf]
        %v8964 = vld [vmem:[#allocation20 + $0x4bc] sm:$0xff]
        %v8965 = vld [vmem:[#allocation20 + $0x4c4] sm:$0xf]
        %v8966 = vld [vmem:[#allocation20 + $0x4c8] sm:$0xff]
        %v8967 = vld [vmem:[#allocation20 + $0x4d0] sm:$0xf]
        %v8968 = vld [vmem:[#allocation20 + $0x4d4] sm:$0xff]
        %v8969 = vld [vmem:[#allocation20 + $0x4dc] sm:$0xf]
        %v8970 = vld [vmem:[#allocation20 + $0x4e0] sm:$0xff]
        %v8971 = vld [vmem:[#allocation20 + $0x4e8] sm:$0xf]
        %v8972 = vld [vmem:[#allocation20 + $0x4ec] sm:$0xff]
        %v8973 = vld [vmem:[#allocation20 + $0x4f4] sm:$0xf]
        %v8974 = vld [vmem:[#allocation20 + $0x4f8] sm:$0xff]
        %v8975 = vld [vmem:[#allocation20 + $0x500] sm:$0xf]
        %v8976 = vld [vmem:[#allocation20 + $0x504] sm:$0xff]
        %v8977 = vld [vmem:[#allocation20 + $0x50c] sm:$0xf]
        %v8978 = vld [vmem:[#allocation20 + $0x510] sm:$0xff]
        %v8979 = vld [vmem:[#allocation20 + $0x518] sm:$0xf]
        %v8980 = vld [vmem:[#allocation20 + $0x51c] sm:$0xff]
        %v8981 = vld [vmem:[#allocation20 + $0x524] sm:$0xf]
        %v8982 = vld [vmem:[#allocation20 + $0x528] sm:$0xff]
        %v8983 = vld [vmem:[#allocation20 + $0x530] sm:$0xf]
        %v8984 = vld [vmem:[#allocation20 + $0x534] sm:$0xff]
        %v8985 = vld [vmem:[#allocation20 + $0x53c] sm:$0xf]
        %v8986 = vld [vmem:[#allocation20 + $0x540] sm:$0xff]
        %v8987 = vld [vmem:[#allocation20 + $0x548] sm:$0xf]
        %v8988 = vld [vmem:[#allocation20 + $0x54c] sm:$0xff]
        %v8989 = vld [vmem:[#allocation20 + $0x554] sm:$0xf]
        %v8990 = vld [vmem:[#allocation20 + $0x558] sm:$0xff]
        %v8991 = vld [vmem:[#allocation20 + $0x560] sm:$0xf]
        %v8992 = vld [vmem:[#allocation20 + $0x564] sm:$0xff]
        %v8993 = vld [vmem:[#allocation20 + $0x56c] sm:$0xf]
        %v8994 = vld [vmem:[#allocation20 + $0x570] sm:$0xff]
        %v8995 = vld [vmem:[#allocation20 + $0x578] sm:$0xf]
        %v8996 = vld [vmem:[#allocation20 + $0x57c] sm:$0xff]
        %v8997 = vld [vmem:[#allocation20 + $0x584] sm:$0xf]
        %v8998 = vld [vmem:[#allocation20 + $0x588] sm:$0xff]
        %v8999 = vld [vmem:[#allocation20 + $0x590] sm:$0xf]
        %v9000 = vld [vmem:[#allocation20 + $0x594] sm:$0xff]
        %v9001 = vld [vmem:[#allocation20 + $0x59c] sm:$0xf]
        %v9002 = vld [vmem:[#allocation20 + $0x5a0] sm:$0xff]
        %v9003 = vld [vmem:[#allocation20 + $0x5a8] sm:$0xf]
        %v9004 = vld [vmem:[#allocation20 + $0x5ac] sm:$0xff]
        %v9005 = vld [vmem:[#allocation20 + $0x5b4] sm:$0xf]
        %v9006 = vld [vmem:[#allocation20 + $0x5b8] sm:$0xff]
        %v9007 = vld [vmem:[#allocation20 + $0x5c0] sm:$0xf]
        %v9008 = vld [vmem:[#allocation20 + $0x5c4] sm:$0xff]
        %v9009 = vld [vmem:[#allocation20 + $0x5cc] sm:$0xf]
        %v9010 = vld [vmem:[#allocation20 + $0x5d0] sm:$0xff]
        %v9011 = vld [vmem:[#allocation20 + $0x5d8] sm:$0xf]
        %v9012 = vld [vmem:[#allocation20 + $0x5dc] sm:$0xff]
        %v9013 = vld [vmem:[#allocation20 + $0x5e4] sm:$0xf]
        %v9014 = vld [vmem:[#allocation20 + $0x5e8] sm:$0xff]
        %v9015 = vld [vmem:[#allocation20 + $0x5f0] sm:$0xf]
        %v9016 = vld [vmem:[#allocation20 + $0x5f4] sm:$0xff]
        %v9017 = vld [vmem:[#allocation20 + $0x5fc] sm:$0xf]
        %v9018 = vld [vmem:[#allocation20 + $0x600] sm:$0xff]
        %v9019 = vld [vmem:[#allocation20 + $0x608] sm:$0xf]
        %v9020 = vld [vmem:[#allocation20 + $0x60c] sm:$0xff]
        %v9021 = vld [vmem:[#allocation20 + $0x614] sm:$0xf]
        %v9022 = vld [vmem:[#allocation20 + $0x618] sm:$0xff]
        %v9023 = vld [vmem:[#allocation20 + $0x620] sm:$0xf]
        %v9024 = vld [vmem:[#allocation20 + $0x624] sm:$0xff]
        %v9025 = vld [vmem:[#allocation20 + $0x62c] sm:$0xf]
        %v9026 = vld [vmem:[#allocation20 + $0x630] sm:$0xff]
        %v9027 = vld [vmem:[#allocation20 + $0x638] sm:$0xf]
        %v9028 = vld [vmem:[#allocation20 + $0x63c] sm:$0xff]
        %v9029 = vld [vmem:[#allocation20 + $0x644] sm:$0xf]
        %v9030 = vld [vmem:[#allocation20 + $0x648] sm:$0xff]
        %v9031 = vld [vmem:[#allocation20 + $0x650] sm:$0xf]
        %v9032 = vld [vmem:[#allocation20 + $0x654] sm:$0xff]
        %v9033 = vld [vmem:[#allocation20 + $0x65c] sm:$0xf]
        %v9034 = vld [vmem:[#allocation20 + $0x660] sm:$0xff]
        %v9035 = vld [vmem:[#allocation20 + $0x668] sm:$0xf]
        %v9036 = vld [vmem:[#allocation20 + $0x66c] sm:$0xff]
        %v9037 = vld [vmem:[#allocation20 + $0x674] sm:$0xf]
        %v9038 = vld [vmem:[#allocation20 + $0x678] sm:$0xff]
        %v9039 = vld [vmem:[#allocation20 + $0x680] sm:$0xf]
        %v9040 = vld [vmem:[#allocation20 + $0x684] sm:$0xff]
        %v9041 = vld [vmem:[#allocation20 + $0x68c] sm:$0xf]
        %v9042 = vld [vmem:[#allocation20 + $0x690] sm:$0xff]
        %v9043 = vld [vmem:[#allocation20 + $0x698] sm:$0xf]
        %v9044 = vld [vmem:[#allocation20 + $0x69c] sm:$0xff]
        %v9045 = vld [vmem:[#allocation20 + $0x6a4] sm:$0xf]
        %v9046 = vld [vmem:[#allocation20 + $0x6a8] sm:$0xff]
        %v9047 = vld [vmem:[#allocation20 + $0x6b0] sm:$0xf]
        %v9048 = vld [vmem:[#allocation20 + $0x6b4] sm:$0xff]
        %v9049 = vld [vmem:[#allocation20 + $0x6bc] sm:$0xf]
        %v9050 = vld [vmem:[#allocation20 + $0x6c0] sm:$0xff]
        %v9051 = vld [vmem:[#allocation20 + $0x6c8] sm:$0xf]
        %v9052 = vld [vmem:[#allocation20 + $0x6cc] sm:$0xff]
        %v9053 = vld [vmem:[#allocation20 + $0x6d4] sm:$0xf]
        %v9054 = vld [vmem:[#allocation20 + $0x6d8] sm:$0xff]
        %v9055 = vld [vmem:[#allocation20 + $0x6e0] sm:$0xf]
        %v9056 = vld [vmem:[#allocation20 + $0x6e4] sm:$0xff]
        %v9057 = vld [vmem:[#allocation20 + $0x6ec] sm:$0xf]
        %v9058 = vld [vmem:[#allocation20 + $0x6f0] sm:$0xff]
        %v9059 = vld [vmem:[#allocation20 + $0x6f8] sm:$0xf]
        %v9060 = vld [vmem:[#allocation20 + $0x6fc] sm:$0xff]
        %v9061 = vld [vmem:[#allocation20 + $0x704] sm:$0xf]
        %v9062 = vld [vmem:[#allocation20 + $0x708] sm:$0xff]
        %v9063 = vld [vmem:[#allocation20 + $0x710] sm:$0xf]
        %v9064 = vld [vmem:[#allocation20 + $0x714] sm:$0xff]
        %v9065 = vld [vmem:[#allocation20 + $0x71c] sm:$0xf]
        %v9066 = vld [vmem:[#allocation20 + $0x720] sm:$0xff]
        %v9067 = vld [vmem:[#allocation20 + $0x728] sm:$0xf]
        %v9068 = vld [vmem:[#allocation20 + $0x72c] sm:$0xff]
        %v9069 = vld [vmem:[#allocation20 + $0x734] sm:$0xf]
        %v9070 = vld [vmem:[#allocation20 + $0x738] sm:$0xff]
        %v9071 = vld [vmem:[#allocation20 + $0x740] sm:$0xf]
        %v9072 = vld [vmem:[#allocation20 + $0x744] sm:$0xff]
        %v9073 = vld [vmem:[#allocation20 + $0x74c] sm:$0xf]
        %v9074 = vld [vmem:[#allocation20 + $0x750] sm:$0xff]
        %v9075 = vld [vmem:[#allocation20 + $0x758] sm:$0xf]
        %v9076 = vld [vmem:[#allocation20 + $0x75c] sm:$0xff]
        %v9077 = vld [vmem:[#allocation20 + $0x764] sm:$0xf]
        %v9078 = vld [vmem:[#allocation20 + $0x768] sm:$0xff]
        %v9079 = vld [vmem:[#allocation20 + $0x770] sm:$0xf]
        %v9080 = vld [vmem:[#allocation20 + $0x774] sm:$0xff]
        %v9081 = vld [vmem:[#allocation20 + $0x77c] sm:$0xf]
        %v9082 = vld [vmem:[#allocation20 + $0x780] sm:$0xff]
        %v9083 = vld [vmem:[#allocation20 + $0x788] sm:$0xf]
        %v9084 = vld [vmem:[#allocation20 + $0x78c] sm:$0xff]
        %v9085 = vld [vmem:[#allocation20 + $0x794] sm:$0xf]
        %v9086 = vld [vmem:[#allocation20 + $0x798] sm:$0xff]
        %v9087 = vld [vmem:[#allocation20 + $0x7a0] sm:$0xf]
        %v9088 = vld [vmem:[#allocation20 + $0x7a4] sm:$0xff]
        %v9089 = vld [vmem:[#allocation20 + $0x7ac] sm:$0xf]
        %v9090 = vld [vmem:[#allocation20 + $0x7b0] sm:$0xff]
        %v9091 = vld [vmem:[#allocation20 + $0x7b8] sm:$0xf]
        %v9092 = vld [vmem:[#allocation20 + $0x7bc] sm:$0xff]
        %v9093 = vld [vmem:[#allocation20 + $0x7c4] sm:$0xf]
        %v9094 = vld [vmem:[#allocation20 + $0x7c8] sm:$0xff]
        %v9095 = vld [vmem:[#allocation20 + $0x7d0] sm:$0xf]
        %v9096 = vld [vmem:[#allocation20 + $0x7d4] sm:$0xff]
        %v9097 = vld [vmem:[#allocation20 + $0x7dc] sm:$0xf]
        %v9098 = vld [vmem:[#allocation20 + $0x7e0] sm:$0xff]
        %v9099 = vld [vmem:[#allocation20 + $0x7e8] sm:$0xf]
        %v9100 = vld [vmem:[#allocation20 + $0x7ec] sm:$0xff]
        %v9101 = vld [vmem:[#allocation20 + $0x7f4] sm:$0xf]
        %v9102 = vld [vmem:[#allocation20 + $0x7f8] sm:$0xff]
        %v9103 = vld [vmem:[#allocation20 + $0x800] sm:$0xf]
        %v9104 = vld [vmem:[#allocation20 + $0x804] sm:$0xff]
        %v9105 = vld [vmem:[#allocation20 + $0x80c] sm:$0xf]
        %v9106 = vld [vmem:[#allocation20 + $0x810] sm:$0xff]
        %v9107 = vld [vmem:[#allocation20 + $0x818] sm:$0xf]
        %v9108 = vld [vmem:[#allocation20 + $0x81c] sm:$0xff]
        %v9109 = vld [vmem:[#allocation20 + $0x824] sm:$0xf]
        %v9110 = vld [vmem:[#allocation20 + $0x828] sm:$0xff]
        %v9111 = vld [vmem:[#allocation20 + $0x830] sm:$0xf]
        %v9112 = vld [vmem:[#allocation20 + $0x834] sm:$0xff]
        %v9113 = vld [vmem:[#allocation20 + $0x83c] sm:$0xf]
        %v9114 = vld [vmem:[#allocation20 + $0x840] sm:$0xff]
        %v9115 = vld [vmem:[#allocation20 + $0x848] sm:$0xf]
        %v9116 = vld [vmem:[#allocation20 + $0x84c] sm:$0xff]
        %v9117 = vld [vmem:[#allocation20 + $0x854] sm:$0xf]
        %v9118 = vld [vmem:[#allocation20 + $0x858] sm:$0xff]
        %v9119 = vld [vmem:[#allocation20 + $0x860] sm:$0xf]
        %v9120 = vld [vmem:[#allocation20 + $0x864] sm:$0xff]
        %v9121 = vld [vmem:[#allocation20 + $0x86c] sm:$0xf]
        %v9122 = vld [vmem:[#allocation20 + $0x870] sm:$0xff]
        %v9123 = vld [vmem:[#allocation20 + $0x878] sm:$0xf]
        %v9124 = vld [vmem:[#allocation20 + $0x87c] sm:$0xff]
        %v9125 = vld [vmem:[#allocation20 + $0x884] sm:$0xf]
        %v9126 = vld [vmem:[#allocation20 + $0x888] sm:$0xff]
        %v9127 = vld [vmem:[#allocation20 + $0x890] sm:$0xf]
        %v9128 = vld [vmem:[#allocation20 + $0x894] sm:$0xff]
        %v9129 = vld [vmem:[#allocation20 + $0x89c] sm:$0xf]
        %v9130 = vld [vmem:[#allocation20 + $0x8a0] sm:$0xff]
        %v9131 = vld [vmem:[#allocation20 + $0x8a8] sm:$0xf]
        %v9132 = vld [vmem:[#allocation20 + $0x8ac] sm:$0xff]
        %v9133 = vld [vmem:[#allocation20 + $0x8b4] sm:$0xf]
        %v9134 = vld [vmem:[#allocation20 + $0x8b8] sm:$0xff]
        %v9135 = vld [vmem:[#allocation20 + $0x8c0] sm:$0xf]
        %v9136 = vld [vmem:[#allocation20 + $0x8c4] sm:$0xff]
        %v9137 = vld [vmem:[#allocation20 + $0x8cc] sm:$0xf]
        %v9138 = vld [vmem:[#allocation20 + $0x8d0] sm:$0xff]
        %v9139 = vld [vmem:[#allocation20 + $0x8d8] sm:$0xf]
        %v9140 = vld [vmem:[#allocation20 + $0x8dc] sm:$0xff]
        %v9141 = vld [vmem:[#allocation20 + $0x8e4] sm:$0xf]
        %v9142 = vld [vmem:[#allocation20 + $0x8e8] sm:$0xff]
        %v9143 = vld [vmem:[#allocation20 + $0x8f0] sm:$0xf]
        %v9144 = vld [vmem:[#allocation20 + $0x8f4] sm:$0xff]
        %v9145 = vld [vmem:[#allocation20 + $0x8fc] sm:$0xf]
        %v9530 = vunpack.c.l.b16 %v8762
        %v9531 = vunpack.c.h.b16 %v8762
        %v9532 = vunpack.c.l.b16 %v8763
        %v9533 = vunpack.c.l.b16 %v8764
        %v9534 = vunpack.c.h.b16 %v8764
        %v9535 = vunpack.c.l.b16 %v8765
        %v9536 = vunpack.c.l.b16 %v8766
        %v9537 = vunpack.c.h.b16 %v8766
        %v9538 = vunpack.c.l.b16 %v8767
        %v9539 = vunpack.c.l.b16 %v8768
        %v9540 = vunpack.c.h.b16 %v8768
        %v9541 = vunpack.c.l.b16 %v8769
        %v9542 = vunpack.c.l.b16 %v8770
        %v9543 = vunpack.c.h.b16 %v8770
        %v9544 = vunpack.c.l.b16 %v8771
        %v9545 = vunpack.c.l.b16 %v8772
        %v9546 = vunpack.c.h.b16 %v8772
        %v9547 = vunpack.c.l.b16 %v8773
        %v9548 = vunpack.c.l.b16 %v8774
        %v9549 = vunpack.c.h.b16 %v8774
        %v9550 = vunpack.c.l.b16 %v8775
        %v9551 = vunpack.c.l.b16 %v8776
        %v9552 = vunpack.c.h.b16 %v8776
        %v9553 = vunpack.c.l.b16 %v8777
        %v9554 = vunpack.c.l.b16 %v8778
        %v9555 = vunpack.c.h.b16 %v8778
        %v9556 = vunpack.c.l.b16 %v8779
        %v9557 = vunpack.c.l.b16 %v8780
        %v9558 = vunpack.c.h.b16 %v8780
        %v9559 = vunpack.c.l.b16 %v8781
        %v9560 = vunpack.c.l.b16 %v8782
        %v9561 = vunpack.c.h.b16 %v8782
        %v9562 = vunpack.c.l.b16 %v8783
        %v9563 = vunpack.c.l.b16 %v8784
        %v9564 = vunpack.c.h.b16 %v8784
        %v9565 = vunpack.c.l.b16 %v8785
        %v9566 = vunpack.c.l.b16 %v8786
        %v9567 = vunpack.c.h.b16 %v8786
        %v9568 = vunpack.c.l.b16 %v8787
        %v9569 = vunpack.c.l.b16 %v8788
        %v9570 = vunpack.c.h.b16 %v8788
        %v9571 = vunpack.c.l.b16 %v8789
        %v9572 = vunpack.c.l.b16 %v8790
        %v9573 = vunpack.c.h.b16 %v8790
        %v9574 = vunpack.c.l.b16 %v8791
        %v9575 = vunpack.c.l.b16 %v8792
        %v9576 = vunpack.c.h.b16 %v8792
        %v9577 = vunpack.c.l.b16 %v8793
        %v9578 = vunpack.c.l.b16 %v8794
        %v9579 = vunpack.c.h.b16 %v8794
        %v9580 = vunpack.c.l.b16 %v8795
        %v9581 = vunpack.c.l.b16 %v8796
        %v9582 = vunpack.c.h.b16 %v8796
        %v9583 = vunpack.c.l.b16 %v8797
        %v9584 = vunpack.c.l.b16 %v8798
        %v9585 = vunpack.c.h.b16 %v8798
        %v9586 = vunpack.c.l.b16 %v8799
        %v9587 = vunpack.c.l.b16 %v8800
        %v9588 = vunpack.c.h.b16 %v8800
        %v9589 = vunpack.c.l.b16 %v8801
        %v9590 = vunpack.c.l.b16 %v8802
        %v9591 = vunpack.c.h.b16 %v8802
        %v9592 = vunpack.c.l.b16 %v8803
        %v9593 = vunpack.c.l.b16 %v8804
        %v9594 = vunpack.c.h.b16 %v8804
        %v9595 = vunpack.c.l.b16 %v8805
        %v9596 = vunpack.c.l.b16 %v8806
        %v9597 = vunpack.c.h.b16 %v8806
        %v9598 = vunpack.c.l.b16 %v8807
        %v9599 = vunpack.c.l.b16 %v8808
        %v9600 = vunpack.c.h.b16 %v8808
        %v9601 = vunpack.c.l.b16 %v8809
        %v9602 = vunpack.c.l.b16 %v8810
        %v9603 = vunpack.c.h.b16 %v8810
        %v9604 = vunpack.c.l.b16 %v8811
        %v9605 = vunpack.c.l.b16 %v8812
        %v9606 = vunpack.c.h.b16 %v8812
        %v9607 = vunpack.c.l.b16 %v8813
        %v9608 = vunpack.c.l.b16 %v8814
        %v9609 = vunpack.c.h.b16 %v8814
        %v9610 = vunpack.c.l.b16 %v8815
        %v9611 = vunpack.c.l.b16 %v8816
        %v9612 = vunpack.c.h.b16 %v8816
        %v9613 = vunpack.c.l.b16 %v8817
        %v9614 = vunpack.c.l.b16 %v8818
        %v9615 = vunpack.c.h.b16 %v8818
        %v9616 = vunpack.c.l.b16 %v8819
        %v9617 = vunpack.c.l.b16 %v8820
        %v9618 = vunpack.c.h.b16 %v8820
        %v9619 = vunpack.c.l.b16 %v8821
        %v9620 = vunpack.c.l.b16 %v8822
        %v9621 = vunpack.c.h.b16 %v8822
        %v9622 = vunpack.c.l.b16 %v8823
        %v9623 = vunpack.c.l.b16 %v8824
        %v9624 = vunpack.c.h.b16 %v8824
        %v9625 = vunpack.c.l.b16 %v8825
        %v9626 = vunpack.c.l.b16 %v8826
        %v9627 = vunpack.c.h.b16 %v8826
        %v9628 = vunpack.c.l.b16 %v8827
        %v9629 = vunpack.c.l.b16 %v8828
        %v9630 = vunpack.c.h.b16 %v8828
        %v9631 = vunpack.c.l.b16 %v8829
        %v9632 = vunpack.c.l.b16 %v8830
        %v9633 = vunpack.c.h.b16 %v8830
        %v9634 = vunpack.c.l.b16 %v8831
        %v9635 = vunpack.c.l.b16 %v8832
        %v9636 = vunpack.c.h.b16 %v8832
        %v9637 = vunpack.c.l.b16 %v8833
        %v9638 = vunpack.c.l.b16 %v8834
        %v9639 = vunpack.c.h.b16 %v8834
        %v9640 = vunpack.c.l.b16 %v8835
        %v9641 = vunpack.c.l.b16 %v8836
        %v9642 = vunpack.c.h.b16 %v8836
        %v9643 = vunpack.c.l.b16 %v8837
        %v9644 = vunpack.c.l.b16 %v8838
        %v9645 = vunpack.c.h.b16 %v8838
        %v9646 = vunpack.c.l.b16 %v8839
        %v9647 = vunpack.c.l.b16 %v8840
        %v9648 = vunpack.c.h.b16 %v8840
        %v9649 = vunpack.c.l.b16 %v8841
        %v9650 = vunpack.c.l.b16 %v8842
        %v9651 = vunpack.c.h.b16 %v8842
        %v9652 = vunpack.c.l.b16 %v8843
        %v9653 = vunpack.c.l.b16 %v8844
        %v9654 = vunpack.c.h.b16 %v8844
        %v9655 = vunpack.c.l.b16 %v8845
        %v9656 = vunpack.c.l.b16 %v8846
        %v9657 = vunpack.c.h.b16 %v8846
        %v9658 = vunpack.c.l.b16 %v8847
        %v9659 = vunpack.c.l.b16 %v8848
        %v9660 = vunpack.c.h.b16 %v8848
        %v9661 = vunpack.c.l.b16 %v8849
        %v9662 = vunpack.c.l.b16 %v8850
        %v9663 = vunpack.c.h.b16 %v8850
        %v9664 = vunpack.c.l.b16 %v8851
        %v9665 = vunpack.c.l.b16 %v8852
        %v9666 = vunpack.c.h.b16 %v8852
        %v9667 = vunpack.c.l.b16 %v8853
        %v9668 = vunpack.c.l.b16 %v8854
        %v9669 = vunpack.c.h.b16 %v8854
        %v9670 = vunpack.c.l.b16 %v8855
        %v9671 = vunpack.c.l.b16 %v8856
        %v9672 = vunpack.c.h.b16 %v8856
        %v9673 = vunpack.c.l.b16 %v8857
        %v9674 = vunpack.c.l.b16 %v8858
        %v9675 = vunpack.c.h.b16 %v8858
        %v9676 = vunpack.c.l.b16 %v8859
        %v9677 = vunpack.c.l.b16 %v8860
        %v9678 = vunpack.c.h.b16 %v8860
        %v9679 = vunpack.c.l.b16 %v8861
        %v9680 = vunpack.c.l.b16 %v8862
        %v9681 = vunpack.c.h.b16 %v8862
        %v9682 = vunpack.c.l.b16 %v8863
        %v9683 = vunpack.c.l.b16 %v8864
        %v9684 = vunpack.c.h.b16 %v8864
        %v9685 = vunpack.c.l.b16 %v8865
        %v9686 = vunpack.c.l.b16 %v8866
        %v9687 = vunpack.c.h.b16 %v8866
        %v9688 = vunpack.c.l.b16 %v8867
        %v9689 = vunpack.c.l.b16 %v8868
        %v9690 = vunpack.c.h.b16 %v8868
        %v9691 = vunpack.c.l.b16 %v8869
        %v9692 = vunpack.c.l.b16 %v8870
        %v9693 = vunpack.c.h.b16 %v8870
        %v9694 = vunpack.c.l.b16 %v8871
        %v9695 = vunpack.c.l.b16 %v8872
        %v9696 = vunpack.c.h.b16 %v8872
        %v9697 = vunpack.c.l.b16 %v8873
        %v9698 = vunpack.c.l.b16 %v8874
        %v9699 = vunpack.c.h.b16 %v8874
        %v9700 = vunpack.c.l.b16 %v8875
        %v9701 = vunpack.c.l.b16 %v8876
        %v9702 = vunpack.c.h.b16 %v8876
        %v9703 = vunpack.c.l.b16 %v8877
        %v9704 = vunpack.c.l.b16 %v8878
        %v9705 = vunpack.c.h.b16 %v8878
        %v9706 = vunpack.c.l.b16 %v8879
        %v9707 = vunpack.c.l.b16 %v8880
        %v9708 = vunpack.c.h.b16 %v8880
        %v9709 = vunpack.c.l.b16 %v8881
        %v9710 = vunpack.c.l.b16 %v8882
        %v9711 = vunpack.c.h.b16 %v8882
        %v9712 = vunpack.c.l.b16 %v8883
        %v9713 = vunpack.c.l.b16 %v8884
        %v9714 = vunpack.c.h.b16 %v8884
        %v9715 = vunpack.c.l.b16 %v8885
        %v9716 = vunpack.c.l.b16 %v8886
        %v9717 = vunpack.c.h.b16 %v8886
        %v9718 = vunpack.c.l.b16 %v8887
        %v9719 = vunpack.c.l.b16 %v8888
        %v9720 = vunpack.c.h.b16 %v8888
        %v9721 = vunpack.c.l.b16 %v8889
        %v9722 = vunpack.c.l.b16 %v8890
        %v9723 = vunpack.c.h.b16 %v8890
        %v9724 = vunpack.c.l.b16 %v8891
        %v9725 = vunpack.c.l.b16 %v8892
        %v9726 = vunpack.c.h.b16 %v8892
        %v9727 = vunpack.c.l.b16 %v8893
        %v9728 = vunpack.c.l.b16 %v8894
        %v9729 = vunpack.c.h.b16 %v8894
        %v9730 = vunpack.c.l.b16 %v8895
        %v9731 = vunpack.c.l.b16 %v8896
        %v9732 = vunpack.c.h.b16 %v8896
        %v9733 = vunpack.c.l.b16 %v8897
        %v9734 = vunpack.c.l.b16 %v8898
        %v9735 = vunpack.c.h.b16 %v8898
        %v9736 = vunpack.c.l.b16 %v8899
        %v9737 = vunpack.c.l.b16 %v8900
        %v9738 = vunpack.c.h.b16 %v8900
        %v9739 = vunpack.c.l.b16 %v8901
        %v9740 = vunpack.c.l.b16 %v8902
        %v9741 = vunpack.c.h.b16 %v8902
        %v9742 = vunpack.c.l.b16 %v8903
        %v9743 = vunpack.c.l.b16 %v8904
        %v9744 = vunpack.c.h.b16 %v8904
        %v9745 = vunpack.c.l.b16 %v8905
        %v9746 = vunpack.c.l.b16 %v8906
        %v9747 = vunpack.c.h.b16 %v8906
        %v9748 = vunpack.c.l.b16 %v8907
        %v9749 = vunpack.c.l.b16 %v8908
        %v9750 = vunpack.c.h.b16 %v8908
        %v9751 = vunpack.c.l.b16 %v8909
        %v9752 = vunpack.c.l.b16 %v8910
        %v9753 = vunpack.c.h.b16 %v8910
        %v9754 = vunpack.c.l.b16 %v8911
        %v9755 = vunpack.c.l.b16 %v8912
        %v9756 = vunpack.c.h.b16 %v8912
        %v9757 = vunpack.c.l.b16 %v8913
        %v9758 = vunpack.c.l.b16 %v8914
        %v9759 = vunpack.c.h.b16 %v8914
        %v9760 = vunpack.c.l.b16 %v8915
        %v9761 = vunpack.c.l.b16 %v8916
        %v9762 = vunpack.c.h.b16 %v8916
        %v9763 = vunpack.c.l.b16 %v8917
        %v9764 = vunpack.c.l.b16 %v8918
        %v9765 = vunpack.c.h.b16 %v8918
        %v9766 = vunpack.c.l.b16 %v8919
        %v9767 = vunpack.c.l.b16 %v8920
        %v9768 = vunpack.c.h.b16 %v8920
        %v9769 = vunpack.c.l.b16 %v8921
        %v9770 = vunpack.c.l.b16 %v8922
        %v9771 = vunpack.c.h.b16 %v8922
        %v9772 = vunpack.c.l.b16 %v8923
        %v9773 = vunpack.c.l.b16 %v8924
        %v9774 = vunpack.c.h.b16 %v8924
        %v9775 = vunpack.c.l.b16 %v8925
        %v9776 = vunpack.c.l.b16 %v8926
        %v9777 = vunpack.c.h.b16 %v8926
        %v9778 = vunpack.c.l.b16 %v8927
        %v9779 = vunpack.c.l.b16 %v8928
        %v9780 = vunpack.c.h.b16 %v8928
        %v9781 = vunpack.c.l.b16 %v8929
        %v9782 = vunpack.c.l.b16 %v8930
        %v9783 = vunpack.c.h.b16 %v8930
        %v9784 = vunpack.c.l.b16 %v8931
        %v9785 = vunpack.c.l.b16 %v8932
        %v9786 = vunpack.c.h.b16 %v8932
        %v9787 = vunpack.c.l.b16 %v8933
        %v9788 = vunpack.c.l.b16 %v8934
        %v9789 = vunpack.c.h.b16 %v8934
        %v9790 = vunpack.c.l.b16 %v8935
        %v9791 = vunpack.c.l.b16 %v8936
        %v9792 = vunpack.c.h.b16 %v8936
        %v9793 = vunpack.c.l.b16 %v8937
        %v9794 = vunpack.c.l.b16 %v8938
        %v9795 = vunpack.c.h.b16 %v8938
        %v9796 = vunpack.c.l.b16 %v8939
        %v9797 = vunpack.c.l.b16 %v8940
        %v9798 = vunpack.c.h.b16 %v8940
        %v9799 = vunpack.c.l.b16 %v8941
        %v9800 = vunpack.c.l.b16 %v8942
        %v9801 = vunpack.c.h.b16 %v8942
        %v9802 = vunpack.c.l.b16 %v8943
        %v9803 = vunpack.c.l.b16 %v8944
        %v9804 = vunpack.c.h.b16 %v8944
        %v9805 = vunpack.c.l.b16 %v8945
        %v9806 = vunpack.c.l.b16 %v8946
        %v9807 = vunpack.c.h.b16 %v8946
        %v9808 = vunpack.c.l.b16 %v8947
        %v9809 = vunpack.c.l.b16 %v8948
        %v9810 = vunpack.c.h.b16 %v8948
        %v9811 = vunpack.c.l.b16 %v8949
        %v9812 = vunpack.c.l.b16 %v8950
        %v9813 = vunpack.c.h.b16 %v8950
        %v9814 = vunpack.c.l.b16 %v8951
        %v9815 = vunpack.c.l.b16 %v8952
        %v9816 = vunpack.c.h.b16 %v8952
        %v9817 = vunpack.c.l.b16 %v8953
        %v9818 = vunpack.c.l.b16 %v8954
        %v9819 = vunpack.c.h.b16 %v8954
        %v9820 = vunpack.c.l.b16 %v8955
        %v9821 = vunpack.c.l.b16 %v8956
        %v9822 = vunpack.c.h.b16 %v8956
        %v9823 = vunpack.c.l.b16 %v8957
        %v9824 = vunpack.c.l.b16 %v8958
        %v9825 = vunpack.c.h.b16 %v8958
        %v9826 = vunpack.c.l.b16 %v8959
        %v9827 = vunpack.c.l.b16 %v8960
        %v9828 = vunpack.c.h.b16 %v8960
        %v9829 = vunpack.c.l.b16 %v8961
        %v9830 = vunpack.c.l.b16 %v8962
        %v9831 = vunpack.c.h.b16 %v8962
        %v9832 = vunpack.c.l.b16 %v8963
        %v9833 = vunpack.c.l.b16 %v8964
        %v9834 = vunpack.c.h.b16 %v8964
        %v9835 = vunpack.c.l.b16 %v8965
        %v9836 = vunpack.c.l.b16 %v8966
        %v9837 = vunpack.c.h.b16 %v8966
        %v9838 = vunpack.c.l.b16 %v8967
        %v9839 = vunpack.c.l.b16 %v8968
        %v9840 = vunpack.c.h.b16 %v8968
        %v9841 = vunpack.c.l.b16 %v8969
        %v9842 = vunpack.c.l.b16 %v8970
        %v9843 = vunpack.c.h.b16 %v8970
        %v9844 = vunpack.c.l.b16 %v8971
        %v9845 = vunpack.c.l.b16 %v8972
        %v9846 = vunpack.c.h.b16 %v8972
        %v9847 = vunpack.c.l.b16 %v8973
        %v9848 = vunpack.c.l.b16 %v8974
        %v9849 = vunpack.c.h.b16 %v8974
        %v9850 = vunpack.c.l.b16 %v8975
        %v9851 = vunpack.c.l.b16 %v8976
        %v9852 = vunpack.c.h.b16 %v8976
        %v9853 = vunpack.c.l.b16 %v8977
        %v9854 = vunpack.c.l.b16 %v8978
        %v9855 = vunpack.c.h.b16 %v8978
        %v9856 = vunpack.c.l.b16 %v8979
        %v9857 = vunpack.c.l.b16 %v8980
        %v9858 = vunpack.c.h.b16 %v8980
        %v9859 = vunpack.c.l.b16 %v8981
        %v9860 = vunpack.c.l.b16 %v8982
        %v9861 = vunpack.c.h.b16 %v8982
        %v9862 = vunpack.c.l.b16 %v8983
        %v9863 = vunpack.c.l.b16 %v8984
        %v9864 = vunpack.c.h.b16 %v8984
        %v9865 = vunpack.c.l.b16 %v8985
        %v9866 = vunpack.c.l.b16 %v8986
        %v9867 = vunpack.c.h.b16 %v8986
        %v9868 = vunpack.c.l.b16 %v8987
        %v9869 = vunpack.c.l.b16 %v8988
        %v9870 = vunpack.c.h.b16 %v8988
        %v9871 = vunpack.c.l.b16 %v8989
        %v9872 = vunpack.c.l.b16 %v8990
        %v9873 = vunpack.c.h.b16 %v8990
        %v9874 = vunpack.c.l.b16 %v8991
        %v9875 = vunpack.c.l.b16 %v8992
        %v9876 = vunpack.c.h.b16 %v8992
        %v9877 = vunpack.c.l.b16 %v8993
        %v9878 = vunpack.c.l.b16 %v8994
        %v9879 = vunpack.c.h.b16 %v8994
        %v9880 = vunpack.c.l.b16 %v8995
        %v9881 = vunpack.c.l.b16 %v8996
        %v9882 = vunpack.c.h.b16 %v8996
        %v9883 = vunpack.c.l.b16 %v8997
        %v9884 = vunpack.c.l.b16 %v8998
        %v9885 = vunpack.c.h.b16 %v8998
        %v9886 = vunpack.c.l.b16 %v8999
        %v9887 = vunpack.c.l.b16 %v9000
        %v9888 = vunpack.c.h.b16 %v9000
        %v9889 = vunpack.c.l.b16 %v9001
        %v9890 = vunpack.c.l.b16 %v9002
        %v9891 = vunpack.c.h.b16 %v9002
        %v9892 = vunpack.c.l.b16 %v9003
        %v9893 = vunpack.c.l.b16 %v9004
        %v9894 = vunpack.c.h.b16 %v9004
        %v9895 = vunpack.c.l.b16 %v9005
        %v9896 = vunpack.c.l.b16 %v9006
        %v9897 = vunpack.c.h.b16 %v9006
        %v9898 = vunpack.c.l.b16 %v9007
        %v9899 = vunpack.c.l.b16 %v9008
        %v9900 = vunpack.c.h.b16 %v9008
        %v9901 = vunpack.c.l.b16 %v9009
        %v9902 = vunpack.c.l.b16 %v9010
        %v9903 = vunpack.c.h.b16 %v9010
        %v9904 = vunpack.c.l.b16 %v9011
        %v9905 = vunpack.c.l.b16 %v9012
        %v9906 = vunpack.c.h.b16 %v9012
        %v9907 = vunpack.c.l.b16 %v9013
        %v9908 = vunpack.c.l.b16 %v9014
        %v9909 = vunpack.c.h.b16 %v9014
        %v9910 = vunpack.c.l.b16 %v9015
        %v9911 = vunpack.c.l.b16 %v9016
        %v9912 = vunpack.c.h.b16 %v9016
        %v9913 = vunpack.c.l.b16 %v9017
        %v9914 = vunpack.c.l.b16 %v9018
        %v9915 = vunpack.c.h.b16 %v9018
        %v9916 = vunpack.c.l.b16 %v9019
        %v9917 = vunpack.c.l.b16 %v9020
        %v9918 = vunpack.c.h.b16 %v9020
        %v9919 = vunpack.c.l.b16 %v9021
        %v9920 = vunpack.c.l.b16 %v9022
        %v9921 = vunpack.c.h.b16 %v9022
        %v9922 = vunpack.c.l.b16 %v9023
        %v9923 = vunpack.c.l.b16 %v9024
        %v9924 = vunpack.c.h.b16 %v9024
        %v9925 = vunpack.c.l.b16 %v9025
        %v9926 = vunpack.c.l.b16 %v9026
        %v9927 = vunpack.c.h.b16 %v9026
        %v9928 = vunpack.c.l.b16 %v9027
        %v9929 = vunpack.c.l.b16 %v9028
        %v9930 = vunpack.c.h.b16 %v9028
        %v9931 = vunpack.c.l.b16 %v9029
        %v9932 = vunpack.c.l.b16 %v9030
        %v9933 = vunpack.c.h.b16 %v9030
        %v9934 = vunpack.c.l.b16 %v9031
        %v9935 = vunpack.c.l.b16 %v9032
        %v9936 = vunpack.c.h.b16 %v9032
        %v9937 = vunpack.c.l.b16 %v9033
        %v9938 = vunpack.c.l.b16 %v9034
        %v9939 = vunpack.c.h.b16 %v9034
        %v9940 = vunpack.c.l.b16 %v9035
        %v9941 = vunpack.c.l.b16 %v9036
        %v9942 = vunpack.c.h.b16 %v9036
        %v9943 = vunpack.c.l.b16 %v9037
        %v9944 = vunpack.c.l.b16 %v9038
        %v9945 = vunpack.c.h.b16 %v9038
        %v9946 = vunpack.c.l.b16 %v9039
        %v9947 = vunpack.c.l.b16 %v9040
        %v9948 = vunpack.c.h.b16 %v9040
        %v9949 = vunpack.c.l.b16 %v9041
        %v9950 = vunpack.c.l.b16 %v9042
        %v9951 = vunpack.c.h.b16 %v9042
        %v9952 = vunpack.c.l.b16 %v9043
        %v9953 = vunpack.c.l.b16 %v9044
        %v9954 = vunpack.c.h.b16 %v9044
        %v9955 = vunpack.c.l.b16 %v9045
        %v9956 = vunpack.c.l.b16 %v9046
        %v9957 = vunpack.c.h.b16 %v9046
        %v9958 = vunpack.c.l.b16 %v9047
        %v9959 = vunpack.c.l.b16 %v9048
        %v9960 = vunpack.c.h.b16 %v9048
        %v9961 = vunpack.c.l.b16 %v9049
        %v9962 = vunpack.c.l.b16 %v9050
        %v9963 = vunpack.c.h.b16 %v9050
        %v9964 = vunpack.c.l.b16 %v9051
        %v9965 = vunpack.c.l.b16 %v9052
        %v9966 = vunpack.c.h.b16 %v9052
        %v9967 = vunpack.c.l.b16 %v9053
        %v9968 = vunpack.c.l.b16 %v9054
        %v9969 = vunpack.c.h.b16 %v9054
        %v9970 = vunpack.c.l.b16 %v9055
        %v9971 = vunpack.c.l.b16 %v9056
        %v9972 = vunpack.c.h.b16 %v9056
        %v9973 = vunpack.c.l.b16 %v9057
        %v9974 = vunpack.c.l.b16 %v9058
        %v9975 = vunpack.c.h.b16 %v9058
        %v9976 = vunpack.c.l.b16 %v9059
        %v9977 = vunpack.c.l.b16 %v9060
        %v9978 = vunpack.c.h.b16 %v9060
        %v9979 = vunpack.c.l.b16 %v9061
        %v9980 = vunpack.c.l.b16 %v9062
        %v9981 = vunpack.c.h.b16 %v9062
        %v9982 = vunpack.c.l.b16 %v9063
        %v9983 = vunpack.c.l.b16 %v9064
        %v9984 = vunpack.c.h.b16 %v9064
        %v9985 = vunpack.c.l.b16 %v9065
        %v9986 = vunpack.c.l.b16 %v9066
        %v9987 = vunpack.c.h.b16 %v9066
        %v9988 = vunpack.c.l.b16 %v9067
        %v9989 = vunpack.c.l.b16 %v9068
        %v9990 = vunpack.c.h.b16 %v9068
        %v9991 = vunpack.c.l.b16 %v9069
        %v9992 = vunpack.c.l.b16 %v9070
        %v9993 = vunpack.c.h.b16 %v9070
        %v9994 = vunpack.c.l.b16 %v9071
        %v9995 = vunpack.c.l.b16 %v9072
        %v9996 = vunpack.c.h.b16 %v9072
        %v9997 = vunpack.c.l.b16 %v9073
        %v9998 = vunpack.c.l.b16 %v9074
        %v9999 = vunpack.c.h.b16 %v9074
        %v10000 = vunpack.c.l.b16 %v9075
        %v10001 = vunpack.c.l.b16 %v9076
        %v10002 = vunpack.c.h.b16 %v9076
        %v10003 = vunpack.c.l.b16 %v9077
        %v10004 = vunpack.c.l.b16 %v9078
        %v10005 = vunpack.c.h.b16 %v9078
        %v10006 = vunpack.c.l.b16 %v9079
        %v10007 = vunpack.c.l.b16 %v9080
        %v10008 = vunpack.c.h.b16 %v9080
        %v10009 = vunpack.c.l.b16 %v9081
        %v10010 = vunpack.c.l.b16 %v9082
        %v10011 = vunpack.c.h.b16 %v9082
        %v10012 = vunpack.c.l.b16 %v9083
        %v10013 = vunpack.c.l.b16 %v9084
        %v10014 = vunpack.c.h.b16 %v9084
        %v10015 = vunpack.c.l.b16 %v9085
        %v10016 = vunpack.c.l.b16 %v9086
        %v10017 = vunpack.c.h.b16 %v9086
        %v10018 = vunpack.c.l.b16 %v9087
        %v10019 = vunpack.c.l.b16 %v9088
        %v10020 = vunpack.c.h.b16 %v9088
        %v10021 = vunpack.c.l.b16 %v9089
        %v10022 = vunpack.c.l.b16 %v9090
        %v10023 = vunpack.c.h.b16 %v9090
        %v10024 = vunpack.c.l.b16 %v9091
        %v10025 = vunpack.c.l.b16 %v9092
        %v10026 = vunpack.c.h.b16 %v9092
        %v10027 = vunpack.c.l.b16 %v9093
        %v10028 = vunpack.c.l.b16 %v9094
        %v10029 = vunpack.c.h.b16 %v9094
        %v10030 = vunpack.c.l.b16 %v9095
        %v10031 = vunpack.c.l.b16 %v9096
        %v10032 = vunpack.c.h.b16 %v9096
        %v10033 = vunpack.c.l.b16 %v9097
        %v10034 = vunpack.c.l.b16 %v9098
        %v10035 = vunpack.c.h.b16 %v9098
        %v10036 = vunpack.c.l.b16 %v9099
        %v10037 = vunpack.c.l.b16 %v9100
        %v10038 = vunpack.c.h.b16 %v9100
        %v10039 = vunpack.c.l.b16 %v9101
        %v10040 = vunpack.c.l.b16 %v9102
        %v10041 = vunpack.c.h.b16 %v9102
        %v10042 = vunpack.c.l.b16 %v9103
        %v10043 = vunpack.c.l.b16 %v9104
        %v10044 = vunpack.c.h.b16 %v9104
        %v10045 = vunpack.c.l.b16 %v9105
        %v10046 = vunpack.c.l.b16 %v9106
        %v10047 = vunpack.c.h.b16 %v9106
        %v10048 = vunpack.c.l.b16 %v9107
        %v10049 = vunpack.c.l.b16 %v9108
        %v10050 = vunpack.c.h.b16 %v9108
        %v10051 = vunpack.c.l.b16 %v9109
        %v10052 = vunpack.c.l.b16 %v9110
        %v10053 = vunpack.c.h.b16 %v9110
        %v10054 = vunpack.c.l.b16 %v9111
        %v10055 = vunpack.c.l.b16 %v9112
        %v10056 = vunpack.c.h.b16 %v9112
        %v10057 = vunpack.c.l.b16 %v9113
        %v10058 = vunpack.c.l.b16 %v9114
        %v10059 = vunpack.c.h.b16 %v9114
        %v10060 = vunpack.c.l.b16 %v9115
        %v10061 = vunpack.c.l.b16 %v9116
        %v10062 = vunpack.c.h.b16 %v9116
        %v10063 = vunpack.c.l.b16 %v9117
        %v10064 = vunpack.c.l.b16 %v9118
        %v10065 = vunpack.c.h.b16 %v9118
        %v10066 = vunpack.c.l.b16 %v9119
        %v10067 = vunpack.c.l.b16 %v9120
        %v10068 = vunpack.c.h.b16 %v9120
        %v10069 = vunpack.c.l.b16 %v9121
        %v10070 = vunpack.c.l.b16 %v9122
        %v10071 = vunpack.c.h.b16 %v9122
        %v10072 = vunpack.c.l.b16 %v9123
        %v10073 = vunpack.c.l.b16 %v9124
        %v10074 = vunpack.c.h.b16 %v9124
        %v10075 = vunpack.c.l.b16 %v9125
        %v10076 = vunpack.c.l.b16 %v9126
        %v10077 = vunpack.c.h.b16 %v9126
        %v10078 = vunpack.c.l.b16 %v9127
        %v10079 = vunpack.c.l.b16 %v9128
        %v10080 = vunpack.c.h.b16 %v9128
        %v10081 = vunpack.c.l.b16 %v9129
        %v10082 = vunpack.c.l.b16 %v9130
        %v10083 = vunpack.c.h.b16 %v9130
        %v10084 = vunpack.c.l.b16 %v9131
        %v10085 = vunpack.c.l.b16 %v9132
        %v10086 = vunpack.c.h.b16 %v9132
        %v10087 = vunpack.c.l.b16 %v9133
        %v10088 = vunpack.c.l.b16 %v9134
        %v10089 = vunpack.c.h.b16 %v9134
        %v10090 = vunpack.c.l.b16 %v9135
        %v10091 = vunpack.c.l.b16 %v9136
        %v10092 = vunpack.c.h.b16 %v9136
        %v10093 = vunpack.c.l.b16 %v9137
        %v10094 = vunpack.c.l.b16 %v9138
        %v10095 = vunpack.c.h.b16 %v9138
        %v10096 = vunpack.c.l.b16 %v9139
        %v10097 = vunpack.c.l.b16 %v9140
        %v10098 = vunpack.c.h.b16 %v9140
        %v10099 = vunpack.c.l.b16 %v9141
        %v10100 = vunpack.c.l.b16 %v9142
        %v10101 = vunpack.c.h.b16 %v9142
        %v10102 = vunpack.c.l.b16 %v9143
        %v10103 = vunpack.c.l.b16 %v9144
        %v10104 = vunpack.c.h.b16 %v9144
        %v10105 = vunpack.c.l.b16 %v9145
        %v10106 = vpack.c.b16 %v9533, %v9530
        %v10107 = vpack.c.b16 %v9534, %v9531
        %v10108 = vpack.c.b16 %v9535, %v9532
        %v10109 = vpack.c.b16 %v9539, %v9536
        %v10110 = vpack.c.b16 %v9540, %v9537
        %v10111 = vpack.c.b16 %v9541, %v9538
        %v10112 = vpack.c.b16 %v9545, %v9542
        %v10113 = vpack.c.b16 %v9546, %v9543
        %v10114 = vpack.c.b16 %v9547, %v9544
        %v10115 = vpack.c.b16 %v9551, %v9548
        %v10116 = vpack.c.b16 %v9552, %v9549
        %v10117 = vpack.c.b16 %v9553, %v9550
        %v10118 = vpack.c.b16 %v9557, %v9554
        %v10119 = vpack.c.b16 %v9558, %v9555
        %v10120 = vpack.c.b16 %v9559, %v9556
        %v10121 = vpack.c.b16 %v9563, %v9560
        %v10122 = vpack.c.b16 %v9564, %v9561
        %v10123 = vpack.c.b16 %v9565, %v9562
        %v10124 = vpack.c.b16 %v9569, %v9566
        %v10125 = vpack.c.b16 %v9570, %v9567
        %v10126 = vpack.c.b16 %v9571, %v9568
        %v10127 = vpack.c.b16 %v9575, %v9572
        %v10128 = vpack.c.b16 %v9576, %v9573
        %v10129 = vpack.c.b16 %v9577, %v9574
        %v10130 = vpack.c.b16 %v9581, %v9578
        %v10131 = vpack.c.b16 %v9582, %v9579
        %v10132 = vpack.c.b16 %v9583, %v9580
        %v10133 = vpack.c.b16 %v9587, %v9584
        %v10134 = vpack.c.b16 %v9588, %v9585
        %v10135 = vpack.c.b16 %v9589, %v9586
        %v10136 = vpack.c.b16 %v9593, %v9590
        %v10137 = vpack.c.b16 %v9594, %v9591
        %v10138 = vpack.c.b16 %v9595, %v9592
        %v10139 = vpack.c.b16 %v9599, %v9596
        %v10140 = vpack.c.b16 %v9600, %v9597
        %v10141 = vpack.c.b16 %v9601, %v9598
        %v10142 = vpack.c.b16 %v9605, %v9602
        %v10143 = vpack.c.b16 %v9606, %v9603
        %v10144 = vpack.c.b16 %v9607, %v9604
        %v10145 = vpack.c.b16 %v9611, %v9608
        %v10146 = vpack.c.b16 %v9612, %v9609
        %v10147 = vpack.c.b16 %v9613, %v9610
        %v10148 = vpack.c.b16 %v9617, %v9614
        %v10149 = vpack.c.b16 %v9618, %v9615
        %v10150 = vpack.c.b16 %v9619, %v9616
        %v10151 = vpack.c.b16 %v9623, %v9620
        %v10152 = vpack.c.b16 %v9624, %v9621
        %v10153 = vpack.c.b16 %v9625, %v9622
        %v10154 = vpack.c.b16 %v9629, %v9626
        %v10155 = vpack.c.b16 %v9630, %v9627
        %v10156 = vpack.c.b16 %v9631, %v9628
        %v10157 = vpack.c.b16 %v9635, %v9632
        %v10158 = vpack.c.b16 %v9636, %v9633
        %v10159 = vpack.c.b16 %v9637, %v9634
        %v10160 = vpack.c.b16 %v9641, %v9638
        %v10161 = vpack.c.b16 %v9642, %v9639
        %v10162 = vpack.c.b16 %v9643, %v9640
        %v10163 = vpack.c.b16 %v9647, %v9644
        %v10164 = vpack.c.b16 %v9648, %v9645
        %v10165 = vpack.c.b16 %v9649, %v9646
        %v10166 = vpack.c.b16 %v9653, %v9650
        %v10167 = vpack.c.b16 %v9654, %v9651
        %v10168 = vpack.c.b16 %v9655, %v9652
        %v10169 = vpack.c.b16 %v9659, %v9656
        %v10170 = vpack.c.b16 %v9660, %v9657
        %v10171 = vpack.c.b16 %v9661, %v9658
        %v10172 = vpack.c.b16 %v9665, %v9662
        %v10173 = vpack.c.b16 %v9666, %v9663
        %v10174 = vpack.c.b16 %v9667, %v9664
        %v10175 = vpack.c.b16 %v9671, %v9668
        %v10176 = vpack.c.b16 %v9672, %v9669
        %v10177 = vpack.c.b16 %v9673, %v9670
        %v10178 = vpack.c.b16 %v9677, %v9674
        %v10179 = vpack.c.b16 %v9678, %v9675
        %v10180 = vpack.c.b16 %v9679, %v9676
        %v10181 = vpack.c.b16 %v9683, %v9680
        %v10182 = vpack.c.b16 %v9684, %v9681
        %v10183 = vpack.c.b16 %v9685, %v9682
        %v10184 = vpack.c.b16 %v9689, %v9686
        %v10185 = vpack.c.b16 %v9690, %v9687
        %v10186 = vpack.c.b16 %v9691, %v9688
        %v10187 = vpack.c.b16 %v9695, %v9692
        %v10188 = vpack.c.b16 %v9696, %v9693
        %v10189 = vpack.c.b16 %v9697, %v9694
        %v10190 = vpack.c.b16 %v9701, %v9698
        %v10191 = vpack.c.b16 %v9702, %v9699
        %v10192 = vpack.c.b16 %v9703, %v9700
        %v10193 = vpack.c.b16 %v9707, %v9704
        %v10194 = vpack.c.b16 %v9708, %v9705
        %v10195 = vpack.c.b16 %v9709, %v9706
        %v10196 = vpack.c.b16 %v9713, %v9710
        %v10197 = vpack.c.b16 %v9714, %v9711
        %v10198 = vpack.c.b16 %v9715, %v9712
        %v10199 = vpack.c.b16 %v9719, %v9716
        %v10200 = vpack.c.b16 %v9720, %v9717
        %v10201 = vpack.c.b16 %v9721, %v9718
        %v10202 = vpack.c.b16 %v9725, %v9722
        %v10203 = vpack.c.b16 %v9726, %v9723
        %v10204 = vpack.c.b16 %v9727, %v9724
        %v10205 = vpack.c.b16 %v9731, %v9728
        %v10206 = vpack.c.b16 %v9732, %v9729
        %v10207 = vpack.c.b16 %v9733, %v9730
        %v10208 = vpack.c.b16 %v9737, %v9734
        %v10209 = vpack.c.b16 %v9738, %v9735
        %v10210 = vpack.c.b16 %v9739, %v9736
        %v10211 = vpack.c.b16 %v9743, %v9740
        %v10212 = vpack.c.b16 %v9744, %v9741
        %v10213 = vpack.c.b16 %v9745, %v9742
        %v10214 = vpack.c.b16 %v9749, %v9746
        %v10215 = vpack.c.b16 %v9750, %v9747
        %v10216 = vpack.c.b16 %v9751, %v9748
        %v10217 = vpack.c.b16 %v9755, %v9752
        %v10218 = vpack.c.b16 %v9756, %v9753
        %v10219 = vpack.c.b16 %v9757, %v9754
        %v10220 = vpack.c.b16 %v9761, %v9758
        %v10221 = vpack.c.b16 %v9762, %v9759
        %v10222 = vpack.c.b16 %v9763, %v9760
        %v10223 = vpack.c.b16 %v9767, %v9764
        %v10224 = vpack.c.b16 %v9768, %v9765
        %v10225 = vpack.c.b16 %v9769, %v9766
        %v10226 = vpack.c.b16 %v9773, %v9770
        %v10227 = vpack.c.b16 %v9774, %v9771
        %v10228 = vpack.c.b16 %v9775, %v9772
        %v10229 = vpack.c.b16 %v9779, %v9776
        %v10230 = vpack.c.b16 %v9780, %v9777
        %v10231 = vpack.c.b16 %v9781, %v9778
        %v10232 = vpack.c.b16 %v9785, %v9782
        %v10233 = vpack.c.b16 %v9786, %v9783
        %v10234 = vpack.c.b16 %v9787, %v9784
        %v10235 = vpack.c.b16 %v9791, %v9788
        %v10236 = vpack.c.b16 %v9792, %v9789
        %v10237 = vpack.c.b16 %v9793, %v9790
        %v10238 = vpack.c.b16 %v9797, %v9794
        %v10239 = vpack.c.b16 %v9798, %v9795
        %v10240 = vpack.c.b16 %v9799, %v9796
        %v10241 = vpack.c.b16 %v9803, %v9800
        %v10242 = vpack.c.b16 %v9804, %v9801
        %v10243 = vpack.c.b16 %v9805, %v9802
        %v10244 = vpack.c.b16 %v9809, %v9806
        %v10245 = vpack.c.b16 %v9810, %v9807
        %v10246 = vpack.c.b16 %v9811, %v9808
        %v10247 = vpack.c.b16 %v9815, %v9812
        %v10248 = vpack.c.b16 %v9816, %v9813
        %v10249 = vpack.c.b16 %v9817, %v9814
        %v10250 = vpack.c.b16 %v9821, %v9818
        %v10251 = vpack.c.b16 %v9822, %v9819
        %v10252 = vpack.c.b16 %v9823, %v9820
        %v10253 = vpack.c.b16 %v9827, %v9824
        %v10254 = vpack.c.b16 %v9828, %v9825
        %v10255 = vpack.c.b16 %v9829, %v9826
        %v10256 = vpack.c.b16 %v9833, %v9830
        %v10257 = vpack.c.b16 %v9834, %v9831
        %v10258 = vpack.c.b16 %v9835, %v9832
        %v10259 = vpack.c.b16 %v9839, %v9836
        %v10260 = vpack.c.b16 %v9840, %v9837
        %v10261 = vpack.c.b16 %v9841, %v9838
        %v10262 = vpack.c.b16 %v9845, %v9842
        %v10263 = vpack.c.b16 %v9846, %v9843
        %v10264 = vpack.c.b16 %v9847, %v9844
        %v10265 = vpack.c.b16 %v9851, %v9848
        %v10266 = vpack.c.b16 %v9852, %v9849
        %v10267 = vpack.c.b16 %v9853, %v9850
        %v10268 = vpack.c.b16 %v9857, %v9854
        %v10269 = vpack.c.b16 %v9858, %v9855
        %v10270 = vpack.c.b16 %v9859, %v9856
        %v10271 = vpack.c.b16 %v9863, %v9860
        %v10272 = vpack.c.b16 %v9864, %v9861
        %v10273 = vpack.c.b16 %v9865, %v9862
        %v10274 = vpack.c.b16 %v9869, %v9866
        %v10275 = vpack.c.b16 %v9870, %v9867
        %v10276 = vpack.c.b16 %v9871, %v9868
        %v10277 = vpack.c.b16 %v9875, %v9872
        %v10278 = vpack.c.b16 %v9876, %v9873
        %v10279 = vpack.c.b16 %v9877, %v9874
        %v10280 = vpack.c.b16 %v9881, %v9878
        %v10281 = vpack.c.b16 %v9882, %v9879
        %v10282 = vpack.c.b16 %v9883, %v9880
        %v10283 = vpack.c.b16 %v9887, %v9884
        %v10284 = vpack.c.b16 %v9888, %v9885
        %v10285 = vpack.c.b16 %v9889, %v9886
        %v10286 = vpack.c.b16 %v9893, %v9890
        %v10287 = vpack.c.b16 %v9894, %v9891
        %v10288 = vpack.c.b16 %v9895, %v9892
        %v10289 = vpack.c.b16 %v9899, %v9896
        %v10290 = vpack.c.b16 %v9900, %v9897
        %v10291 = vpack.c.b16 %v9901, %v9898
        %v10292 = vpack.c.b16 %v9905, %v9902
        %v10293 = vpack.c.b16 %v9906, %v9903
        %v10294 = vpack.c.b16 %v9907, %v9904
        %v10295 = vpack.c.b16 %v9911, %v9908
        %v10296 = vpack.c.b16 %v9912, %v9909
        %v10297 = vpack.c.b16 %v9913, %v9910
        %v10298 = vpack.c.b16 %v9917, %v9914
        %v10299 = vpack.c.b16 %v9918, %v9915
        %v10300 = vpack.c.b16 %v9919, %v9916
        %v10301 = vpack.c.b16 %v9923, %v9920
        %v10302 = vpack.c.b16 %v9924, %v9921
        %v10303 = vpack.c.b16 %v9925, %v9922
        %v10304 = vpack.c.b16 %v9929, %v9926
        %v10305 = vpack.c.b16 %v9930, %v9927
        %v10306 = vpack.c.b16 %v9931, %v9928
        %v10307 = vpack.c.b16 %v9935, %v9932
        %v10308 = vpack.c.b16 %v9936, %v9933
        %v10309 = vpack.c.b16 %v9937, %v9934
        %v10310 = vpack.c.b16 %v9941, %v9938
        %v10311 = vpack.c.b16 %v9942, %v9939
        %v10312 = vpack.c.b16 %v9943, %v9940
        %v10313 = vpack.c.b16 %v9947, %v9944
        %v10314 = vpack.c.b16 %v9948, %v9945
        %v10315 = vpack.c.b16 %v9949, %v9946
        %v10316 = vpack.c.b16 %v9953, %v9950
        %v10317 = vpack.c.b16 %v9954, %v9951
        %v10318 = vpack.c.b16 %v9955, %v9952
        %v10319 = vpack.c.b16 %v9959, %v9956
        %v10320 = vpack.c.b16 %v9960, %v9957
        %v10321 = vpack.c.b16 %v9961, %v9958
        %v10322 = vpack.c.b16 %v9965, %v9962
        %v10323 = vpack.c.b16 %v9966, %v9963
        %v10324 = vpack.c.b16 %v9967, %v9964
        %v10325 = vpack.c.b16 %v9971, %v9968
        %v10326 = vpack.c.b16 %v9972, %v9969
        %v10327 = vpack.c.b16 %v9973, %v9970
        %v10328 = vpack.c.b16 %v9977, %v9974
        %v10329 = vpack.c.b16 %v9978, %v9975
        %v10330 = vpack.c.b16 %v9979, %v9976
        %v10331 = vpack.c.b16 %v9983, %v9980
        %v10332 = vpack.c.b16 %v9984, %v9981
        %v10333 = vpack.c.b16 %v9985, %v9982
        %v10334 = vpack.c.b16 %v9989, %v9986
        %v10335 = vpack.c.b16 %v9990, %v9987
        %v10336 = vpack.c.b16 %v9991, %v9988
        %v10337 = vpack.c.b16 %v9995, %v9992
        %v10338 = vpack.c.b16 %v9996, %v9993
        %v10339 = vpack.c.b16 %v9997, %v9994
        %v10340 = vpack.c.b16 %v10001, %v9998
        %v10341 = vpack.c.b16 %v10002, %v9999
        %v10342 = vpack.c.b16 %v10003, %v10000
        %v10343 = vpack.c.b16 %v10007, %v10004
        %v10344 = vpack.c.b16 %v10008, %v10005
        %v10345 = vpack.c.b16 %v10009, %v10006
        %v10346 = vpack.c.b16 %v10013, %v10010
        %v10347 = vpack.c.b16 %v10014, %v10011
        %v10348 = vpack.c.b16 %v10015, %v10012
        %v10349 = vpack.c.b16 %v10019, %v10016
        %v10350 = vpack.c.b16 %v10020, %v10017
        %v10351 = vpack.c.b16 %v10021, %v10018
        %v10352 = vpack.c.b16 %v10025, %v10022
        %v10353 = vpack.c.b16 %v10026, %v10023
        %v10354 = vpack.c.b16 %v10027, %v10024
        %v10355 = vpack.c.b16 %v10031, %v10028
        %v10356 = vpack.c.b16 %v10032, %v10029
        %v10357 = vpack.c.b16 %v10033, %v10030
        %v10358 = vpack.c.b16 %v10037, %v10034
        %v10359 = vpack.c.b16 %v10038, %v10035
        %v10360 = vpack.c.b16 %v10039, %v10036
        %v10361 = vpack.c.b16 %v10043, %v10040
        %v10362 = vpack.c.b16 %v10044, %v10041
        %v10363 = vpack.c.b16 %v10045, %v10042
        %v10364 = vpack.c.b16 %v10049, %v10046
        %v10365 = vpack.c.b16 %v10050, %v10047
        %v10366 = vpack.c.b16 %v10051, %v10048
        %v10367 = vpack.c.b16 %v10055, %v10052
        %v10368 = vpack.c.b16 %v10056, %v10053
        %v10369 = vpack.c.b16 %v10057, %v10054
        %v10370 = vpack.c.b16 %v10061, %v10058
        %v10371 = vpack.c.b16 %v10062, %v10059
        %v10372 = vpack.c.b16 %v10063, %v10060
        %v10373 = vpack.c.b16 %v10067, %v10064
        %v10374 = vpack.c.b16 %v10068, %v10065
        %v10375 = vpack.c.b16 %v10069, %v10066
        %v10376 = vpack.c.b16 %v10073, %v10070
        %v10377 = vpack.c.b16 %v10074, %v10071
        %v10378 = vpack.c.b16 %v10075, %v10072
        %v10379 = vpack.c.b16 %v10079, %v10076
        %v10380 = vpack.c.b16 %v10080, %v10077
        %v10381 = vpack.c.b16 %v10081, %v10078
        %v10382 = vpack.c.b16 %v10085, %v10082
        %v10383 = vpack.c.b16 %v10086, %v10083
        %v10384 = vpack.c.b16 %v10087, %v10084
        %v10385 = vpack.c.b16 %v10091, %v10088
        %v10386 = vpack.c.b16 %v10092, %v10089
        %v10387 = vpack.c.b16 %v10093, %v10090
        %v10388 = vpack.c.b16 %v10097, %v10094
        %v10389 = vpack.c.b16 %v10098, %v10095
        %v10390 = vpack.c.b16 %v10099, %v10096
        %v10391 = vpack.c.b16 %v10103, %v10100
        %v10392 = vpack.c.b16 %v10104, %v10101
        %v10393 = vpack.c.b16 %v10105, %v10102
        %10682 = vmatpush.bf16.msra.mxu0 %v10127
        %10683 = vmatpush.bf16.msra.mxu0 %v10124
        %10684 = vmatpush.bf16.msra.mxu0 %v10121
        %10685 = vmatpush.bf16.msra.mxu0 %v10118
        %10686 = vmatpush.bf16.msra.mxu0 %v10115
        %10687 = vmatpush.bf16.msra.mxu0 %v10112
        %10688 = vmatpush.bf16.msra.mxu0 %v10109
        %10689 = vmatpush.bf16.msra.mxu0 %v10106
        %10690 = vmatmul.bf16.gmra.mxu0 %v8714
        %v10691 = vpop.f32.mrf.mxu0
        %v10692 = vadd.f32 0.0, %v10691
        %v10693 = vpop.f32.mrf.mxu0
        %v10694 = vadd.f32 0.0, %v10693
        %10695 = vmatmul.bf16.gmra.mxu0 %v8726
        %v10696 = vpop.f32.mrf.mxu0
        %v10697 = vadd.f32 0.0, %v10696
        %v10698 = vpop.f32.mrf.mxu0
        %v10699 = vadd.f32 0.0, %v10698
        %10700 = vmatmul.bf16.gmra.mxu0 %v8738
        %v10701 = vpop.f32.mrf.mxu0
        %v10702 = vadd.f32 0.0, %v10701
        %v10703 = vpop.f32.mrf.mxu0
        %v10704 = vadd.f32 0.0, %v10703
        %10705 = vmatmul.bf16.gmra.mxu0 %v8750
        %v10706 = vpop.f32.mrf.mxu0
        %v10707 = vadd.f32 0.0, %v10706
        %v10708 = vpop.f32.mrf.mxu0
        %v10709 = vadd.f32 0.0, %v10708
        %10710 = vdwg.mxu0
        %10711 = vmatpush.bf16.msra.mxu0 %v10151
        %10712 = vmatpush.bf16.msra.mxu0 %v10148
        %10713 = vmatpush.bf16.msra.mxu0 %v10145
        %10714 = vmatpush.bf16.msra.mxu0 %v10142
        %10715 = vmatpush.bf16.msra.mxu0 %v10139
        %10716 = vmatpush.bf16.msra.mxu0 %v10136
        %10717 = vmatpush.bf16.msra.mxu0 %v10133
        %10718 = vmatpush.bf16.msra.mxu0 %v10130
        %10719 = vmatmul.bf16.gmra.mxu0 %v8715
        %v10720 = vpop.f32.mrf.mxu0
        %v10721 = vadd.f32 %v10692, %v10720
        %v10722 = vpop.f32.mrf.mxu0
        %v10723 = vadd.f32 %v10694, %v10722
        %10724 = vmatmul.bf16.gmra.mxu0 %v8727
        %v10725 = vpop.f32.mrf.mxu0
        %v10726 = vadd.f32 %v10697, %v10725
        %v10727 = vpop.f32.mrf.mxu0
        %v10728 = vadd.f32 %v10699, %v10727
        %10729 = vmatmul.bf16.gmra.mxu0 %v8739
        %v10730 = vpop.f32.mrf.mxu0
        %v10731 = vadd.f32 %v10702, %v10730
        %v10732 = vpop.f32.mrf.mxu0
        %v10733 = vadd.f32 %v10704, %v10732
        %10734 = vmatmul.bf16.gmra.mxu0 %v8751
        %v10735 = vpop.f32.mrf.mxu0
        %v10736 = vadd.f32 %v10707, %v10735
        %v10737 = vpop.f32.mrf.mxu0
        %v10738 = vadd.f32 %v10709, %v10737
        %10739 = vdwg.mxu0
        %10740 = vmatpush.bf16.msra.mxu0 %v10175
        %10741 = vmatpush.bf16.msra.mxu0 %v10172
        %10742 = vmatpush.bf16.msra.mxu0 %v10169
        %10743 = vmatpush.bf16.msra.mxu0 %v10166
        %10744 = vmatpush.bf16.msra.mxu0 %v10163
        %10745 = vmatpush.bf16.msra.mxu0 %v10160
        %10746 = vmatpush.bf16.msra.mxu0 %v10157
        %10747 = vmatpush.bf16.msra.mxu0 %v10154
        %10748 = vmatmul.bf16.gmra.mxu0 %v8716
        %v10749 = vpop.f32.mrf.mxu0
        %v10750 = vadd.f32 %v10721, %v10749
        %v10751 = vpop.f32.mrf.mxu0
        %v10752 = vadd.f32 %v10723, %v10751
        %10753 = vmatmul.bf16.gmra.mxu0 %v8728
        %v10754 = vpop.f32.mrf.mxu0
        %v10755 = vadd.f32 %v10726, %v10754
        %v10756 = vpop.f32.mrf.mxu0
        %v10757 = vadd.f32 %v10728, %v10756
        %10758 = vmatmul.bf16.gmra.mxu0 %v8740
        %v10759 = vpop.f32.mrf.mxu0
        %v10760 = vadd.f32 %v10731, %v10759
        %v10761 = vpop.f32.mrf.mxu0
        %v10762 = vadd.f32 %v10733, %v10761
        %10763 = vmatmul.bf16.gmra.mxu0 %v8752
        %v10764 = vpop.f32.mrf.mxu0
        %v10765 = vadd.f32 %v10736, %v10764
        %v10766 = vpop.f32.mrf.mxu0
        %v10767 = vadd.f32 %v10738, %v10766
        %10768 = vdwg.mxu0
        %10769 = vmatpush.bf16.msra.mxu0 %v10199
        %10770 = vmatpush.bf16.msra.mxu0 %v10196
        %10771 = vmatpush.bf16.msra.mxu0 %v10193
        %10772 = vmatpush.bf16.msra.mxu0 %v10190
        %10773 = vmatpush.bf16.msra.mxu0 %v10187
        %10774 = vmatpush.bf16.msra.mxu0 %v10184
        %10775 = vmatpush.bf16.msra.mxu0 %v10181
        %10776 = vmatpush.bf16.msra.mxu0 %v10178
        %10777 = vmatmul.bf16.gmra.mxu0 %v8717
        %v10778 = vpop.f32.mrf.mxu0
        %v10779 = vadd.f32 %v10750, %v10778
        %v10780 = vpop.f32.mrf.mxu0
        %v10781 = vadd.f32 %v10752, %v10780
        %10782 = vmatmul.bf16.gmra.mxu0 %v8729
        %v10783 = vpop.f32.mrf.mxu0
        %v10784 = vadd.f32 %v10755, %v10783
        %v10785 = vpop.f32.mrf.mxu0
        %v10786 = vadd.f32 %v10757, %v10785
        %10787 = vmatmul.bf16.gmra.mxu0 %v8741
        %v10788 = vpop.f32.mrf.mxu0
        %v10789 = vadd.f32 %v10760, %v10788
        %v10790 = vpop.f32.mrf.mxu0
        %v10791 = vadd.f32 %v10762, %v10790
        %10792 = vmatmul.bf16.gmra.mxu0 %v8753
        %v10793 = vpop.f32.mrf.mxu0
        %v10794 = vadd.f32 %v10765, %v10793
        %v10795 = vpop.f32.mrf.mxu0
        %v10796 = vadd.f32 %v10767, %v10795
        %10797 = vdwg.mxu0
        %10798 = vmatpush.bf16.msra.mxu0 %v10223
        %10799 = vmatpush.bf16.msra.mxu0 %v10220
        %10800 = vmatpush.bf16.msra.mxu0 %v10217
        %10801 = vmatpush.bf16.msra.mxu0 %v10214
        %10802 = vmatpush.bf16.msra.mxu0 %v10211
        %10803 = vmatpush.bf16.msra.mxu0 %v10208
        %10804 = vmatpush.bf16.msra.mxu0 %v10205
        %10805 = vmatpush.bf16.msra.mxu0 %v10202
        %10806 = vmatmul.bf16.gmra.mxu0 %v8718
        %v10807 = vpop.f32.mrf.mxu0
        %v10808 = vadd.f32 %v10779, %v10807
        %v10809 = vpop.f32.mrf.mxu0
        %v10810 = vadd.f32 %v10781, %v10809
        %10811 = vmatmul.bf16.gmra.mxu0 %v8730
        %v10812 = vpop.f32.mrf.mxu0
        %v10813 = vadd.f32 %v10784, %v10812
        %v10814 = vpop.f32.mrf.mxu0
        %v10815 = vadd.f32 %v10786, %v10814
        %10816 = vmatmul.bf16.gmra.mxu0 %v8742
        %v10817 = vpop.f32.mrf.mxu0
        %v10818 = vadd.f32 %v10789, %v10817
        %v10819 = vpop.f32.mrf.mxu0
        %v10820 = vadd.f32 %v10791, %v10819
        %10821 = vmatmul.bf16.gmra.mxu0 %v8754
        %v10822 = vpop.f32.mrf.mxu0
        %v10823 = vadd.f32 %v10794, %v10822
        %v10824 = vpop.f32.mrf.mxu0
        %v10825 = vadd.f32 %v10796, %v10824
        %10826 = vdwg.mxu0
        %10827 = vmatpush.bf16.msra.mxu0 %v10247
        %10828 = vmatpush.bf16.msra.mxu0 %v10244
        %10829 = vmatpush.bf16.msra.mxu0 %v10241
        %10830 = vmatpush.bf16.msra.mxu0 %v10238
        %10831 = vmatpush.bf16.msra.mxu0 %v10235
        %10832 = vmatpush.bf16.msra.mxu0 %v10232
        %10833 = vmatpush.bf16.msra.mxu0 %v10229
        %10834 = vmatpush.bf16.msra.mxu0 %v10226
        %10835 = vmatmul.bf16.gmra.mxu0 %v8719
        %v10836 = vpop.f32.mrf.mxu0
        %v10837 = vadd.f32 %v10808, %v10836
        %v10838 = vpop.f32.mrf.mxu0
        %v10839 = vadd.f32 %v10810, %v10838
        %10840 = vmatmul.bf16.gmra.mxu0 %v8731
        %v10841 = vpop.f32.mrf.mxu0
        %v10842 = vadd.f32 %v10813, %v10841
        %v10843 = vpop.f32.mrf.mxu0
        %v10844 = vadd.f32 %v10815, %v10843
        %10845 = vmatmul.bf16.gmra.mxu0 %v8743
        %v10846 = vpop.f32.mrf.mxu0
        %v10847 = vadd.f32 %v10818, %v10846
        %v10848 = vpop.f32.mrf.mxu0
        %v10849 = vadd.f32 %v10820, %v10848
        %10850 = vmatmul.bf16.gmra.mxu0 %v8755
        %v10851 = vpop.f32.mrf.mxu0
        %v10852 = vadd.f32 %v10823, %v10851
        %v10853 = vpop.f32.mrf.mxu0
        %v10854 = vadd.f32 %v10825, %v10853
        %10855 = vdwg.mxu0
        %10856 = vmatpush.bf16.msra.mxu0 %v10271
        %10857 = vmatpush.bf16.msra.mxu0 %v10268
        %10858 = vmatpush.bf16.msra.mxu0 %v10265
        %10859 = vmatpush.bf16.msra.mxu0 %v10262
        %10860 = vmatpush.bf16.msra.mxu0 %v10259
        %10861 = vmatpush.bf16.msra.mxu0 %v10256
        %10862 = vmatpush.bf16.msra.mxu0 %v10253
        %10863 = vmatpush.bf16.msra.mxu0 %v10250
        %10864 = vmatmul.bf16.gmra.mxu0 %v8720
        %v10865 = vpop.f32.mrf.mxu0
        %v10866 = vadd.f32 %v10837, %v10865
        %v10867 = vpop.f32.mrf.mxu0
        %v10868 = vadd.f32 %v10839, %v10867
        %10869 = vmatmul.bf16.gmra.mxu0 %v8732
        %v10870 = vpop.f32.mrf.mxu0
        %v10871 = vadd.f32 %v10842, %v10870
        %v10872 = vpop.f32.mrf.mxu0
        %v10873 = vadd.f32 %v10844, %v10872
        %10874 = vmatmul.bf16.gmra.mxu0 %v8744
        %v10875 = vpop.f32.mrf.mxu0
        %v10876 = vadd.f32 %v10847, %v10875
        %v10877 = vpop.f32.mrf.mxu0
        %v10878 = vadd.f32 %v10849, %v10877
        %10879 = vmatmul.bf16.gmra.mxu0 %v8756
        %v10880 = vpop.f32.mrf.mxu0
        %v10881 = vadd.f32 %v10852, %v10880
        %v10882 = vpop.f32.mrf.mxu0
        %v10883 = vadd.f32 %v10854, %v10882
        %10884 = vdwg.mxu0
        %10885 = vmatpush.bf16.msra.mxu0 %v10295
        %10886 = vmatpush.bf16.msra.mxu0 %v10292
        %10887 = vmatpush.bf16.msra.mxu0 %v10289
        %10888 = vmatpush.bf16.msra.mxu0 %v10286
        %10889 = vmatpush.bf16.msra.mxu0 %v10283
        %10890 = vmatpush.bf16.msra.mxu0 %v10280
        %10891 = vmatpush.bf16.msra.mxu0 %v10277
        %10892 = vmatpush.bf16.msra.mxu0 %v10274
        %10893 = vmatmul.bf16.gmra.mxu0 %v8721
        %v10894 = vpop.f32.mrf.mxu0
        %v10895 = vadd.f32 %v10866, %v10894
        %v10896 = vpop.f32.mrf.mxu0
        %v10897 = vadd.f32 %v10868, %v10896
        %10898 = vmatmul.bf16.gmra.mxu0 %v8733
        %v10899 = vpop.f32.mrf.mxu0
        %v10900 = vadd.f32 %v10871, %v10899
        %v10901 = vpop.f32.mrf.mxu0
        %v10902 = vadd.f32 %v10873, %v10901
        %10903 = vmatmul.bf16.gmra.mxu0 %v8745
        %v10904 = vpop.f32.mrf.mxu0
        %v10905 = vadd.f32 %v10876, %v10904
        %v10906 = vpop.f32.mrf.mxu0
        %v10907 = vadd.f32 %v10878, %v10906
        %10908 = vmatmul.bf16.gmra.mxu0 %v8757
        %v10909 = vpop.f32.mrf.mxu0
        %v10910 = vadd.f32 %v10881, %v10909
        %v10911 = vpop.f32.mrf.mxu0
        %v10912 = vadd.f32 %v10883, %v10911
        %10913 = vdwg.mxu0
        %10914 = vmatpush.bf16.msra.mxu0 %v10319
        %10915 = vmatpush.bf16.msra.mxu0 %v10316
        %10916 = vmatpush.bf16.msra.mxu0 %v10313
        %10917 = vmatpush.bf16.msra.mxu0 %v10310
        %10918 = vmatpush.bf16.msra.mxu0 %v10307
        %10919 = vmatpush.bf16.msra.mxu0 %v10304
        %10920 = vmatpush.bf16.msra.mxu0 %v10301
        %10921 = vmatpush.bf16.msra.mxu0 %v10298
        %10922 = vmatmul.bf16.gmra.mxu0 %v8722
        %v10923 = vpop.f32.mrf.mxu0
        %v10924 = vadd.f32 %v10895, %v10923
        %v10925 = vpop.f32.mrf.mxu0
        %v10926 = vadd.f32 %v10897, %v10925
        %10927 = vmatmul.bf16.gmra.mxu0 %v8734
        %v10928 = vpop.f32.mrf.mxu0
        %v10929 = vadd.f32 %v10900, %v10928
        %v10930 = vpop.f32.mrf.mxu0
        %v10931 = vadd.f32 %v10902, %v10930
        %10932 = vmatmul.bf16.gmra.mxu0 %v8746
        %v10933 = vpop.f32.mrf.mxu0
        %v10934 = vadd.f32 %v10905, %v10933
        %v10935 = vpop.f32.mrf.mxu0
        %v10936 = vadd.f32 %v10907, %v10935
        %10937 = vmatmul.bf16.gmra.mxu0 %v8758
        %v10938 = vpop.f32.mrf.mxu0
        %v10939 = vadd.f32 %v10910, %v10938
        %v10940 = vpop.f32.mrf.mxu0
        %v10941 = vadd.f32 %v10912, %v10940
        %10942 = vdwg.mxu0
        %10943 = vmatpush.bf16.msra.mxu0 %v10343
        %10944 = vmatpush.bf16.msra.mxu0 %v10340
        %10945 = vmatpush.bf16.msra.mxu0 %v10337
        %10946 = vmatpush.bf16.msra.mxu0 %v10334
        %10947 = vmatpush.bf16.msra.mxu0 %v10331
        %10948 = vmatpush.bf16.msra.mxu0 %v10328
        %10949 = vmatpush.bf16.msra.mxu0 %v10325
        %10950 = vmatpush.bf16.msra.mxu0 %v10322
        %10951 = vmatmul.bf16.gmra.mxu0 %v8723
        %v10952 = vpop.f32.mrf.mxu0
        %v10953 = vadd.f32 %v10924, %v10952
        %v10954 = vpop.f32.mrf.mxu0
        %v10955 = vadd.f32 %v10926, %v10954
        %10956 = vmatmul.bf16.gmra.mxu0 %v8735
        %v10957 = vpop.f32.mrf.mxu0
        %v10958 = vadd.f32 %v10929, %v10957
        %v10959 = vpop.f32.mrf.mxu0
        %v10960 = vadd.f32 %v10931, %v10959
        %10961 = vmatmul.bf16.gmra.mxu0 %v8747
        %v10962 = vpop.f32.mrf.mxu0
        %v10963 = vadd.f32 %v10934, %v10962
        %v10964 = vpop.f32.mrf.mxu0
        %v10965 = vadd.f32 %v10936, %v10964
        %10966 = vmatmul.bf16.gmra.mxu0 %v8759
        %v10967 = vpop.f32.mrf.mxu0
        %v10968 = vadd.f32 %v10939, %v10967
        %v10969 = vpop.f32.mrf.mxu0
        %v10970 = vadd.f32 %v10941, %v10969
        %10971 = vdwg.mxu0
        %10972 = vmatpush.bf16.msra.mxu0 %v10367
        %10973 = vmatpush.bf16.msra.mxu0 %v10364
        %10974 = vmatpush.bf16.msra.mxu0 %v10361
        %10975 = vmatpush.bf16.msra.mxu0 %v10358
        %10976 = vmatpush.bf16.msra.mxu0 %v10355
        %10977 = vmatpush.bf16.msra.mxu0 %v10352
        %10978 = vmatpush.bf16.msra.mxu0 %v10349
        %10979 = vmatpush.bf16.msra.mxu0 %v10346
        %10980 = vmatmul.bf16.gmra.mxu0 %v8724
        %v10981 = vpop.f32.mrf.mxu0
        %v10982 = vadd.f32 %v10953, %v10981
        %v10983 = vpop.f32.mrf.mxu0
        %v10984 = vadd.f32 %v10955, %v10983
        %10985 = vmatmul.bf16.gmra.mxu0 %v8736
        %v10986 = vpop.f32.mrf.mxu0
        %v10987 = vadd.f32 %v10958, %v10986
        %v10988 = vpop.f32.mrf.mxu0
        %v10989 = vadd.f32 %v10960, %v10988
        %10990 = vmatmul.bf16.gmra.mxu0 %v8748
        %v10991 = vpop.f32.mrf.mxu0
        %v10992 = vadd.f32 %v10963, %v10991
        %v10993 = vpop.f32.mrf.mxu0
        %v10994 = vadd.f32 %v10965, %v10993
        %10995 = vmatmul.bf16.gmra.mxu0 %v8760
        %v10996 = vpop.f32.mrf.mxu0
        %v10997 = vadd.f32 %v10968, %v10996
        %v10998 = vpop.f32.mrf.mxu0
        %v10999 = vadd.f32 %v10970, %v10998
        %11000 = vdwg.mxu0
        %11001 = vmatpush.bf16.msra.mxu0 %v10391
        %11002 = vmatpush.bf16.msra.mxu0 %v10388
        %11003 = vmatpush.bf16.msra.mxu0 %v10385
        %11004 = vmatpush.bf16.msra.mxu0 %v10382
        %11005 = vmatpush.bf16.msra.mxu0 %v10379
        %11006 = vmatpush.bf16.msra.mxu0 %v10376
        %11007 = vmatpush.bf16.msra.mxu0 %v10373
        %11008 = vmatpush.bf16.msra.mxu0 %v10370
        %11009 = vmatmul.bf16.gmra.mxu0 %v8725
        %v11010 = vpop.f32.mrf.mxu0
        %v11011 = vadd.f32 %v10982, %v11010
        %v11012 = vpop.f32.mrf.mxu0
        %v11013 = vadd.f32 %v10984, %v11012
        %11014 = vmatmul.bf16.gmra.mxu0 %v8737
        %v11015 = vpop.f32.mrf.mxu0
        %v11016 = vadd.f32 %v10987, %v11015
        %v11017 = vpop.f32.mrf.mxu0
        %v11018 = vadd.f32 %v10989, %v11017
        %11019 = vmatmul.bf16.gmra.mxu0 %v8749
        %v11020 = vpop.f32.mrf.mxu0
        %v11021 = vadd.f32 %v10992, %v11020
        %v11022 = vpop.f32.mrf.mxu0
        %v11023 = vadd.f32 %v10994, %v11022
        %11024 = vmatmul.bf16.gmra.mxu0 %v8761
        %v11025 = vpop.f32.mrf.mxu0
        %v11026 = vadd.f32 %v10997, %v11025
        %v11027 = vpop.f32.mrf.mxu0
        %v11028 = vadd.f32 %v10999, %v11027
        %11029 = vdwg.mxu0
        %11030 = vmatpush.bf16.msra.mxu0 %v10128
        %11031 = vmatpush.bf16.msra.mxu0 %v10125
        %11032 = vmatpush.bf16.msra.mxu0 %v10122
        %11033 = vmatpush.bf16.msra.mxu0 %v10119
        %11034 = vmatpush.bf16.msra.mxu0 %v10116
        %11035 = vmatpush.bf16.msra.mxu0 %v10113
        %11036 = vmatpush.bf16.msra.mxu0 %v10110
        %11037 = vmatpush.bf16.msra.mxu0 %v10107
        %11038 = vmatmul.bf16.gmra.mxu0 %v8714
        %v11039 = vpop.f32.mrf.mxu0
        %v11040 = vadd.f32 0.0, %v11039
        %v11041 = vpop.f32.mrf.mxu0
        %v11042 = vadd.f32 0.0, %v11041
        %11043 = vmatmul.bf16.gmra.mxu0 %v8726
        %v11044 = vpop.f32.mrf.mxu0
        %v11045 = vadd.f32 0.0, %v11044
        %v11046 = vpop.f32.mrf.mxu0
        %v11047 = vadd.f32 0.0, %v11046
        %11048 = vmatmul.bf16.gmra.mxu0 %v8738
        %v11049 = vpop.f32.mrf.mxu0
        %v11050 = vadd.f32 0.0, %v11049
        %v11051 = vpop.f32.mrf.mxu0
        %v11052 = vadd.f32 0.0, %v11051
        %11053 = vmatmul.bf16.gmra.mxu0 %v8750
        %v11054 = vpop.f32.mrf.mxu0
        %v11055 = vadd.f32 0.0, %v11054
        %v11056 = vpop.f32.mrf.mxu0
        %v11057 = vadd.f32 0.0, %v11056
        %11058 = vdwg.mxu0
        %11059 = vmatpush.bf16.msra.mxu0 %v10152
        %11060 = vmatpush.bf16.msra.mxu0 %v10149
        %11061 = vmatpush.bf16.msra.mxu0 %v10146
        %11062 = vmatpush.bf16.msra.mxu0 %v10143
        %11063 = vmatpush.bf16.msra.mxu0 %v10140
        %11064 = vmatpush.bf16.msra.mxu0 %v10137
        %11065 = vmatpush.bf16.msra.mxu0 %v10134
        %11066 = vmatpush.bf16.msra.mxu0 %v10131
        %11067 = vmatmul.bf16.gmra.mxu0 %v8715
        %v11068 = vpop.f32.mrf.mxu0
        %v11069 = vadd.f32 %v11040, %v11068
        %v11070 = vpop.f32.mrf.mxu0
        %v11071 = vadd.f32 %v11042, %v11070
        %11072 = vmatmul.bf16.gmra.mxu0 %v8727
        %v11073 = vpop.f32.mrf.mxu0
        %v11074 = vadd.f32 %v11045, %v11073
        %v11075 = vpop.f32.mrf.mxu0
        %v11076 = vadd.f32 %v11047, %v11075
        %11077 = vmatmul.bf16.gmra.mxu0 %v8739
        %v11078 = vpop.f32.mrf.mxu0
        %v11079 = vadd.f32 %v11050, %v11078
        %v11080 = vpop.f32.mrf.mxu0
        %v11081 = vadd.f32 %v11052, %v11080
        %11082 = vmatmul.bf16.gmra.mxu0 %v8751
        %v11083 = vpop.f32.mrf.mxu0
        %v11084 = vadd.f32 %v11055, %v11083
        %v11085 = vpop.f32.mrf.mxu0
        %v11086 = vadd.f32 %v11057, %v11085
        %11087 = vdwg.mxu0
        %11088 = vmatpush.bf16.msra.mxu0 %v10176
        %11089 = vmatpush.bf16.msra.mxu0 %v10173
        %11090 = vmatpush.bf16.msra.mxu0 %v10170
        %11091 = vmatpush.bf16.msra.mxu0 %v10167
        %11092 = vmatpush.bf16.msra.mxu0 %v10164
        %11093 = vmatpush.bf16.msra.mxu0 %v10161
        %11094 = vmatpush.bf16.msra.mxu0 %v10158
        %11095 = vmatpush.bf16.msra.mxu0 %v10155
        %11096 = vmatmul.bf16.gmra.mxu0 %v8716
        %v11097 = vpop.f32.mrf.mxu0
        %v11098 = vadd.f32 %v11069, %v11097
        %v11099 = vpop.f32.mrf.mxu0
        %v11100 = vadd.f32 %v11071, %v11099
        %11101 = vmatmul.bf16.gmra.mxu0 %v8728
        %v11102 = vpop.f32.mrf.mxu0
        %v11103 = vadd.f32 %v11074, %v11102
        %v11104 = vpop.f32.mrf.mxu0
        %v11105 = vadd.f32 %v11076, %v11104
        %11106 = vmatmul.bf16.gmra.mxu0 %v8740
        %v11107 = vpop.f32.mrf.mxu0
        %v11108 = vadd.f32 %v11079, %v11107
        %v11109 = vpop.f32.mrf.mxu0
        %v11110 = vadd.f32 %v11081, %v11109
        %11111 = vmatmul.bf16.gmra.mxu0 %v8752
        %v11112 = vpop.f32.mrf.mxu0
        %v11113 = vadd.f32 %v11084, %v11112
        %v11114 = vpop.f32.mrf.mxu0
        %v11115 = vadd.f32 %v11086, %v11114
        %11116 = vdwg.mxu0
        %11117 = vmatpush.bf16.msra.mxu0 %v10200
        %11118 = vmatpush.bf16.msra.mxu0 %v10197
        %11119 = vmatpush.bf16.msra.mxu0 %v10194
        %11120 = vmatpush.bf16.msra.mxu0 %v10191
        %11121 = vmatpush.bf16.msra.mxu0 %v10188
        %11122 = vmatpush.bf16.msra.mxu0 %v10185
        %11123 = vmatpush.bf16.msra.mxu0 %v10182
        %11124 = vmatpush.bf16.msra.mxu0 %v10179
        %11125 = vmatmul.bf16.gmra.mxu0 %v8717
        %v11126 = vpop.f32.mrf.mxu0
        %v11127 = vadd.f32 %v11098, %v11126
        %v11128 = vpop.f32.mrf.mxu0
        %v11129 = vadd.f32 %v11100, %v11128
        %11130 = vmatmul.bf16.gmra.mxu0 %v8729
        %v11131 = vpop.f32.mrf.mxu0
        %v11132 = vadd.f32 %v11103, %v11131
        %v11133 = vpop.f32.mrf.mxu0
        %v11134 = vadd.f32 %v11105, %v11133
        %11135 = vmatmul.bf16.gmra.mxu0 %v8741
        %v11136 = vpop.f32.mrf.mxu0
        %v11137 = vadd.f32 %v11108, %v11136
        %v11138 = vpop.f32.mrf.mxu0
        %v11139 = vadd.f32 %v11110, %v11138
        %11140 = vmatmul.bf16.gmra.mxu0 %v8753
        %v11141 = vpop.f32.mrf.mxu0
        %v11142 = vadd.f32 %v11113, %v11141
        %v11143 = vpop.f32.mrf.mxu0
        %v11144 = vadd.f32 %v11115, %v11143
        %11145 = vdwg.mxu0
        %11146 = vmatpush.bf16.msra.mxu0 %v10224
        %11147 = vmatpush.bf16.msra.mxu0 %v10221
        %11148 = vmatpush.bf16.msra.mxu0 %v10218
        %11149 = vmatpush.bf16.msra.mxu0 %v10215
        %11150 = vmatpush.bf16.msra.mxu0 %v10212
        %11151 = vmatpush.bf16.msra.mxu0 %v10209
        %11152 = vmatpush.bf16.msra.mxu0 %v10206
        %11153 = vmatpush.bf16.msra.mxu0 %v10203
        %11154 = vmatmul.bf16.gmra.mxu0 %v8718
        %v11155 = vpop.f32.mrf.mxu0
        %v11156 = vadd.f32 %v11127, %v11155
        %v11157 = vpop.f32.mrf.mxu0
        %v11158 = vadd.f32 %v11129, %v11157
        %11159 = vmatmul.bf16.gmra.mxu0 %v8730
        %v11160 = vpop.f32.mrf.mxu0
        %v11161 = vadd.f32 %v11132, %v11160
        %v11162 = vpop.f32.mrf.mxu0
        %v11163 = vadd.f32 %v11134, %v11162
        %11164 = vmatmul.bf16.gmra.mxu0 %v8742
        %v11165 = vpop.f32.mrf.mxu0
        %v11166 = vadd.f32 %v11137, %v11165
        %v11167 = vpop.f32.mrf.mxu0
        %v11168 = vadd.f32 %v11139, %v11167
        %11169 = vmatmul.bf16.gmra.mxu0 %v8754
        %v11170 = vpop.f32.mrf.mxu0
        %v11171 = vadd.f32 %v11142, %v11170
        %v11172 = vpop.f32.mrf.mxu0
        %v11173 = vadd.f32 %v11144, %v11172
        %11174 = vdwg.mxu0
        %11175 = vmatpush.bf16.msra.mxu0 %v10248
        %11176 = vmatpush.bf16.msra.mxu0 %v10245
        %11177 = vmatpush.bf16.msra.mxu0 %v10242
        %11178 = vmatpush.bf16.msra.mxu0 %v10239
        %11179 = vmatpush.bf16.msra.mxu0 %v10236
        %11180 = vmatpush.bf16.msra.mxu0 %v10233
        %11181 = vmatpush.bf16.msra.mxu0 %v10230
        %11182 = vmatpush.bf16.msra.mxu0 %v10227
        %11183 = vmatmul.bf16.gmra.mxu0 %v8719
        %v11184 = vpop.f32.mrf.mxu0
        %v11185 = vadd.f32 %v11156, %v11184
        %v11186 = vpop.f32.mrf.mxu0
        %v11187 = vadd.f32 %v11158, %v11186
        %11188 = vmatmul.bf16.gmra.mxu0 %v8731
        %v11189 = vpop.f32.mrf.mxu0
        %v11190 = vadd.f32 %v11161, %v11189
        %v11191 = vpop.f32.mrf.mxu0
        %v11192 = vadd.f32 %v11163, %v11191
        %11193 = vmatmul.bf16.gmra.mxu0 %v8743
        %v11194 = vpop.f32.mrf.mxu0
        %v11195 = vadd.f32 %v11166, %v11194
        %v11196 = vpop.f32.mrf.mxu0
        %v11197 = vadd.f32 %v11168, %v11196
        %11198 = vmatmul.bf16.gmra.mxu0 %v8755
        %v11199 = vpop.f32.mrf.mxu0
        %v11200 = vadd.f32 %v11171, %v11199
        %v11201 = vpop.f32.mrf.mxu0
        %v11202 = vadd.f32 %v11173, %v11201
        %11203 = vdwg.mxu0
        %11204 = vmatpush.bf16.msra.mxu0 %v10272
        %11205 = vmatpush.bf16.msra.mxu0 %v10269
        %11206 = vmatpush.bf16.msra.mxu0 %v10266
        %11207 = vmatpush.bf16.msra.mxu0 %v10263
        %11208 = vmatpush.bf16.msra.mxu0 %v10260
        %11209 = vmatpush.bf16.msra.mxu0 %v10257
        %11210 = vmatpush.bf16.msra.mxu0 %v10254
        %11211 = vmatpush.bf16.msra.mxu0 %v10251
        %11212 = vmatmul.bf16.gmra.mxu0 %v8720
        %v11213 = vpop.f32.mrf.mxu0
        %v11214 = vadd.f32 %v11185, %v11213
        %v11215 = vpop.f32.mrf.mxu0
        %v11216 = vadd.f32 %v11187, %v11215
        %11217 = vmatmul.bf16.gmra.mxu0 %v8732
        %v11218 = vpop.f32.mrf.mxu0
        %v11219 = vadd.f32 %v11190, %v11218
        %v11220 = vpop.f32.mrf.mxu0
        %v11221 = vadd.f32 %v11192, %v11220
        %11222 = vmatmul.bf16.gmra.mxu0 %v8744
        %v11223 = vpop.f32.mrf.mxu0
        %v11224 = vadd.f32 %v11195, %v11223
        %v11225 = vpop.f32.mrf.mxu0
        %v11226 = vadd.f32 %v11197, %v11225
        %11227 = vmatmul.bf16.gmra.mxu0 %v8756
        %v11228 = vpop.f32.mrf.mxu0
        %v11229 = vadd.f32 %v11200, %v11228
        %v11230 = vpop.f32.mrf.mxu0
        %v11231 = vadd.f32 %v11202, %v11230
        %11232 = vdwg.mxu0
        %11233 = vmatpush.bf16.msra.mxu0 %v10296
        %11234 = vmatpush.bf16.msra.mxu0 %v10293
        %11235 = vmatpush.bf16.msra.mxu0 %v10290
        %11236 = vmatpush.bf16.msra.mxu0 %v10287
        %11237 = vmatpush.bf16.msra.mxu0 %v10284
        %11238 = vmatpush.bf16.msra.mxu0 %v10281
        %11239 = vmatpush.bf16.msra.mxu0 %v10278
        %11240 = vmatpush.bf16.msra.mxu0 %v10275
        %11241 = vmatmul.bf16.gmra.mxu0 %v8721
        %v11242 = vpop.f32.mrf.mxu0
        %v11243 = vadd.f32 %v11214, %v11242
        %v11244 = vpop.f32.mrf.mxu0
        %v11245 = vadd.f32 %v11216, %v11244
        %11246 = vmatmul.bf16.gmra.mxu0 %v8733
        %v11247 = vpop.f32.mrf.mxu0
        %v11248 = vadd.f32 %v11219, %v11247
        %v11249 = vpop.f32.mrf.mxu0
        %v11250 = vadd.f32 %v11221, %v11249
        %11251 = vmatmul.bf16.gmra.mxu0 %v8745
        %v11252 = vpop.f32.mrf.mxu0
        %v11253 = vadd.f32 %v11224, %v11252
        %v11254 = vpop.f32.mrf.mxu0
        %v11255 = vadd.f32 %v11226, %v11254
        %11256 = vmatmul.bf16.gmra.mxu0 %v8757
        %v11257 = vpop.f32.mrf.mxu0
        %v11258 = vadd.f32 %v11229, %v11257
        %v11259 = vpop.f32.mrf.mxu0
        %v11260 = vadd.f32 %v11231, %v11259
        %11261 = vdwg.mxu0
        %11262 = vmatpush.bf16.msra.mxu0 %v10320
        %11263 = vmatpush.bf16.msra.mxu0 %v10317
        %11264 = vmatpush.bf16.msra.mxu0 %v10314
        %11265 = vmatpush.bf16.msra.mxu0 %v10311
        %11266 = vmatpush.bf16.msra.mxu0 %v10308
        %11267 = vmatpush.bf16.msra.mxu0 %v10305
        %11268 = vmatpush.bf16.msra.mxu0 %v10302
        %11269 = vmatpush.bf16.msra.mxu0 %v10299
        %11270 = vmatmul.bf16.gmra.mxu0 %v8722
        %v11271 = vpop.f32.mrf.mxu0
        %v11272 = vadd.f32 %v11243, %v11271
        %v11273 = vpop.f32.mrf.mxu0
        %v11274 = vadd.f32 %v11245, %v11273
        %11275 = vmatmul.bf16.gmra.mxu0 %v8734
        %v11276 = vpop.f32.mrf.mxu0
        %v11277 = vadd.f32 %v11248, %v11276
        %v11278 = vpop.f32.mrf.mxu0
        %v11279 = vadd.f32 %v11250, %v11278
        %11280 = vmatmul.bf16.gmra.mxu0 %v8746
        %v11281 = vpop.f32.mrf.mxu0
        %v11282 = vadd.f32 %v11253, %v11281
        %v11283 = vpop.f32.mrf.mxu0
        %v11284 = vadd.f32 %v11255, %v11283
        %11285 = vmatmul.bf16.gmra.mxu0 %v8758
        %v11286 = vpop.f32.mrf.mxu0
        %v11287 = vadd.f32 %v11258, %v11286
        %v11288 = vpop.f32.mrf.mxu0
        %v11289 = vadd.f32 %v11260, %v11288
        %11290 = vdwg.mxu0
        %11291 = vmatpush.bf16.msra.mxu0 %v10344
        %11292 = vmatpush.bf16.msra.mxu0 %v10341
        %11293 = vmatpush.bf16.msra.mxu0 %v10338
        %11294 = vmatpush.bf16.msra.mxu0 %v10335
        %11295 = vmatpush.bf16.msra.mxu0 %v10332
        %11296 = vmatpush.bf16.msra.mxu0 %v10329
        %11297 = vmatpush.bf16.msra.mxu0 %v10326
        %11298 = vmatpush.bf16.msra.mxu0 %v10323
        %11299 = vmatmul.bf16.gmra.mxu0 %v8723
        %v11300 = vpop.f32.mrf.mxu0
        %v11301 = vadd.f32 %v11272, %v11300
        %v11302 = vpop.f32.mrf.mxu0
        %v11303 = vadd.f32 %v11274, %v11302
        %11304 = vmatmul.bf16.gmra.mxu0 %v8735
        %v11305 = vpop.f32.mrf.mxu0
        %v11306 = vadd.f32 %v11277, %v11305
        %v11307 = vpop.f32.mrf.mxu0
        %v11308 = vadd.f32 %v11279, %v11307
        %11309 = vmatmul.bf16.gmra.mxu0 %v8747
        %v11310 = vpop.f32.mrf.mxu0
        %v11311 = vadd.f32 %v11282, %v11310
        %v11312 = vpop.f32.mrf.mxu0
        %v11313 = vadd.f32 %v11284, %v11312
        %11314 = vmatmul.bf16.gmra.mxu0 %v8759
        %v11315 = vpop.f32.mrf.mxu0
        %v11316 = vadd.f32 %v11287, %v11315
        %v11317 = vpop.f32.mrf.mxu0
        %v11318 = vadd.f32 %v11289, %v11317
        %11319 = vdwg.mxu0
        %11320 = vmatpush.bf16.msra.mxu0 %v10368
        %11321 = vmatpush.bf16.msra.mxu0 %v10365
        %11322 = vmatpush.bf16.msra.mxu0 %v10362
        %11323 = vmatpush.bf16.msra.mxu0 %v10359
        %11324 = vmatpush.bf16.msra.mxu0 %v10356
        %11325 = vmatpush.bf16.msra.mxu0 %v10353
        %11326 = vmatpush.bf16.msra.mxu0 %v10350
        %11327 = vmatpush.bf16.msra.mxu0 %v10347
        %11328 = vmatmul.bf16.gmra.mxu0 %v8724
        %v11329 = vpop.f32.mrf.mxu0
        %v11330 = vadd.f32 %v11301, %v11329
        %v11331 = vpop.f32.mrf.mxu0
        %v11332 = vadd.f32 %v11303, %v11331
        %11333 = vmatmul.bf16.gmra.mxu0 %v8736
        %v11334 = vpop.f32.mrf.mxu0
        %v11335 = vadd.f32 %v11306, %v11334
        %v11336 = vpop.f32.mrf.mxu0
        %v11337 = vadd.f32 %v11308, %v11336
        %11338 = vmatmul.bf16.gmra.mxu0 %v8748
        %v11339 = vpop.f32.mrf.mxu0
        %v11340 = vadd.f32 %v11311, %v11339
        %v11341 = vpop.f32.mrf.mxu0
        %v11342 = vadd.f32 %v11313, %v11341
        %11343 = vmatmul.bf16.gmra.mxu0 %v8760
        %v11344 = vpop.f32.mrf.mxu0
        %v11345 = vadd.f32 %v11316, %v11344
        %v11346 = vpop.f32.mrf.mxu0
        %v11347 = vadd.f32 %v11318, %v11346
        %11348 = vdwg.mxu0
        %11349 = vmatpush.bf16.msra.mxu0 %v10392
        %11350 = vmatpush.bf16.msra.mxu0 %v10389
        %11351 = vmatpush.bf16.msra.mxu0 %v10386
        %11352 = vmatpush.bf16.msra.mxu0 %v10383
        %11353 = vmatpush.bf16.msra.mxu0 %v10380
        %11354 = vmatpush.bf16.msra.mxu0 %v10377
        %11355 = vmatpush.bf16.msra.mxu0 %v10374
        %11356 = vmatpush.bf16.msra.mxu0 %v10371
        %11357 = vmatmul.bf16.gmra.mxu0 %v8725
        %v11358 = vpop.f32.mrf.mxu0
        %v11359 = vadd.f32 %v11330, %v11358
        %v11360 = vpop.f32.mrf.mxu0
        %v11361 = vadd.f32 %v11332, %v11360
        %11362 = vmatmul.bf16.gmra.mxu0 %v8737
        %v11363 = vpop.f32.mrf.mxu0
        %v11364 = vadd.f32 %v11335, %v11363
        %v11365 = vpop.f32.mrf.mxu0
        %v11366 = vadd.f32 %v11337, %v11365
        %11367 = vmatmul.bf16.gmra.mxu0 %v8749
        %v11368 = vpop.f32.mrf.mxu0
        %v11369 = vadd.f32 %v11340, %v11368
        %v11370 = vpop.f32.mrf.mxu0
        %v11371 = vadd.f32 %v11342, %v11370
        %11372 = vmatmul.bf16.gmra.mxu0 %v8761
        %v11373 = vpop.f32.mrf.mxu0
        %v11374 = vadd.f32 %v11345, %v11373
        %v11375 = vpop.f32.mrf.mxu0
        %v11376 = vadd.f32 %v11347, %v11375
        %11377 = vdwg.mxu0
        %11378 = vmatpush.bf16.msra.mxu0 %v10129
        %11379 = vmatpush.bf16.msra.mxu0 %v10126
        %11380 = vmatpush.bf16.msra.mxu0 %v10123
        %11381 = vmatpush.bf16.msra.mxu0 %v10120
        %11382 = vmatpush.bf16.msra.mxu0 %v10117
        %11383 = vmatpush.bf16.msra.mxu0 %v10114
        %11384 = vmatpush.bf16.msra.mxu0 %v10111
        %11385 = vmatpush.bf16.msra.mxu0 %v10108
        %11386 = vmatmul.bf16.gmra.mxu0 %v8714
        %v11387 = vpop.f32.mrf.mxu0
        %v11388 = vadd.f32 0.0, %v11387
        %v11389 = vpop.f32.mrf.mxu0
        %v11390 = vadd.f32 0.0, %v11389
        %11391 = vmatmul.bf16.gmra.mxu0 %v8726
        %v11392 = vpop.f32.mrf.mxu0
        %v11393 = vadd.f32 0.0, %v11392
        %v11394 = vpop.f32.mrf.mxu0
        %v11395 = vadd.f32 0.0, %v11394
        %11396 = vmatmul.bf16.gmra.mxu0 %v8738
        %v11397 = vpop.f32.mrf.mxu0
        %v11398 = vadd.f32 0.0, %v11397
        %v11399 = vpop.f32.mrf.mxu0
        %v11400 = vadd.f32 0.0, %v11399
        %11401 = vmatmul.bf16.gmra.mxu0 %v8750
        %v11402 = vpop.f32.mrf.mxu0
        %v11403 = vadd.f32 0.0, %v11402
        %v11404 = vpop.f32.mrf.mxu0
        %v11405 = vadd.f32 0.0, %v11404
        %11406 = vdwg.mxu0
        %11407 = vmatpush.bf16.msra.mxu0 %v10153
        %11408 = vmatpush.bf16.msra.mxu0 %v10150
        %11409 = vmatpush.bf16.msra.mxu0 %v10147
        %11410 = vmatpush.bf16.msra.mxu0 %v10144
        %11411 = vmatpush.bf16.msra.mxu0 %v10141
        %11412 = vmatpush.bf16.msra.mxu0 %v10138
        %11413 = vmatpush.bf16.msra.mxu0 %v10135
        %11414 = vmatpush.bf16.msra.mxu0 %v10132
        %11415 = vmatmul.bf16.gmra.mxu0 %v8715
        %v11416 = vpop.f32.mrf.mxu0
        %v11417 = vadd.f32 %v11388, %v11416
        %v11418 = vpop.f32.mrf.mxu0
        %v11419 = vadd.f32 %v11390, %v11418
        %11420 = vmatmul.bf16.gmra.mxu0 %v8727
        %v11421 = vpop.f32.mrf.mxu0
        %v11422 = vadd.f32 %v11393, %v11421
        %v11423 = vpop.f32.mrf.mxu0
        %v11424 = vadd.f32 %v11395, %v11423
        %11425 = vmatmul.bf16.gmra.mxu0 %v8739
        %v11426 = vpop.f32.mrf.mxu0
        %v11427 = vadd.f32 %v11398, %v11426
        %v11428 = vpop.f32.mrf.mxu0
        %v11429 = vadd.f32 %v11400, %v11428
        %11430 = vmatmul.bf16.gmra.mxu0 %v8751
        %v11431 = vpop.f32.mrf.mxu0
        %v11432 = vadd.f32 %v11403, %v11431
        %v11433 = vpop.f32.mrf.mxu0
        %v11434 = vadd.f32 %v11405, %v11433
        %11435 = vdwg.mxu0
        %11436 = vmatpush.bf16.msra.mxu0 %v10177
        %11437 = vmatpush.bf16.msra.mxu0 %v10174
        %11438 = vmatpush.bf16.msra.mxu0 %v10171
        %11439 = vmatpush.bf16.msra.mxu0 %v10168
        %11440 = vmatpush.bf16.msra.mxu0 %v10165
        %11441 = vmatpush.bf16.msra.mxu0 %v10162
        %11442 = vmatpush.bf16.msra.mxu0 %v10159
        %11443 = vmatpush.bf16.msra.mxu0 %v10156
        %11444 = vmatmul.bf16.gmra.mxu0 %v8716
        %v11445 = vpop.f32.mrf.mxu0
        %v11446 = vadd.f32 %v11417, %v11445
        %v11447 = vpop.f32.mrf.mxu0
        %v11448 = vadd.f32 %v11419, %v11447
        %11449 = vmatmul.bf16.gmra.mxu0 %v8728
        %v11450 = vpop.f32.mrf.mxu0
        %v11451 = vadd.f32 %v11422, %v11450
        %v11452 = vpop.f32.mrf.mxu0
        %v11453 = vadd.f32 %v11424, %v11452
        %11454 = vmatmul.bf16.gmra.mxu0 %v8740
        %v11455 = vpop.f32.mrf.mxu0
        %v11456 = vadd.f32 %v11427, %v11455
        %v11457 = vpop.f32.mrf.mxu0
        %v11458 = vadd.f32 %v11429, %v11457
        %11459 = vmatmul.bf16.gmra.mxu0 %v8752
        %v11460 = vpop.f32.mrf.mxu0
        %v11461 = vadd.f32 %v11432, %v11460
        %v11462 = vpop.f32.mrf.mxu0
        %v11463 = vadd.f32 %v11434, %v11462
        %11464 = vdwg.mxu0
        %11465 = vmatpush.bf16.msra.mxu0 %v10201
        %11466 = vmatpush.bf16.msra.mxu0 %v10198
        %11467 = vmatpush.bf16.msra.mxu0 %v10195
        %11468 = vmatpush.bf16.msra.mxu0 %v10192
        %11469 = vmatpush.bf16.msra.mxu0 %v10189
        %11470 = vmatpush.bf16.msra.mxu0 %v10186
        %11471 = vmatpush.bf16.msra.mxu0 %v10183
        %11472 = vmatpush.bf16.msra.mxu0 %v10180
        %11473 = vmatmul.bf16.gmra.mxu0 %v8717
        %v11474 = vpop.f32.mrf.mxu0
        %v11475 = vadd.f32 %v11446, %v11474
        %v11476 = vpop.f32.mrf.mxu0
        %v11477 = vadd.f32 %v11448, %v11476
        %11478 = vmatmul.bf16.gmra.mxu0 %v8729
        %v11479 = vpop.f32.mrf.mxu0
        %v11480 = vadd.f32 %v11451, %v11479
        %v11481 = vpop.f32.mrf.mxu0
        %v11482 = vadd.f32 %v11453, %v11481
        %11483 = vmatmul.bf16.gmra.mxu0 %v8741
        %v11484 = vpop.f32.mrf.mxu0
        %v11485 = vadd.f32 %v11456, %v11484
        %v11486 = vpop.f32.mrf.mxu0
        %v11487 = vadd.f32 %v11458, %v11486
        %11488 = vmatmul.bf16.gmra.mxu0 %v8753
        %v11489 = vpop.f32.mrf.mxu0
        %v11490 = vadd.f32 %v11461, %v11489
        %v11491 = vpop.f32.mrf.mxu0
        %v11492 = vadd.f32 %v11463, %v11491
        %11493 = vdwg.mxu0
        %11494 = vmatpush.bf16.msra.mxu0 %v10225
        %11495 = vmatpush.bf16.msra.mxu0 %v10222
        %11496 = vmatpush.bf16.msra.mxu0 %v10219
        %11497 = vmatpush.bf16.msra.mxu0 %v10216
        %11498 = vmatpush.bf16.msra.mxu0 %v10213
        %11499 = vmatpush.bf16.msra.mxu0 %v10210
        %11500 = vmatpush.bf16.msra.mxu0 %v10207
        %11501 = vmatpush.bf16.msra.mxu0 %v10204
        %11502 = vmatmul.bf16.gmra.mxu0 %v8718
        %v11503 = vpop.f32.mrf.mxu0
        %v11504 = vadd.f32 %v11475, %v11503
        %v11505 = vpop.f32.mrf.mxu0
        %v11506 = vadd.f32 %v11477, %v11505
        %11507 = vmatmul.bf16.gmra.mxu0 %v8730
        %v11508 = vpop.f32.mrf.mxu0
        %v11509 = vadd.f32 %v11480, %v11508
        %v11510 = vpop.f32.mrf.mxu0
        %v11511 = vadd.f32 %v11482, %v11510
        %11512 = vmatmul.bf16.gmra.mxu0 %v8742
        %v11513 = vpop.f32.mrf.mxu0
        %v11514 = vadd.f32 %v11485, %v11513
        %v11515 = vpop.f32.mrf.mxu0
        %v11516 = vadd.f32 %v11487, %v11515
        %11517 = vmatmul.bf16.gmra.mxu0 %v8754
        %v11518 = vpop.f32.mrf.mxu0
        %v11519 = vadd.f32 %v11490, %v11518
        %v11520 = vpop.f32.mrf.mxu0
        %v11521 = vadd.f32 %v11492, %v11520
        %11522 = vdwg.mxu0
        %11523 = vmatpush.bf16.msra.mxu0 %v10249
        %11524 = vmatpush.bf16.msra.mxu0 %v10246
        %11525 = vmatpush.bf16.msra.mxu0 %v10243
        %11526 = vmatpush.bf16.msra.mxu0 %v10240
        %11527 = vmatpush.bf16.msra.mxu0 %v10237
        %11528 = vmatpush.bf16.msra.mxu0 %v10234
        %11529 = vmatpush.bf16.msra.mxu0 %v10231
        %11530 = vmatpush.bf16.msra.mxu0 %v10228
        %11531 = vmatmul.bf16.gmra.mxu0 %v8719
        %v11532 = vpop.f32.mrf.mxu0
        %v11533 = vadd.f32 %v11504, %v11532
        %v11534 = vpop.f32.mrf.mxu0
        %v11535 = vadd.f32 %v11506, %v11534
        %11536 = vmatmul.bf16.gmra.mxu0 %v8731
        %v11537 = vpop.f32.mrf.mxu0
        %v11538 = vadd.f32 %v11509, %v11537
        %v11539 = vpop.f32.mrf.mxu0
        %v11540 = vadd.f32 %v11511, %v11539
        %11541 = vmatmul.bf16.gmra.mxu0 %v8743
        %v11542 = vpop.f32.mrf.mxu0
        %v11543 = vadd.f32 %v11514, %v11542
        %v11544 = vpop.f32.mrf.mxu0
        %v11545 = vadd.f32 %v11516, %v11544
        %11546 = vmatmul.bf16.gmra.mxu0 %v8755
        %v11547 = vpop.f32.mrf.mxu0
        %v11548 = vadd.f32 %v11519, %v11547
        %v11549 = vpop.f32.mrf.mxu0
        %v11550 = vadd.f32 %v11521, %v11549
        %11551 = vdwg.mxu0
        %11552 = vmatpush.bf16.msra.mxu0 %v10273
        %11553 = vmatpush.bf16.msra.mxu0 %v10270
        %11554 = vmatpush.bf16.msra.mxu0 %v10267
        %11555 = vmatpush.bf16.msra.mxu0 %v10264
        %11556 = vmatpush.bf16.msra.mxu0 %v10261
        %11557 = vmatpush.bf16.msra.mxu0 %v10258
        %11558 = vmatpush.bf16.msra.mxu0 %v10255
        %11559 = vmatpush.bf16.msra.mxu0 %v10252
        %11560 = vmatmul.bf16.gmra.mxu0 %v8720
        %v11561 = vpop.f32.mrf.mxu0
        %v11562 = vadd.f32 %v11533, %v11561
        %v11563 = vpop.f32.mrf.mxu0
        %v11564 = vadd.f32 %v11535, %v11563
        %11565 = vmatmul.bf16.gmra.mxu0 %v8732
        %v11566 = vpop.f32.mrf.mxu0
        %v11567 = vadd.f32 %v11538, %v11566
        %v11568 = vpop.f32.mrf.mxu0
        %v11569 = vadd.f32 %v11540, %v11568
        %11570 = vmatmul.bf16.gmra.mxu0 %v8744
        %v11571 = vpop.f32.mrf.mxu0
        %v11572 = vadd.f32 %v11543, %v11571
        %v11573 = vpop.f32.mrf.mxu0
        %v11574 = vadd.f32 %v11545, %v11573
        %11575 = vmatmul.bf16.gmra.mxu0 %v8756
        %v11576 = vpop.f32.mrf.mxu0
        %v11577 = vadd.f32 %v11548, %v11576
        %v11578 = vpop.f32.mrf.mxu0
        %v11579 = vadd.f32 %v11550, %v11578
        %11580 = vdwg.mxu0
        %11581 = vmatpush.bf16.msra.mxu0 %v10297
        %11582 = vmatpush.bf16.msra.mxu0 %v10294
        %11583 = vmatpush.bf16.msra.mxu0 %v10291
        %11584 = vmatpush.bf16.msra.mxu0 %v10288
        %11585 = vmatpush.bf16.msra.mxu0 %v10285
        %11586 = vmatpush.bf16.msra.mxu0 %v10282
        %11587 = vmatpush.bf16.msra.mxu0 %v10279
        %11588 = vmatpush.bf16.msra.mxu0 %v10276
        %11589 = vmatmul.bf16.gmra.mxu0 %v8721
        %v11590 = vpop.f32.mrf.mxu0
        %v11591 = vadd.f32 %v11562, %v11590
        %v11592 = vpop.f32.mrf.mxu0
        %v11593 = vadd.f32 %v11564, %v11592
        %11594 = vmatmul.bf16.gmra.mxu0 %v8733
        %v11595 = vpop.f32.mrf.mxu0
        %v11596 = vadd.f32 %v11567, %v11595
        %v11597 = vpop.f32.mrf.mxu0
        %v11598 = vadd.f32 %v11569, %v11597
        %11599 = vmatmul.bf16.gmra.mxu0 %v8745
        %v11600 = vpop.f32.mrf.mxu0
        %v11601 = vadd.f32 %v11572, %v11600
        %v11602 = vpop.f32.mrf.mxu0
        %v11603 = vadd.f32 %v11574, %v11602
        %11604 = vmatmul.bf16.gmra.mxu0 %v8757
        %v11605 = vpop.f32.mrf.mxu0
        %v11606 = vadd.f32 %v11577, %v11605
        %v11607 = vpop.f32.mrf.mxu0
        %v11608 = vadd.f32 %v11579, %v11607
        %11609 = vdwg.mxu0
        %11610 = vmatpush.bf16.msra.mxu0 %v10321
        %11611 = vmatpush.bf16.msra.mxu0 %v10318
        %11612 = vmatpush.bf16.msra.mxu0 %v10315
        %11613 = vmatpush.bf16.msra.mxu0 %v10312
        %11614 = vmatpush.bf16.msra.mxu0 %v10309
        %11615 = vmatpush.bf16.msra.mxu0 %v10306
        %11616 = vmatpush.bf16.msra.mxu0 %v10303
        %11617 = vmatpush.bf16.msra.mxu0 %v10300
        %11618 = vmatmul.bf16.gmra.mxu0 %v8722
        %v11619 = vpop.f32.mrf.mxu0
        %v11620 = vadd.f32 %v11591, %v11619
        %v11621 = vpop.f32.mrf.mxu0
        %v11622 = vadd.f32 %v11593, %v11621
        %11623 = vmatmul.bf16.gmra.mxu0 %v8734
        %v11624 = vpop.f32.mrf.mxu0
        %v11625 = vadd.f32 %v11596, %v11624
        %v11626 = vpop.f32.mrf.mxu0
        %v11627 = vadd.f32 %v11598, %v11626
        %11628 = vmatmul.bf16.gmra.mxu0 %v8746
        %v11629 = vpop.f32.mrf.mxu0
        %v11630 = vadd.f32 %v11601, %v11629
        %v11631 = vpop.f32.mrf.mxu0
        %v11632 = vadd.f32 %v11603, %v11631
        %11633 = vmatmul.bf16.gmra.mxu0 %v8758
        %v11634 = vpop.f32.mrf.mxu0
        %v11635 = vadd.f32 %v11606, %v11634
        %v11636 = vpop.f32.mrf.mxu0
        %v11637 = vadd.f32 %v11608, %v11636
        %11638 = vdwg.mxu0
        %11639 = vmatpush.bf16.msra.mxu0 %v10345
        %11640 = vmatpush.bf16.msra.mxu0 %v10342
        %11641 = vmatpush.bf16.msra.mxu0 %v10339
        %11642 = vmatpush.bf16.msra.mxu0 %v10336
        %11643 = vmatpush.bf16.msra.mxu0 %v10333
        %11644 = vmatpush.bf16.msra.mxu0 %v10330
        %11645 = vmatpush.bf16.msra.mxu0 %v10327
        %11646 = vmatpush.bf16.msra.mxu0 %v10324
        %11647 = vmatmul.bf16.gmra.mxu0 %v8723
        %v11648 = vpop.f32.mrf.mxu0
        %v11649 = vadd.f32 %v11620, %v11648
        %v11650 = vpop.f32.mrf.mxu0
        %v11651 = vadd.f32 %v11622, %v11650
        %11652 = vmatmul.bf16.gmra.mxu0 %v8735
        %v11653 = vpop.f32.mrf.mxu0
        %v11654 = vadd.f32 %v11625, %v11653
        %v11655 = vpop.f32.mrf.mxu0
        %v11656 = vadd.f32 %v11627, %v11655
        %11657 = vmatmul.bf16.gmra.mxu0 %v8747
        %v11658 = vpop.f32.mrf.mxu0
        %v11659 = vadd.f32 %v11630, %v11658
        %v11660 = vpop.f32.mrf.mxu0
        %v11661 = vadd.f32 %v11632, %v11660
        %11662 = vmatmul.bf16.gmra.mxu0 %v8759
        %v11663 = vpop.f32.mrf.mxu0
        %v11664 = vadd.f32 %v11635, %v11663
        %v11665 = vpop.f32.mrf.mxu0
        %v11666 = vadd.f32 %v11637, %v11665
        %11667 = vdwg.mxu0
        %11668 = vmatpush.bf16.msra.mxu0 %v10369
        %11669 = vmatpush.bf16.msra.mxu0 %v10366
        %11670 = vmatpush.bf16.msra.mxu0 %v10363
        %11671 = vmatpush.bf16.msra.mxu0 %v10360
        %11672 = vmatpush.bf16.msra.mxu0 %v10357
        %11673 = vmatpush.bf16.msra.mxu0 %v10354
        %11674 = vmatpush.bf16.msra.mxu0 %v10351
        %11675 = vmatpush.bf16.msra.mxu0 %v10348
        %11676 = vmatmul.bf16.gmra.mxu0 %v8724
        %v11677 = vpop.f32.mrf.mxu0
        %v11678 = vadd.f32 %v11649, %v11677
        %v11679 = vpop.f32.mrf.mxu0
        %v11680 = vadd.f32 %v11651, %v11679
        %11681 = vmatmul.bf16.gmra.mxu0 %v8736
        %v11682 = vpop.f32.mrf.mxu0
        %v11683 = vadd.f32 %v11654, %v11682
        %v11684 = vpop.f32.mrf.mxu0
        %v11685 = vadd.f32 %v11656, %v11684
        %11686 = vmatmul.bf16.gmra.mxu0 %v8748
        %v11687 = vpop.f32.mrf.mxu0
        %v11688 = vadd.f32 %v11659, %v11687
        %v11689 = vpop.f32.mrf.mxu0
        %v11690 = vadd.f32 %v11661, %v11689
        %11691 = vmatmul.bf16.gmra.mxu0 %v8760
        %v11692 = vpop.f32.mrf.mxu0
        %v11693 = vadd.f32 %v11664, %v11692
        %v11694 = vpop.f32.mrf.mxu0
        %v11695 = vadd.f32 %v11666, %v11694
        %11696 = vdwg.mxu0
        %11697 = vmatpush.bf16.msra.mxu0 %v10393
        %11698 = vmatpush.bf16.msra.mxu0 %v10390
        %11699 = vmatpush.bf16.msra.mxu0 %v10387
        %11700 = vmatpush.bf16.msra.mxu0 %v10384
        %11701 = vmatpush.bf16.msra.mxu0 %v10381
        %11702 = vmatpush.bf16.msra.mxu0 %v10378
        %11703 = vmatpush.bf16.msra.mxu0 %v10375
        %11704 = vmatpush.bf16.msra.mxu0 %v10372
        %11705 = vmatmul.bf16.gmra.mxu0 %v8725
        %v11706 = vpop.f32.mrf.mxu0
        %v11707 = vadd.f32 %v11678, %v11706
        %v11708 = vpop.f32.mrf.mxu0
        %v11709 = vadd.f32 %v11680, %v11708
        %11710 = vmatmul.bf16.gmra.mxu0 %v8737
        %v11711 = vpop.f32.mrf.mxu0
        %v11712 = vadd.f32 %v11683, %v11711
        %v11713 = vpop.f32.mrf.mxu0
        %v11714 = vadd.f32 %v11685, %v11713
        %11715 = vmatmul.bf16.gmra.mxu0 %v8749
        %v11716 = vpop.f32.mrf.mxu0
        %v11717 = vadd.f32 %v11688, %v11716
        %v11718 = vpop.f32.mrf.mxu0
        %v11719 = vadd.f32 %v11690, %v11718
        %11720 = vmatmul.bf16.gmra.mxu0 %v8761
        %v11721 = vpop.f32.mrf.mxu0
        %v11722 = vadd.f32 %v11693, %v11721
        %v11723 = vpop.f32.mrf.mxu0
        %v11724 = vadd.f32 %v11695, %v11723
        %11725 = vdwg.mxu0
        %v11726 = vadd.f32 %v5478, %v11011
        %v11727 = vadd.f32 %v5479, %v11359
        %v11728 = vadd.f32 %v5480, %v11707
        %v11729 = vadd.f32 %v5481, %v11013
        %v11730 = vadd.f32 %v5482, %v11361
        %v11731 = vadd.f32 %v5483, %v11709
        %v11732 = vadd.f32 %v5484, %v11016
        %v11733 = vadd.f32 %v5485, %v11364
        %v11734 = vadd.f32 %v5486, %v11712
        %v11735 = vadd.f32 %v5487, %v11018
        %v11736 = vadd.f32 %v5488, %v11366
        %v11737 = vadd.f32 %v5489, %v11714
        %v11738 = vadd.f32 %v5490, %v11021
        %v11739 = vadd.f32 %v5491, %v11369
        %v11740 = vadd.f32 %v5492, %v11717
        %v11741 = vadd.f32 %v5493, %v11023
        %v11742 = vadd.f32 %v5494, %v11371
        %v11743 = vadd.f32 %v5495, %v11719
        %v11744 = vadd.f32 %v5496, %v11026
        %v11745 = vadd.f32 %v5497, %v11374
        %v11746 = vadd.f32 %v5498, %v11722
        %v11747 = vadd.f32 %v5499, %v11028
        %v11748 = vadd.f32 %v5500, %v11376
        %v11749 = vadd.f32 %v5501, %v11724
        %v11750 = vld [vmem:[#allocation21] sm:$0x7]
        %v11752 = vperm.slane %v11750, 0
        %v11753 = vperm.slane %v11750, 1
        %v11754 = vperm.slane %v11750, 2
        %v11758 = vadd.f32 %v11726, %v11752
        %v11759 = vadd.f32 %v11727, %v11753
        %v11760 = vadd.f32 %v11728, %v11754
        %v11761 = vadd.f32 %v11729, %v11752
        %v11762 = vadd.f32 %v11730, %v11753
        %v11763 = vadd.f32 %v11731, %v11754
        %v11764 = vadd.f32 %v11732, %v11752
        %v11765 = vadd.f32 %v11733, %v11753
        %v11766 = vadd.f32 %v11734, %v11754
        %v11767 = vadd.f32 %v11735, %v11752
        %v11768 = vadd.f32 %v11736, %v11753
        %v11769 = vadd.f32 %v11737, %v11754
        %v11770 = vadd.f32 %v11738, %v11752
        %v11771 = vadd.f32 %v11739, %v11753
        %v11772 = vadd.f32 %v11740, %v11754
        %v11773 = vadd.f32 %v11741, %v11752
        %v11774 = vadd.f32 %v11742, %v11753
        %v11775 = vadd.f32 %v11743, %v11754
        %v11776 = vadd.f32 %v11744, %v11752
        %v11777 = vadd.f32 %v11745, %v11753
        %v11778 = vadd.f32 %v11746, %v11754
        %v11779 = vadd.f32 %v11747, %v11752
        %v11780 = vadd.f32 %v11748, %v11753
        %v11781 = vadd.f32 %v11749, %v11754
        %11782 = vst [vmem:[%s602] sm:$0xff] %v11758
        %11783 = vst [vmem:[%s602 + $0x8] sm:$0xff] %v11759
        %11784 = vst [vmem:[%s602 + $0x10] sm:$0xff] %v11760
        %11785 = vst [vmem:[%s602 + $0x18] sm:$0xff] %v11761
        %11786 = vst [vmem:[%s602 + $0x20] sm:$0xff] %v11762
        %11787 = vst [vmem:[%s602 + $0x28] sm:$0xff] %v11763
        %11788 = vst [vmem:[%s602 + $0x30] sm:$0xff] %v11764
        %11789 = vst [vmem:[%s602 + $0x38] sm:$0xff] %v11765
        %11790 = vst [vmem:[%s602 + $0x40] sm:$0xff] %v11766
        %11791 = vst [vmem:[%s602 + $0x48] sm:$0xff] %v11767
        %11792 = vst [vmem:[%s602 + $0x50] sm:$0xff] %v11768
        %11793 = vst [vmem:[%s602 + $0x58] sm:$0xff] %v11769
        %11794 = vst [vmem:[%s602 + $0x60] sm:$0xff] %v11770
        %11795 = vst [vmem:[%s602 + $0x68] sm:$0xff] %v11771
        %11796 = vst [vmem:[%s602 + $0x70] sm:$0xff] %v11772
        %11797 = vst [vmem:[%s602 + $0x78] sm:$0xff] %v11773
        %11798 = vst [vmem:[%s602 + $0x80] sm:$0xff] %v11774
        %11799 = vst [vmem:[%s602 + $0x88] sm:$0xff] %v11775
        %11800 = vst [vmem:[%s602 + $0x90] sm:$0xff] %v11776
        %11801 = vst [vmem:[%s602 + $0x98] sm:$0xff] %v11777
        %11802 = vst [vmem:[%s602 + $0xa0] sm:$0xff] %v11778
        %11803 = vst [vmem:[%s602 + $0xa8] sm:$0xff] %v11779
        %11804 = vst [vmem:[%s602 + $0xb0] sm:$0xff] %v11780
        %11805 = vst [vmem:[%s602 + $0xb8] sm:$0xff] %v11781
        %s11806 = sand.u32 %s300, 1
        %s11807 = scalar_lea.sflag [#allocation5], %s11806
        %s11808 = sand.u32 %s300, 1
        %s11809 = smul.addr %s11808, 192
        %s11810 = scalar_lea.vmem [#allocation23], %s11809
        // Predicated region
        $region117: #{tpu_custom_call.1} parent=67 // pred_check
          %p11811 = pneg %p310
        $region118: #{tpu_custom_call.1} parent=67 // pred_check_branch
          %11813 = sbr.rel (%p11811) target = $region120
        $region119: #{tpu_custom_call.1} parent=67 // pred_region
          %s11814 = smul.u32 8, %s35
          %11816 = vsyncadd %s11807, 0
          %s11817 = smul.addr %s11814, 3
          %s11818 = smul.addr %s11817, 8
          %s11819 = scalar_lea.hbm %s12, %s11818
          %s11820 = sshll.u32 %s11810, 4
          %s11821 = int_to_ptr.vmem [resolvable:$true] %s11820
          %s11822 = sshll.u32 %s11819, 4
          %s11823 = int_to_ptr.hbm [resolvable:$true] %s11822
          %11828 = dma.vmem_to_hbm [thread:$0]  %s11821, 3072, %s11823, %s11807, 384, 384, 24
        $region120: #{tpu_custom_call.1} parent=67 // pred_fallthru
          _
      $region68: #{tpu_custom_call.1} parent=5 // pred_fallthru
        _
      %p11829 = scmp.le.s32.totalorder 2, %s30
      // Predicated region
      $region121: #{tpu_custom_call.1} parent=5 // pred_check
        %p11830 = pneg %p11829
      $region122: #{tpu_custom_call.1} parent=5 // pred_check_branch
        %11832 = sbr.rel (%p11830) target = $region124
      $region123: #{tpu_custom_call.1} parent=5 // pred_region
        %s11833 = ssub.s32 %s30, 2
        // Predicated region
        $region125: #{tpu_custom_call.1} parent=123 // pred_check
          %p11834 = pneg %p316
        $region126: #{tpu_custom_call.1} parent=123 // pred_check_branch
          %11836 = sbr.rel (%p11834) target = $region128
        $region127: #{tpu_custom_call.1} parent=123 // pred_region
          %s11837 = sand.u32 %s301, 1
          %s11838 = scalar_lea.sflag [#allocation5], %s11837
          %s11839 = sand.u32 %s301, 1
          %s11840 = smul.addr %s11839, 192
          %s11841 = scalar_lea.vmem [#allocation23], %s11840
          %11843 = dma.done %s11838, 3072
        $region128: #{tpu_custom_call.1} parent=123 // pred_fallthru
          _
      $region124: #{tpu_custom_call.1} parent=5 // pred_fallthru
        _
    $region6: #{tpu_custom_call.1} parent=1 // loop_footer
      %s34 = sadd.s32 1, %s30
    $region7: #{tpu_custom_call.1} parent=1 // loop_footer_branch
      %29 = sbr.rel target = $region3
    $region8: #{tpu_custom_call.1} parent=1 // loop_exit
      _
    %11844 = vsyncpa [#allocation4], 1
    %s11845 = scalar_lea.sflag [#allocation4], 1
    %11846 = vsyncpa %s11845, 1
    %11847 = vsyncpa [#allocation7], 1
    %11848 = vsyncpa [#allocation10], 1
    %11849 = vsyncpa [#allocation13], 1
    %11850 = vsyncpa [#allocation16], 1
    %11851 = vsyncpa [#allocation19], 1
    %11852 = vsyncpa [#allocation22], 1
    %11853 = vsyncpa [#allocation5], 1
    %s11854 = scalar_lea.sflag [#allocation5], 1
    %11855 = vsyncpa %s11854, 1

</llo_original>
